<compile_context>
chip_gen: v6e
topology: v6e:2x2x1
jax: 0.10.0
libtpu: 0.0.40
codegen_flags: <defaults>
</compile_context>

<pallas_src>
import numpy as np
import jax
import jax.numpy as jnp
from jax.experimental import pallas as pl
from jax.experimental.pallas import tpu as pltpu

LEAK = 0.2     # LeakyReLU negative slope
EPS = 1e-5     # InstanceNorm2d eps (PyTorch default, affine=False)


# ------------------------------ kernel helpers ------------------------------

def _instance_norm_lrelu(a):
    """a: (M, C) f32 for one sample.  InstanceNorm2d(affine=False) + LeakyReLU."""
    mu = jnp.mean(a, axis=0, keepdims=True)
    xc = a - mu
    var = jnp.mean(xc * xc, axis=0, keepdims=True)        # biased variance (torch)
    y = xc * jax.lax.rsqrt(var + EPS)                      # EUP rsqrt
    return jnp.where(y >= 0, y, LEAK * y)


def _conv_in_lrelu(x_f32, p_ref, w_ref, b_ref):
    """3x3 'same' conv (stride folded into P) + InstanceNorm + LeakyReLU.

    x_f32 : (Min, Cin)  f32 activation of the previous layer
    p_ref : (9, Mout, Min) bf16 0/1 tap-selection matrices (stride + zero pad)
    w_ref : (9, Cin, Cout) bf16 tap weights
    b_ref : (1, Cout)      f32 bias
    """
    xb = x_f32.astype(jnp.bfloat16)
    mout = p_ref.shape[1]
    cout = w_ref.shape[2]
    acc = jnp.zeros((mout, cout), jnp.float32)
    for t in range(9):
        # MXU gather of the shifted/subsampled rows (exact: P is 0/1).
        g = jnp.dot(p_ref[t], xb, preferred_element_type=jnp.float32)
        acc = acc + jnp.dot(g.astype(jnp.bfloat16), w_ref[t],
                            preferred_element_type=jnp.float32)
    acc = acc + b_ref[...]
    return _instance_norm_lrelu(acc)


def _discriminator_kernel(x1_ref,                 # (1, M1, 9)  bf16  im2col(img)
                          w1_ref, b1_ref,         # (9, 64) bf16, (1, 64) f32
                          p2_ref, w2_ref, b2_ref, # (9,M2,M1), (9,64,128), (1,128)
                          p3_ref, w3_ref, b3_ref, # (9,M3,M2), (9,128,256), (1,256)
                          p4_ref, w4_ref, b4_ref, # (9,M4,M3), (9,256,512), (1,512)
                          p5_ref, w5_ref, b5_ref, # (9,M5,M4), (9,1,512), (1,) SMEM
                          o_ref):                 # (1, 1, 128) f32
    # ---- layer 1: Conv(1->64, s2) via host-side im2col (Cin=1 special case)
    a = jnp.dot(x1_ref[0], w1_ref[...], preferred_element_type=jnp.float32)
    a = _instance_norm_lrelu(a + b1_ref[...])                 # (M1, 64)

    # ---- layers 2..4: strided convs as gather-matmul + tap matmul
    a = _conv_in_lrelu(a, p2_ref, w2_ref, b2_ref)             # (M2, 128)
    a = _conv_in_lrelu(a, p3_ref, w3_ref, b3_ref)             # (M3, 256)
    a = _conv_in_lrelu(a, p4_ref, w4_ref, b4_ref)             # (M4, 512)

    # ---- layer 5: Conv(512->1, s1).  Cout=1 -> VPU multiply + lane reduction.
    xb = a.astype(jnp.bfloat16)
    m5 = p5_ref.shape[1]
    acc = jnp.zeros((m5, a.shape[1]), jnp.float32)
    for t in range(9):
        g = jnp.dot(p5_ref[t], xb, preferred_element_type=jnp.float32)  # (M5, 512)
        acc = acc + g * w5_ref[t].astype(jnp.float32)                   # (1,512) bcast
    pix = jnp.sum(acc, axis=1, keepdims=True) + b5_ref[0]               # (M5, 1)

    # ---- torch.mean over (C, H, W)  (C == 1 here)
    score = jnp.sum(pix) * (1.0 / m5)
    o_ref[...] = jnp.broadcast_to(score, o_ref.shape).astype(o_ref.dtype)


# ------------------------------ host-side setup ------------------------------

def _conv_out(sz, stride, ksize=3, pad=1):
    return (sz + 2 * pad - ksize) // stride + 1


def _make_selection(hin, win, stride, ksize=3, pad=1):
    """Per-tap 0/1 matrices mapping flat input (hin*win) -> flat output rows."""
    hout, wout = _conv_out(hin, stride, ksize, pad), _conv_out(win, stride, ksize, pad)
    sel = np.zeros((ksize * ksize, hout * wout, hin * win), np.float32)
    for kh in range(ksize):
        for kw in range(ksize):
            t = kh * ksize + kw
            for oh in range(hout):
                ih = stride * oh + kh - pad
                if not (0 <= ih < hin):
                    continue
                for ow in range(wout):
                    iw = stride * ow + kw - pad
                    if 0 <= iw < win:
                        sel[t, oh * wout + ow, ih * win + iw] = 1.0
    return jnp.asarray(sel, jnp.bfloat16), (hout, wout)


def _im2col_l1(x, stride=2, ksize=3, pad=1):
    """x: (N, H, W) raw image -> (N, Hout*Wout, 9) patches for the Cin=1 conv."""
    n, h, w = x.shape
    hout, wout = _conv_out(h, stride, ksize, pad), _conv_out(w, stride, ksize, pad)
    xp = jnp.pad(x, ((0, 0), (pad, pad), (pad, pad)))
    cols = []
    for kh in range(ksize):
        for kw in range(ksize):
            cols.append(xp[:, kh:kh + stride * hout:stride,
                           kw:kw + stride * wout:stride])
    col = jnp.stack(cols, axis=-1)                     # (N, Hout, Wout, 9)
    return col.reshape(n, hout * wout, ksize * ksize)


def init_params(key):
    dims = [(1, 64), (64, 128), (128, 256), (256, 512), (512, 1)]
    params = {}
    keys = jax.random.split(key, 2 * len(dims))
    for i, (cin, cout) in enumerate(dims):
        fan_in = 9 * cin
        params[f"w{i + 1}"] = (jax.random.normal(keys[2 * i], (9, cin, cout),
                                                 jnp.float32) * fan_in ** -0.5)
        params[f"b{i + 1}"] = (jax.random.normal(keys[2 * i + 1], (cout,),
                                                 jnp.float32) * 0.05)
    return params


@jax.jit
def discriminator_forward(img, params):
    """img: (N, 1, H, W) f32 NCHW -> (N,) f32, matching the PyTorch module."""
    n, c, h, w = img.shape
    assert c == 1

    x1col = _im2col_l1(img[:, 0]).astype(jnp.bfloat16)        # (N, M1, 9)
    m1 = x1col.shape[1]

    h1, w1sp = _conv_out(h, 2), _conv_out(w, 2)
    sel2, (h2, w2sp) = _make_selection(h1, w1sp, stride=2)
    sel3, (h3, w3sp) = _make_selection(h2, w2sp, stride=2)
    sel4, (h4, w4sp) = _make_selection(h3, w3sp, stride=2)
    sel5, _ = _make_selection(h4, w4sp, stride=1)

    bf = jnp.bfloat16
    w1 = params["w1"].reshape(9, 64).astype(bf)
    w2 = params["w2"].astype(bf)
    w3 = params["w3"].astype(bf)
    w4 = params["w4"].astype(bf)
    w5 = params["w5"].reshape(9, 1, 512).astype(bf)
    b1 = params["b1"].reshape(1, -1)
    b2 = params["b2"].reshape(1, -1)
    b3 = params["b3"].reshape(1, -1)
    b4 = params["b4"].reshape(1, -1)
    b5 = params["b5"].reshape(1)

    def full(shape):
        return pl.BlockSpec(shape, lambda i, _s=len(shape): (0,) * _s)

    out = pl.pallas_call(
        _discriminator_kernel,
        out_shape=jax.ShapeDtypeStruct((n, 1, 128), jnp.float32),
        grid=(n,),
        in_specs=[
            pl.BlockSpec((1, m1, 9), lambda i: (i, 0, 0)),
            full(w1.shape), full(b1.shape),
            full(sel2.shape), full(w2.shape), full(b2.shape),
            full(sel3.shape), full(w3.shape), full(b3.shape),
            full(sel4.shape), full(w4.shape), full(b4.shape),
            full(sel5.shape), full(w5.shape),
            pl.BlockSpec(memory_space=pltpu.SMEM),                 # b5 scalar
        ],
        out_specs=pl.BlockSpec((1, 1, 128), lambda i: (i, 0, 0)),
        compiler_params=pltpu.CompilerParams(
            dimension_semantics=("parallel",)),                    # v7x: 2 TCs
    )(x1col, w1, b1, sel2, w2, b2, sel3, w3, b3, sel4, w4, b4, sel5, w5, b5)

    return out[:, 0, 0]


# ------------------------- pure-JAX reference (check) ------------------------

def discriminator_reference(img, params):
    """Same math (bf16 matmul inputs, f32 accumulation) with lax.conv."""
    x = jnp.transpose(img, (0, 2, 3, 1)).astype(jnp.float32)       # NHWC
    cfg = [(2, True), (2, True), (2, True), (2, True), (1, False)]
    for i, (stride, norm) in enumerate(cfg):
        wt = params[f"w{i + 1}"]
        cin, cout = wt.shape[1], wt.shape[2]
        wk = wt.reshape(3, 3, cin, cout).astype(jnp.bfloat16)
        y = jax.lax.conv_general_dilated(
            x.astype(jnp.bfloat16), wk,
            window_strides=(stride, stride), padding=((1, 1), (1, 1)),
            dimension_numbers=("NHWC", "HWIO", "NHWC"),
            preferred_element_type=jnp.float32)
        y = y + params[f"b{i + 1}"]
        if norm:
            mu = jnp.mean(y, axis=(1, 2), keepdims=True)
            var = jnp.mean((y - mu) ** 2, axis=(1, 2), keepdims=True)
            y = (y - mu) * jax.lax.rsqrt(var + EPS)
            y = jnp.where(y >= 0, y, LEAK * y)
        x = y
    return jnp.mean(x, axis=(1, 2, 3))


if __name__ == "__main__":
    key = jax.random.PRNGKey(0)
    k_img, k_par = jax.random.split(key)

    img = jax.random.normal(k_img, (2, 1, 32, 32), jnp.float32)    # NCHW like torch
    params = init_params(k_par)

    out = discriminator_forward(img, params)
    out = jax.block_until_ready(out)

    assert out.shape == (2,), out.shape
    assert out.dtype == jnp.float32
    assert bool(jnp.all(jnp.isfinite(out)))

    ref = jax.block_until_ready(discriminator_reference(img, params))
    err = float(jnp.max(jnp.abs(out - ref)))
    assert err < 2e-2, f"mismatch vs reference: {err}"

    print("KERNEL_OK")
</pallas_src>

<mosaic_0001>
module attributes {stable_mosaic.version = 11 : i64} {
  func.func @_discriminator_kernel(%arg0: i32, %arg1: memref<1x256x9xbf16, #tpu.memory_space<vmem>>, %arg2: memref<9x64xbf16, #tpu.memory_space<vmem>>, %arg3: memref<1x64xf32, #tpu.memory_space<vmem>>, %arg4: memref<9x64x256xbf16, #tpu.memory_space<vmem>>, %arg5: memref<9x64x128xbf16, #tpu.memory_space<vmem>>, %arg6: memref<1x128xf32, #tpu.memory_space<vmem>>, %arg7: memref<9x16x64xbf16, #tpu.memory_space<vmem>>, %arg8: memref<9x128x256xbf16, #tpu.memory_space<vmem>>, %arg9: memref<1x256xf32, #tpu.memory_space<vmem>>, %arg10: memref<9x4x16xbf16, #tpu.memory_space<vmem>>, %arg11: memref<9x256x512xbf16, #tpu.memory_space<vmem>>, %arg12: memref<1x512xf32, #tpu.memory_space<vmem>>, %arg13: memref<9x4x4xbf16, #tpu.memory_space<vmem>>, %arg14: memref<9x1x512xbf16, #tpu.memory_space<vmem>>, %arg15: memref<1xf32, #tpu.memory_space<smem>>, %arg16: memref<1x1x128xf32, #tpu.memory_space<vmem>>) attributes {dimension_semantics = [#tpu.dimension_semantics<parallel>], iteration_bounds = array<i64: 2>, scalar_prefetch = 0 : i64, scratch_operands = 0 : i64, tpu.core_type = #tpu.core_type<tc>, window_params = [{transform_indices = @transform_0, window_bounds = array<i64: 1, 256, 9>}, {pipeline_mode = #tpu.pipeline_mode<synchronous>, transform_indices = @transform_1, window_bounds = array<i64: 9, 64>}, {pipeline_mode = #tpu.pipeline_mode<synchronous>, transform_indices = @transform_2, window_bounds = array<i64: 1, 64>}, {pipeline_mode = #tpu.pipeline_mode<synchronous>, transform_indices = @transform_3, window_bounds = array<i64: 9, 64, 256>}, {pipeline_mode = #tpu.pipeline_mode<synchronous>, transform_indices = @transform_4, window_bounds = array<i64: 9, 64, 128>}, {pipeline_mode = #tpu.pipeline_mode<synchronous>, transform_indices = @transform_5, window_bounds = array<i64: 1, 128>}, {pipeline_mode = #tpu.pipeline_mode<synchronous>, transform_indices = @transform_6, window_bounds = array<i64: 9, 16, 64>}, {pipeline_mode = #tpu.pipeline_mode<synchronous>, transform_indices = @transform_7, window_bounds = array<i64: 9, 128, 256>}, {pipeline_mode = #tpu.pipeline_mode<synchronous>, transform_indices = @transform_8, window_bounds = array<i64: 1, 256>}, {pipeline_mode = #tpu.pipeline_mode<synchronous>, transform_indices = @transform_9, window_bounds = array<i64: 9, 4, 16>}, {pipeline_mode = #tpu.pipeline_mode<synchronous>, transform_indices = @transform_10, window_bounds = array<i64: 9, 256, 512>}, {pipeline_mode = #tpu.pipeline_mode<synchronous>, transform_indices = @transform_11, window_bounds = array<i64: 1, 512>}, {pipeline_mode = #tpu.pipeline_mode<synchronous>, transform_indices = @transform_12, window_bounds = array<i64: 9, 4, 4>}, {pipeline_mode = #tpu.pipeline_mode<synchronous>, transform_indices = @transform_13, window_bounds = array<i64: 9, 1, 512>}, {transform_indices = @transform_14, window_bounds = array<i64: 1>}, {transform_indices = @transform_15, window_bounds = array<i64: 1, 1, 128>}]} {
    %c0 = arith.constant 0 : index
    %c0_0 = arith.constant 0 : index
    %c0_1 = arith.constant 0 : index
    %0 = vector.load %arg1[%c0, %c0_0, %c0_1] : memref<1x256x9xbf16, #tpu.memory_space<vmem>>, vector<1x256x9xbf16>
    %1 = vector.shape_cast %0 : vector<1x256x9xbf16> to vector<256x9xbf16>
    %c0_2 = arith.constant 0 : index
    %c0_3 = arith.constant 0 : index
    %2 = vector.load %arg2[%c0_2, %c0_3] : memref<9x64xbf16, #tpu.memory_space<vmem>>, vector<9x64xbf16>
    %cst = arith.constant dense<0.000000e+00> : vector<256x64xf32>
    %3 = tpu.matmul %1, %2, %cst {dimension_numbers = #tpu.dot_dimension_numbers<[1], [0], [0], [1], [0, 0, 1, 1], [], []>} : vector<256x9xbf16>, vector<9x64xbf16>, vector<256x64xf32> -> vector<256x64xf32>
    %c0_4 = arith.constant 0 : index
    %c0_5 = arith.constant 0 : index
    %4 = vector.load %arg3[%c0_4, %c0_5] : memref<1x64xf32, #tpu.memory_space<vmem>>, vector<1x64xf32>
    %5 = vector.broadcast %4 : vector<1x64xf32> to vector<256x64xf32>
    %6 = arith.addf %3, %5 : vector<256x64xf32>
    %cst_6 = arith.constant dense<0.000000e+00> : vector<64xf32>
    %7 = vector.multi_reduction <add>, %6, %cst_6 [0] : vector<256x64xf32> to vector<64xf32>
    %8 = vector.shape_cast %7 : vector<64xf32> to vector<1x64xf32>
    %cst_7 = arith.constant 2.560000e+02 : f32
    %9 = vector.broadcast %cst_7 : f32 to vector<1x64xf32>
    %10 = arith.divf %8, %9 : vector<1x64xf32>
    %11 = vector.broadcast %10 : vector<1x64xf32> to vector<256x64xf32>
    %12 = arith.subf %6, %11 : vector<256x64xf32>
    %13 = arith.mulf %12, %12 : vector<256x64xf32>
    %cst_8 = arith.constant dense<0.000000e+00> : vector<64xf32>
    %14 = vector.multi_reduction <add>, %13, %cst_8 [0] : vector<256x64xf32> to vector<64xf32>
    %15 = vector.shape_cast %14 : vector<64xf32> to vector<1x64xf32>
    %cst_9 = arith.constant 2.560000e+02 : f32
    %16 = vector.broadcast %cst_9 : f32 to vector<1x64xf32>
    %17 = arith.divf %15, %16 : vector<1x64xf32>
    %cst_10 = arith.constant 9.99999974E-6 : f32
    %18 = vector.broadcast %cst_10 : f32 to vector<1x64xf32>
    %19 = arith.addf %17, %18 : vector<1x64xf32>
    %20 = math.rsqrt %19 : vector<1x64xf32>
    %21 = vector.broadcast %20 : vector<1x64xf32> to vector<256x64xf32>
    %22 = arith.mulf %12, %21 : vector<256x64xf32>
    %cst_11 = arith.constant 0.000000e+00 : f32
    %23 = vector.broadcast %cst_11 : f32 to vector<256x64xf32>
    %24 = arith.cmpf oge, %22, %23 : vector<256x64xf32>
    %cst_12 = arith.constant 2.000000e-01 : f32
    %25 = vector.broadcast %cst_12 : f32 to vector<256x64xf32>
    %26 = arith.mulf %25, %22 : vector<256x64xf32>
    %27 = arith.select %24, %22, %26 : vector<256x64xi1>, vector<256x64xf32>
    %28 = arith.truncf %27 : vector<256x64xf32> to vector<256x64xbf16>
    %cst_13 = arith.constant 0.000000e+00 : f32
    %29 = vector.broadcast %cst_13 : f32 to vector<64x128xf32>
    %c0_14 = arith.constant 0 : index
    %c0_15 = arith.constant 0 : index
    %c0_16 = arith.constant 0 : index
    %30 = vector.load %arg4[%c0_14, %c0_15, %c0_16] : memref<9x64x256xbf16, #tpu.memory_space<vmem>>, vector<1x64x256xbf16>
    %31 = vector.shape_cast %30 : vector<1x64x256xbf16> to vector<64x256xbf16>
    %cst_17 = arith.constant dense<0.000000e+00> : vector<64x64xf32>
    %32 = tpu.matmul %31, %28, %cst_17 {dimension_numbers = #tpu.dot_dimension_numbers<[1], [0], [0], [1], [0, 0, 1, 1], [], []>} : vector<64x256xbf16>, vector<256x64xbf16>, vector<64x64xf32> -> vector<64x64xf32>
    %33 = arith.truncf %32 : vector<64x64xf32> to vector<64x64xbf16>
    %c0_18 = arith.constant 0 : index
    %c0_19 = arith.constant 0 : index
    %c0_20 = arith.constant 0 : index
    %34 = vector.load %arg5[%c0_18, %c0_19, %c0_20] : memref<9x64x128xbf16, #tpu.memory_space<vmem>>, vector<1x64x128xbf16>
    %35 = vector.shape_cast %34 : vector<1x64x128xbf16> to vector<64x128xbf16>
    %cst_21 = arith.constant dense<0.000000e+00> : vector<64x128xf32>
    %36 = tpu.matmul %33, %35, %cst_21 {dimension_numbers = #tpu.dot_dimension_numbers<[1], [0], [0], [1], [0, 0, 1, 1], [], []>} : vector<64x64xbf16>, vector<64x128xbf16>, vector<64x128xf32> -> vector<64x128xf32>
    %37 = arith.addf %29, %36 : vector<64x128xf32>
    %c1 = arith.constant 1 : index
    %c0_22 = arith.constant 0 : index
    %c0_23 = arith.constant 0 : index
    %38 = vector.load %arg4[%c1, %c0_22, %c0_23] : memref<9x64x256xbf16, #tpu.memory_space<vmem>>, vector<1x64x256xbf16>
    %39 = vector.shape_cast %38 : vector<1x64x256xbf16> to vector<64x256xbf16>
    %cst_24 = arith.constant dense<0.000000e+00> : vector<64x64xf32>
    %40 = tpu.matmul %39, %28, %cst_24 {dimension_numbers = #tpu.dot_dimension_numbers<[1], [0], [0], [1], [0, 0, 1, 1], [], []>} : vector<64x256xbf16>, vector<256x64xbf16>, vector<64x64xf32> -> vector<64x64xf32>
    %41 = arith.truncf %40 : vector<64x64xf32> to vector<64x64xbf16>
    %c1_25 = arith.constant 1 : index
    %c0_26 = arith.constant 0 : index
    %c0_27 = arith.constant 0 : index
    %42 = vector.load %arg5[%c1_25, %c0_26, %c0_27] : memref<9x64x128xbf16, #tpu.memory_space<vmem>>, vector<1x64x128xbf16>
    %43 = vector.shape_cast %42 : vector<1x64x128xbf16> to vector<64x128xbf16>
    %cst_28 = arith.constant dense<0.000000e+00> : vector<64x128xf32>
    %44 = tpu.matmul %41, %43, %cst_28 {dimension_numbers = #tpu.dot_dimension_numbers<[1], [0], [0], [1], [0, 0, 1, 1], [], []>} : vector<64x64xbf16>, vector<64x128xbf16>, vector<64x128xf32> -> vector<64x128xf32>
    %45 = arith.addf %37, %44 : vector<64x128xf32>
    %c2 = arith.constant 2 : index
    %c0_29 = arith.constant 0 : index
    %c0_30 = arith.constant 0 : index
    %46 = vector.load %arg4[%c2, %c0_29, %c0_30] : memref<9x64x256xbf16, #tpu.memory_space<vmem>>, vector<1x64x256xbf16>
    %47 = vector.shape_cast %46 : vector<1x64x256xbf16> to vector<64x256xbf16>
    %cst_31 = arith.constant dense<0.000000e+00> : vector<64x64xf32>
    %48 = tpu.matmul %47, %28, %cst_31 {dimension_numbers = #tpu.dot_dimension_numbers<[1], [0], [0], [1], [0, 0, 1, 1], [], []>} : vector<64x256xbf16>, vector<256x64xbf16>, vector<64x64xf32> -> vector<64x64xf32>
    %49 = arith.truncf %48 : vector<64x64xf32> to vector<64x64xbf16>
    %c2_32 = arith.constant 2 : index
    %c0_33 = arith.constant 0 : index
    %c0_34 = arith.constant 0 : index
    %50 = vector.load %arg5[%c2_32, %c0_33, %c0_34] : memref<9x64x128xbf16, #tpu.memory_space<vmem>>, vector<1x64x128xbf16>
    %51 = vector.shape_cast %50 : vector<1x64x128xbf16> to vector<64x128xbf16>
    %cst_35 = arith.constant dense<0.000000e+00> : vector<64x128xf32>
    %52 = tpu.matmul %49, %51, %cst_35 {dimension_numbers = #tpu.dot_dimension_numbers<[1], [0], [0], [1], [0, 0, 1, 1], [], []>} : vector<64x64xbf16>, vector<64x128xbf16>, vector<64x128xf32> -> vector<64x128xf32>
    %53 = arith.addf %45, %52 : vector<64x128xf32>
    %c3 = arith.constant 3 : index
    %c0_36 = arith.constant 0 : index
    %c0_37 = arith.constant 0 : index
    %54 = vector.load %arg4[%c3, %c0_36, %c0_37] : memref<9x64x256xbf16, #tpu.memory_space<vmem>>, vector<1x64x256xbf16>
    %55 = vector.shape_cast %54 : vector<1x64x256xbf16> to vector<64x256xbf16>
    %cst_38 = arith.constant dense<0.000000e+00> : vector<64x64xf32>
    %56 = tpu.matmul %55, %28, %cst_38 {dimension_numbers = #tpu.dot_dimension_numbers<[1], [0], [0], [1], [0, 0, 1, 1], [], []>} : vector<64x256xbf16>, vector<256x64xbf16>, vector<64x64xf32> -> vector<64x64xf32>
    %57 = arith.truncf %56 : vector<64x64xf32> to vector<64x64xbf16>
    %c3_39 = arith.constant 3 : index
    %c0_40 = arith.constant 0 : index
    %c0_41 = arith.constant 0 : index
    %58 = vector.load %arg5[%c3_39, %c0_40, %c0_41] : memref<9x64x128xbf16, #tpu.memory_space<vmem>>, vector<1x64x128xbf16>
    %59 = vector.shape_cast %58 : vector<1x64x128xbf16> to vector<64x128xbf16>
    %cst_42 = arith.constant dense<0.000000e+00> : vector<64x128xf32>
    %60 = tpu.matmul %57, %59, %cst_42 {dimension_numbers = #tpu.dot_dimension_numbers<[1], [0], [0], [1], [0, 0, 1, 1], [], []>} : vector<64x64xbf16>, vector<64x128xbf16>, vector<64x128xf32> -> vector<64x128xf32>
    %61 = arith.addf %53, %60 : vector<64x128xf32>
    %c4 = arith.constant 4 : index
    %c0_43 = arith.constant 0 : index
    %c0_44 = arith.constant 0 : index
    %62 = vector.load %arg4[%c4, %c0_43, %c0_44] : memref<9x64x256xbf16, #tpu.memory_space<vmem>>, vector<1x64x256xbf16>
    %63 = vector.shape_cast %62 : vector<1x64x256xbf16> to vector<64x256xbf16>
    %cst_45 = arith.constant dense<0.000000e+00> : vector<64x64xf32>
    %64 = tpu.matmul %63, %28, %cst_45 {dimension_numbers = #tpu.dot_dimension_numbers<[1], [0], [0], [1], [0, 0, 1, 1], [], []>} : vector<64x256xbf16>, vector<256x64xbf16>, vector<64x64xf32> -> vector<64x64xf32>
    %65 = arith.truncf %64 : vector<64x64xf32> to vector<64x64xbf16>
    %c4_46 = arith.constant 4 : index
    %c0_47 = arith.constant 0 : index
    %c0_48 = arith.constant 0 : index
    %66 = vector.load %arg5[%c4_46, %c0_47, %c0_48] : memref<9x64x128xbf16, #tpu.memory_space<vmem>>, vector<1x64x128xbf16>
    %67 = vector.shape_cast %66 : vector<1x64x128xbf16> to vector<64x128xbf16>
    %cst_49 = arith.constant dense<0.000000e+00> : vector<64x128xf32>
    %68 = tpu.matmul %65, %67, %cst_49 {dimension_numbers = #tpu.dot_dimension_numbers<[1], [0], [0], [1], [0, 0, 1, 1], [], []>} : vector<64x64xbf16>, vector<64x128xbf16>, vector<64x128xf32> -> vector<64x128xf32>
    %69 = arith.addf %61, %68 : vector<64x128xf32>
    %c5 = arith.constant 5 : index
    %c0_50 = arith.constant 0 : index
    %c0_51 = arith.constant 0 : index
    %70 = vector.load %arg4[%c5, %c0_50, %c0_51] : memref<9x64x256xbf16, #tpu.memory_space<vmem>>, vector<1x64x256xbf16>
    %71 = vector.shape_cast %70 : vector<1x64x256xbf16> to vector<64x256xbf16>
    %cst_52 = arith.constant dense<0.000000e+00> : vector<64x64xf32>
    %72 = tpu.matmul %71, %28, %cst_52 {dimension_numbers = #tpu.dot_dimension_numbers<[1], [0], [0], [1], [0, 0, 1, 1], [], []>} : vector<64x256xbf16>, vector<256x64xbf16>, vector<64x64xf32> -> vector<64x64xf32>
    %73 = arith.truncf %72 : vector<64x64xf32> to vector<64x64xbf16>
    %c5_53 = arith.constant 5 : index
    %c0_54 = arith.constant 0 : index
    %c0_55 = arith.constant 0 : index
    %74 = vector.load %arg5[%c5_53, %c0_54, %c0_55] : memref<9x64x128xbf16, #tpu.memory_space<vmem>>, vector<1x64x128xbf16>
    %75 = vector.shape_cast %74 : vector<1x64x128xbf16> to vector<64x128xbf16>
    %cst_56 = arith.constant dense<0.000000e+00> : vector<64x128xf32>
    %76 = tpu.matmul %73, %75, %cst_56 {dimension_numbers = #tpu.dot_dimension_numbers<[1], [0], [0], [1], [0, 0, 1, 1], [], []>} : vector<64x64xbf16>, vector<64x128xbf16>, vector<64x128xf32> -> vector<64x128xf32>
    %77 = arith.addf %69, %76 : vector<64x128xf32>
    %c6 = arith.constant 6 : index
    %c0_57 = arith.constant 0 : index
    %c0_58 = arith.constant 0 : index
    %78 = vector.load %arg4[%c6, %c0_57, %c0_58] : memref<9x64x256xbf16, #tpu.memory_space<vmem>>, vector<1x64x256xbf16>
    %79 = vector.shape_cast %78 : vector<1x64x256xbf16> to vector<64x256xbf16>
    %cst_59 = arith.constant dense<0.000000e+00> : vector<64x64xf32>
    %80 = tpu.matmul %79, %28, %cst_59 {dimension_numbers = #tpu.dot_dimension_numbers<[1], [0], [0], [1], [0, 0, 1, 1], [], []>} : vector<64x256xbf16>, vector<256x64xbf16>, vector<64x64xf32> -> vector<64x64xf32>
    %81 = arith.truncf %80 : vector<64x64xf32> to vector<64x64xbf16>
    %c6_60 = arith.constant 6 : index
    %c0_61 = arith.constant 0 : index
    %c0_62 = arith.constant 0 : index
    %82 = vector.load %arg5[%c6_60, %c0_61, %c0_62] : memref<9x64x128xbf16, #tpu.memory_space<vmem>>, vector<1x64x128xbf16>
    %83 = vector.shape_cast %82 : vector<1x64x128xbf16> to vector<64x128xbf16>
    %cst_63 = arith.constant dense<0.000000e+00> : vector<64x128xf32>
    %84 = tpu.matmul %81, %83, %cst_63 {dimension_numbers = #tpu.dot_dimension_numbers<[1], [0], [0], [1], [0, 0, 1, 1], [], []>} : vector<64x64xbf16>, vector<64x128xbf16>, vector<64x128xf32> -> vector<64x128xf32>
    %85 = arith.addf %77, %84 : vector<64x128xf32>
    %c7 = arith.constant 7 : index
    %c0_64 = arith.constant 0 : index
    %c0_65 = arith.constant 0 : index
    %86 = vector.load %arg4[%c7, %c0_64, %c0_65] : memref<9x64x256xbf16, #tpu.memory_space<vmem>>, vector<1x64x256xbf16>
    %87 = vector.shape_cast %86 : vector<1x64x256xbf16> to vector<64x256xbf16>
    %cst_66 = arith.constant dense<0.000000e+00> : vector<64x64xf32>
    %88 = tpu.matmul %87, %28, %cst_66 {dimension_numbers = #tpu.dot_dimension_numbers<[1], [0], [0], [1], [0, 0, 1, 1], [], []>} : vector<64x256xbf16>, vector<256x64xbf16>, vector<64x64xf32> -> vector<64x64xf32>
    %89 = arith.truncf %88 : vector<64x64xf32> to vector<64x64xbf16>
    %c7_67 = arith.constant 7 : index
    %c0_68 = arith.constant 0 : index
    %c0_69 = arith.constant 0 : index
    %90 = vector.load %arg5[%c7_67, %c0_68, %c0_69] : memref<9x64x128xbf16, #tpu.memory_space<vmem>>, vector<1x64x128xbf16>
    %91 = vector.shape_cast %90 : vector<1x64x128xbf16> to vector<64x128xbf16>
    %cst_70 = arith.constant dense<0.000000e+00> : vector<64x128xf32>
    %92 = tpu.matmul %89, %91, %cst_70 {dimension_numbers = #tpu.dot_dimension_numbers<[1], [0], [0], [1], [0, 0, 1, 1], [], []>} : vector<64x64xbf16>, vector<64x128xbf16>, vector<64x128xf32> -> vector<64x128xf32>
    %93 = arith.addf %85, %92 : vector<64x128xf32>
    %c8 = arith.constant 8 : index
    %c0_71 = arith.constant 0 : index
    %c0_72 = arith.constant 0 : index
    %94 = vector.load %arg4[%c8, %c0_71, %c0_72] : memref<9x64x256xbf16, #tpu.memory_space<vmem>>, vector<1x64x256xbf16>
    %95 = vector.shape_cast %94 : vector<1x64x256xbf16> to vector<64x256xbf16>
    %cst_73 = arith.constant dense<0.000000e+00> : vector<64x64xf32>
    %96 = tpu.matmul %95, %28, %cst_73 {dimension_numbers = #tpu.dot_dimension_numbers<[1], [0], [0], [1], [0, 0, 1, 1], [], []>} : vector<64x256xbf16>, vector<256x64xbf16>, vector<64x64xf32> -> vector<64x64xf32>
    %97 = arith.truncf %96 : vector<64x64xf32> to vector<64x64xbf16>
    %c8_74 = arith.constant 8 : index
    %c0_75 = arith.constant 0 : index
    %c0_76 = arith.constant 0 : index
    %98 = vector.load %arg5[%c8_74, %c0_75, %c0_76] : memref<9x64x128xbf16, #tpu.memory_space<vmem>>, vector<1x64x128xbf16>
    %99 = vector.shape_cast %98 : vector<1x64x128xbf16> to vector<64x128xbf16>
    %cst_77 = arith.constant dense<0.000000e+00> : vector<64x128xf32>
    %100 = tpu.matmul %97, %99, %cst_77 {dimension_numbers = #tpu.dot_dimension_numbers<[1], [0], [0], [1], [0, 0, 1, 1], [], []>} : vector<64x64xbf16>, vector<64x128xbf16>, vector<64x128xf32> -> vector<64x128xf32>
    %101 = arith.addf %93, %100 : vector<64x128xf32>
    %c0_78 = arith.constant 0 : index
    %c0_79 = arith.constant 0 : index
    %102 = vector.load %arg6[%c0_78, %c0_79] : memref<1x128xf32, #tpu.memory_space<vmem>>, vector<1x128xf32>
    %103 = vector.broadcast %102 : vector<1x128xf32> to vector<64x128xf32>
    %104 = arith.addf %101, %103 : vector<64x128xf32>
    %cst_80 = arith.constant dense<0.000000e+00> : vector<128xf32>
    %105 = vector.multi_reduction <add>, %104, %cst_80 [0] : vector<64x128xf32> to vector<128xf32>
    %106 = vector.shape_cast %105 : vector<128xf32> to vector<1x128xf32>
    %cst_81 = arith.constant 6.400000e+01 : f32
    %107 = vector.broadcast %cst_81 : f32 to vector<1x128xf32>
    %108 = arith.divf %106, %107 : vector<1x128xf32>
    %109 = vector.broadcast %108 : vector<1x128xf32> to vector<64x128xf32>
    %110 = arith.subf %104, %109 : vector<64x128xf32>
    %111 = arith.mulf %110, %110 : vector<64x128xf32>
    %cst_82 = arith.constant dense<0.000000e+00> : vector<128xf32>
    %112 = vector.multi_reduction <add>, %111, %cst_82 [0] : vector<64x128xf32> to vector<128xf32>
    %113 = vector.shape_cast %112 : vector<128xf32> to vector<1x128xf32>
    %cst_83 = arith.constant 6.400000e+01 : f32
    %114 = vector.broadcast %cst_83 : f32 to vector<1x128xf32>
    %115 = arith.divf %113, %114 : vector<1x128xf32>
    %cst_84 = arith.constant 9.99999974E-6 : f32
    %116 = vector.broadcast %cst_84 : f32 to vector<1x128xf32>
    %117 = arith.addf %115, %116 : vector<1x128xf32>
    %118 = math.rsqrt %117 : vector<1x128xf32>
    %119 = vector.broadcast %118 : vector<1x128xf32> to vector<64x128xf32>
    %120 = arith.mulf %110, %119 : vector<64x128xf32>
    %cst_85 = arith.constant 0.000000e+00 : f32
    %121 = vector.broadcast %cst_85 : f32 to vector<64x128xf32>
    %122 = arith.cmpf oge, %120, %121 : vector<64x128xf32>
    %cst_86 = arith.constant 2.000000e-01 : f32
    %123 = vector.broadcast %cst_86 : f32 to vector<64x128xf32>
    %124 = arith.mulf %123, %120 : vector<64x128xf32>
    %125 = arith.select %122, %120, %124 : vector<64x128xi1>, vector<64x128xf32>
    %126 = arith.truncf %125 : vector<64x128xf32> to vector<64x128xbf16>
    %cst_87 = arith.constant 0.000000e+00 : f32
    %127 = vector.broadcast %cst_87 : f32 to vector<16x256xf32>
    %c0_88 = arith.constant 0 : index
    %c0_89 = arith.constant 0 : index
    %c0_90 = arith.constant 0 : index
    %128 = vector.load %arg7[%c0_88, %c0_89, %c0_90] : memref<9x16x64xbf16, #tpu.memory_space<vmem>>, vector<1x16x64xbf16>
    %129 = vector.shape_cast %128 : vector<1x16x64xbf16> to vector<16x64xbf16>
    %cst_91 = arith.constant dense<0.000000e+00> : vector<16x128xf32>
    %130 = tpu.matmul %129, %126, %cst_91 {dimension_numbers = #tpu.dot_dimension_numbers<[1], [0], [0], [1], [0, 0, 1, 1], [], []>} : vector<16x64xbf16>, vector<64x128xbf16>, vector<16x128xf32> -> vector<16x128xf32>
    %131 = arith.truncf %130 : vector<16x128xf32> to vector<16x128xbf16>
    %c0_92 = arith.constant 0 : index
    %c0_93 = arith.constant 0 : index
    %c0_94 = arith.constant 0 : index
    %132 = vector.load %arg8[%c0_92, %c0_93, %c0_94] : memref<9x128x256xbf16, #tpu.memory_space<vmem>>, vector<1x128x256xbf16>
    %133 = vector.shape_cast %132 : vector<1x128x256xbf16> to vector<128x256xbf16>
    %cst_95 = arith.constant dense<0.000000e+00> : vector<16x256xf32>
    %134 = tpu.matmul %131, %133, %cst_95 {dimension_numbers = #tpu.dot_dimension_numbers<[1], [0], [0], [1], [0, 0, 1, 1], [], []>} : vector<16x128xbf16>, vector<128x256xbf16>, vector<16x256xf32> -> vector<16x256xf32>
    %135 = arith.addf %127, %134 : vector<16x256xf32>
    %c1_96 = arith.constant 1 : index
    %c0_97 = arith.constant 0 : index
    %c0_98 = arith.constant 0 : index
    %136 = vector.load %arg7[%c1_96, %c0_97, %c0_98] : memref<9x16x64xbf16, #tpu.memory_space<vmem>>, vector<1x16x64xbf16>
    %137 = vector.shape_cast %136 : vector<1x16x64xbf16> to vector<16x64xbf16>
    %cst_99 = arith.constant dense<0.000000e+00> : vector<16x128xf32>
    %138 = tpu.matmul %137, %126, %cst_99 {dimension_numbers = #tpu.dot_dimension_numbers<[1], [0], [0], [1], [0, 0, 1, 1], [], []>} : vector<16x64xbf16>, vector<64x128xbf16>, vector<16x128xf32> -> vector<16x128xf32>
    %139 = arith.truncf %138 : vector<16x128xf32> to vector<16x128xbf16>
    %c1_100 = arith.constant 1 : index
    %c0_101 = arith.constant 0 : index
    %c0_102 = arith.constant 0 : index
    %140 = vector.load %arg8[%c1_100, %c0_101, %c0_102] : memref<9x128x256xbf16, #tpu.memory_space<vmem>>, vector<1x128x256xbf16>
    %141 = vector.shape_cast %140 : vector<1x128x256xbf16> to vector<128x256xbf16>
    %cst_103 = arith.constant dense<0.000000e+00> : vector<16x256xf32>
    %142 = tpu.matmul %139, %141, %cst_103 {dimension_numbers = #tpu.dot_dimension_numbers<[1], [0], [0], [1], [0, 0, 1, 1], [], []>} : vector<16x128xbf16>, vector<128x256xbf16>, vector<16x256xf32> -> vector<16x256xf32>
    %143 = arith.addf %135, %142 : vector<16x256xf32>
    %c2_104 = arith.constant 2 : index
    %c0_105 = arith.constant 0 : index
    %c0_106 = arith.constant 0 : index
    %144 = vector.load %arg7[%c2_104, %c0_105, %c0_106] : memref<9x16x64xbf16, #tpu.memory_space<vmem>>, vector<1x16x64xbf16>
    %145 = vector.shape_cast %144 : vector<1x16x64xbf16> to vector<16x64xbf16>
    %cst_107 = arith.constant dense<0.000000e+00> : vector<16x128xf32>
    %146 = tpu.matmul %145, %126, %cst_107 {dimension_numbers = #tpu.dot_dimension_numbers<[1], [0], [0], [1], [0, 0, 1, 1], [], []>} : vector<16x64xbf16>, vector<64x128xbf16>, vector<16x128xf32> -> vector<16x128xf32>
    %147 = arith.truncf %146 : vector<16x128xf32> to vector<16x128xbf16>
    %c2_108 = arith.constant 2 : index
    %c0_109 = arith.constant 0 : index
    %c0_110 = arith.constant 0 : index
    %148 = vector.load %arg8[%c2_108, %c0_109, %c0_110] : memref<9x128x256xbf16, #tpu.memory_space<vmem>>, vector<1x128x256xbf16>
    %149 = vector.shape_cast %148 : vector<1x128x256xbf16> to vector<128x256xbf16>
    %cst_111 = arith.constant dense<0.000000e+00> : vector<16x256xf32>
    %150 = tpu.matmul %147, %149, %cst_111 {dimension_numbers = #tpu.dot_dimension_numbers<[1], [0], [0], [1], [0, 0, 1, 1], [], []>} : vector<16x128xbf16>, vector<128x256xbf16>, vector<16x256xf32> -> vector<16x256xf32>
    %151 = arith.addf %143, %150 : vector<16x256xf32>
    %c3_112 = arith.constant 3 : index
    %c0_113 = arith.constant 0 : index
    %c0_114 = arith.constant 0 : index
    %152 = vector.load %arg7[%c3_112, %c0_113, %c0_114] : memref<9x16x64xbf16, #tpu.memory_space<vmem>>, vector<1x16x64xbf16>
    %153 = vector.shape_cast %152 : vector<1x16x64xbf16> to vector<16x64xbf16>
    %cst_115 = arith.constant dense<0.000000e+00> : vector<16x128xf32>
    %154 = tpu.matmul %153, %126, %cst_115 {dimension_numbers = #tpu.dot_dimension_numbers<[1], [0], [0], [1], [0, 0, 1, 1], [], []>} : vector<16x64xbf16>, vector<64x128xbf16>, vector<16x128xf32> -> vector<16x128xf32>
    %155 = arith.truncf %154 : vector<16x128xf32> to vector<16x128xbf16>
    %c3_116 = arith.constant 3 : index
    %c0_117 = arith.constant 0 : index
    %c0_118 = arith.constant 0 : index
    %156 = vector.load %arg8[%c3_116, %c0_117, %c0_118] : memref<9x128x256xbf16, #tpu.memory_space<vmem>>, vector<1x128x256xbf16>
    %157 = vector.shape_cast %156 : vector<1x128x256xbf16> to vector<128x256xbf16>
    %cst_119 = arith.constant dense<0.000000e+00> : vector<16x256xf32>
    %158 = tpu.matmul %155, %157, %cst_119 {dimension_numbers = #tpu.dot_dimension_numbers<[1], [0], [0], [1], [0, 0, 1, 1], [], []>} : vector<16x128xbf16>, vector<128x256xbf16>, vector<16x256xf32> -> vector<16x256xf32>
    %159 = arith.addf %151, %158 : vector<16x256xf32>
    %c4_120 = arith.constant 4 : index
    %c0_121 = arith.constant 0 : index
    %c0_122 = arith.constant 0 : index
    %160 = vector.load %arg7[%c4_120, %c0_121, %c0_122] : memref<9x16x64xbf16, #tpu.memory_space<vmem>>, vector<1x16x64xbf16>
    %161 = vector.shape_cast %160 : vector<1x16x64xbf16> to vector<16x64xbf16>
    %cst_123 = arith.constant dense<0.000000e+00> : vector<16x128xf32>
    %162 = tpu.matmul %161, %126, %cst_123 {dimension_numbers = #tpu.dot_dimension_numbers<[1], [0], [0], [1], [0, 0, 1, 1], [], []>} : vector<16x64xbf16>, vector<64x128xbf16>, vector<16x128xf32> -> vector<16x128xf32>
    %163 = arith.truncf %162 : vector<16x128xf32> to vector<16x128xbf16>
    %c4_124 = arith.constant 4 : index
    %c0_125 = arith.constant 0 : index
    %c0_126 = arith.constant 0 : index
    %164 = vector.load %arg8[%c4_124, %c0_125, %c0_126] : memref<9x128x256xbf16, #tpu.memory_space<vmem>>, vector<1x128x256xbf16>
    %165 = vector.shape_cast %164 : vector<1x128x256xbf16> to vector<128x256xbf16>
    %cst_127 = arith.constant dense<0.000000e+00> : vector<16x256xf32>
    %166 = tpu.matmul %163, %165, %cst_127 {dimension_numbers = #tpu.dot_dimension_numbers<[1], [0], [0], [1], [0, 0, 1, 1], [], []>} : vector<16x128xbf16>, vector<128x256xbf16>, vector<16x256xf32> -> vector<16x256xf32>
    %167 = arith.addf %159, %166 : vector<16x256xf32>
    %c5_128 = arith.constant 5 : index
    %c0_129 = arith.constant 0 : index
    %c0_130 = arith.constant 0 : index
    %168 = vector.load %arg7[%c5_128, %c0_129, %c0_130] : memref<9x16x64xbf16, #tpu.memory_space<vmem>>, vector<1x16x64xbf16>
    %169 = vector.shape_cast %168 : vector<1x16x64xbf16> to vector<16x64xbf16>
    %cst_131 = arith.constant dense<0.000000e+00> : vector<16x128xf32>
    %170 = tpu.matmul %169, %126, %cst_131 {dimension_numbers = #tpu.dot_dimension_numbers<[1], [0], [0], [1], [0, 0, 1, 1], [], []>} : vector<16x64xbf16>, vector<64x128xbf16>, vector<16x128xf32> -> vector<16x128xf32>
    %171 = arith.truncf %170 : vector<16x128xf32> to vector<16x128xbf16>
    %c5_132 = arith.constant 5 : index
    %c0_133 = arith.constant 0 : index
    %c0_134 = arith.constant 0 : index
    %172 = vector.load %arg8[%c5_132, %c0_133, %c0_134] : memref<9x128x256xbf16, #tpu.memory_space<vmem>>, vector<1x128x256xbf16>
    %173 = vector.shape_cast %172 : vector<1x128x256xbf16> to vector<128x256xbf16>
    %cst_135 = arith.constant dense<0.000000e+00> : vector<16x256xf32>
    %174 = tpu.matmul %171, %173, %cst_135 {dimension_numbers = #tpu.dot_dimension_numbers<[1], [0], [0], [1], [0, 0, 1, 1], [], []>} : vector<16x128xbf16>, vector<128x256xbf16>, vector<16x256xf32> -> vector<16x256xf32>
    %175 = arith.addf %167, %174 : vector<16x256xf32>
    %c6_136 = arith.constant 6 : index
    %c0_137 = arith.constant 0 : index
    %c0_138 = arith.constant 0 : index
    %176 = vector.load %arg7[%c6_136, %c0_137, %c0_138] : memref<9x16x64xbf16, #tpu.memory_space<vmem>>, vector<1x16x64xbf16>
    %177 = vector.shape_cast %176 : vector<1x16x64xbf16> to vector<16x64xbf16>
    %cst_139 = arith.constant dense<0.000000e+00> : vector<16x128xf32>
    %178 = tpu.matmul %177, %126, %cst_139 {dimension_numbers = #tpu.dot_dimension_numbers<[1], [0], [0], [1], [0, 0, 1, 1], [], []>} : vector<16x64xbf16>, vector<64x128xbf16>, vector<16x128xf32> -> vector<16x128xf32>
    %179 = arith.truncf %178 : vector<16x128xf32> to vector<16x128xbf16>
    %c6_140 = arith.constant 6 : index
    %c0_141 = arith.constant 0 : index
    %c0_142 = arith.constant 0 : index
    %180 = vector.load %arg8[%c6_140, %c0_141, %c0_142] : memref<9x128x256xbf16, #tpu.memory_space<vmem>>, vector<1x128x256xbf16>
    %181 = vector.shape_cast %180 : vector<1x128x256xbf16> to vector<128x256xbf16>
    %cst_143 = arith.constant dense<0.000000e+00> : vector<16x256xf32>
    %182 = tpu.matmul %179, %181, %cst_143 {dimension_numbers = #tpu.dot_dimension_numbers<[1], [0], [0], [1], [0, 0, 1, 1], [], []>} : vector<16x128xbf16>, vector<128x256xbf16>, vector<16x256xf32> -> vector<16x256xf32>
    %183 = arith.addf %175, %182 : vector<16x256xf32>
    %c7_144 = arith.constant 7 : index
    %c0_145 = arith.constant 0 : index
    %c0_146 = arith.constant 0 : index
    %184 = vector.load %arg7[%c7_144, %c0_145, %c0_146] : memref<9x16x64xbf16, #tpu.memory_space<vmem>>, vector<1x16x64xbf16>
    %185 = vector.shape_cast %184 : vector<1x16x64xbf16> to vector<16x64xbf16>
    %cst_147 = arith.constant dense<0.000000e+00> : vector<16x128xf32>
    %186 = tpu.matmul %185, %126, %cst_147 {dimension_numbers = #tpu.dot_dimension_numbers<[1], [0], [0], [1], [0, 0, 1, 1], [], []>} : vector<16x64xbf16>, vector<64x128xbf16>, vector<16x128xf32> -> vector<16x128xf32>
    %187 = arith.truncf %186 : vector<16x128xf32> to vector<16x128xbf16>
    %c7_148 = arith.constant 7 : index
    %c0_149 = arith.constant 0 : index
    %c0_150 = arith.constant 0 : index
    %188 = vector.load %arg8[%c7_148, %c0_149, %c0_150] : memref<9x128x256xbf16, #tpu.memory_space<vmem>>, vector<1x128x256xbf16>
    %189 = vector.shape_cast %188 : vector<1x128x256xbf16> to vector<128x256xbf16>
    %cst_151 = arith.constant dense<0.000000e+00> : vector<16x256xf32>
    %190 = tpu.matmul %187, %189, %cst_151 {dimension_numbers = #tpu.dot_dimension_numbers<[1], [0], [0], [1], [0, 0, 1, 1], [], []>} : vector<16x128xbf16>, vector<128x256xbf16>, vector<16x256xf32> -> vector<16x256xf32>
    %191 = arith.addf %183, %190 : vector<16x256xf32>
    %c8_152 = arith.constant 8 : index
    %c0_153 = arith.constant 0 : index
    %c0_154 = arith.constant 0 : index
    %192 = vector.load %arg7[%c8_152, %c0_153, %c0_154] : memref<9x16x64xbf16, #tpu.memory_space<vmem>>, vector<1x16x64xbf16>
    %193 = vector.shape_cast %192 : vector<1x16x64xbf16> to vector<16x64xbf16>
    %cst_155 = arith.constant dense<0.000000e+00> : vector<16x128xf32>
    %194 = tpu.matmul %193, %126, %cst_155 {dimension_numbers = #tpu.dot_dimension_numbers<[1], [0], [0], [1], [0, 0, 1, 1], [], []>} : vector<16x64xbf16>, vector<64x128xbf16>, vector<16x128xf32> -> vector<16x128xf32>
    %195 = arith.truncf %194 : vector<16x128xf32> to vector<16x128xbf16>
    %c8_156 = arith.constant 8 : index
    %c0_157 = arith.constant 0 : index
    %c0_158 = arith.constant 0 : index
    %196 = vector.load %arg8[%c8_156, %c0_157, %c0_158] : memref<9x128x256xbf16, #tpu.memory_space<vmem>>, vector<1x128x256xbf16>
    %197 = vector.shape_cast %196 : vector<1x128x256xbf16> to vector<128x256xbf16>
    %cst_159 = arith.constant dense<0.000000e+00> : vector<16x256xf32>
    %198 = tpu.matmul %195, %197, %cst_159 {dimension_numbers = #tpu.dot_dimension_numbers<[1], [0], [0], [1], [0, 0, 1, 1], [], []>} : vector<16x128xbf16>, vector<128x256xbf16>, vector<16x256xf32> -> vector<16x256xf32>
    %199 = arith.addf %191, %198 : vector<16x256xf32>
    %c0_160 = arith.constant 0 : index
    %c0_161 = arith.constant 0 : index
    %200 = vector.load %arg9[%c0_160, %c0_161] : memref<1x256xf32, #tpu.memory_space<vmem>>, vector<1x256xf32>
    %201 = vector.broadcast %200 : vector<1x256xf32> to vector<16x256xf32>
    %202 = arith.addf %199, %201 : vector<16x256xf32>
    %cst_162 = arith.constant dense<0.000000e+00> : vector<256xf32>
    %203 = vector.multi_reduction <add>, %202, %cst_162 [0] : vector<16x256xf32> to vector<256xf32>
    %204 = vector.shape_cast %203 : vector<256xf32> to vector<1x256xf32>
    %cst_163 = arith.constant 1.600000e+01 : f32
    %205 = vector.broadcast %cst_163 : f32 to vector<1x256xf32>
    %206 = arith.divf %204, %205 : vector<1x256xf32>
    %207 = vector.broadcast %206 : vector<1x256xf32> to vector<16x256xf32>
    %208 = arith.subf %202, %207 : vector<16x256xf32>
    %209 = arith.mulf %208, %208 : vector<16x256xf32>
    %cst_164 = arith.constant dense<0.000000e+00> : vector<256xf32>
    %210 = vector.multi_reduction <add>, %209, %cst_164 [0] : vector<16x256xf32> to vector<256xf32>
    %211 = vector.shape_cast %210 : vector<256xf32> to vector<1x256xf32>
    %cst_165 = arith.constant 1.600000e+01 : f32
    %212 = vector.broadcast %cst_165 : f32 to vector<1x256xf32>
    %213 = arith.divf %211, %212 : vector<1x256xf32>
    %cst_166 = arith.constant 9.99999974E-6 : f32
    %214 = vector.broadcast %cst_166 : f32 to vector<1x256xf32>
    %215 = arith.addf %213, %214 : vector<1x256xf32>
    %216 = math.rsqrt %215 : vector<1x256xf32>
    %217 = vector.broadcast %216 : vector<1x256xf32> to vector<16x256xf32>
    %218 = arith.mulf %208, %217 : vector<16x256xf32>
    %cst_167 = arith.constant 0.000000e+00 : f32
    %219 = vector.broadcast %cst_167 : f32 to vector<16x256xf32>
    %220 = arith.cmpf oge, %218, %219 : vector<16x256xf32>
    %cst_168 = arith.constant 2.000000e-01 : f32
    %221 = vector.broadcast %cst_168 : f32 to vector<16x256xf32>
    %222 = arith.mulf %221, %218 : vector<16x256xf32>
    %223 = arith.select %220, %218, %222 : vector<16x256xi1>, vector<16x256xf32>
    %224 = arith.truncf %223 : vector<16x256xf32> to vector<16x256xbf16>
    %cst_169 = arith.constant 0.000000e+00 : f32
    %225 = vector.broadcast %cst_169 : f32 to vector<4x512xf32>
    %c0_170 = arith.constant 0 : index
    %c0_171 = arith.constant 0 : index
    %c0_172 = arith.constant 0 : index
    %226 = vector.load %arg10[%c0_170, %c0_171, %c0_172] : memref<9x4x16xbf16, #tpu.memory_space<vmem>>, vector<1x4x16xbf16>
    %227 = vector.shape_cast %226 : vector<1x4x16xbf16> to vector<4x16xbf16>
    %cst_173 = arith.constant dense<0.000000e+00> : vector<4x256xf32>
    %228 = tpu.matmul %227, %224, %cst_173 {dimension_numbers = #tpu.dot_dimension_numbers<[1], [0], [0], [1], [0, 0, 1, 1], [], []>} : vector<4x16xbf16>, vector<16x256xbf16>, vector<4x256xf32> -> vector<4x256xf32>
    %229 = arith.truncf %228 : vector<4x256xf32> to vector<4x256xbf16>
    %c0_174 = arith.constant 0 : index
    %c0_175 = arith.constant 0 : index
    %c0_176 = arith.constant 0 : index
    %230 = vector.load %arg11[%c0_174, %c0_175, %c0_176] : memref<9x256x512xbf16, #tpu.memory_space<vmem>>, vector<1x256x512xbf16>
    %231 = vector.shape_cast %230 : vector<1x256x512xbf16> to vector<256x512xbf16>
    %cst_177 = arith.constant dense<0.000000e+00> : vector<4x512xf32>
    %232 = tpu.matmul %229, %231, %cst_177 {dimension_numbers = #tpu.dot_dimension_numbers<[1], [0], [0], [1], [0, 0, 1, 1], [], []>} : vector<4x256xbf16>, vector<256x512xbf16>, vector<4x512xf32> -> vector<4x512xf32>
    %233 = arith.addf %225, %232 : vector<4x512xf32>
    %c1_178 = arith.constant 1 : index
    %c0_179 = arith.constant 0 : index
    %c0_180 = arith.constant 0 : index
    %234 = vector.load %arg10[%c1_178, %c0_179, %c0_180] : memref<9x4x16xbf16, #tpu.memory_space<vmem>>, vector<1x4x16xbf16>
    %235 = vector.shape_cast %234 : vector<1x4x16xbf16> to vector<4x16xbf16>
    %cst_181 = arith.constant dense<0.000000e+00> : vector<4x256xf32>
    %236 = tpu.matmul %235, %224, %cst_181 {dimension_numbers = #tpu.dot_dimension_numbers<[1], [0], [0], [1], [0, 0, 1, 1], [], []>} : vector<4x16xbf16>, vector<16x256xbf16>, vector<4x256xf32> -> vector<4x256xf32>
    %237 = arith.truncf %236 : vector<4x256xf32> to vector<4x256xbf16>
    %c1_182 = arith.constant 1 : index
    %c0_183 = arith.constant 0 : index
    %c0_184 = arith.constant 0 : index
    %238 = vector.load %arg11[%c1_182, %c0_183, %c0_184] : memref<9x256x512xbf16, #tpu.memory_space<vmem>>, vector<1x256x512xbf16>
    %239 = vector.shape_cast %238 : vector<1x256x512xbf16> to vector<256x512xbf16>
    %cst_185 = arith.constant dense<0.000000e+00> : vector<4x512xf32>
    %240 = tpu.matmul %237, %239, %cst_185 {dimension_numbers = #tpu.dot_dimension_numbers<[1], [0], [0], [1], [0, 0, 1, 1], [], []>} : vector<4x256xbf16>, vector<256x512xbf16>, vector<4x512xf32> -> vector<4x512xf32>
    %241 = arith.addf %233, %240 : vector<4x512xf32>
    %c2_186 = arith.constant 2 : index
    %c0_187 = arith.constant 0 : index
    %c0_188 = arith.constant 0 : index
    %242 = vector.load %arg10[%c2_186, %c0_187, %c0_188] : memref<9x4x16xbf16, #tpu.memory_space<vmem>>, vector<1x4x16xbf16>
    %243 = vector.shape_cast %242 : vector<1x4x16xbf16> to vector<4x16xbf16>
    %cst_189 = arith.constant dense<0.000000e+00> : vector<4x256xf32>
    %244 = tpu.matmul %243, %224, %cst_189 {dimension_numbers = #tpu.dot_dimension_numbers<[1], [0], [0], [1], [0, 0, 1, 1], [], []>} : vector<4x16xbf16>, vector<16x256xbf16>, vector<4x256xf32> -> vector<4x256xf32>
    %245 = arith.truncf %244 : vector<4x256xf32> to vector<4x256xbf16>
    %c2_190 = arith.constant 2 : index
    %c0_191 = arith.constant 0 : index
    %c0_192 = arith.constant 0 : index
    %246 = vector.load %arg11[%c2_190, %c0_191, %c0_192] : memref<9x256x512xbf16, #tpu.memory_space<vmem>>, vector<1x256x512xbf16>
    %247 = vector.shape_cast %246 : vector<1x256x512xbf16> to vector<256x512xbf16>
    %cst_193 = arith.constant dense<0.000000e+00> : vector<4x512xf32>
    %248 = tpu.matmul %245, %247, %cst_193 {dimension_numbers = #tpu.dot_dimension_numbers<[1], [0], [0], [1], [0, 0, 1, 1], [], []>} : vector<4x256xbf16>, vector<256x512xbf16>, vector<4x512xf32> -> vector<4x512xf32>
    %249 = arith.addf %241, %248 : vector<4x512xf32>
    %c3_194 = arith.constant 3 : index
    %c0_195 = arith.constant 0 : index
    %c0_196 = arith.constant 0 : index
    %250 = vector.load %arg10[%c3_194, %c0_195, %c0_196] : memref<9x4x16xbf16, #tpu.memory_space<vmem>>, vector<1x4x16xbf16>
    %251 = vector.shape_cast %250 : vector<1x4x16xbf16> to vector<4x16xbf16>
    %cst_197 = arith.constant dense<0.000000e+00> : vector<4x256xf32>
    %252 = tpu.matmul %251, %224, %cst_197 {dimension_numbers = #tpu.dot_dimension_numbers<[1], [0], [0], [1], [0, 0, 1, 1], [], []>} : vector<4x16xbf16>, vector<16x256xbf16>, vector<4x256xf32> -> vector<4x256xf32>
    %253 = arith.truncf %252 : vector<4x256xf32> to vector<4x256xbf16>
    %c3_198 = arith.constant 3 : index
    %c0_199 = arith.constant 0 : index
    %c0_200 = arith.constant 0 : index
    %254 = vector.load %arg11[%c3_198, %c0_199, %c0_200] : memref<9x256x512xbf16, #tpu.memory_space<vmem>>, vector<1x256x512xbf16>
    %255 = vector.shape_cast %254 : vector<1x256x512xbf16> to vector<256x512xbf16>
    %cst_201 = arith.constant dense<0.000000e+00> : vector<4x512xf32>
    %256 = tpu.matmul %253, %255, %cst_201 {dimension_numbers = #tpu.dot_dimension_numbers<[1], [0], [0], [1], [0, 0, 1, 1], [], []>} : vector<4x256xbf16>, vector<256x512xbf16>, vector<4x512xf32> -> vector<4x512xf32>
    %257 = arith.addf %249, %256 : vector<4x512xf32>
    %c4_202 = arith.constant 4 : index
    %c0_203 = arith.constant 0 : index
    %c0_204 = arith.constant 0 : index
    %258 = vector.load %arg10[%c4_202, %c0_203, %c0_204] : memref<9x4x16xbf16, #tpu.memory_space<vmem>>, vector<1x4x16xbf16>
    %259 = vector.shape_cast %258 : vector<1x4x16xbf16> to vector<4x16xbf16>
    %cst_205 = arith.constant dense<0.000000e+00> : vector<4x256xf32>
    %260 = tpu.matmul %259, %224, %cst_205 {dimension_numbers = #tpu.dot_dimension_numbers<[1], [0], [0], [1], [0, 0, 1, 1], [], []>} : vector<4x16xbf16>, vector<16x256xbf16>, vector<4x256xf32> -> vector<4x256xf32>
    %261 = arith.truncf %260 : vector<4x256xf32> to vector<4x256xbf16>
    %c4_206 = arith.constant 4 : index
    %c0_207 = arith.constant 0 : index
    %c0_208 = arith.constant 0 : index
    %262 = vector.load %arg11[%c4_206, %c0_207, %c0_208] : memref<9x256x512xbf16, #tpu.memory_space<vmem>>, vector<1x256x512xbf16>
    %263 = vector.shape_cast %262 : vector<1x256x512xbf16> to vector<256x512xbf16>
    %cst_209 = arith.constant dense<0.000000e+00> : vector<4x512xf32>
    %264 = tpu.matmul %261, %263, %cst_209 {dimension_numbers = #tpu.dot_dimension_numbers<[1], [0], [0], [1], [0, 0, 1, 1], [], []>} : vector<4x256xbf16>, vector<256x512xbf16>, vector<4x512xf32> -> vector<4x512xf32>
    %265 = arith.addf %257, %264 : vector<4x512xf32>
    %c5_210 = arith.constant 5 : index
    %c0_211 = arith.constant 0 : index
    %c0_212 = arith.constant 0 : index
    %266 = vector.load %arg10[%c5_210, %c0_211, %c0_212] : memref<9x4x16xbf16, #tpu.memory_space<vmem>>, vector<1x4x16xbf16>
    %267 = vector.shape_cast %266 : vector<1x4x16xbf16> to vector<4x16xbf16>
    %cst_213 = arith.constant dense<0.000000e+00> : vector<4x256xf32>
    %268 = tpu.matmul %267, %224, %cst_213 {dimension_numbers = #tpu.dot_dimension_numbers<[1], [0], [0], [1], [0, 0, 1, 1], [], []>} : vector<4x16xbf16>, vector<16x256xbf16>, vector<4x256xf32> -> vector<4x256xf32>
    %269 = arith.truncf %268 : vector<4x256xf32> to vector<4x256xbf16>
    %c5_214 = arith.constant 5 : index
    %c0_215 = arith.constant 0 : index
    %c0_216 = arith.constant 0 : index
    %270 = vector.load %arg11[%c5_214, %c0_215, %c0_216] : memref<9x256x512xbf16, #tpu.memory_space<vmem>>, vector<1x256x512xbf16>
    %271 = vector.shape_cast %270 : vector<1x256x512xbf16> to vector<256x512xbf16>
    %cst_217 = arith.constant dense<0.000000e+00> : vector<4x512xf32>
    %272 = tpu.matmul %269, %271, %cst_217 {dimension_numbers = #tpu.dot_dimension_numbers<[1], [0], [0], [1], [0, 0, 1, 1], [], []>} : vector<4x256xbf16>, vector<256x512xbf16>, vector<4x512xf32> -> vector<4x512xf32>
    %273 = arith.addf %265, %272 : vector<4x512xf32>
    %c6_218 = arith.constant 6 : index
    %c0_219 = arith.constant 0 : index
    %c0_220 = arith.constant 0 : index
    %274 = vector.load %arg10[%c6_218, %c0_219, %c0_220] : memref<9x4x16xbf16, #tpu.memory_space<vmem>>, vector<1x4x16xbf16>
    %275 = vector.shape_cast %274 : vector<1x4x16xbf16> to vector<4x16xbf16>
    %cst_221 = arith.constant dense<0.000000e+00> : vector<4x256xf32>
    %276 = tpu.matmul %275, %224, %cst_221 {dimension_numbers = #tpu.dot_dimension_numbers<[1], [0], [0], [1], [0, 0, 1, 1], [], []>} : vector<4x16xbf16>, vector<16x256xbf16>, vector<4x256xf32> -> vector<4x256xf32>
    %277 = arith.truncf %276 : vector<4x256xf32> to vector<4x256xbf16>
    %c6_222 = arith.constant 6 : index
    %c0_223 = arith.constant 0 : index
    %c0_224 = arith.constant 0 : index
    %278 = vector.load %arg11[%c6_222, %c0_223, %c0_224] : memref<9x256x512xbf16, #tpu.memory_space<vmem>>, vector<1x256x512xbf16>
    %279 = vector.shape_cast %278 : vector<1x256x512xbf16> to vector<256x512xbf16>
    %cst_225 = arith.constant dense<0.000000e+00> : vector<4x512xf32>
    %280 = tpu.matmul %277, %279, %cst_225 {dimension_numbers = #tpu.dot_dimension_numbers<[1], [0], [0], [1], [0, 0, 1, 1], [], []>} : vector<4x256xbf16>, vector<256x512xbf16>, vector<4x512xf32> -> vector<4x512xf32>
    %281 = arith.addf %273, %280 : vector<4x512xf32>
    %c7_226 = arith.constant 7 : index
    %c0_227 = arith.constant 0 : index
    %c0_228 = arith.constant 0 : index
    %282 = vector.load %arg10[%c7_226, %c0_227, %c0_228] : memref<9x4x16xbf16, #tpu.memory_space<vmem>>, vector<1x4x16xbf16>
    %283 = vector.shape_cast %282 : vector<1x4x16xbf16> to vector<4x16xbf16>
    %cst_229 = arith.constant dense<0.000000e+00> : vector<4x256xf32>
    %284 = tpu.matmul %283, %224, %cst_229 {dimension_numbers = #tpu.dot_dimension_numbers<[1], [0], [0], [1], [0, 0, 1, 1], [], []>} : vector<4x16xbf16>, vector<16x256xbf16>, vector<4x256xf32> -> vector<4x256xf32>
    %285 = arith.truncf %284 : vector<4x256xf32> to vector<4x256xbf16>
    %c7_230 = arith.constant 7 : index
    %c0_231 = arith.constant 0 : index
    %c0_232 = arith.constant 0 : index
    %286 = vector.load %arg11[%c7_230, %c0_231, %c0_232] : memref<9x256x512xbf16, #tpu.memory_space<vmem>>, vector<1x256x512xbf16>
    %287 = vector.shape_cast %286 : vector<1x256x512xbf16> to vector<256x512xbf16>
    %cst_233 = arith.constant dense<0.000000e+00> : vector<4x512xf32>
    %288 = tpu.matmul %285, %287, %cst_233 {dimension_numbers = #tpu.dot_dimension_numbers<[1], [0], [0], [1], [0, 0, 1, 1], [], []>} : vector<4x256xbf16>, vector<256x512xbf16>, vector<4x512xf32> -> vector<4x512xf32>
    %289 = arith.addf %281, %288 : vector<4x512xf32>
    %c8_234 = arith.constant 8 : index
    %c0_235 = arith.constant 0 : index
    %c0_236 = arith.constant 0 : index
    %290 = vector.load %arg10[%c8_234, %c0_235, %c0_236] : memref<9x4x16xbf16, #tpu.memory_space<vmem>>, vector<1x4x16xbf16>
    %291 = vector.shape_cast %290 : vector<1x4x16xbf16> to vector<4x16xbf16>
    %cst_237 = arith.constant dense<0.000000e+00> : vector<4x256xf32>
    %292 = tpu.matmul %291, %224, %cst_237 {dimension_numbers = #tpu.dot_dimension_numbers<[1], [0], [0], [1], [0, 0, 1, 1], [], []>} : vector<4x16xbf16>, vector<16x256xbf16>, vector<4x256xf32> -> vector<4x256xf32>
    %293 = arith.truncf %292 : vector<4x256xf32> to vector<4x256xbf16>
    %c8_238 = arith.constant 8 : index
    %c0_239 = arith.constant 0 : index
    %c0_240 = arith.constant 0 : index
    %294 = vector.load %arg11[%c8_238, %c0_239, %c0_240] : memref<9x256x512xbf16, #tpu.memory_space<vmem>>, vector<1x256x512xbf16>
    %295 = vector.shape_cast %294 : vector<1x256x512xbf16> to vector<256x512xbf16>
    %cst_241 = arith.constant dense<0.000000e+00> : vector<4x512xf32>
    %296 = tpu.matmul %293, %295, %cst_241 {dimension_numbers = #tpu.dot_dimension_numbers<[1], [0], [0], [1], [0, 0, 1, 1], [], []>} : vector<4x256xbf16>, vector<256x512xbf16>, vector<4x512xf32> -> vector<4x512xf32>
    %297 = arith.addf %289, %296 : vector<4x512xf32>
    %c0_242 = arith.constant 0 : index
    %c0_243 = arith.constant 0 : index
    %298 = vector.load %arg12[%c0_242, %c0_243] : memref<1x512xf32, #tpu.memory_space<vmem>>, vector<1x512xf32>
    %299 = vector.broadcast %298 : vector<1x512xf32> to vector<4x512xf32>
    %300 = arith.addf %297, %299 : vector<4x512xf32>
    %cst_244 = arith.constant dense<0.000000e+00> : vector<512xf32>
    %301 = vector.multi_reduction <add>, %300, %cst_244 [0] : vector<4x512xf32> to vector<512xf32>
    %302 = vector.shape_cast %301 : vector<512xf32> to vector<1x512xf32>
    %cst_245 = arith.constant 4.000000e+00 : f32
    %303 = vector.broadcast %cst_245 : f32 to vector<1x512xf32>
    %304 = arith.divf %302, %303 : vector<1x512xf32>
    %305 = vector.broadcast %304 : vector<1x512xf32> to vector<4x512xf32>
    %306 = arith.subf %300, %305 : vector<4x512xf32>
    %307 = arith.mulf %306, %306 : vector<4x512xf32>
    %cst_246 = arith.constant dense<0.000000e+00> : vector<512xf32>
    %308 = vector.multi_reduction <add>, %307, %cst_246 [0] : vector<4x512xf32> to vector<512xf32>
    %309 = vector.shape_cast %308 : vector<512xf32> to vector<1x512xf32>
    %cst_247 = arith.constant 4.000000e+00 : f32
    %310 = vector.broadcast %cst_247 : f32 to vector<1x512xf32>
    %311 = arith.divf %309, %310 : vector<1x512xf32>
    %cst_248 = arith.constant 9.99999974E-6 : f32
    %312 = vector.broadcast %cst_248 : f32 to vector<1x512xf32>
    %313 = arith.addf %311, %312 : vector<1x512xf32>
    %314 = math.rsqrt %313 : vector<1x512xf32>
    %315 = vector.broadcast %314 : vector<1x512xf32> to vector<4x512xf32>
    %316 = arith.mulf %306, %315 : vector<4x512xf32>
    %cst_249 = arith.constant 0.000000e+00 : f32
    %317 = vector.broadcast %cst_249 : f32 to vector<4x512xf32>
    %318 = arith.cmpf oge, %316, %317 : vector<4x512xf32>
    %cst_250 = arith.constant 2.000000e-01 : f32
    %319 = vector.broadcast %cst_250 : f32 to vector<4x512xf32>
    %320 = arith.mulf %319, %316 : vector<4x512xf32>
    %321 = arith.select %318, %316, %320 : vector<4x512xi1>, vector<4x512xf32>
    %322 = arith.truncf %321 : vector<4x512xf32> to vector<4x512xbf16>
    %cst_251 = arith.constant 0.000000e+00 : f32
    %323 = vector.broadcast %cst_251 : f32 to vector<4x512xf32>
    %c0_252 = arith.constant 0 : index
    %c0_253 = arith.constant 0 : index
    %c0_254 = arith.constant 0 : index
    %324 = vector.load %arg13[%c0_252, %c0_253, %c0_254] : memref<9x4x4xbf16, #tpu.memory_space<vmem>>, vector<1x4x4xbf16>
    %325 = vector.shape_cast %324 : vector<1x4x4xbf16> to vector<4x4xbf16>
    %cst_255 = arith.constant dense<0.000000e+00> : vector<4x512xf32>
    %326 = tpu.matmul %325, %322, %cst_255 {dimension_numbers = #tpu.dot_dimension_numbers<[1], [0], [0], [1], [0, 0, 1, 1], [], []>} : vector<4x4xbf16>, vector<4x512xbf16>, vector<4x512xf32> -> vector<4x512xf32>
    %c0_256 = arith.constant 0 : index
    %c0_257 = arith.constant 0 : index
    %c0_258 = arith.constant 0 : index
    %327 = vector.load %arg14[%c0_256, %c0_257, %c0_258] : memref<9x1x512xbf16, #tpu.memory_space<vmem>>, vector<1x1x512xbf16>
    %328 = vector.shape_cast %327 : vector<1x1x512xbf16> to vector<1x512xbf16>
    %329 = arith.extf %328 : vector<1x512xbf16> to vector<1x512xf32>
    %330 = vector.broadcast %329 : vector<1x512xf32> to vector<4x512xf32>
    %331 = arith.mulf %326, %330 : vector<4x512xf32>
    %332 = arith.addf %323, %331 : vector<4x512xf32>
    %c1_259 = arith.constant 1 : index
    %c0_260 = arith.constant 0 : index
    %c0_261 = arith.constant 0 : index
    %333 = vector.load %arg13[%c1_259, %c0_260, %c0_261] : memref<9x4x4xbf16, #tpu.memory_space<vmem>>, vector<1x4x4xbf16>
    %334 = vector.shape_cast %333 : vector<1x4x4xbf16> to vector<4x4xbf16>
    %cst_262 = arith.constant dense<0.000000e+00> : vector<4x512xf32>
    %335 = tpu.matmul %334, %322, %cst_262 {dimension_numbers = #tpu.dot_dimension_numbers<[1], [0], [0], [1], [0, 0, 1, 1], [], []>} : vector<4x4xbf16>, vector<4x512xbf16>, vector<4x512xf32> -> vector<4x512xf32>
    %c1_263 = arith.constant 1 : index
    %c0_264 = arith.constant 0 : index
    %c0_265 = arith.constant 0 : index
    %336 = vector.load %arg14[%c1_263, %c0_264, %c0_265] : memref<9x1x512xbf16, #tpu.memory_space<vmem>>, vector<1x1x512xbf16>
    %337 = vector.shape_cast %336 : vector<1x1x512xbf16> to vector<1x512xbf16>
    %338 = arith.extf %337 : vector<1x512xbf16> to vector<1x512xf32>
    %339 = vector.broadcast %338 : vector<1x512xf32> to vector<4x512xf32>
    %340 = arith.mulf %335, %339 : vector<4x512xf32>
    %341 = arith.addf %332, %340 : vector<4x512xf32>
    %c2_266 = arith.constant 2 : index
    %c0_267 = arith.constant 0 : index
    %c0_268 = arith.constant 0 : index
    %342 = vector.load %arg13[%c2_266, %c0_267, %c0_268] : memref<9x4x4xbf16, #tpu.memory_space<vmem>>, vector<1x4x4xbf16>
    %343 = vector.shape_cast %342 : vector<1x4x4xbf16> to vector<4x4xbf16>
    %cst_269 = arith.constant dense<0.000000e+00> : vector<4x512xf32>
    %344 = tpu.matmul %343, %322, %cst_269 {dimension_numbers = #tpu.dot_dimension_numbers<[1], [0], [0], [1], [0, 0, 1, 1], [], []>} : vector<4x4xbf16>, vector<4x512xbf16>, vector<4x512xf32> -> vector<4x512xf32>
    %c2_270 = arith.constant 2 : index
    %c0_271 = arith.constant 0 : index
    %c0_272 = arith.constant 0 : index
    %345 = vector.load %arg14[%c2_270, %c0_271, %c0_272] : memref<9x1x512xbf16, #tpu.memory_space<vmem>>, vector<1x1x512xbf16>
    %346 = vector.shape_cast %345 : vector<1x1x512xbf16> to vector<1x512xbf16>
    %347 = arith.extf %346 : vector<1x512xbf16> to vector<1x512xf32>
    %348 = vector.broadcast %347 : vector<1x512xf32> to vector<4x512xf32>
    %349 = arith.mulf %344, %348 : vector<4x512xf32>
    %350 = arith.addf %341, %349 : vector<4x512xf32>
    %c3_273 = arith.constant 3 : index
    %c0_274 = arith.constant 0 : index
    %c0_275 = arith.constant 0 : index
    %351 = vector.load %arg13[%c3_273, %c0_274, %c0_275] : memref<9x4x4xbf16, #tpu.memory_space<vmem>>, vector<1x4x4xbf16>
    %352 = vector.shape_cast %351 : vector<1x4x4xbf16> to vector<4x4xbf16>
    %cst_276 = arith.constant dense<0.000000e+00> : vector<4x512xf32>
    %353 = tpu.matmul %352, %322, %cst_276 {dimension_numbers = #tpu.dot_dimension_numbers<[1], [0], [0], [1], [0, 0, 1, 1], [], []>} : vector<4x4xbf16>, vector<4x512xbf16>, vector<4x512xf32> -> vector<4x512xf32>
    %c3_277 = arith.constant 3 : index
    %c0_278 = arith.constant 0 : index
    %c0_279 = arith.constant 0 : index
    %354 = vector.load %arg14[%c3_277, %c0_278, %c0_279] : memref<9x1x512xbf16, #tpu.memory_space<vmem>>, vector<1x1x512xbf16>
    %355 = vector.shape_cast %354 : vector<1x1x512xbf16> to vector<1x512xbf16>
    %356 = arith.extf %355 : vector<1x512xbf16> to vector<1x512xf32>
    %357 = vector.broadcast %356 : vector<1x512xf32> to vector<4x512xf32>
    %358 = arith.mulf %353, %357 : vector<4x512xf32>
    %359 = arith.addf %350, %358 : vector<4x512xf32>
    %c4_280 = arith.constant 4 : index
    %c0_281 = arith.constant 0 : index
    %c0_282 = arith.constant 0 : index
    %360 = vector.load %arg13[%c4_280, %c0_281, %c0_282] : memref<9x4x4xbf16, #tpu.memory_space<vmem>>, vector<1x4x4xbf16>
    %361 = vector.shape_cast %360 : vector<1x4x4xbf16> to vector<4x4xbf16>
    %cst_283 = arith.constant dense<0.000000e+00> : vector<4x512xf32>
    %362 = tpu.matmul %361, %322, %cst_283 {dimension_numbers = #tpu.dot_dimension_numbers<[1], [0], [0], [1], [0, 0, 1, 1], [], []>} : vector<4x4xbf16>, vector<4x512xbf16>, vector<4x512xf32> -> vector<4x512xf32>
    %c4_284 = arith.constant 4 : index
    %c0_285 = arith.constant 0 : index
    %c0_286 = arith.constant 0 : index
    %363 = vector.load %arg14[%c4_284, %c0_285, %c0_286] : memref<9x1x512xbf16, #tpu.memory_space<vmem>>, vector<1x1x512xbf16>
    %364 = vector.shape_cast %363 : vector<1x1x512xbf16> to vector<1x512xbf16>
    %365 = arith.extf %364 : vector<1x512xbf16> to vector<1x512xf32>
    %366 = vector.broadcast %365 : vector<1x512xf32> to vector<4x512xf32>
    %367 = arith.mulf %362, %366 : vector<4x512xf32>
    %368 = arith.addf %359, %367 : vector<4x512xf32>
    %c5_287 = arith.constant 5 : index
    %c0_288 = arith.constant 0 : index
    %c0_289 = arith.constant 0 : index
    %369 = vector.load %arg13[%c5_287, %c0_288, %c0_289] : memref<9x4x4xbf16, #tpu.memory_space<vmem>>, vector<1x4x4xbf16>
    %370 = vector.shape_cast %369 : vector<1x4x4xbf16> to vector<4x4xbf16>
    %cst_290 = arith.constant dense<0.000000e+00> : vector<4x512xf32>
    %371 = tpu.matmul %370, %322, %cst_290 {dimension_numbers = #tpu.dot_dimension_numbers<[1], [0], [0], [1], [0, 0, 1, 1], [], []>} : vector<4x4xbf16>, vector<4x512xbf16>, vector<4x512xf32> -> vector<4x512xf32>
    %c5_291 = arith.constant 5 : index
    %c0_292 = arith.constant 0 : index
    %c0_293 = arith.constant 0 : index
    %372 = vector.load %arg14[%c5_291, %c0_292, %c0_293] : memref<9x1x512xbf16, #tpu.memory_space<vmem>>, vector<1x1x512xbf16>
    %373 = vector.shape_cast %372 : vector<1x1x512xbf16> to vector<1x512xbf16>
    %374 = arith.extf %373 : vector<1x512xbf16> to vector<1x512xf32>
    %375 = vector.broadcast %374 : vector<1x512xf32> to vector<4x512xf32>
    %376 = arith.mulf %371, %375 : vector<4x512xf32>
    %377 = arith.addf %368, %376 : vector<4x512xf32>
    %c6_294 = arith.constant 6 : index
    %c0_295 = arith.constant 0 : index
    %c0_296 = arith.constant 0 : index
    %378 = vector.load %arg13[%c6_294, %c0_295, %c0_296] : memref<9x4x4xbf16, #tpu.memory_space<vmem>>, vector<1x4x4xbf16>
    %379 = vector.shape_cast %378 : vector<1x4x4xbf16> to vector<4x4xbf16>
    %cst_297 = arith.constant dense<0.000000e+00> : vector<4x512xf32>
    %380 = tpu.matmul %379, %322, %cst_297 {dimension_numbers = #tpu.dot_dimension_numbers<[1], [0], [0], [1], [0, 0, 1, 1], [], []>} : vector<4x4xbf16>, vector<4x512xbf16>, vector<4x512xf32> -> vector<4x512xf32>
    %c6_298 = arith.constant 6 : index
    %c0_299 = arith.constant 0 : index
    %c0_300 = arith.constant 0 : index
    %381 = vector.load %arg14[%c6_298, %c0_299, %c0_300] : memref<9x1x512xbf16, #tpu.memory_space<vmem>>, vector<1x1x512xbf16>
    %382 = vector.shape_cast %381 : vector<1x1x512xbf16> to vector<1x512xbf16>
    %383 = arith.extf %382 : vector<1x512xbf16> to vector<1x512xf32>
    %384 = vector.broadcast %383 : vector<1x512xf32> to vector<4x512xf32>
    %385 = arith.mulf %380, %384 : vector<4x512xf32>
    %386 = arith.addf %377, %385 : vector<4x512xf32>
    %c7_301 = arith.constant 7 : index
    %c0_302 = arith.constant 0 : index
    %c0_303 = arith.constant 0 : index
    %387 = vector.load %arg13[%c7_301, %c0_302, %c0_303] : memref<9x4x4xbf16, #tpu.memory_space<vmem>>, vector<1x4x4xbf16>
    %388 = vector.shape_cast %387 : vector<1x4x4xbf16> to vector<4x4xbf16>
    %cst_304 = arith.constant dense<0.000000e+00> : vector<4x512xf32>
    %389 = tpu.matmul %388, %322, %cst_304 {dimension_numbers = #tpu.dot_dimension_numbers<[1], [0], [0], [1], [0, 0, 1, 1], [], []>} : vector<4x4xbf16>, vector<4x512xbf16>, vector<4x512xf32> -> vector<4x512xf32>
    %c7_305 = arith.constant 7 : index
    %c0_306 = arith.constant 0 : index
    %c0_307 = arith.constant 0 : index
    %390 = vector.load %arg14[%c7_305, %c0_306, %c0_307] : memref<9x1x512xbf16, #tpu.memory_space<vmem>>, vector<1x1x512xbf16>
    %391 = vector.shape_cast %390 : vector<1x1x512xbf16> to vector<1x512xbf16>
    %392 = arith.extf %391 : vector<1x512xbf16> to vector<1x512xf32>
    %393 = vector.broadcast %392 : vector<1x512xf32> to vector<4x512xf32>
    %394 = arith.mulf %389, %393 : vector<4x512xf32>
    %395 = arith.addf %386, %394 : vector<4x512xf32>
    %c8_308 = arith.constant 8 : index
    %c0_309 = arith.constant 0 : index
    %c0_310 = arith.constant 0 : index
    %396 = vector.load %arg13[%c8_308, %c0_309, %c0_310] : memref<9x4x4xbf16, #tpu.memory_space<vmem>>, vector<1x4x4xbf16>
    %397 = vector.shape_cast %396 : vector<1x4x4xbf16> to vector<4x4xbf16>
    %cst_311 = arith.constant dense<0.000000e+00> : vector<4x512xf32>
    %398 = tpu.matmul %397, %322, %cst_311 {dimension_numbers = #tpu.dot_dimension_numbers<[1], [0], [0], [1], [0, 0, 1, 1], [], []>} : vector<4x4xbf16>, vector<4x512xbf16>, vector<4x512xf32> -> vector<4x512xf32>
    %c8_312 = arith.constant 8 : index
    %c0_313 = arith.constant 0 : index
    %c0_314 = arith.constant 0 : index
    %399 = vector.load %arg14[%c8_312, %c0_313, %c0_314] : memref<9x1x512xbf16, #tpu.memory_space<vmem>>, vector<1x1x512xbf16>
    %400 = vector.shape_cast %399 : vector<1x1x512xbf16> to vector<1x512xbf16>
    %401 = arith.extf %400 : vector<1x512xbf16> to vector<1x512xf32>
    %402 = vector.broadcast %401 : vector<1x512xf32> to vector<4x512xf32>
    %403 = arith.mulf %398, %402 : vector<4x512xf32>
    %404 = arith.addf %395, %403 : vector<4x512xf32>
    %cst_315 = arith.constant dense<0.000000e+00> : vector<4xf32>
    %405 = vector.multi_reduction <add>, %404, %cst_315 [1] : vector<4x512xf32> to vector<4xf32>
    %406 = vector.shape_cast %405 : vector<4xf32> to vector<4x1xf32>
    %c0_316 = arith.constant 0 : index
    %407 = memref.load %arg15[%c0_316] : memref<1xf32, #tpu.memory_space<smem>>
    %408 = vector.broadcast %407 : f32 to vector<4x1xf32>
    %409 = arith.addf %406, %408 : vector<4x1xf32>
    %410 = vector.shape_cast %409 : vector<4x1xf32> to vector<1x4x1xf32>
    %cst_317 = arith.constant dense<0.000000e+00> : vector<1xf32>
    %411 = vector.multi_reduction <add>, %410, %cst_317 [1, 2] : vector<1x4x1xf32> to vector<1xf32>
    %412 = vector.shape_cast %411 : vector<1xf32> to vector<1x1x1xf32>
    %413 = vector.extract %412[0, 0, 0] : f32 from vector<1x1x1xf32>
    %cst_318 = arith.constant 2.500000e-01 : f32
    %414 = arith.mulf %413, %cst_318 : f32
    %415 = vector.broadcast %414 : f32 to vector<1x1x128xf32>
    %c0_319 = arith.constant 0 : index
    %c0_320 = arith.constant 0 : index
    %c0_321 = arith.constant 0 : index
    %416 = vector.load %arg16[%c0_319, %c0_320, %c0_321] : memref<1x1x128xf32, #tpu.memory_space<vmem>>, vector<1x1x128xf32>
    tpu.vector_store %arg16[%c0_319, %c0_320, %c0_321], %415 {strides = array<i32>} : memref<1x1x128xf32, #tpu.memory_space<vmem>>, vector<1x1x128xf32>,
    return
  }
  func.func @transform_0(%arg0: i32) -> (i32, i32, i32) {
    %c0_i32 = arith.constant 0 : i32
    %c0_i32_0 = arith.constant 0 : i32
    %c0_i32_1 = arith.constant 0 : i32
    return %arg0, %c0_i32, %c0_i32_0 : i32, i32, i32
  }
  func.func @transform_1(%arg0: i32) -> (i32, i32) {
    %c0_i32 = arith.constant 0 : i32
    %c0_i32_0 = arith.constant 0 : i32
    %c0_i32_1 = arith.constant 0 : i32
    return %c0_i32, %c0_i32_0 : i32, i32
  }
  func.func @transform_2(%arg0: i32) -> (i32, i32) {
    %c0_i32 = arith.constant 0 : i32
    %c0_i32_0 = arith.constant 0 : i32
    %c0_i32_1 = arith.constant 0 : i32
    return %c0_i32, %c0_i32_0 : i32, i32
  }
  func.func @transform_3(%arg0: i32) -> (i32, i32, i32) {
    %c0_i32 = arith.constant 0 : i32
    %c0_i32_0 = arith.constant 0 : i32
    %c0_i32_1 = arith.constant 0 : i32
    %c0_i32_2 = arith.constant 0 : i32
    return %c0_i32, %c0_i32_0, %c0_i32_1 : i32, i32, i32
  }
  func.func @transform_4(%arg0: i32) -> (i32, i32, i32) {
    %c0_i32 = arith.constant 0 : i32
    %c0_i32_0 = arith.constant 0 : i32
    %c0_i32_1 = arith.constant 0 : i32
    %c0_i32_2 = arith.constant 0 : i32
    return %c0_i32, %c0_i32_0, %c0_i32_1 : i32, i32, i32
  }
  func.func @transform_5(%arg0: i32) -> (i32, i32) {
    %c0_i32 = arith.constant 0 : i32
    %c0_i32_0 = arith.constant 0 : i32
    %c0_i32_1 = arith.constant 0 : i32
    return %c0_i32, %c0_i32_0 : i32, i32
  }
  func.func @transform_6(%arg0: i32) -> (i32, i32, i32) {
    %c0_i32 = arith.constant 0 : i32
    %c0_i32_0 = arith.constant 0 : i32
    %c0_i32_1 = arith.constant 0 : i32
    %c0_i32_2 = arith.constant 0 : i32
    return %c0_i32, %c0_i32_0, %c0_i32_1 : i32, i32, i32
  }
  func.func @transform_7(%arg0: i32) -> (i32, i32, i32) {
    %c0_i32 = arith.constant 0 : i32
    %c0_i32_0 = arith.constant 0 : i32
    %c0_i32_1 = arith.constant 0 : i32
    %c0_i32_2 = arith.constant 0 : i32
    return %c0_i32, %c0_i32_0, %c0_i32_1 : i32, i32, i32
  }
  func.func @transform_8(%arg0: i32) -> (i32, i32) {
    %c0_i32 = arith.constant 0 : i32
    %c0_i32_0 = arith.constant 0 : i32
    %c0_i32_1 = arith.constant 0 : i32
    return %c0_i32, %c0_i32_0 : i32, i32
  }
  func.func @transform_9(%arg0: i32) -> (i32, i32, i32) {
    %c0_i32 = arith.constant 0 : i32
    %c0_i32_0 = arith.constant 0 : i32
    %c0_i32_1 = arith.constant 0 : i32
    %c0_i32_2 = arith.constant 0 : i32
    return %c0_i32, %c0_i32_0, %c0_i32_1 : i32, i32, i32
  }
  func.func @transform_10(%arg0: i32) -> (i32, i32, i32) {
    %c0_i32 = arith.constant 0 : i32
    %c0_i32_0 = arith.constant 0 : i32
    %c0_i32_1 = arith.constant 0 : i32
    %c0_i32_2 = arith.constant 0 : i32
    return %c0_i32, %c0_i32_0, %c0_i32_1 : i32, i32, i32
  }
  func.func @transform_11(%arg0: i32) -> (i32, i32) {
    %c0_i32 = arith.constant 0 : i32
    %c0_i32_0 = arith.constant 0 : i32
    %c0_i32_1 = arith.constant 0 : i32
    return %c0_i32, %c0_i32_0 : i32, i32
  }
  func.func @transform_12(%arg0: i32) -> (i32, i32, i32) {
    %c0_i32 = arith.constant 0 : i32
    %c0_i32_0 = arith.constant 0 : i32
    %c0_i32_1 = arith.constant 0 : i32
    %c0_i32_2 = arith.constant 0 : i32
    return %c0_i32, %c0_i32_0, %c0_i32_1 : i32, i32, i32
  }
  func.func @transform_13(%arg0: i32) -> (i32, i32, i32) {
    %c0_i32 = arith.constant 0 : i32
    %c0_i32_0 = arith.constant 0 : i32
    %c0_i32_1 = arith.constant 0 : i32
    %c0_i32_2 = arith.constant 0 : i32
    return %c0_i32, %c0_i32_0, %c0_i32_1 : i32, i32, i32
  }
  func.func @transform_14(%arg0: i32) -> i32 {
    %c0_i32 = arith.constant 0 : i32
    %c0_i32_0 = arith.constant 0 : i32
    return %c0_i32 : i32
  }
  func.func @transform_15(%arg0: i32) -> (i32, i32, i32) {
    %c0_i32 = arith.constant 0 : i32
    %c0_i32_0 = arith.constant 0 : i32
    %c0_i32_1 = arith.constant 0 : i32
    return %arg0, %c0_i32, %c0_i32_0 : i32, i32, i32
  }
}

</mosaic_0001>

<llo_original>
// kernel: discriminator_forward.1
$region0: #{discriminator_forward.1}
  #allocation0 [shape = 'u32[]', space=smem, size = 0x4, offset = 0x4, fixed_abs, tag = 'smem constant byte address 0x4 - core index']
  #allocation1 [shape = 'u32[144,128]{1,0:T(1,128)}', space=vmem, size = 0x12000, scoped, tag = 'internal scratch']
  #allocation2 [shape = 'f32[1]{0:T(128)S(6)}', space=smem, size = 0x200, scoped, tag = 'scoped memory for discriminator_forward.1']
  %s0 = inlined_call_operand.vmem [shape: bf16[2,256,9], index: 0, kind: input, shape index: {}]
  %s1 = inlined_call_operand.vmem [shape: bf16[9,64], index: 1, kind: input, shape index: {}]
  %s2 = inlined_call_operand.vmem [shape: f32[1,64], index: 2, kind: input, shape index: {}]
  %s3 = inlined_call_operand.vmem [shape: bf16[9,64,256], index: 3, kind: input, shape index: {}]
  %s4 = inlined_call_operand.vmem [shape: bf16[9,64,128], index: 4, kind: input, shape index: {}]
  %s5 = inlined_call_operand.vmem [shape: f32[1,128], index: 5, kind: input, shape index: {}]
  %s6 = inlined_call_operand.vmem [shape: bf16[9,16,64], index: 6, kind: input, shape index: {}]
  %s7 = inlined_call_operand.vmem [shape: bf16[9,128,256], index: 7, kind: input, shape index: {}]
  %s8 = inlined_call_operand.vmem [shape: f32[1,256], index: 8, kind: input, shape index: {}]
  %s9 = inlined_call_operand.vmem [shape: bf16[9,4,16], index: 9, kind: input, shape index: {}]
  %s10 = inlined_call_operand.vmem [shape: bf16[9,256,512], index: 10, kind: input, shape index: {}]
  %s11 = inlined_call_operand.vmem [shape: f32[1,512], index: 11, kind: input, shape index: {}]
  %s12 = inlined_call_operand.vmem [shape: bf16[9,4,4], index: 12, kind: input, shape index: {}]
  %s13 = inlined_call_operand.vmem [shape: bf16[9,1,512], index: 13, kind: input, shape index: {}]
  %s14 = inlined_call_operand.<no memory space> [shape: f32[1], index: 14, kind: input, shape index: {}]
  %s15 = inlined_call_operand.vmem [shape: f32[2,1,128], index: 15, kind: output, shape index: {}]
  %s16 = sld [smem:[#allocation0]]
  $region93: #{discriminator_forward.1} parent=0
    _
  %s18 = ssub.s32 1, %s16
  %s19 = scalar_select 0, %s18, %s16
  %20 = sst [smem:[#allocation2]] %s14
  loop: start=0, step=1, limit=4
  $region2: #{discriminator_forward.1} parent=0 // loop_pre_header
    _
  $region3: #{discriminator_forward.1} parent=0 // loop_header
    %s22 = sphi 0, %s26
    %p23 = scmp.ge.s32.totalorder %s22, 4
    %s32 = sphi 0, %s34
    %s35 = sphi 0, %s32
    %s36 = sphi 0, %s35
    %s52 = sphi 0, %s36
    %s56 = sphi 0, %s56
    %s58 = sphi 0, %s56
    %s59 = sphi 0, %s58
    %s73 = sphi 0, %s59
    %s77 = sphi 0, %s77
    %s79 = sphi 0, %s77
    %s80 = sphi 0, %s79
    %s94 = sphi 0, %s80
    %s98 = sphi 0, %s98
    %s100 = sphi 0, %s98
    %s101 = sphi 0, %s100
    %s115 = sphi 0, %s101
    %s119 = sphi 0, %s119
    %s121 = sphi 0, %s119
    %s122 = sphi 0, %s121
    %s136 = sphi 0, %s122
    %s140 = sphi 0, %s140
    %s142 = sphi 0, %s140
    %s143 = sphi 0, %s142
    %s157 = sphi 0, %s143
    %s161 = sphi 0, %s161
    %s163 = sphi 0, %s161
    %s164 = sphi 0, %s163
    %s178 = sphi 0, %s164
    %s182 = sphi 0, %s182
    %s184 = sphi 0, %s182
    %s185 = sphi 0, %s184
    %s199 = sphi 0, %s185
    %s203 = sphi 0, %s203
    %s205 = sphi 0, %s203
    %s206 = sphi 0, %s205
    %s220 = sphi 0, %s206
    %s224 = sphi 0, %s224
    %s226 = sphi 0, %s224
    %s227 = sphi 0, %s226
    %s241 = sphi 0, %s227
    %s245 = sphi 0, %s245
    %s247 = sphi 0, %s245
    %s248 = sphi 0, %s247
    %s262 = sphi 0, %s248
    %s266 = sphi 0, %s266
    %s268 = sphi 0, %s266
    %s269 = sphi 0, %s268
    %s283 = sphi 0, %s269
    %s287 = sphi 0, %s287
    %s289 = sphi 0, %s287
    %s290 = sphi 0, %s289
    %s304 = sphi 0, %s290
    %s308 = sphi 0, %s308
    %s310 = sphi 0, %s308
    %s311 = sphi 0, %s310
    %s325 = sphi 0, %s311
    %s329 = sphi 0, %s329
    %s331 = sphi 0, %s329
    %s332 = sphi 0, %s331
    %s346 = sphi 0, %s332
    %s352 = sphi 0, %s354
    %s355 = sphi 0, %s352
    %s356 = sphi 0, %s355
    %s372 = sphi 0, %s356
  $region4: #{discriminator_forward.1} parent=0 // loop_header_branch
    %25 = sbr.rel (%p23) target = $region8
  $region5: #{discriminator_forward.1} parent=0 // loop_body
    %s27 = ssub.s32 %s22, 1
    %s28 = ssub.s32 %s22, 2
    %s29 = sadd.s32 %s22, 1
    %s30 = ssub.s32 %s22, %s29
    %p31 = scmp.eq.s32.totalorder %s30, 0
    %s33 = sadd.s32 %s32, 1
    %s34 = scalar_select %p31, %s32, %s33
    %p37 = pneg %p31
    %p38 = scmp.eq.s32.totalorder %s22, 1
    %p39 = por %p37, %p38
    %p40 = scmp.ne.s32.totalorder %s32, %s35
    %p41 = scmp.eq.s32.totalorder %s22, 0
    %p42 = por %p40, %p41
    %p43 = scmp.ne.s32.totalorder %s32, %s35
    %p44 = scmp.eq.s32.totalorder %s27, 1
    %p45 = por %p43, %p44
    %p46 = scmp.ne.s32.totalorder %s35, %s36
    %p47 = scmp.eq.s32.totalorder %s27, 0
    %p48 = por %p46, %p47
    %p49 = scmp.ne.s32.totalorder %s35, %s36
    %p50 = scmp.eq.s32.totalorder %s28, 1
    %p51 = por %p49, %p50
    %p53 = scmp.ne.s32.totalorder %s36, %s52
    %p54 = scmp.eq.s32.totalorder %s28, 0
    %p55 = por %p53, %p54
    %s57 = sadd.s32 %s56, 1
    %p60 = scmp.eq.s32.totalorder %s22, 1
    %p61 = scmp.ne.s32.totalorder %s56, %s58
    %p62 = scmp.eq.s32.totalorder %s22, 0
    %p63 = por %p61, %p62
    %p64 = scmp.ne.s32.totalorder %s56, %s58
    %p65 = scmp.eq.s32.totalorder %s27, 1
    %p66 = por %p64, %p65
    %p67 = scmp.ne.s32.totalorder %s58, %s59
    %p68 = scmp.eq.s32.totalorder %s27, 0
    %p69 = por %p67, %p68
    %p70 = scmp.ne.s32.totalorder %s58, %s59
    %p71 = scmp.eq.s32.totalorder %s28, 1
    %p72 = por %p70, %p71
    %p74 = scmp.ne.s32.totalorder %s59, %s73
    %p75 = scmp.eq.s32.totalorder %s28, 0
    %p76 = por %p74, %p75
    %s78 = sadd.s32 %s77, 1
    %p81 = scmp.eq.s32.totalorder %s22, 1
    %p82 = scmp.ne.s32.totalorder %s77, %s79
    %p83 = scmp.eq.s32.totalorder %s22, 0
    %p84 = por %p82, %p83
    %p85 = scmp.ne.s32.totalorder %s77, %s79
    %p86 = scmp.eq.s32.totalorder %s27, 1
    %p87 = por %p85, %p86
    %p88 = scmp.ne.s32.totalorder %s79, %s80
    %p89 = scmp.eq.s32.totalorder %s27, 0
    %p90 = por %p88, %p89
    %p91 = scmp.ne.s32.totalorder %s79, %s80
    %p92 = scmp.eq.s32.totalorder %s28, 1
    %p93 = por %p91, %p92
    %p95 = scmp.ne.s32.totalorder %s80, %s94
    %p96 = scmp.eq.s32.totalorder %s28, 0
    %p97 = por %p95, %p96
    %s99 = sadd.s32 %s98, 1
    %p102 = scmp.eq.s32.totalorder %s22, 1
    %p103 = scmp.ne.s32.totalorder %s98, %s100
    %p104 = scmp.eq.s32.totalorder %s22, 0
    %p105 = por %p103, %p104
    %p106 = scmp.ne.s32.totalorder %s98, %s100
    %p107 = scmp.eq.s32.totalorder %s27, 1
    %p108 = por %p106, %p107
    %p109 = scmp.ne.s32.totalorder %s100, %s101
    %p110 = scmp.eq.s32.totalorder %s27, 0
    %p111 = por %p109, %p110
    %p112 = scmp.ne.s32.totalorder %s100, %s101
    %p113 = scmp.eq.s32.totalorder %s28, 1
    %p114 = por %p112, %p113
    %p116 = scmp.ne.s32.totalorder %s101, %s115
    %p117 = scmp.eq.s32.totalorder %s28, 0
    %p118 = por %p116, %p117
    %s120 = sadd.s32 %s119, 1
    %p123 = scmp.eq.s32.totalorder %s22, 1
    %p124 = scmp.ne.s32.totalorder %s119, %s121
    %p125 = scmp.eq.s32.totalorder %s22, 0
    %p126 = por %p124, %p125
    %p127 = scmp.ne.s32.totalorder %s119, %s121
    %p128 = scmp.eq.s32.totalorder %s27, 1
    %p129 = por %p127, %p128
    %p130 = scmp.ne.s32.totalorder %s121, %s122
    %p131 = scmp.eq.s32.totalorder %s27, 0
    %p132 = por %p130, %p131
    %p133 = scmp.ne.s32.totalorder %s121, %s122
    %p134 = scmp.eq.s32.totalorder %s28, 1
    %p135 = por %p133, %p134
    %p137 = scmp.ne.s32.totalorder %s122, %s136
    %p138 = scmp.eq.s32.totalorder %s28, 0
    %p139 = por %p137, %p138
    %s141 = sadd.s32 %s140, 1
    %p144 = scmp.eq.s32.totalorder %s22, 1
    %p145 = scmp.ne.s32.totalorder %s140, %s142
    %p146 = scmp.eq.s32.totalorder %s22, 0
    %p147 = por %p145, %p146
    %p148 = scmp.ne.s32.totalorder %s140, %s142
    %p149 = scmp.eq.s32.totalorder %s27, 1
    %p150 = por %p148, %p149
    %p151 = scmp.ne.s32.totalorder %s142, %s143
    %p152 = scmp.eq.s32.totalorder %s27, 0
    %p153 = por %p151, %p152
    %p154 = scmp.ne.s32.totalorder %s142, %s143
    %p155 = scmp.eq.s32.totalorder %s28, 1
    %p156 = por %p154, %p155
    %p158 = scmp.ne.s32.totalorder %s143, %s157
    %p159 = scmp.eq.s32.totalorder %s28, 0
    %p160 = por %p158, %p159
    %s162 = sadd.s32 %s161, 1
    %p165 = scmp.eq.s32.totalorder %s22, 1
    %p166 = scmp.ne.s32.totalorder %s161, %s163
    %p167 = scmp.eq.s32.totalorder %s22, 0
    %p168 = por %p166, %p167
    %p169 = scmp.ne.s32.totalorder %s161, %s163
    %p170 = scmp.eq.s32.totalorder %s27, 1
    %p171 = por %p169, %p170
    %p172 = scmp.ne.s32.totalorder %s163, %s164
    %p173 = scmp.eq.s32.totalorder %s27, 0
    %p174 = por %p172, %p173
    %p175 = scmp.ne.s32.totalorder %s163, %s164
    %p176 = scmp.eq.s32.totalorder %s28, 1
    %p177 = por %p175, %p176
    %p179 = scmp.ne.s32.totalorder %s164, %s178
    %p180 = scmp.eq.s32.totalorder %s28, 0
    %p181 = por %p179, %p180
    %s183 = sadd.s32 %s182, 1
    %p186 = scmp.eq.s32.totalorder %s22, 1
    %p187 = scmp.ne.s32.totalorder %s182, %s184
    %p188 = scmp.eq.s32.totalorder %s22, 0
    %p189 = por %p187, %p188
    %p190 = scmp.ne.s32.totalorder %s182, %s184
    %p191 = scmp.eq.s32.totalorder %s27, 1
    %p192 = por %p190, %p191
    %p193 = scmp.ne.s32.totalorder %s184, %s185
    %p194 = scmp.eq.s32.totalorder %s27, 0
    %p195 = por %p193, %p194
    %p196 = scmp.ne.s32.totalorder %s184, %s185
    %p197 = scmp.eq.s32.totalorder %s28, 1
    %p198 = por %p196, %p197
    %p200 = scmp.ne.s32.totalorder %s185, %s199
    %p201 = scmp.eq.s32.totalorder %s28, 0
    %p202 = por %p200, %p201
    %s204 = sadd.s32 %s203, 1
    %p207 = scmp.eq.s32.totalorder %s22, 1
    %p208 = scmp.ne.s32.totalorder %s203, %s205
    %p209 = scmp.eq.s32.totalorder %s22, 0
    %p210 = por %p208, %p209
    %p211 = scmp.ne.s32.totalorder %s203, %s205
    %p212 = scmp.eq.s32.totalorder %s27, 1
    %p213 = por %p211, %p212
    %p214 = scmp.ne.s32.totalorder %s205, %s206
    %p215 = scmp.eq.s32.totalorder %s27, 0
    %p216 = por %p214, %p215
    %p217 = scmp.ne.s32.totalorder %s205, %s206
    %p218 = scmp.eq.s32.totalorder %s28, 1
    %p219 = por %p217, %p218
    %p221 = scmp.ne.s32.totalorder %s206, %s220
    %p222 = scmp.eq.s32.totalorder %s28, 0
    %p223 = por %p221, %p222
    %s225 = sadd.s32 %s224, 1
    %p228 = scmp.eq.s32.totalorder %s22, 1
    %p229 = scmp.ne.s32.totalorder %s224, %s226
    %p230 = scmp.eq.s32.totalorder %s22, 0
    %p231 = por %p229, %p230
    %p232 = scmp.ne.s32.totalorder %s224, %s226
    %p233 = scmp.eq.s32.totalorder %s27, 1
    %p234 = por %p232, %p233
    %p235 = scmp.ne.s32.totalorder %s226, %s227
    %p236 = scmp.eq.s32.totalorder %s27, 0
    %p237 = por %p235, %p236
    %p238 = scmp.ne.s32.totalorder %s226, %s227
    %p239 = scmp.eq.s32.totalorder %s28, 1
    %p240 = por %p238, %p239
    %p242 = scmp.ne.s32.totalorder %s227, %s241
    %p243 = scmp.eq.s32.totalorder %s28, 0
    %p244 = por %p242, %p243
    %s246 = sadd.s32 %s245, 1
    %p249 = scmp.eq.s32.totalorder %s22, 1
    %p250 = scmp.ne.s32.totalorder %s245, %s247
    %p251 = scmp.eq.s32.totalorder %s22, 0
    %p252 = por %p250, %p251
    %p253 = scmp.ne.s32.totalorder %s245, %s247
    %p254 = scmp.eq.s32.totalorder %s27, 1
    %p255 = por %p253, %p254
    %p256 = scmp.ne.s32.totalorder %s247, %s248
    %p257 = scmp.eq.s32.totalorder %s27, 0
    %p258 = por %p256, %p257
    %p259 = scmp.ne.s32.totalorder %s247, %s248
    %p260 = scmp.eq.s32.totalorder %s28, 1
    %p261 = por %p259, %p260
    %p263 = scmp.ne.s32.totalorder %s248, %s262
    %p264 = scmp.eq.s32.totalorder %s28, 0
    %p265 = por %p263, %p264
    %s267 = sadd.s32 %s266, 1
    %p270 = scmp.eq.s32.totalorder %s22, 1
    %p271 = scmp.ne.s32.totalorder %s266, %s268
    %p272 = scmp.eq.s32.totalorder %s22, 0
    %p273 = por %p271, %p272
    %p274 = scmp.ne.s32.totalorder %s266, %s268
    %p275 = scmp.eq.s32.totalorder %s27, 1
    %p276 = por %p274, %p275
    %p277 = scmp.ne.s32.totalorder %s268, %s269
    %p278 = scmp.eq.s32.totalorder %s27, 0
    %p279 = por %p277, %p278
    %p280 = scmp.ne.s32.totalorder %s268, %s269
    %p281 = scmp.eq.s32.totalorder %s28, 1
    %p282 = por %p280, %p281
    %p284 = scmp.ne.s32.totalorder %s269, %s283
    %p285 = scmp.eq.s32.totalorder %s28, 0
    %p286 = por %p284, %p285
    %s288 = sadd.s32 %s287, 1
    %p291 = scmp.eq.s32.totalorder %s22, 1
    %p292 = scmp.ne.s32.totalorder %s287, %s289
    %p293 = scmp.eq.s32.totalorder %s22, 0
    %p294 = por %p292, %p293
    %p295 = scmp.ne.s32.totalorder %s287, %s289
    %p296 = scmp.eq.s32.totalorder %s27, 1
    %p297 = por %p295, %p296
    %p298 = scmp.ne.s32.totalorder %s289, %s290
    %p299 = scmp.eq.s32.totalorder %s27, 0
    %p300 = por %p298, %p299
    %p301 = scmp.ne.s32.totalorder %s289, %s290
    %p302 = scmp.eq.s32.totalorder %s28, 1
    %p303 = por %p301, %p302
    %p305 = scmp.ne.s32.totalorder %s290, %s304
    %p306 = scmp.eq.s32.totalorder %s28, 0
    %p307 = por %p305, %p306
    %s309 = sadd.s32 %s308, 1
    %p312 = scmp.eq.s32.totalorder %s22, 1
    %p313 = scmp.ne.s32.totalorder %s308, %s310
    %p314 = scmp.eq.s32.totalorder %s22, 0
    %p315 = por %p313, %p314
    %p316 = scmp.ne.s32.totalorder %s308, %s310
    %p317 = scmp.eq.s32.totalorder %s27, 1
    %p318 = por %p316, %p317
    %p319 = scmp.ne.s32.totalorder %s310, %s311
    %p320 = scmp.eq.s32.totalorder %s27, 0
    %p321 = por %p319, %p320
    %p322 = scmp.ne.s32.totalorder %s310, %s311
    %p323 = scmp.eq.s32.totalorder %s28, 1
    %p324 = por %p322, %p323
    %p326 = scmp.ne.s32.totalorder %s311, %s325
    %p327 = scmp.eq.s32.totalorder %s28, 0
    %p328 = por %p326, %p327
    %s330 = sadd.s32 %s329, 1
    %p333 = scmp.eq.s32.totalorder %s22, 1
    %p334 = scmp.ne.s32.totalorder %s329, %s331
    %p335 = scmp.eq.s32.totalorder %s22, 0
    %p336 = por %p334, %p335
    %p337 = scmp.ne.s32.totalorder %s329, %s331
    %p338 = scmp.eq.s32.totalorder %s27, 1
    %p339 = por %p337, %p338
    %p340 = scmp.ne.s32.totalorder %s331, %s332
    %p341 = scmp.eq.s32.totalorder %s27, 0
    %p342 = por %p340, %p341
    %p343 = scmp.ne.s32.totalorder %s331, %s332
    %p344 = scmp.eq.s32.totalorder %s28, 1
    %p345 = por %p343, %p344
    %p347 = scmp.ne.s32.totalorder %s332, %s346
    %p348 = scmp.eq.s32.totalorder %s28, 0
    %p349 = por %p347, %p348
    %s350 = ssub.s32 %s22, %s29
    %p351 = scmp.eq.s32.totalorder %s350, 0
    %s353 = sadd.s32 %s352, 1
    %s354 = scalar_select %p351, %s352, %s353
    %p357 = pneg %p351
    %p358 = scmp.eq.s32.totalorder %s22, 1
    %p359 = por %p357, %p358
    %p360 = scmp.ne.s32.totalorder %s352, %s355
    %p361 = scmp.eq.s32.totalorder %s22, 0
    %p362 = por %p360, %p361
    %p363 = scmp.ne.s32.totalorder %s352, %s355
    %p364 = scmp.eq.s32.totalorder %s27, 1
    %p365 = por %p363, %p364
    %p366 = scmp.ne.s32.totalorder %s355, %s356
    %p367 = scmp.eq.s32.totalorder %s27, 0
    %p368 = por %p366, %p367
    %p369 = scmp.ne.s32.totalorder %s355, %s356
    %p370 = scmp.eq.s32.totalorder %s28, 1
    %p371 = por %p369, %p370
    %p373 = scmp.ne.s32.totalorder %s356, %s372
    %p374 = scmp.eq.s32.totalorder %s28, 0
    %p375 = por %p373, %p374
    %p376 = scmp.le.s32.totalorder 1, %s22
    %p377 = scmp.lt.s32.totalorder %s22, 3
    %p378 = pnand %p376, %p377
    %p379 = pneg %p378
    // Predicated region
    $region9: #{discriminator_forward.1} parent=5 // pred_check
      _
    $region10: #{discriminator_forward.1} parent=5 // pred_check_branch
      %381 = sbr.rel (%p378) target = $region12
    $region11: #{discriminator_forward.1} parent=5 // pred_region
      %s382 = ssub.s32 %s22, 1
      // Predicated region
      $region13: #{discriminator_forward.1} parent=11 // pred_check
        %p383 = pneg %p69
      $region14: #{discriminator_forward.1} parent=11 // pred_check_branch
        %385 = sbr.rel (%p383) target = $region16
      $region15: #{discriminator_forward.1} parent=11 // pred_region
        _
      $region16: #{discriminator_forward.1} parent=11 // pred_fallthru
        _
      // Predicated region
      $region17: #{discriminator_forward.1} parent=11 // pred_check
        %p386 = pneg %p90
      $region18: #{discriminator_forward.1} parent=11 // pred_check_branch
        %388 = sbr.rel (%p386) target = $region20
      $region19: #{discriminator_forward.1} parent=11 // pred_region
        _
      $region20: #{discriminator_forward.1} parent=11 // pred_fallthru
        _
      // Predicated region
      $region21: #{discriminator_forward.1} parent=11 // pred_check
        %p389 = pneg %p111
      $region22: #{discriminator_forward.1} parent=11 // pred_check_branch
        %391 = sbr.rel (%p389) target = $region24
      $region23: #{discriminator_forward.1} parent=11 // pred_region
        _
      $region24: #{discriminator_forward.1} parent=11 // pred_fallthru
        _
      // Predicated region
      $region25: #{discriminator_forward.1} parent=11 // pred_check
        %p392 = pneg %p132
      $region26: #{discriminator_forward.1} parent=11 // pred_check_branch
        %394 = sbr.rel (%p392) target = $region28
      $region27: #{discriminator_forward.1} parent=11 // pred_region
        _
      $region28: #{discriminator_forward.1} parent=11 // pred_fallthru
        _
      // Predicated region
      $region29: #{discriminator_forward.1} parent=11 // pred_check
        %p395 = pneg %p153
      $region30: #{discriminator_forward.1} parent=11 // pred_check_branch
        %397 = sbr.rel (%p395) target = $region32
      $region31: #{discriminator_forward.1} parent=11 // pred_region
        _
      $region32: #{discriminator_forward.1} parent=11 // pred_fallthru
        _
      // Predicated region
      $region33: #{discriminator_forward.1} parent=11 // pred_check
        %p398 = pneg %p174
      $region34: #{discriminator_forward.1} parent=11 // pred_check_branch
        %400 = sbr.rel (%p398) target = $region36
      $region35: #{discriminator_forward.1} parent=11 // pred_region
        _
      $region36: #{discriminator_forward.1} parent=11 // pred_fallthru
        _
      // Predicated region
      $region37: #{discriminator_forward.1} parent=11 // pred_check
        %p401 = pneg %p195
      $region38: #{discriminator_forward.1} parent=11 // pred_check_branch
        %403 = sbr.rel (%p401) target = $region40
      $region39: #{discriminator_forward.1} parent=11 // pred_region
        _
      $region40: #{discriminator_forward.1} parent=11 // pred_fallthru
        _
      // Predicated region
      $region41: #{discriminator_forward.1} parent=11 // pred_check
        %p404 = pneg %p216
      $region42: #{discriminator_forward.1} parent=11 // pred_check_branch
        %406 = sbr.rel (%p404) target = $region44
      $region43: #{discriminator_forward.1} parent=11 // pred_region
        _
      $region44: #{discriminator_forward.1} parent=11 // pred_fallthru
        _
      // Predicated region
      $region45: #{discriminator_forward.1} parent=11 // pred_check
        %p407 = pneg %p237
      $region46: #{discriminator_forward.1} parent=11 // pred_check_branch
        %409 = sbr.rel (%p407) target = $region48
      $region47: #{discriminator_forward.1} parent=11 // pred_region
        _
      $region48: #{discriminator_forward.1} parent=11 // pred_fallthru
        _
      // Predicated region
      $region49: #{discriminator_forward.1} parent=11 // pred_check
        %p410 = pneg %p258
      $region50: #{discriminator_forward.1} parent=11 // pred_check_branch
        %412 = sbr.rel (%p410) target = $region52
      $region51: #{discriminator_forward.1} parent=11 // pred_region
        _
      $region52: #{discriminator_forward.1} parent=11 // pred_fallthru
        _
      // Predicated region
      $region53: #{discriminator_forward.1} parent=11 // pred_check
        %p413 = pneg %p279
      $region54: #{discriminator_forward.1} parent=11 // pred_check_branch
        %415 = sbr.rel (%p413) target = $region56
      $region55: #{discriminator_forward.1} parent=11 // pred_region
        _
      $region56: #{discriminator_forward.1} parent=11 // pred_fallthru
        _
      // Predicated region
      $region57: #{discriminator_forward.1} parent=11 // pred_check
        %p416 = pneg %p300
      $region58: #{discriminator_forward.1} parent=11 // pred_check_branch
        %418 = sbr.rel (%p416) target = $region60
      $region59: #{discriminator_forward.1} parent=11 // pred_region
        _
      $region60: #{discriminator_forward.1} parent=11 // pred_fallthru
        _
      // Predicated region
      $region61: #{discriminator_forward.1} parent=11 // pred_check
        %p419 = pneg %p321
      $region62: #{discriminator_forward.1} parent=11 // pred_check_branch
        %421 = sbr.rel (%p419) target = $region64
      $region63: #{discriminator_forward.1} parent=11 // pred_region
        _
      $region64: #{discriminator_forward.1} parent=11 // pred_fallthru
        _
      // Predicated region
      $region65: #{discriminator_forward.1} parent=11 // pred_check
        %p422 = pneg %p342
      $region66: #{discriminator_forward.1} parent=11 // pred_check_branch
        %424 = sbr.rel (%p422) target = $region68
      $region67: #{discriminator_forward.1} parent=11 // pred_region
        _
      $region68: #{discriminator_forward.1} parent=11 // pred_fallthru
        _
    $region12: #{discriminator_forward.1} parent=5 // pred_fallthru
      _
    %p425 = scmp.lt.s32.totalorder %s22, 2
    // Predicated region
    $region69: #{discriminator_forward.1} parent=5 // pred_check
      %p426 = pneg %p425
    $region70: #{discriminator_forward.1} parent=5 // pred_check_branch
      %428 = sbr.rel (%p426) target = $region72
    $region71: #{discriminator_forward.1} parent=5 // pred_region
      // Predicated region
      $region73: #{discriminator_forward.1} parent=71 // pred_check
        %p429 = pneg %p42
      $region74: #{discriminator_forward.1} parent=71 // pred_check_branch
        %431 = sbr.rel (%p429) target = $region76
      $region75: #{discriminator_forward.1} parent=71 // pred_region
        %p432 = scmp.lt.s32.totalorder %s22, 1
        %s433 = scalar_select %p432, %s22, 1
        %s434 = smul.addr %s433, 32
        %s435 = smul.addr %s434, 4
        %s436 = scalar_lea.vmem %s0, %s435
      $region76: #{discriminator_forward.1} parent=71 // pred_fallthru
        _
    $region72: #{discriminator_forward.1} parent=5 // pred_fallthru
      _
    %p437 = scmp.le.s32.totalorder 1, %s22
    %p438 = scmp.lt.s32.totalorder %s22, 3
    %p439 = pnand %p437, %p438
    %p440 = pneg %p439
    // Predicated region
    $region77: #{discriminator_forward.1} parent=5 // pred_check
      _
    $region78: #{discriminator_forward.1} parent=5 // pred_check_branch
      %442 = sbr.rel (%p439) target = $region80
    $region79: #{discriminator_forward.1} parent=5 // pred_region
      %s443 = ssub.s32 %s22, 1
      %p444 = scmp.lt.s32.totalorder %s27, 1
      %s445 = scalar_select %p444, %s27, 1
      %s446 = smul.addr %s445, 32
      %s447 = smul.addr %s446, 4
      %s448 = scalar_lea.vmem %s0, %s447
      %p449 = pneg %p48
      %p450 = pneg %p45
      %p451 = pneg %p69
      %p452 = pneg %p66
      %p453 = pneg %p90
      %p454 = pneg %p87
      %p455 = pneg %p111
      %p456 = pneg %p108
      %p457 = pneg %p132
      %p458 = pneg %p129
      %p459 = pneg %p153
      %p460 = pneg %p150
      %p461 = pneg %p174
      %p462 = pneg %p171
      %p463 = pneg %p195
      %p464 = pneg %p192
      %p465 = pneg %p216
      %p466 = pneg %p213
      %p467 = pneg %p237
      %p468 = pneg %p234
      %p469 = pneg %p258
      %p470 = pneg %p255
      %p471 = pneg %p279
      %p472 = pneg %p276
      %p473 = pneg %p300
      %p474 = pneg %p297
      %p475 = pneg %p321
      %p476 = pneg %p318
      %p477 = pneg %p342
      %p478 = pneg %p339
      %p479 = pneg %p368
      %p480 = pneg %p365
      %p481 = scmp.lt.s32.totalorder %s27, 1
      %s482 = scalar_select %p481, %s27, 1
      %s483 = scalar_lea.vmem %s15, %s482
      %p484 = scmp.lt.s32.totalorder %s27, 1
      %s485 = scalar_select %p484, %s27, 1
      %s486 = smul.addr %s485, 32
      %s487 = smul.addr %s486, 4
      %s488 = scalar_lea.vmem %s0, %s487
      %p489 = scmp.lt.s32.totalorder %s27, 1
      %s490 = scalar_select %p489, %s27, 1
      %s491 = scalar_lea.vmem %s15, %s490
      %v493 = vld [vmem:[%s488] sm:$0xf]
      %v494 = vld [vmem:[%s488 + $0x4] sm:$0xf]
      %v495 = vld [vmem:[%s488 + $0x8] sm:$0xf]
      %v496 = vld [vmem:[%s488 + $0xc] sm:$0xf]
      %v497 = vld [vmem:[%s488 + $0x10] sm:$0xf]
      %v498 = vld [vmem:[%s488 + $0x14] sm:$0xf]
      %v499 = vld [vmem:[%s488 + $0x18] sm:$0xf]
      %v500 = vld [vmem:[%s488 + $0x1c] sm:$0xf]
      %v501 = vld [vmem:[%s488 + $0x20] sm:$0xf]
      %v502 = vld [vmem:[%s488 + $0x24] sm:$0xf]
      %v503 = vld [vmem:[%s488 + $0x28] sm:$0xf]
      %v504 = vld [vmem:[%s488 + $0x2c] sm:$0xf]
      %v505 = vld [vmem:[%s488 + $0x30] sm:$0xf]
      %v506 = vld [vmem:[%s488 + $0x34] sm:$0xf]
      %v507 = vld [vmem:[%s488 + $0x38] sm:$0xf]
      %v508 = vld [vmem:[%s488 + $0x3c] sm:$0xf]
      %v509 = vld [vmem:[%s488 + $0x40] sm:$0xf]
      %v510 = vld [vmem:[%s488 + $0x44] sm:$0xf]
      %v511 = vld [vmem:[%s488 + $0x48] sm:$0xf]
      %v512 = vld [vmem:[%s488 + $0x4c] sm:$0xf]
      %v513 = vld [vmem:[%s488 + $0x50] sm:$0xf]
      %v514 = vld [vmem:[%s488 + $0x54] sm:$0xf]
      %v515 = vld [vmem:[%s488 + $0x58] sm:$0xf]
      %v516 = vld [vmem:[%s488 + $0x5c] sm:$0xf]
      %v517 = vld [vmem:[%s488 + $0x60] sm:$0xf]
      %v518 = vld [vmem:[%s488 + $0x64] sm:$0xf]
      %v519 = vld [vmem:[%s488 + $0x68] sm:$0xf]
      %v520 = vld [vmem:[%s488 + $0x6c] sm:$0xf]
      %v521 = vld [vmem:[%s488 + $0x70] sm:$0xf]
      %v522 = vld [vmem:[%s488 + $0x74] sm:$0xf]
      %v523 = vld [vmem:[%s488 + $0x78] sm:$0xf]
      %v524 = vld [vmem:[%s488 + $0x7c] sm:$0xf]
      %v525 = vld [vmem:[%s1] sm:$0xf]
      %v526 = vld [vmem:[%s1 + $0x4] sm:$0x1]
      %v527 = vld [vmem:[%s2] sm:$0x1]
      %v529 = vlaneseq
      %v530 = vshrl.u32 %v529, 7
      %v531 = vsub.s32 0, %v530
      %v532 = vrot.slane %v527, %v531
      %v566 = vunpack.c.l.b16 %v493
      %v567 = vunpack.c.l.b16 %v494
      %v568 = vunpack.c.l.b16 %v495
      %v569 = vunpack.c.l.b16 %v496
      %v570 = vunpack.c.l.b16 %v497
      %v571 = vunpack.c.l.b16 %v498
      %v572 = vunpack.c.l.b16 %v499
      %v573 = vunpack.c.l.b16 %v500
      %v574 = vunpack.c.l.b16 %v501
      %v575 = vunpack.c.l.b16 %v502
      %v576 = vunpack.c.l.b16 %v503
      %v577 = vunpack.c.l.b16 %v504
      %v578 = vunpack.c.l.b16 %v505
      %v579 = vunpack.c.l.b16 %v506
      %v580 = vunpack.c.l.b16 %v507
      %v581 = vunpack.c.l.b16 %v508
      %v582 = vunpack.c.l.b16 %v509
      %v583 = vunpack.c.l.b16 %v510
      %v584 = vunpack.c.l.b16 %v511
      %v585 = vunpack.c.l.b16 %v512
      %v586 = vunpack.c.l.b16 %v513
      %v587 = vunpack.c.l.b16 %v514
      %v588 = vunpack.c.l.b16 %v515
      %v589 = vunpack.c.l.b16 %v516
      %v590 = vunpack.c.l.b16 %v517
      %v591 = vunpack.c.l.b16 %v518
      %v592 = vunpack.c.l.b16 %v519
      %v593 = vunpack.c.l.b16 %v520
      %v594 = vunpack.c.l.b16 %v521
      %v595 = vunpack.c.l.b16 %v522
      %v596 = vunpack.c.l.b16 %v523
      %v597 = vunpack.c.l.b16 %v524
      %v598 = vpack.c.b16 %v567, %v566
      %v599 = vpack.c.b16 %v569, %v568
      %v600 = vpack.c.b16 %v571, %v570
      %v601 = vpack.c.b16 %v573, %v572
      %v602 = vpack.c.b16 %v575, %v574
      %v603 = vpack.c.b16 %v577, %v576
      %v604 = vpack.c.b16 %v579, %v578
      %v605 = vpack.c.b16 %v581, %v580
      %v606 = vpack.c.b16 %v583, %v582
      %v607 = vpack.c.b16 %v585, %v584
      %v608 = vpack.c.b16 %v587, %v586
      %v609 = vpack.c.b16 %v589, %v588
      %v610 = vpack.c.b16 %v591, %v590
      %v611 = vpack.c.b16 %v593, %v592
      %v612 = vpack.c.b16 %v595, %v594
      %v613 = vpack.c.b16 %v597, %v596
      %v616 = vunpack.c.l.b16 %v525
      %v617 = vunpack.c.l.b16 %v526
      %v618 = vpack.c.b16 %v617, %v616
      %vm619 = vcmask 72704
      %v621 = vsel %vm619, %v598, 0
      %v624 = vsel %vm619, %v599, 0
      %v627 = vsel %vm619, %v600, 0
      %v630 = vsel %vm619, %v601, 0
      %v633 = vsel %vm619, %v602, 0
      %v636 = vsel %vm619, %v603, 0
      %v639 = vsel %vm619, %v604, 0
      %v642 = vsel %vm619, %v605, 0
      %v645 = vsel %vm619, %v606, 0
      %v648 = vsel %vm619, %v607, 0
      %v651 = vsel %vm619, %v608, 0
      %v654 = vsel %vm619, %v609, 0
      %v657 = vsel %vm619, %v610, 0
      %v660 = vsel %vm619, %v611, 0
      %v663 = vsel %vm619, %v612, 0
      %v666 = vsel %vm619, %v613, 0
      %vm668 = vcmask 1043456
      %vm669 = vcmask 1044480
      %v670 = vsel %vm668, 4294967295, 65535
      %v671 = vsel %vm669, %v670, 0
      %v673 = vand.u32 %v618, %v671
      %675 = vmatprep.subr.bf16.mxu0 0
      %676 = vmatpush1.bf16.msra.mxu0 0
      %677 = vmatprep.subr.bf16.mxu0 0
      %678 = vmatpush1.bf16.msra.mxu0 0
      %679 = vmatprep.subr.bf16.mxu0 0
      %680 = vmatpush1.bf16.msra.mxu0 0
      %681 = vmatprep.subr.bf16.mxu0 0
      %682 = vmatpush1.bf16.msra.mxu0 0
      %683 = vmatprep.subr.bf16.mxu0 0
      %684 = vmatpush1.bf16.msra.mxu0 0
      %685 = vmatprep.subr.bf16.mxu0 0
      %686 = vmatpush1.bf16.msra.mxu0 0
      %687 = vmatprep.subr.bf16.mxu0 0
      %688 = vmatpush1.bf16.msra.mxu0 0
      %689 = vmatprep.subr.bf16.mxu0 0
      %690 = vmatpush1.bf16.msra.mxu0 %v673
      %691 = vmatprep.subr.bf16.mxu0 0
      %692 = vmatpush2.bf16.msra.mxu0 0
      %693 = vmatprep.subr.bf16.mxu0 0
      %694 = vmatpush2.bf16.msra.mxu0 0
      %695 = vmatprep.subr.bf16.mxu0 0
      %696 = vmatpush2.bf16.msra.mxu0 0
      %697 = vmatprep.subr.bf16.mxu0 0
      %698 = vmatpush2.bf16.msra.mxu0 0
      %699 = vmatprep.subr.bf16.mxu0 0
      %700 = vmatpush2.bf16.msra.mxu0 0
      %701 = vmatprep.subr.bf16.mxu0 0
      %702 = vmatpush2.bf16.msra.mxu0 0
      %703 = vmatprep.subr.bf16.mxu0 0
      %704 = vmatpush2.bf16.msra.mxu0 0
      %705 = vmatprep.subr.bf16.mxu0 0
      %706 = vmatpush2.bf16.msra.mxu0 0
      %707 = vmatprep.mubr.bf16.mxu0 0
      %708 = vmatmul.mubr.bf16.gmra.mxu0 %v621
      %v709 = vpop.f32.mrf.mxu0
      %v710 = vadd.f32 %v532, %v709
      %v711 = vpop.f32.mrf.mxu0
      %v712 = vpop.f32.mrf.mxu0
      %v713 = vadd.f32 %v532, %v712
      %v714 = vpop.f32.mrf.mxu0
      %715 = vmatprep.mubr.bf16.mxu0 0
      %716 = vmatmul.mubr.bf16.gmra.mxu0 %v624
      %v717 = vpop.f32.mrf.mxu0
      %v718 = vadd.f32 %v532, %v717
      %v719 = vpop.f32.mrf.mxu0
      %v720 = vpop.f32.mrf.mxu0
      %v721 = vadd.f32 %v532, %v720
      %v722 = vpop.f32.mrf.mxu0
      %723 = vmatprep.mubr.bf16.mxu0 0
      %724 = vmatmul.mubr.bf16.gmra.mxu0 %v627
      %v725 = vpop.f32.mrf.mxu0
      %v726 = vadd.f32 %v532, %v725
      %v727 = vpop.f32.mrf.mxu0
      %v728 = vpop.f32.mrf.mxu0
      %v729 = vadd.f32 %v532, %v728
      %v730 = vpop.f32.mrf.mxu0
      %731 = vmatprep.mubr.bf16.mxu0 0
      %732 = vmatmul.mubr.bf16.gmra.mxu0 %v630
      %v733 = vpop.f32.mrf.mxu0
      %v734 = vadd.f32 %v532, %v733
      %v735 = vpop.f32.mrf.mxu0
      %v736 = vpop.f32.mrf.mxu0
      %v737 = vadd.f32 %v532, %v736
      %v738 = vpop.f32.mrf.mxu0
      %739 = vmatprep.mubr.bf16.mxu0 0
      %740 = vmatmul.mubr.bf16.gmra.mxu0 %v633
      %v741 = vpop.f32.mrf.mxu0
      %v742 = vadd.f32 %v532, %v741
      %v743 = vpop.f32.mrf.mxu0
      %v744 = vpop.f32.mrf.mxu0
      %v745 = vadd.f32 %v532, %v744
      %v746 = vpop.f32.mrf.mxu0
      %747 = vmatprep.mubr.bf16.mxu0 0
      %748 = vmatmul.mubr.bf16.gmra.mxu0 %v636
      %v749 = vpop.f32.mrf.mxu0
      %v750 = vadd.f32 %v532, %v749
      %v751 = vpop.f32.mrf.mxu0
      %v752 = vpop.f32.mrf.mxu0
      %v753 = vadd.f32 %v532, %v752
      %v754 = vpop.f32.mrf.mxu0
      %755 = vmatprep.mubr.bf16.mxu0 0
      %756 = vmatmul.mubr.bf16.gmra.mxu0 %v639
      %v757 = vpop.f32.mrf.mxu0
      %v758 = vadd.f32 %v532, %v757
      %v759 = vpop.f32.mrf.mxu0
      %v760 = vpop.f32.mrf.mxu0
      %v761 = vadd.f32 %v532, %v760
      %v762 = vpop.f32.mrf.mxu0
      %763 = vmatprep.mubr.bf16.mxu0 0
      %764 = vmatmul.mubr.bf16.gmra.mxu0 %v642
      %v765 = vpop.f32.mrf.mxu0
      %v766 = vadd.f32 %v532, %v765
      %v767 = vpop.f32.mrf.mxu0
      %v768 = vpop.f32.mrf.mxu0
      %v769 = vadd.f32 %v532, %v768
      %v770 = vpop.f32.mrf.mxu0
      %771 = vmatprep.mubr.bf16.mxu0 0
      %772 = vmatmul.mubr.bf16.gmra.mxu0 %v645
      %v773 = vpop.f32.mrf.mxu0
      %v774 = vadd.f32 %v532, %v773
      %v775 = vpop.f32.mrf.mxu0
      %v776 = vpop.f32.mrf.mxu0
      %v777 = vadd.f32 %v532, %v776
      %v778 = vpop.f32.mrf.mxu0
      %779 = vmatprep.mubr.bf16.mxu0 0
      %780 = vmatmul.mubr.bf16.gmra.mxu0 %v648
      %v781 = vpop.f32.mrf.mxu0
      %v782 = vadd.f32 %v532, %v781
      %v783 = vpop.f32.mrf.mxu0
      %v784 = vpop.f32.mrf.mxu0
      %v785 = vadd.f32 %v532, %v784
      %v786 = vpop.f32.mrf.mxu0
      %787 = vmatprep.mubr.bf16.mxu0 0
      %788 = vmatmul.mubr.bf16.gmra.mxu0 %v651
      %v789 = vpop.f32.mrf.mxu0
      %v790 = vadd.f32 %v532, %v789
      %v791 = vpop.f32.mrf.mxu0
      %v792 = vpop.f32.mrf.mxu0
      %v793 = vadd.f32 %v532, %v792
      %v794 = vpop.f32.mrf.mxu0
      %795 = vmatprep.mubr.bf16.mxu0 0
      %796 = vmatmul.mubr.bf16.gmra.mxu0 %v654
      %v797 = vpop.f32.mrf.mxu0
      %v798 = vadd.f32 %v532, %v797
      %v799 = vpop.f32.mrf.mxu0
      %v800 = vpop.f32.mrf.mxu0
      %v801 = vadd.f32 %v532, %v800
      %v802 = vpop.f32.mrf.mxu0
      %803 = vmatprep.mubr.bf16.mxu0 0
      %804 = vmatmul.mubr.bf16.gmra.mxu0 %v657
      %v805 = vpop.f32.mrf.mxu0
      %v806 = vadd.f32 %v532, %v805
      %v807 = vpop.f32.mrf.mxu0
      %v808 = vpop.f32.mrf.mxu0
      %v809 = vadd.f32 %v532, %v808
      %v810 = vpop.f32.mrf.mxu0
      %811 = vmatprep.mubr.bf16.mxu0 0
      %812 = vmatmul.mubr.bf16.gmra.mxu0 %v660
      %v813 = vpop.f32.mrf.mxu0
      %v814 = vadd.f32 %v532, %v813
      %v815 = vpop.f32.mrf.mxu0
      %v816 = vpop.f32.mrf.mxu0
      %v817 = vadd.f32 %v532, %v816
      %v818 = vpop.f32.mrf.mxu0
      %819 = vmatprep.mubr.bf16.mxu0 0
      %820 = vmatmul.mubr.bf16.gmra.mxu0 %v663
      %v821 = vpop.f32.mrf.mxu0
      %v822 = vadd.f32 %v532, %v821
      %v823 = vpop.f32.mrf.mxu0
      %v824 = vpop.f32.mrf.mxu0
      %v825 = vadd.f32 %v532, %v824
      %v826 = vpop.f32.mrf.mxu0
      %827 = vmatprep.mubr.bf16.mxu0 0
      %828 = vmatmul.mubr.bf16.gmra.mxu0 %v666
      %v829 = vpop.f32.mrf.mxu0
      %v830 = vadd.f32 %v532, %v829
      %v831 = vpop.f32.mrf.mxu0
      %v832 = vpop.f32.mrf.mxu0
      %v833 = vadd.f32 %v532, %v832
      %v834 = vpop.f32.mrf.mxu0
      %835 = vdwg.mxu0
      %vm836 = vcmask 523264
      %v837 = vsel %vm836, %v710, 0.0
      %v838 = vsel %vm836, %v713, 0.0
      %v839 = vadd.f32 %v837, %v838
      %v840 = vsel %vm836, %v718, 0.0
      %v841 = vadd.f32 %v839, %v840
      %v842 = vsel %vm836, %v721, 0.0
      %v843 = vadd.f32 %v841, %v842
      %v844 = vsel %vm836, %v726, 0.0
      %v845 = vadd.f32 %v843, %v844
      %v846 = vsel %vm836, %v729, 0.0
      %v847 = vadd.f32 %v845, %v846
      %v848 = vsel %vm836, %v734, 0.0
      %v849 = vadd.f32 %v847, %v848
      %v850 = vsel %vm836, %v737, 0.0
      %v851 = vadd.f32 %v849, %v850
      %v852 = vsel %vm836, %v742, 0.0
      %v853 = vadd.f32 %v851, %v852
      %v854 = vsel %vm836, %v745, 0.0
      %v855 = vadd.f32 %v853, %v854
      %v856 = vsel %vm836, %v750, 0.0
      %v857 = vadd.f32 %v855, %v856
      %v858 = vsel %vm836, %v753, 0.0
      %v859 = vadd.f32 %v857, %v858
      %v860 = vsel %vm836, %v758, 0.0
      %v861 = vadd.f32 %v859, %v860
      %v862 = vsel %vm836, %v761, 0.0
      %v863 = vadd.f32 %v861, %v862
      %v864 = vsel %vm836, %v766, 0.0
      %v865 = vadd.f32 %v863, %v864
      %v866 = vsel %vm836, %v769, 0.0
      %v867 = vadd.f32 %v865, %v866
      %v868 = vsel %vm836, %v774, 0.0
      %v869 = vadd.f32 %v867, %v868
      %v870 = vsel %vm836, %v777, 0.0
      %v871 = vadd.f32 %v869, %v870
      %v872 = vsel %vm836, %v782, 0.0
      %v873 = vadd.f32 %v871, %v872
      %v874 = vsel %vm836, %v785, 0.0
      %v875 = vadd.f32 %v873, %v874
      %v876 = vsel %vm836, %v790, 0.0
      %v877 = vadd.f32 %v875, %v876
      %v878 = vsel %vm836, %v793, 0.0
      %v879 = vadd.f32 %v877, %v878
      %v880 = vsel %vm836, %v798, 0.0
      %v881 = vadd.f32 %v879, %v880
      %v882 = vsel %vm836, %v801, 0.0
      %v883 = vadd.f32 %v881, %v882
      %v884 = vsel %vm836, %v806, 0.0
      %v885 = vadd.f32 %v883, %v884
      %v886 = vsel %vm836, %v809, 0.0
      %v887 = vadd.f32 %v885, %v886
      %v888 = vsel %vm836, %v814, 0.0
      %v889 = vadd.f32 %v887, %v888
      %v890 = vsel %vm836, %v817, 0.0
      %v891 = vadd.f32 %v889, %v890
      %v892 = vsel %vm836, %v822, 0.0
      %v893 = vadd.f32 %v891, %v892
      %v894 = vsel %vm836, %v825, 0.0
      %v895 = vadd.f32 %v893, %v894
      %v896 = vsel %vm836, %v830, 0.0
      %v897 = vadd.f32 %v895, %v896
      %v898 = vsel %vm836, %v833, 0.0
      %v899 = vadd.f32 %v897, %v898
      %v900 = vrot.slane %v899, 4
      %v901 = vadd.f32 %v899, %v900
      %v902 = vrot.slane %v901, 2
      %v903 = vadd.f32 %v901, %v902
      %v904 = vrot.slane %v903, 1
      %v905 = vadd.f32 %v903, %v904
      %v906 = vrcp.pop 256.0
      %v907 = vmul.f32 %v905, %v906
      %v908 = vsub.f32 %v710, %v907
      %v909 = vsub.f32 %v713, %v907
      %v910 = vsub.f32 %v718, %v907
      %v911 = vsub.f32 %v721, %v907
      %v912 = vsub.f32 %v726, %v907
      %v913 = vsub.f32 %v729, %v907
      %v914 = vsub.f32 %v734, %v907
      %v915 = vsub.f32 %v737, %v907
      %v916 = vsub.f32 %v742, %v907
      %v917 = vsub.f32 %v745, %v907
      %v918 = vsub.f32 %v750, %v907
      %v919 = vsub.f32 %v753, %v907
      %v920 = vsub.f32 %v758, %v907
      %v921 = vsub.f32 %v761, %v907
      %v922 = vsub.f32 %v766, %v907
      %v923 = vsub.f32 %v769, %v907
      %v924 = vsub.f32 %v774, %v907
      %v925 = vsub.f32 %v777, %v907
      %v926 = vsub.f32 %v782, %v907
      %v927 = vsub.f32 %v785, %v907
      %v928 = vsub.f32 %v790, %v907
      %v929 = vsub.f32 %v793, %v907
      %v930 = vsub.f32 %v798, %v907
      %v931 = vsub.f32 %v801, %v907
      %v932 = vsub.f32 %v806, %v907
      %v933 = vsub.f32 %v809, %v907
      %v934 = vsub.f32 %v814, %v907
      %v935 = vsub.f32 %v817, %v907
      %v936 = vsub.f32 %v822, %v907
      %v937 = vsub.f32 %v825, %v907
      %v938 = vsub.f32 %v830, %v907
      %v939 = vsub.f32 %v833, %v907
      %v940 = vmul.f32 %v908, %v908
      %v941 = vmul.f32 %v909, %v909
      %v942 = vmul.f32 %v910, %v910
      %v943 = vmul.f32 %v911, %v911
      %v944 = vmul.f32 %v912, %v912
      %v945 = vmul.f32 %v913, %v913
      %v946 = vmul.f32 %v914, %v914
      %v947 = vmul.f32 %v915, %v915
      %v948 = vmul.f32 %v916, %v916
      %v949 = vmul.f32 %v917, %v917
      %v950 = vmul.f32 %v918, %v918
      %v951 = vmul.f32 %v919, %v919
      %v952 = vmul.f32 %v920, %v920
      %v953 = vmul.f32 %v921, %v921
      %v954 = vmul.f32 %v922, %v922
      %v955 = vmul.f32 %v923, %v923
      %v956 = vmul.f32 %v924, %v924
      %v957 = vmul.f32 %v925, %v925
      %v958 = vmul.f32 %v926, %v926
      %v959 = vmul.f32 %v927, %v927
      %v960 = vmul.f32 %v928, %v928
      %v961 = vmul.f32 %v929, %v929
      %v962 = vmul.f32 %v930, %v930
      %v963 = vmul.f32 %v931, %v931
      %v964 = vmul.f32 %v932, %v932
      %v965 = vmul.f32 %v933, %v933
      %v966 = vmul.f32 %v934, %v934
      %v967 = vmul.f32 %v935, %v935
      %v968 = vmul.f32 %v936, %v936
      %v969 = vmul.f32 %v937, %v937
      %v970 = vmul.f32 %v938, %v938
      %v971 = vmul.f32 %v939, %v939
      %v972 = vsel %vm836, %v940, 0.0
      %v973 = vsel %vm836, %v941, 0.0
      %v974 = vadd.f32 %v972, %v973
      %v975 = vsel %vm836, %v942, 0.0
      %v976 = vadd.f32 %v974, %v975
      %v977 = vsel %vm836, %v943, 0.0
      %v978 = vadd.f32 %v976, %v977
      %v979 = vsel %vm836, %v944, 0.0
      %v980 = vadd.f32 %v978, %v979
      %v981 = vsel %vm836, %v945, 0.0
      %v982 = vadd.f32 %v980, %v981
      %v983 = vsel %vm836, %v946, 0.0
      %v984 = vadd.f32 %v982, %v983
      %v985 = vsel %vm836, %v947, 0.0
      %v986 = vadd.f32 %v984, %v985
      %v987 = vsel %vm836, %v948, 0.0
      %v988 = vadd.f32 %v986, %v987
      %v989 = vsel %vm836, %v949, 0.0
      %v990 = vadd.f32 %v988, %v989
      %v991 = vsel %vm836, %v950, 0.0
      %v992 = vadd.f32 %v990, %v991
      %v993 = vsel %vm836, %v951, 0.0
      %v994 = vadd.f32 %v992, %v993
      %v995 = vsel %vm836, %v952, 0.0
      %v996 = vadd.f32 %v994, %v995
      %v997 = vsel %vm836, %v953, 0.0
      %v998 = vadd.f32 %v996, %v997
      %v999 = vsel %vm836, %v954, 0.0
      %v1000 = vadd.f32 %v998, %v999
      %v1001 = vsel %vm836, %v955, 0.0
      %v1002 = vadd.f32 %v1000, %v1001
      %v1003 = vsel %vm836, %v956, 0.0
      %v1004 = vadd.f32 %v1002, %v1003
      %v1005 = vsel %vm836, %v957, 0.0
      %v1006 = vadd.f32 %v1004, %v1005
      %v1007 = vsel %vm836, %v958, 0.0
      %v1008 = vadd.f32 %v1006, %v1007
      %v1009 = vsel %vm836, %v959, 0.0
      %v1010 = vadd.f32 %v1008, %v1009
      %v1011 = vsel %vm836, %v960, 0.0
      %v1012 = vadd.f32 %v1010, %v1011
      %v1013 = vsel %vm836, %v961, 0.0
      %v1014 = vadd.f32 %v1012, %v1013
      %v1015 = vsel %vm836, %v962, 0.0
      %v1016 = vadd.f32 %v1014, %v1015
      %v1017 = vsel %vm836, %v963, 0.0
      %v1018 = vadd.f32 %v1016, %v1017
      %v1019 = vsel %vm836, %v964, 0.0
      %v1020 = vadd.f32 %v1018, %v1019
      %v1021 = vsel %vm836, %v965, 0.0
      %v1022 = vadd.f32 %v1020, %v1021
      %v1023 = vsel %vm836, %v966, 0.0
      %v1024 = vadd.f32 %v1022, %v1023
      %v1025 = vsel %vm836, %v967, 0.0
      %v1026 = vadd.f32 %v1024, %v1025
      %v1027 = vsel %vm836, %v968, 0.0
      %v1028 = vadd.f32 %v1026, %v1027
      %v1029 = vsel %vm836, %v969, 0.0
      %v1030 = vadd.f32 %v1028, %v1029
      %v1031 = vsel %vm836, %v970, 0.0
      %v1032 = vadd.f32 %v1030, %v1031
      %v1033 = vsel %vm836, %v971, 0.0
      %v1034 = vadd.f32 %v1032, %v1033
      %v1035 = vrot.slane %v1034, 4
      %v1036 = vadd.f32 %v1034, %v1035
      %v1037 = vrot.slane %v1036, 2
      %v1038 = vadd.f32 %v1036, %v1037
      %v1039 = vrot.slane %v1038, 1
      %v1040 = vadd.f32 %v1038, %v1039
      %v1041 = vmul.f32 %v1040, %v906
      %v1042 = vadd.f32 %v1041, 1e-05
      %v1043 = vrsqrt.pop %v1042
      %v1044 = vmul.f32 %v908, %v1043
      %v1045 = vmul.f32 %v909, %v1043
      %v1046 = vmul.f32 %v910, %v1043
      %v1047 = vmul.f32 %v911, %v1043
      %v1048 = vmul.f32 %v912, %v1043
      %v1049 = vmul.f32 %v913, %v1043
      %v1050 = vmul.f32 %v914, %v1043
      %v1051 = vmul.f32 %v915, %v1043
      %v1052 = vmul.f32 %v916, %v1043
      %v1053 = vmul.f32 %v917, %v1043
      %v1054 = vmul.f32 %v918, %v1043
      %v1055 = vmul.f32 %v919, %v1043
      %v1056 = vmul.f32 %v920, %v1043
      %v1057 = vmul.f32 %v921, %v1043
      %v1058 = vmul.f32 %v922, %v1043
      %v1059 = vmul.f32 %v923, %v1043
      %v1060 = vmul.f32 %v924, %v1043
      %v1061 = vmul.f32 %v925, %v1043
      %v1062 = vmul.f32 %v926, %v1043
      %v1063 = vmul.f32 %v927, %v1043
      %v1064 = vmul.f32 %v928, %v1043
      %v1065 = vmul.f32 %v929, %v1043
      %v1066 = vmul.f32 %v930, %v1043
      %v1067 = vmul.f32 %v931, %v1043
      %v1068 = vmul.f32 %v932, %v1043
      %v1069 = vmul.f32 %v933, %v1043
      %v1070 = vmul.f32 %v934, %v1043
      %v1071 = vmul.f32 %v935, %v1043
      %v1072 = vmul.f32 %v936, %v1043
      %v1073 = vmul.f32 %v937, %v1043
      %v1074 = vmul.f32 %v938, %v1043
      %v1075 = vmul.f32 %v939, %v1043
      %vm1076 = vcmp.ge.f32.partialorder %v1044, 0.0
      %vm1077 = vcmp.ge.f32.partialorder %v1045, 0.0
      %vm1078 = vcmp.ge.f32.partialorder %v1046, 0.0
      %vm1079 = vcmp.ge.f32.partialorder %v1047, 0.0
      %vm1080 = vcmp.ge.f32.partialorder %v1048, 0.0
      %vm1081 = vcmp.ge.f32.partialorder %v1049, 0.0
      %vm1082 = vcmp.ge.f32.partialorder %v1050, 0.0
      %vm1083 = vcmp.ge.f32.partialorder %v1051, 0.0
      %vm1084 = vcmp.ge.f32.partialorder %v1052, 0.0
      %vm1085 = vcmp.ge.f32.partialorder %v1053, 0.0
      %vm1086 = vcmp.ge.f32.partialorder %v1054, 0.0
      %vm1087 = vcmp.ge.f32.partialorder %v1055, 0.0
      %vm1088 = vcmp.ge.f32.partialorder %v1056, 0.0
      %vm1089 = vcmp.ge.f32.partialorder %v1057, 0.0
      %vm1090 = vcmp.ge.f32.partialorder %v1058, 0.0
      %vm1091 = vcmp.ge.f32.partialorder %v1059, 0.0
      %vm1092 = vcmp.ge.f32.partialorder %v1060, 0.0
      %vm1093 = vcmp.ge.f32.partialorder %v1061, 0.0
      %vm1094 = vcmp.ge.f32.partialorder %v1062, 0.0
      %vm1095 = vcmp.ge.f32.partialorder %v1063, 0.0
      %vm1096 = vcmp.ge.f32.partialorder %v1064, 0.0
      %vm1097 = vcmp.ge.f32.partialorder %v1065, 0.0
      %vm1098 = vcmp.ge.f32.partialorder %v1066, 0.0
      %vm1099 = vcmp.ge.f32.partialorder %v1067, 0.0
      %vm1100 = vcmp.ge.f32.partialorder %v1068, 0.0
      %vm1101 = vcmp.ge.f32.partialorder %v1069, 0.0
      %vm1102 = vcmp.ge.f32.partialorder %v1070, 0.0
      %vm1103 = vcmp.ge.f32.partialorder %v1071, 0.0
      %vm1104 = vcmp.ge.f32.partialorder %v1072, 0.0
      %vm1105 = vcmp.ge.f32.partialorder %v1073, 0.0
      %vm1106 = vcmp.ge.f32.partialorder %v1074, 0.0
      %vm1107 = vcmp.ge.f32.partialorder %v1075, 0.0
      %v1108 = vmul.f32 %v1044, 0.2
      %v1109 = vmul.f32 %v1045, 0.2
      %v1110 = vmul.f32 %v1046, 0.2
      %v1111 = vmul.f32 %v1047, 0.2
      %v1112 = vmul.f32 %v1048, 0.2
      %v1113 = vmul.f32 %v1049, 0.2
      %v1114 = vmul.f32 %v1050, 0.2
      %v1115 = vmul.f32 %v1051, 0.2
      %v1116 = vmul.f32 %v1052, 0.2
      %v1117 = vmul.f32 %v1053, 0.2
      %v1118 = vmul.f32 %v1054, 0.2
      %v1119 = vmul.f32 %v1055, 0.2
      %v1120 = vmul.f32 %v1056, 0.2
      %v1121 = vmul.f32 %v1057, 0.2
      %v1122 = vmul.f32 %v1058, 0.2
      %v1123 = vmul.f32 %v1059, 0.2
      %v1124 = vmul.f32 %v1060, 0.2
      %v1125 = vmul.f32 %v1061, 0.2
      %v1126 = vmul.f32 %v1062, 0.2
      %v1127 = vmul.f32 %v1063, 0.2
      %v1128 = vmul.f32 %v1064, 0.2
      %v1129 = vmul.f32 %v1065, 0.2
      %v1130 = vmul.f32 %v1066, 0.2
      %v1131 = vmul.f32 %v1067, 0.2
      %v1132 = vmul.f32 %v1068, 0.2
      %v1133 = vmul.f32 %v1069, 0.2
      %v1134 = vmul.f32 %v1070, 0.2
      %v1135 = vmul.f32 %v1071, 0.2
      %v1136 = vmul.f32 %v1072, 0.2
      %v1137 = vmul.f32 %v1073, 0.2
      %v1138 = vmul.f32 %v1074, 0.2
      %v1139 = vmul.f32 %v1075, 0.2
      %v1140 = vsel %vm1076, %v1044, %v1108
      %v1141 = vsel %vm1077, %v1045, %v1109
      %v1142 = vsel %vm1078, %v1046, %v1110
      %v1143 = vsel %vm1079, %v1047, %v1111
      %v1144 = vsel %vm1080, %v1048, %v1112
      %v1145 = vsel %vm1081, %v1049, %v1113
      %v1146 = vsel %vm1082, %v1050, %v1114
      %v1147 = vsel %vm1083, %v1051, %v1115
      %v1148 = vsel %vm1084, %v1052, %v1116
      %v1149 = vsel %vm1085, %v1053, %v1117
      %v1150 = vsel %vm1086, %v1054, %v1118
      %v1151 = vsel %vm1087, %v1055, %v1119
      %v1152 = vsel %vm1088, %v1056, %v1120
      %v1153 = vsel %vm1089, %v1057, %v1121
      %v1154 = vsel %vm1090, %v1058, %v1122
      %v1155 = vsel %vm1091, %v1059, %v1123
      %v1156 = vsel %vm1092, %v1060, %v1124
      %v1157 = vsel %vm1093, %v1061, %v1125
      %v1158 = vsel %vm1094, %v1062, %v1126
      %v1159 = vsel %vm1095, %v1063, %v1127
      %v1160 = vsel %vm1096, %v1064, %v1128
      %v1161 = vsel %vm1097, %v1065, %v1129
      %v1162 = vsel %vm1098, %v1066, %v1130
      %v1163 = vsel %vm1099, %v1067, %v1131
      %v1164 = vsel %vm1100, %v1068, %v1132
      %v1165 = vsel %vm1101, %v1069, %v1133
      %v1166 = vsel %vm1102, %v1070, %v1134
      %v1167 = vsel %vm1103, %v1071, %v1135
      %v1168 = vsel %vm1104, %v1072, %v1136
      %v1169 = vsel %vm1105, %v1073, %v1137
      %v1170 = vsel %vm1106, %v1074, %v1138
      %v1171 = vsel %vm1107, %v1075, %v1139
      %v1172 = vpack.c.bf16 %v1141, %v1140
      %v1173 = vpack.c.bf16 %v1143, %v1142
      %v1174 = vpack.c.bf16 %v1145, %v1144
      %v1175 = vpack.c.bf16 %v1147, %v1146
      %v1176 = vpack.c.bf16 %v1149, %v1148
      %v1177 = vpack.c.bf16 %v1151, %v1150
      %v1178 = vpack.c.bf16 %v1153, %v1152
      %v1179 = vpack.c.bf16 %v1155, %v1154
      %v1180 = vpack.c.bf16 %v1157, %v1156
      %v1181 = vpack.c.bf16 %v1159, %v1158
      %v1182 = vpack.c.bf16 %v1161, %v1160
      %v1183 = vpack.c.bf16 %v1163, %v1162
      %v1184 = vpack.c.bf16 %v1165, %v1164
      %v1185 = vpack.c.bf16 %v1167, %v1166
      %v1186 = vpack.c.bf16 %v1169, %v1168
      %v1187 = vpack.c.bf16 %v1171, %v1170
      %v1188 = vld [vmem:[%s3] sm:$0xff]
      %v1189 = vld [vmem:[%s3 + $0x8] sm:$0xff]
      %v1190 = vld [vmem:[%s3 + $0x10] sm:$0xff]
      %v1191 = vld [vmem:[%s3 + $0x18] sm:$0xff]
      %v1192 = vld [vmem:[%s3 + $0x20] sm:$0xff]
      %v1193 = vld [vmem:[%s3 + $0x28] sm:$0xff]
      %v1194 = vld [vmem:[%s3 + $0x30] sm:$0xff]
      %v1195 = vld [vmem:[%s3 + $0x38] sm:$0xff]
      %v1204 = vunpack.c.l.b16 %v1188
      %v1205 = vunpack.c.h.b16 %v1188
      %v1206 = vunpack.c.l.b16 %v1189
      %v1207 = vunpack.c.h.b16 %v1189
      %v1208 = vunpack.c.l.b16 %v1190
      %v1209 = vunpack.c.h.b16 %v1190
      %v1210 = vunpack.c.l.b16 %v1191
      %v1211 = vunpack.c.h.b16 %v1191
      %v1212 = vunpack.c.l.b16 %v1192
      %v1213 = vunpack.c.h.b16 %v1192
      %v1214 = vunpack.c.l.b16 %v1193
      %v1215 = vunpack.c.h.b16 %v1193
      %v1216 = vunpack.c.l.b16 %v1194
      %v1217 = vunpack.c.h.b16 %v1194
      %v1218 = vunpack.c.l.b16 %v1195
      %v1219 = vunpack.c.h.b16 %v1195
      %v1220 = vpack.c.b16 %v1206, %v1204
      %v1221 = vpack.c.b16 %v1207, %v1205
      %v1222 = vpack.c.b16 %v1210, %v1208
      %v1223 = vpack.c.b16 %v1211, %v1209
      %v1224 = vpack.c.b16 %v1214, %v1212
      %v1225 = vpack.c.b16 %v1215, %v1213
      %v1226 = vpack.c.b16 %v1218, %v1216
      %v1227 = vpack.c.b16 %v1219, %v1217
      %1236 = vmatprep.subr.bf16.mxu0 0
      %1237 = vmatpush1.bf16.msra.mxu0 %v1179
      %1238 = vmatprep.subr.bf16.mxu0 0
      %1239 = vmatpush1.bf16.msra.mxu0 %v1178
      %1240 = vmatprep.subr.bf16.mxu0 0
      %1241 = vmatpush1.bf16.msra.mxu0 %v1177
      %1242 = vmatprep.subr.bf16.mxu0 0
      %1243 = vmatpush1.bf16.msra.mxu0 %v1176
      %1244 = vmatprep.subr.bf16.mxu0 0
      %1245 = vmatpush1.bf16.msra.mxu0 %v1175
      %1246 = vmatprep.subr.bf16.mxu0 0
      %1247 = vmatpush1.bf16.msra.mxu0 %v1174
      %1248 = vmatprep.subr.bf16.mxu0 0
      %1249 = vmatpush1.bf16.msra.mxu0 %v1173
      %1250 = vmatprep.subr.bf16.mxu0 0
      %1251 = vmatpush1.bf16.msra.mxu0 %v1172
      %1252 = vmatprep.subr.bf16.mxu0 0
      %1253 = vmatpush2.bf16.msra.mxu0 %v1187
      %1254 = vmatprep.subr.bf16.mxu0 0
      %1255 = vmatpush2.bf16.msra.mxu0 %v1186
      %1256 = vmatprep.subr.bf16.mxu0 0
      %1257 = vmatpush2.bf16.msra.mxu0 %v1185
      %1258 = vmatprep.subr.bf16.mxu0 0
      %1259 = vmatpush2.bf16.msra.mxu0 %v1184
      %1260 = vmatprep.subr.bf16.mxu0 0
      %1261 = vmatpush2.bf16.msra.mxu0 %v1183
      %1262 = vmatprep.subr.bf16.mxu0 0
      %1263 = vmatpush2.bf16.msra.mxu0 %v1182
      %1264 = vmatprep.subr.bf16.mxu0 0
      %1265 = vmatpush2.bf16.msra.mxu0 %v1181
      %1266 = vmatprep.subr.bf16.mxu0 0
      %1267 = vmatpush2.bf16.msra.mxu0 %v1180
      %1268 = vmatprep.mubr.bf16.mxu0 %v1221
      %1269 = vmatmul.mubr.bf16.gmra.mxu0 %v1220
      %v1270 = vpop.f32.mrf.mxu0
      %v1271 = vadd.f32 0.0, %v1270
      %v1272 = vpop.f32.mrf.mxu0
      %v1273 = vpop.f32.mrf.mxu0
      %v1274 = vadd.f32 0.0, %v1273
      %v1275 = vpop.f32.mrf.mxu0
      %1276 = vmatprep.mubr.bf16.mxu0 %v1223
      %1277 = vmatmul.mubr.bf16.gmra.mxu0 %v1222
      %v1278 = vpop.f32.mrf.mxu0
      %v1279 = vadd.f32 0.0, %v1278
      %v1280 = vpop.f32.mrf.mxu0
      %v1281 = vpop.f32.mrf.mxu0
      %v1282 = vadd.f32 0.0, %v1281
      %v1283 = vpop.f32.mrf.mxu0
      %1284 = vmatprep.mubr.bf16.mxu0 %v1225
      %1285 = vmatmul.mubr.bf16.gmra.mxu0 %v1224
      %v1286 = vpop.f32.mrf.mxu0
      %v1287 = vadd.f32 0.0, %v1286
      %v1288 = vpop.f32.mrf.mxu0
      %v1289 = vpop.f32.mrf.mxu0
      %v1290 = vadd.f32 0.0, %v1289
      %v1291 = vpop.f32.mrf.mxu0
      %1292 = vmatprep.mubr.bf16.mxu0 %v1227
      %1293 = vmatmul.mubr.bf16.gmra.mxu0 %v1226
      %v1294 = vpop.f32.mrf.mxu0
      %v1295 = vadd.f32 0.0, %v1294
      %v1296 = vpop.f32.mrf.mxu0
      %v1297 = vpop.f32.mrf.mxu0
      %v1298 = vadd.f32 0.0, %v1297
      %v1299 = vpop.f32.mrf.mxu0
      %1300 = vdwg.mxu0
      %v1301 = vpack.c.bf16 %v1274, %v1271
      %v1302 = vpack.c.bf16 %v1282, %v1279
      %v1303 = vpack.c.bf16 %v1290, %v1287
      %v1304 = vpack.c.bf16 %v1298, %v1295
      %v1305 = vld [vmem:[%s4] sm:$0xf]
      %v1306 = vld [vmem:[%s4 + $0x4] sm:$0xf]
      %v1307 = vld [vmem:[%s4 + $0x8] sm:$0xf]
      %v1308 = vld [vmem:[%s4 + $0xc] sm:$0xf]
      %v1309 = vld [vmem:[%s4 + $0x10] sm:$0xf]
      %v1310 = vld [vmem:[%s4 + $0x14] sm:$0xf]
      %v1311 = vld [vmem:[%s4 + $0x18] sm:$0xf]
      %v1312 = vld [vmem:[%s4 + $0x1c] sm:$0xf]
      %s1313 = scalar_lea.vmem %s3, 64
      %v1314 = vld [vmem:[%s1313] sm:$0xff]
      %v1315 = vld [vmem:[%s1313 + $0x8] sm:$0xff]
      %v1316 = vld [vmem:[%s1313 + $0x10] sm:$0xff]
      %v1317 = vld [vmem:[%s1313 + $0x18] sm:$0xff]
      %v1318 = vld [vmem:[%s1313 + $0x20] sm:$0xff]
      %v1319 = vld [vmem:[%s1313 + $0x28] sm:$0xff]
      %v1320 = vld [vmem:[%s1313 + $0x30] sm:$0xff]
      %v1321 = vld [vmem:[%s1313 + $0x38] sm:$0xff]
      %v1330 = vunpack.c.l.b16 %v1314
      %v1331 = vunpack.c.h.b16 %v1314
      %v1332 = vunpack.c.l.b16 %v1315
      %v1333 = vunpack.c.h.b16 %v1315
      %v1334 = vunpack.c.l.b16 %v1316
      %v1335 = vunpack.c.h.b16 %v1316
      %v1336 = vunpack.c.l.b16 %v1317
      %v1337 = vunpack.c.h.b16 %v1317
      %v1338 = vunpack.c.l.b16 %v1318
      %v1339 = vunpack.c.h.b16 %v1318
      %v1340 = vunpack.c.l.b16 %v1319
      %v1341 = vunpack.c.h.b16 %v1319
      %v1342 = vunpack.c.l.b16 %v1320
      %v1343 = vunpack.c.h.b16 %v1320
      %v1344 = vunpack.c.l.b16 %v1321
      %v1345 = vunpack.c.h.b16 %v1321
      %v1346 = vpack.c.b16 %v1332, %v1330
      %v1347 = vpack.c.b16 %v1333, %v1331
      %v1348 = vpack.c.b16 %v1336, %v1334
      %v1349 = vpack.c.b16 %v1337, %v1335
      %v1350 = vpack.c.b16 %v1340, %v1338
      %v1351 = vpack.c.b16 %v1341, %v1339
      %v1352 = vpack.c.b16 %v1344, %v1342
      %v1353 = vpack.c.b16 %v1345, %v1343
      %1362 = vmatprep.subr.bf16.mxu0 0
      %1363 = vmatpush1.bf16.msra.mxu0 %v1179
      %1364 = vmatprep.subr.bf16.mxu0 0
      %1365 = vmatpush1.bf16.msra.mxu0 %v1178
      %1366 = vmatprep.subr.bf16.mxu0 0
      %1367 = vmatpush1.bf16.msra.mxu0 %v1177
      %1368 = vmatprep.subr.bf16.mxu0 0
      %1369 = vmatpush1.bf16.msra.mxu0 %v1176
      %1370 = vmatprep.subr.bf16.mxu0 0
      %1371 = vmatpush1.bf16.msra.mxu0 %v1175
      %1372 = vmatprep.subr.bf16.mxu0 0
      %1373 = vmatpush1.bf16.msra.mxu0 %v1174
      %1374 = vmatprep.subr.bf16.mxu0 0
      %1375 = vmatpush1.bf16.msra.mxu0 %v1173
      %1376 = vmatprep.subr.bf16.mxu0 0
      %1377 = vmatpush1.bf16.msra.mxu0 %v1172
      %1378 = vmatprep.subr.bf16.mxu0 0
      %1379 = vmatpush2.bf16.msra.mxu0 %v1187
      %1380 = vmatprep.subr.bf16.mxu0 0
      %1381 = vmatpush2.bf16.msra.mxu0 %v1186
      %1382 = vmatprep.subr.bf16.mxu0 0
      %1383 = vmatpush2.bf16.msra.mxu0 %v1185
      %1384 = vmatprep.subr.bf16.mxu0 0
      %1385 = vmatpush2.bf16.msra.mxu0 %v1184
      %1386 = vmatprep.subr.bf16.mxu0 0
      %1387 = vmatpush2.bf16.msra.mxu0 %v1183
      %1388 = vmatprep.subr.bf16.mxu0 0
      %1389 = vmatpush2.bf16.msra.mxu0 %v1182
      %1390 = vmatprep.subr.bf16.mxu0 0
      %1391 = vmatpush2.bf16.msra.mxu0 %v1181
      %1392 = vmatprep.subr.bf16.mxu0 0
      %1393 = vmatpush2.bf16.msra.mxu0 %v1180
      %1394 = vmatprep.mubr.bf16.mxu0 %v1347
      %1395 = vmatmul.mubr.bf16.gmra.mxu0 %v1346
      %v1396 = vpop.f32.mrf.mxu0
      %v1397 = vadd.f32 0.0, %v1396
      %v1398 = vpop.f32.mrf.mxu0
      %v1399 = vpop.f32.mrf.mxu0
      %v1400 = vadd.f32 0.0, %v1399
      %v1401 = vpop.f32.mrf.mxu0
      %1402 = vmatprep.mubr.bf16.mxu0 %v1349
      %1403 = vmatmul.mubr.bf16.gmra.mxu0 %v1348
      %v1404 = vpop.f32.mrf.mxu0
      %v1405 = vadd.f32 0.0, %v1404
      %v1406 = vpop.f32.mrf.mxu0
      %v1407 = vpop.f32.mrf.mxu0
      %v1408 = vadd.f32 0.0, %v1407
      %v1409 = vpop.f32.mrf.mxu0
      %1410 = vmatprep.mubr.bf16.mxu0 %v1351
      %1411 = vmatmul.mubr.bf16.gmra.mxu0 %v1350
      %v1412 = vpop.f32.mrf.mxu0
      %v1413 = vadd.f32 0.0, %v1412
      %v1414 = vpop.f32.mrf.mxu0
      %v1415 = vpop.f32.mrf.mxu0
      %v1416 = vadd.f32 0.0, %v1415
      %v1417 = vpop.f32.mrf.mxu0
      %1418 = vmatprep.mubr.bf16.mxu0 %v1353
      %1419 = vmatmul.mubr.bf16.gmra.mxu0 %v1352
      %v1420 = vpop.f32.mrf.mxu0
      %v1421 = vadd.f32 0.0, %v1420
      %v1422 = vpop.f32.mrf.mxu0
      %v1423 = vpop.f32.mrf.mxu0
      %v1424 = vadd.f32 0.0, %v1423
      %v1425 = vpop.f32.mrf.mxu0
      %1426 = vdwg.mxu0
      %v1427 = vpack.c.bf16 %v1400, %v1397
      %v1428 = vpack.c.bf16 %v1408, %v1405
      %v1429 = vpack.c.bf16 %v1416, %v1413
      %v1430 = vpack.c.bf16 %v1424, %v1421
      %s1431 = scalar_lea.vmem %s4, 32
      %v1432 = vld [vmem:[%s1431] sm:$0xf]
      %v1433 = vld [vmem:[%s1431 + $0x4] sm:$0xf]
      %v1434 = vld [vmem:[%s1431 + $0x8] sm:$0xf]
      %v1435 = vld [vmem:[%s1431 + $0xc] sm:$0xf]
      %v1436 = vld [vmem:[%s1431 + $0x10] sm:$0xf]
      %v1437 = vld [vmem:[%s1431 + $0x14] sm:$0xf]
      %v1438 = vld [vmem:[%s1431 + $0x18] sm:$0xf]
      %v1439 = vld [vmem:[%s1431 + $0x1c] sm:$0xf]
      %v1448 = vunpack.c.l.b16 %v1432
      %v1449 = vunpack.c.l.b16 %v1433
      %v1450 = vunpack.c.l.b16 %v1434
      %v1451 = vunpack.c.l.b16 %v1435
      %v1452 = vunpack.c.l.b16 %v1436
      %v1453 = vunpack.c.l.b16 %v1437
      %v1454 = vunpack.c.l.b16 %v1438
      %v1455 = vunpack.c.l.b16 %v1439
      %v1456 = vpack.c.b16 %v1449, %v1448
      %v1457 = vpack.c.b16 %v1451, %v1450
      %v1458 = vpack.c.b16 %v1453, %v1452
      %v1459 = vpack.c.b16 %v1455, %v1454
      %v1465 = vsel %vm836, %v1427, 0
      %v1468 = vsel %vm836, %v1428, 0
      %v1471 = vsel %vm836, %v1429, 0
      %v1474 = vsel %vm836, %v1430, 0
      %1476 = vmatprep.subr.bf16.mxu0 0
      %1477 = vmatpush1.bf16.msra.mxu0 0
      %1478 = vmatprep.subr.bf16.mxu0 0
      %1479 = vmatpush1.bf16.msra.mxu0 0
      %1480 = vmatprep.subr.bf16.mxu0 0
      %1481 = vmatpush1.bf16.msra.mxu0 0
      %1482 = vmatprep.subr.bf16.mxu0 0
      %1483 = vmatpush1.bf16.msra.mxu0 0
      %1484 = vmatprep.subr.bf16.mxu0 0
      %1485 = vmatpush1.bf16.msra.mxu0 %v1459
      %1486 = vmatprep.subr.bf16.mxu0 0
      %1487 = vmatpush1.bf16.msra.mxu0 %v1458
      %1488 = vmatprep.subr.bf16.mxu0 0
      %1489 = vmatpush1.bf16.msra.mxu0 %v1457
      %1490 = vmatprep.subr.bf16.mxu0 0
      %1491 = vmatpush1.bf16.msra.mxu0 %v1456
      %1492 = vmatprep.subr.bf16.mxu0 0
      %1493 = vmatpush2.bf16.msra.mxu0 0
      %1494 = vmatprep.subr.bf16.mxu0 0
      %1495 = vmatpush2.bf16.msra.mxu0 0
      %1496 = vmatprep.subr.bf16.mxu0 0
      %1497 = vmatpush2.bf16.msra.mxu0 0
      %1498 = vmatprep.subr.bf16.mxu0 0
      %1499 = vmatpush2.bf16.msra.mxu0 0
      %1500 = vmatprep.subr.bf16.mxu0 0
      %1501 = vmatpush2.bf16.msra.mxu0 0
      %1502 = vmatprep.subr.bf16.mxu0 0
      %1503 = vmatpush2.bf16.msra.mxu0 0
      %1504 = vmatprep.subr.bf16.mxu0 0
      %1505 = vmatpush2.bf16.msra.mxu0 0
      %1506 = vmatprep.subr.bf16.mxu0 0
      %1507 = vmatpush2.bf16.msra.mxu0 0
      %1508 = vmatprep.mubr.bf16.mxu0 0
      %1509 = vmatmul.mubr.bf16.gmra.mxu0 %v1465
      %v1510 = vpop.f32.mrf.mxu0
      %v1511 = vadd.f32 0.0, %v1510
      %v1512 = vpop.f32.mrf.mxu0
      %v1513 = vpop.f32.mrf.mxu0
      %v1514 = vadd.f32 0.0, %v1513
      %v1515 = vpop.f32.mrf.mxu0
      %1516 = vmatprep.mubr.bf16.mxu0 0
      %1517 = vmatmul.mubr.bf16.gmra.mxu0 %v1468
      %v1518 = vpop.f32.mrf.mxu0
      %v1519 = vadd.f32 0.0, %v1518
      %v1520 = vpop.f32.mrf.mxu0
      %v1521 = vpop.f32.mrf.mxu0
      %v1522 = vadd.f32 0.0, %v1521
      %v1523 = vpop.f32.mrf.mxu0
      %1524 = vmatprep.mubr.bf16.mxu0 0
      %1525 = vmatmul.mubr.bf16.gmra.mxu0 %v1471
      %v1526 = vpop.f32.mrf.mxu0
      %v1527 = vadd.f32 0.0, %v1526
      %v1528 = vpop.f32.mrf.mxu0
      %v1529 = vpop.f32.mrf.mxu0
      %v1530 = vadd.f32 0.0, %v1529
      %v1531 = vpop.f32.mrf.mxu0
      %1532 = vmatprep.mubr.bf16.mxu0 0
      %1533 = vmatmul.mubr.bf16.gmra.mxu0 %v1474
      %v1534 = vpop.f32.mrf.mxu0
      %v1535 = vadd.f32 0.0, %v1534
      %v1536 = vpop.f32.mrf.mxu0
      %v1537 = vpop.f32.mrf.mxu0
      %v1538 = vadd.f32 0.0, %v1537
      %v1539 = vpop.f32.mrf.mxu0
      %1540 = vdwg.mxu0
      %v1549 = vunpack.c.l.b16 %v1305
      %v1550 = vunpack.c.l.b16 %v1306
      %v1551 = vunpack.c.l.b16 %v1307
      %v1552 = vunpack.c.l.b16 %v1308
      %v1553 = vunpack.c.l.b16 %v1309
      %v1554 = vunpack.c.l.b16 %v1310
      %v1555 = vunpack.c.l.b16 %v1311
      %v1556 = vunpack.c.l.b16 %v1312
      %v1557 = vpack.c.b16 %v1550, %v1549
      %v1558 = vpack.c.b16 %v1552, %v1551
      %v1559 = vpack.c.b16 %v1554, %v1553
      %v1560 = vpack.c.b16 %v1556, %v1555
      %v1566 = vsel %vm836, %v1301, 0
      %v1569 = vsel %vm836, %v1302, 0
      %v1572 = vsel %vm836, %v1303, 0
      %v1575 = vsel %vm836, %v1304, 0
      %1577 = vmatprep.subr.bf16.mxu0 0
      %1578 = vmatpush1.bf16.msra.mxu0 0
      %1579 = vmatprep.subr.bf16.mxu0 0
      %1580 = vmatpush1.bf16.msra.mxu0 0
      %1581 = vmatprep.subr.bf16.mxu0 0
      %1582 = vmatpush1.bf16.msra.mxu0 0
      %1583 = vmatprep.subr.bf16.mxu0 0
      %1584 = vmatpush1.bf16.msra.mxu0 0
      %1585 = vmatprep.subr.bf16.mxu0 0
      %1586 = vmatpush1.bf16.msra.mxu0 %v1560
      %1587 = vmatprep.subr.bf16.mxu0 0
      %1588 = vmatpush1.bf16.msra.mxu0 %v1559
      %1589 = vmatprep.subr.bf16.mxu0 0
      %1590 = vmatpush1.bf16.msra.mxu0 %v1558
      %1591 = vmatprep.subr.bf16.mxu0 0
      %1592 = vmatpush1.bf16.msra.mxu0 %v1557
      %1593 = vmatprep.subr.bf16.mxu0 0
      %1594 = vmatpush2.bf16.msra.mxu0 0
      %1595 = vmatprep.subr.bf16.mxu0 0
      %1596 = vmatpush2.bf16.msra.mxu0 0
      %1597 = vmatprep.subr.bf16.mxu0 0
      %1598 = vmatpush2.bf16.msra.mxu0 0
      %1599 = vmatprep.subr.bf16.mxu0 0
      %1600 = vmatpush2.bf16.msra.mxu0 0
      %1601 = vmatprep.subr.bf16.mxu0 0
      %1602 = vmatpush2.bf16.msra.mxu0 0
      %1603 = vmatprep.subr.bf16.mxu0 0
      %1604 = vmatpush2.bf16.msra.mxu0 0
      %1605 = vmatprep.subr.bf16.mxu0 0
      %1606 = vmatpush2.bf16.msra.mxu0 0
      %1607 = vmatprep.subr.bf16.mxu0 0
      %1608 = vmatpush2.bf16.msra.mxu0 0
      %1609 = vmatprep.mubr.bf16.mxu0 0
      %1610 = vmatmul.mubr.bf16.gmra.mxu0 %v1566
      %v1611 = vpop.f32.mrf.mxu0
      %v1612 = vadd.f32 %v1511, %v1611
      %v1613 = vpop.f32.mrf.mxu0
      %v1614 = vpop.f32.mrf.mxu0
      %v1615 = vadd.f32 %v1514, %v1614
      %v1616 = vpop.f32.mrf.mxu0
      %1617 = vmatprep.mubr.bf16.mxu0 0
      %1618 = vmatmul.mubr.bf16.gmra.mxu0 %v1569
      %v1619 = vpop.f32.mrf.mxu0
      %v1620 = vadd.f32 %v1519, %v1619
      %v1621 = vpop.f32.mrf.mxu0
      %v1622 = vpop.f32.mrf.mxu0
      %v1623 = vadd.f32 %v1522, %v1622
      %v1624 = vpop.f32.mrf.mxu0
      %1625 = vmatprep.mubr.bf16.mxu0 0
      %1626 = vmatmul.mubr.bf16.gmra.mxu0 %v1572
      %v1627 = vpop.f32.mrf.mxu0
      %v1628 = vadd.f32 %v1527, %v1627
      %v1629 = vpop.f32.mrf.mxu0
      %v1630 = vpop.f32.mrf.mxu0
      %v1631 = vadd.f32 %v1530, %v1630
      %v1632 = vpop.f32.mrf.mxu0
      %1633 = vmatprep.mubr.bf16.mxu0 0
      %1634 = vmatmul.mubr.bf16.gmra.mxu0 %v1575
      %v1635 = vpop.f32.mrf.mxu0
      %v1636 = vadd.f32 %v1535, %v1635
      %v1637 = vpop.f32.mrf.mxu0
      %v1638 = vpop.f32.mrf.mxu0
      %v1639 = vadd.f32 %v1538, %v1638
      %v1640 = vpop.f32.mrf.mxu0
      %1641 = vdwg.mxu0
      %s1642 = scalar_lea.vmem %s3, 128
      %v1643 = vld [vmem:[%s1642] sm:$0xff]
      %v1644 = vld [vmem:[%s1642 + $0x8] sm:$0xff]
      %v1645 = vld [vmem:[%s1642 + $0x10] sm:$0xff]
      %v1646 = vld [vmem:[%s1642 + $0x18] sm:$0xff]
      %v1647 = vld [vmem:[%s1642 + $0x20] sm:$0xff]
      %v1648 = vld [vmem:[%s1642 + $0x28] sm:$0xff]
      %v1649 = vld [vmem:[%s1642 + $0x30] sm:$0xff]
      %v1650 = vld [vmem:[%s1642 + $0x38] sm:$0xff]
      %v1659 = vunpack.c.l.b16 %v1643
      %v1660 = vunpack.c.h.b16 %v1643
      %v1661 = vunpack.c.l.b16 %v1644
      %v1662 = vunpack.c.h.b16 %v1644
      %v1663 = vunpack.c.l.b16 %v1645
      %v1664 = vunpack.c.h.b16 %v1645
      %v1665 = vunpack.c.l.b16 %v1646
      %v1666 = vunpack.c.h.b16 %v1646
      %v1667 = vunpack.c.l.b16 %v1647
      %v1668 = vunpack.c.h.b16 %v1647
      %v1669 = vunpack.c.l.b16 %v1648
      %v1670 = vunpack.c.h.b16 %v1648
      %v1671 = vunpack.c.l.b16 %v1649
      %v1672 = vunpack.c.h.b16 %v1649
      %v1673 = vunpack.c.l.b16 %v1650
      %v1674 = vunpack.c.h.b16 %v1650
      %v1675 = vpack.c.b16 %v1661, %v1659
      %v1676 = vpack.c.b16 %v1662, %v1660
      %v1677 = vpack.c.b16 %v1665, %v1663
      %v1678 = vpack.c.b16 %v1666, %v1664
      %v1679 = vpack.c.b16 %v1669, %v1667
      %v1680 = vpack.c.b16 %v1670, %v1668
      %v1681 = vpack.c.b16 %v1673, %v1671
      %v1682 = vpack.c.b16 %v1674, %v1672
      %1691 = vmatprep.subr.bf16.mxu0 0
      %1692 = vmatpush1.bf16.msra.mxu0 %v1179
      %1693 = vmatprep.subr.bf16.mxu0 0
      %1694 = vmatpush1.bf16.msra.mxu0 %v1178
      %1695 = vmatprep.subr.bf16.mxu0 0
      %1696 = vmatpush1.bf16.msra.mxu0 %v1177
      %1697 = vmatprep.subr.bf16.mxu0 0
      %1698 = vmatpush1.bf16.msra.mxu0 %v1176
      %1699 = vmatprep.subr.bf16.mxu0 0
      %1700 = vmatpush1.bf16.msra.mxu0 %v1175
      %1701 = vmatprep.subr.bf16.mxu0 0
      %1702 = vmatpush1.bf16.msra.mxu0 %v1174
      %1703 = vmatprep.subr.bf16.mxu0 0
      %1704 = vmatpush1.bf16.msra.mxu0 %v1173
      %1705 = vmatprep.subr.bf16.mxu0 0
      %1706 = vmatpush1.bf16.msra.mxu0 %v1172
      %1707 = vmatprep.subr.bf16.mxu0 0
      %1708 = vmatpush2.bf16.msra.mxu0 %v1187
      %1709 = vmatprep.subr.bf16.mxu0 0
      %1710 = vmatpush2.bf16.msra.mxu0 %v1186
      %1711 = vmatprep.subr.bf16.mxu0 0
      %1712 = vmatpush2.bf16.msra.mxu0 %v1185
      %1713 = vmatprep.subr.bf16.mxu0 0
      %1714 = vmatpush2.bf16.msra.mxu0 %v1184
      %1715 = vmatprep.subr.bf16.mxu0 0
      %1716 = vmatpush2.bf16.msra.mxu0 %v1183
      %1717 = vmatprep.subr.bf16.mxu0 0
      %1718 = vmatpush2.bf16.msra.mxu0 %v1182
      %1719 = vmatprep.subr.bf16.mxu0 0
      %1720 = vmatpush2.bf16.msra.mxu0 %v1181
      %1721 = vmatprep.subr.bf16.mxu0 0
      %1722 = vmatpush2.bf16.msra.mxu0 %v1180
      %1723 = vmatprep.mubr.bf16.mxu0 %v1676
      %1724 = vmatmul.mubr.bf16.gmra.mxu0 %v1675
      %v1725 = vpop.f32.mrf.mxu0
      %v1726 = vadd.f32 0.0, %v1725
      %v1727 = vpop.f32.mrf.mxu0
      %v1728 = vpop.f32.mrf.mxu0
      %v1729 = vadd.f32 0.0, %v1728
      %v1730 = vpop.f32.mrf.mxu0
      %1731 = vmatprep.mubr.bf16.mxu0 %v1678
      %1732 = vmatmul.mubr.bf16.gmra.mxu0 %v1677
      %v1733 = vpop.f32.mrf.mxu0
      %v1734 = vadd.f32 0.0, %v1733
      %v1735 = vpop.f32.mrf.mxu0
      %v1736 = vpop.f32.mrf.mxu0
      %v1737 = vadd.f32 0.0, %v1736
      %v1738 = vpop.f32.mrf.mxu0
      %1739 = vmatprep.mubr.bf16.mxu0 %v1680
      %1740 = vmatmul.mubr.bf16.gmra.mxu0 %v1679
      %v1741 = vpop.f32.mrf.mxu0
      %v1742 = vadd.f32 0.0, %v1741
      %v1743 = vpop.f32.mrf.mxu0
      %v1744 = vpop.f32.mrf.mxu0
      %v1745 = vadd.f32 0.0, %v1744
      %v1746 = vpop.f32.mrf.mxu0
      %1747 = vmatprep.mubr.bf16.mxu0 %v1682
      %1748 = vmatmul.mubr.bf16.gmra.mxu0 %v1681
      %v1749 = vpop.f32.mrf.mxu0
      %v1750 = vadd.f32 0.0, %v1749
      %v1751 = vpop.f32.mrf.mxu0
      %v1752 = vpop.f32.mrf.mxu0
      %v1753 = vadd.f32 0.0, %v1752
      %v1754 = vpop.f32.mrf.mxu0
      %1755 = vdwg.mxu0
      %v1756 = vpack.c.bf16 %v1729, %v1726
      %v1757 = vpack.c.bf16 %v1737, %v1734
      %v1758 = vpack.c.bf16 %v1745, %v1742
      %v1759 = vpack.c.bf16 %v1753, %v1750
      %s1760 = scalar_lea.vmem %s4, 64
      %v1761 = vld [vmem:[%s1760] sm:$0xf]
      %v1762 = vld [vmem:[%s1760 + $0x4] sm:$0xf]
      %v1763 = vld [vmem:[%s1760 + $0x8] sm:$0xf]
      %v1764 = vld [vmem:[%s1760 + $0xc] sm:$0xf]
      %v1765 = vld [vmem:[%s1760 + $0x10] sm:$0xf]
      %v1766 = vld [vmem:[%s1760 + $0x14] sm:$0xf]
      %v1767 = vld [vmem:[%s1760 + $0x18] sm:$0xf]
      %v1768 = vld [vmem:[%s1760 + $0x1c] sm:$0xf]
      %v1777 = vunpack.c.l.b16 %v1761
      %v1778 = vunpack.c.l.b16 %v1762
      %v1779 = vunpack.c.l.b16 %v1763
      %v1780 = vunpack.c.l.b16 %v1764
      %v1781 = vunpack.c.l.b16 %v1765
      %v1782 = vunpack.c.l.b16 %v1766
      %v1783 = vunpack.c.l.b16 %v1767
      %v1784 = vunpack.c.l.b16 %v1768
      %v1785 = vpack.c.b16 %v1778, %v1777
      %v1786 = vpack.c.b16 %v1780, %v1779
      %v1787 = vpack.c.b16 %v1782, %v1781
      %v1788 = vpack.c.b16 %v1784, %v1783
      %v1794 = vsel %vm836, %v1756, 0
      %v1797 = vsel %vm836, %v1757, 0
      %v1800 = vsel %vm836, %v1758, 0
      %v1803 = vsel %vm836, %v1759, 0
      %1805 = vmatprep.subr.bf16.mxu0 0
      %1806 = vmatpush1.bf16.msra.mxu0 0
      %1807 = vmatprep.subr.bf16.mxu0 0
      %1808 = vmatpush1.bf16.msra.mxu0 0
      %1809 = vmatprep.subr.bf16.mxu0 0
      %1810 = vmatpush1.bf16.msra.mxu0 0
      %1811 = vmatprep.subr.bf16.mxu0 0
      %1812 = vmatpush1.bf16.msra.mxu0 0
      %1813 = vmatprep.subr.bf16.mxu0 0
      %1814 = vmatpush1.bf16.msra.mxu0 %v1788
      %1815 = vmatprep.subr.bf16.mxu0 0
      %1816 = vmatpush1.bf16.msra.mxu0 %v1787
      %1817 = vmatprep.subr.bf16.mxu0 0
      %1818 = vmatpush1.bf16.msra.mxu0 %v1786
      %1819 = vmatprep.subr.bf16.mxu0 0
      %1820 = vmatpush1.bf16.msra.mxu0 %v1785
      %1821 = vmatprep.subr.bf16.mxu0 0
      %1822 = vmatpush2.bf16.msra.mxu0 0
      %1823 = vmatprep.subr.bf16.mxu0 0
      %1824 = vmatpush2.bf16.msra.mxu0 0
      %1825 = vmatprep.subr.bf16.mxu0 0
      %1826 = vmatpush2.bf16.msra.mxu0 0
      %1827 = vmatprep.subr.bf16.mxu0 0
      %1828 = vmatpush2.bf16.msra.mxu0 0
      %1829 = vmatprep.subr.bf16.mxu0 0
      %1830 = vmatpush2.bf16.msra.mxu0 0
      %1831 = vmatprep.subr.bf16.mxu0 0
      %1832 = vmatpush2.bf16.msra.mxu0 0
      %1833 = vmatprep.subr.bf16.mxu0 0
      %1834 = vmatpush2.bf16.msra.mxu0 0
      %1835 = vmatprep.subr.bf16.mxu0 0
      %1836 = vmatpush2.bf16.msra.mxu0 0
      %1837 = vmatprep.mubr.bf16.mxu0 0
      %1838 = vmatmul.mubr.bf16.gmra.mxu0 %v1794
      %v1839 = vpop.f32.mrf.mxu0
      %v1840 = vadd.f32 0.0, %v1839
      %v1841 = vpop.f32.mrf.mxu0
      %v1842 = vpop.f32.mrf.mxu0
      %v1843 = vadd.f32 0.0, %v1842
      %v1844 = vpop.f32.mrf.mxu0
      %1845 = vmatprep.mubr.bf16.mxu0 0
      %1846 = vmatmul.mubr.bf16.gmra.mxu0 %v1797
      %v1847 = vpop.f32.mrf.mxu0
      %v1848 = vadd.f32 0.0, %v1847
      %v1849 = vpop.f32.mrf.mxu0
      %v1850 = vpop.f32.mrf.mxu0
      %v1851 = vadd.f32 0.0, %v1850
      %v1852 = vpop.f32.mrf.mxu0
      %1853 = vmatprep.mubr.bf16.mxu0 0
      %1854 = vmatmul.mubr.bf16.gmra.mxu0 %v1800
      %v1855 = vpop.f32.mrf.mxu0
      %v1856 = vadd.f32 0.0, %v1855
      %v1857 = vpop.f32.mrf.mxu0
      %v1858 = vpop.f32.mrf.mxu0
      %v1859 = vadd.f32 0.0, %v1858
      %v1860 = vpop.f32.mrf.mxu0
      %1861 = vmatprep.mubr.bf16.mxu0 0
      %1862 = vmatmul.mubr.bf16.gmra.mxu0 %v1803
      %v1863 = vpop.f32.mrf.mxu0
      %v1864 = vadd.f32 0.0, %v1863
      %v1865 = vpop.f32.mrf.mxu0
      %v1866 = vpop.f32.mrf.mxu0
      %v1867 = vadd.f32 0.0, %v1866
      %v1868 = vpop.f32.mrf.mxu0
      %1869 = vdwg.mxu0
      %v1870 = vadd.f32 %v1612, %v1840
      %v1871 = vadd.f32 %v1615, %v1843
      %v1872 = vadd.f32 %v1620, %v1848
      %v1873 = vadd.f32 %v1623, %v1851
      %v1874 = vadd.f32 %v1628, %v1856
      %v1875 = vadd.f32 %v1631, %v1859
      %v1876 = vadd.f32 %v1636, %v1864
      %v1877 = vadd.f32 %v1639, %v1867
      %s1878 = scalar_lea.vmem %s3, 192
      %v1879 = vld [vmem:[%s1878] sm:$0xff]
      %v1880 = vld [vmem:[%s1878 + $0x8] sm:$0xff]
      %v1881 = vld [vmem:[%s1878 + $0x10] sm:$0xff]
      %v1882 = vld [vmem:[%s1878 + $0x18] sm:$0xff]
      %v1883 = vld [vmem:[%s1878 + $0x20] sm:$0xff]
      %v1884 = vld [vmem:[%s1878 + $0x28] sm:$0xff]
      %v1885 = vld [vmem:[%s1878 + $0x30] sm:$0xff]
      %v1886 = vld [vmem:[%s1878 + $0x38] sm:$0xff]
      %v1895 = vunpack.c.l.b16 %v1879
      %v1896 = vunpack.c.h.b16 %v1879
      %v1897 = vunpack.c.l.b16 %v1880
      %v1898 = vunpack.c.h.b16 %v1880
      %v1899 = vunpack.c.l.b16 %v1881
      %v1900 = vunpack.c.h.b16 %v1881
      %v1901 = vunpack.c.l.b16 %v1882
      %v1902 = vunpack.c.h.b16 %v1882
      %v1903 = vunpack.c.l.b16 %v1883
      %v1904 = vunpack.c.h.b16 %v1883
      %v1905 = vunpack.c.l.b16 %v1884
      %v1906 = vunpack.c.h.b16 %v1884
      %v1907 = vunpack.c.l.b16 %v1885
      %v1908 = vunpack.c.h.b16 %v1885
      %v1909 = vunpack.c.l.b16 %v1886
      %v1910 = vunpack.c.h.b16 %v1886
      %v1911 = vpack.c.b16 %v1897, %v1895
      %v1912 = vpack.c.b16 %v1898, %v1896
      %v1913 = vpack.c.b16 %v1901, %v1899
      %v1914 = vpack.c.b16 %v1902, %v1900
      %v1915 = vpack.c.b16 %v1905, %v1903
      %v1916 = vpack.c.b16 %v1906, %v1904
      %v1917 = vpack.c.b16 %v1909, %v1907
      %v1918 = vpack.c.b16 %v1910, %v1908
      %1927 = vmatprep.subr.bf16.mxu0 0
      %1928 = vmatpush1.bf16.msra.mxu0 %v1179
      %1929 = vmatprep.subr.bf16.mxu0 0
      %1930 = vmatpush1.bf16.msra.mxu0 %v1178
      %1931 = vmatprep.subr.bf16.mxu0 0
      %1932 = vmatpush1.bf16.msra.mxu0 %v1177
      %1933 = vmatprep.subr.bf16.mxu0 0
      %1934 = vmatpush1.bf16.msra.mxu0 %v1176
      %1935 = vmatprep.subr.bf16.mxu0 0
      %1936 = vmatpush1.bf16.msra.mxu0 %v1175
      %1937 = vmatprep.subr.bf16.mxu0 0
      %1938 = vmatpush1.bf16.msra.mxu0 %v1174
      %1939 = vmatprep.subr.bf16.mxu0 0
      %1940 = vmatpush1.bf16.msra.mxu0 %v1173
      %1941 = vmatprep.subr.bf16.mxu0 0
      %1942 = vmatpush1.bf16.msra.mxu0 %v1172
      %1943 = vmatprep.subr.bf16.mxu0 0
      %1944 = vmatpush2.bf16.msra.mxu0 %v1187
      %1945 = vmatprep.subr.bf16.mxu0 0
      %1946 = vmatpush2.bf16.msra.mxu0 %v1186
      %1947 = vmatprep.subr.bf16.mxu0 0
      %1948 = vmatpush2.bf16.msra.mxu0 %v1185
      %1949 = vmatprep.subr.bf16.mxu0 0
      %1950 = vmatpush2.bf16.msra.mxu0 %v1184
      %1951 = vmatprep.subr.bf16.mxu0 0
      %1952 = vmatpush2.bf16.msra.mxu0 %v1183
      %1953 = vmatprep.subr.bf16.mxu0 0
      %1954 = vmatpush2.bf16.msra.mxu0 %v1182
      %1955 = vmatprep.subr.bf16.mxu0 0
      %1956 = vmatpush2.bf16.msra.mxu0 %v1181
      %1957 = vmatprep.subr.bf16.mxu0 0
      %1958 = vmatpush2.bf16.msra.mxu0 %v1180
      %1959 = vmatprep.mubr.bf16.mxu0 %v1912
      %1960 = vmatmul.mubr.bf16.gmra.mxu0 %v1911
      %v1961 = vpop.f32.mrf.mxu0
      %v1962 = vadd.f32 0.0, %v1961
      %v1963 = vpop.f32.mrf.mxu0
      %v1964 = vpop.f32.mrf.mxu0
      %v1965 = vadd.f32 0.0, %v1964
      %v1966 = vpop.f32.mrf.mxu0
      %1967 = vmatprep.mubr.bf16.mxu0 %v1914
      %1968 = vmatmul.mubr.bf16.gmra.mxu0 %v1913
      %v1969 = vpop.f32.mrf.mxu0
      %v1970 = vadd.f32 0.0, %v1969
      %v1971 = vpop.f32.mrf.mxu0
      %v1972 = vpop.f32.mrf.mxu0
      %v1973 = vadd.f32 0.0, %v1972
      %v1974 = vpop.f32.mrf.mxu0
      %1975 = vmatprep.mubr.bf16.mxu0 %v1916
      %1976 = vmatmul.mubr.bf16.gmra.mxu0 %v1915
      %v1977 = vpop.f32.mrf.mxu0
      %v1978 = vadd.f32 0.0, %v1977
      %v1979 = vpop.f32.mrf.mxu0
      %v1980 = vpop.f32.mrf.mxu0
      %v1981 = vadd.f32 0.0, %v1980
      %v1982 = vpop.f32.mrf.mxu0
      %1983 = vmatprep.mubr.bf16.mxu0 %v1918
      %1984 = vmatmul.mubr.bf16.gmra.mxu0 %v1917
      %v1985 = vpop.f32.mrf.mxu0
      %v1986 = vadd.f32 0.0, %v1985
      %v1987 = vpop.f32.mrf.mxu0
      %v1988 = vpop.f32.mrf.mxu0
      %v1989 = vadd.f32 0.0, %v1988
      %v1990 = vpop.f32.mrf.mxu0
      %1991 = vdwg.mxu0
      %v1992 = vpack.c.bf16 %v1965, %v1962
      %v1993 = vpack.c.bf16 %v1973, %v1970
      %v1994 = vpack.c.bf16 %v1981, %v1978
      %v1995 = vpack.c.bf16 %v1989, %v1986
      %s1996 = scalar_lea.vmem %s4, 96
      %v1997 = vld [vmem:[%s1996] sm:$0xf]
      %v1998 = vld [vmem:[%s1996 + $0x4] sm:$0xf]
      %v1999 = vld [vmem:[%s1996 + $0x8] sm:$0xf]
      %v2000 = vld [vmem:[%s1996 + $0xc] sm:$0xf]
      %v2001 = vld [vmem:[%s1996 + $0x10] sm:$0xf]
      %v2002 = vld [vmem:[%s1996 + $0x14] sm:$0xf]
      %v2003 = vld [vmem:[%s1996 + $0x18] sm:$0xf]
      %v2004 = vld [vmem:[%s1996 + $0x1c] sm:$0xf]
      %v2013 = vunpack.c.l.b16 %v1997
      %v2014 = vunpack.c.l.b16 %v1998
      %v2015 = vunpack.c.l.b16 %v1999
      %v2016 = vunpack.c.l.b16 %v2000
      %v2017 = vunpack.c.l.b16 %v2001
      %v2018 = vunpack.c.l.b16 %v2002
      %v2019 = vunpack.c.l.b16 %v2003
      %v2020 = vunpack.c.l.b16 %v2004
      %v2021 = vpack.c.b16 %v2014, %v2013
      %v2022 = vpack.c.b16 %v2016, %v2015
      %v2023 = vpack.c.b16 %v2018, %v2017
      %v2024 = vpack.c.b16 %v2020, %v2019
      %v2030 = vsel %vm836, %v1992, 0
      %v2033 = vsel %vm836, %v1993, 0
      %v2036 = vsel %vm836, %v1994, 0
      %v2039 = vsel %vm836, %v1995, 0
      %2041 = vmatprep.subr.bf16.mxu0 0
      %2042 = vmatpush1.bf16.msra.mxu0 0
      %2043 = vmatprep.subr.bf16.mxu0 0
      %2044 = vmatpush1.bf16.msra.mxu0 0
      %2045 = vmatprep.subr.bf16.mxu0 0
      %2046 = vmatpush1.bf16.msra.mxu0 0
      %2047 = vmatprep.subr.bf16.mxu0 0
      %2048 = vmatpush1.bf16.msra.mxu0 0
      %2049 = vmatprep.subr.bf16.mxu0 0
      %2050 = vmatpush1.bf16.msra.mxu0 %v2024
      %2051 = vmatprep.subr.bf16.mxu0 0
      %2052 = vmatpush1.bf16.msra.mxu0 %v2023
      %2053 = vmatprep.subr.bf16.mxu0 0
      %2054 = vmatpush1.bf16.msra.mxu0 %v2022
      %2055 = vmatprep.subr.bf16.mxu0 0
      %2056 = vmatpush1.bf16.msra.mxu0 %v2021
      %2057 = vmatprep.subr.bf16.mxu0 0
      %2058 = vmatpush2.bf16.msra.mxu0 0
      %2059 = vmatprep.subr.bf16.mxu0 0
      %2060 = vmatpush2.bf16.msra.mxu0 0
      %2061 = vmatprep.subr.bf16.mxu0 0
      %2062 = vmatpush2.bf16.msra.mxu0 0
      %2063 = vmatprep.subr.bf16.mxu0 0
      %2064 = vmatpush2.bf16.msra.mxu0 0
      %2065 = vmatprep.subr.bf16.mxu0 0
      %2066 = vmatpush2.bf16.msra.mxu0 0
      %2067 = vmatprep.subr.bf16.mxu0 0
      %2068 = vmatpush2.bf16.msra.mxu0 0
      %2069 = vmatprep.subr.bf16.mxu0 0
      %2070 = vmatpush2.bf16.msra.mxu0 0
      %2071 = vmatprep.subr.bf16.mxu0 0
      %2072 = vmatpush2.bf16.msra.mxu0 0
      %2073 = vmatprep.mubr.bf16.mxu0 0
      %2074 = vmatmul.mubr.bf16.gmra.mxu0 %v2030
      %v2075 = vpop.f32.mrf.mxu0
      %v2076 = vadd.f32 0.0, %v2075
      %v2077 = vpop.f32.mrf.mxu0
      %v2078 = vpop.f32.mrf.mxu0
      %v2079 = vadd.f32 0.0, %v2078
      %v2080 = vpop.f32.mrf.mxu0
      %2081 = vmatprep.mubr.bf16.mxu0 0
      %2082 = vmatmul.mubr.bf16.gmra.mxu0 %v2033
      %v2083 = vpop.f32.mrf.mxu0
      %v2084 = vadd.f32 0.0, %v2083
      %v2085 = vpop.f32.mrf.mxu0
      %v2086 = vpop.f32.mrf.mxu0
      %v2087 = vadd.f32 0.0, %v2086
      %v2088 = vpop.f32.mrf.mxu0
      %2089 = vmatprep.mubr.bf16.mxu0 0
      %2090 = vmatmul.mubr.bf16.gmra.mxu0 %v2036
      %v2091 = vpop.f32.mrf.mxu0
      %v2092 = vadd.f32 0.0, %v2091
      %v2093 = vpop.f32.mrf.mxu0
      %v2094 = vpop.f32.mrf.mxu0
      %v2095 = vadd.f32 0.0, %v2094
      %v2096 = vpop.f32.mrf.mxu0
      %2097 = vmatprep.mubr.bf16.mxu0 0
      %2098 = vmatmul.mubr.bf16.gmra.mxu0 %v2039
      %v2099 = vpop.f32.mrf.mxu0
      %v2100 = vadd.f32 0.0, %v2099
      %v2101 = vpop.f32.mrf.mxu0
      %v2102 = vpop.f32.mrf.mxu0
      %v2103 = vadd.f32 0.0, %v2102
      %v2104 = vpop.f32.mrf.mxu0
      %2105 = vdwg.mxu0
      %v2106 = vadd.f32 %v1870, %v2076
      %v2107 = vadd.f32 %v1871, %v2079
      %v2108 = vadd.f32 %v1872, %v2084
      %v2109 = vadd.f32 %v1873, %v2087
      %v2110 = vadd.f32 %v1874, %v2092
      %v2111 = vadd.f32 %v1875, %v2095
      %v2112 = vadd.f32 %v1876, %v2100
      %v2113 = vadd.f32 %v1877, %v2103
      %s2114 = scalar_lea.vmem %s3, 256
      %v2115 = vld [vmem:[%s2114] sm:$0xff]
      %v2116 = vld [vmem:[%s2114 + $0x8] sm:$0xff]
      %v2117 = vld [vmem:[%s2114 + $0x10] sm:$0xff]
      %v2118 = vld [vmem:[%s2114 + $0x18] sm:$0xff]
      %v2119 = vld [vmem:[%s2114 + $0x20] sm:$0xff]
      %v2120 = vld [vmem:[%s2114 + $0x28] sm:$0xff]
      %v2121 = vld [vmem:[%s2114 + $0x30] sm:$0xff]
      %v2122 = vld [vmem:[%s2114 + $0x38] sm:$0xff]
      %v2131 = vunpack.c.l.b16 %v2115
      %v2132 = vunpack.c.h.b16 %v2115
      %v2133 = vunpack.c.l.b16 %v2116
      %v2134 = vunpack.c.h.b16 %v2116
      %v2135 = vunpack.c.l.b16 %v2117
      %v2136 = vunpack.c.h.b16 %v2117
      %v2137 = vunpack.c.l.b16 %v2118
      %v2138 = vunpack.c.h.b16 %v2118
      %v2139 = vunpack.c.l.b16 %v2119
      %v2140 = vunpack.c.h.b16 %v2119
      %v2141 = vunpack.c.l.b16 %v2120
      %v2142 = vunpack.c.h.b16 %v2120
      %v2143 = vunpack.c.l.b16 %v2121
      %v2144 = vunpack.c.h.b16 %v2121
      %v2145 = vunpack.c.l.b16 %v2122
      %v2146 = vunpack.c.h.b16 %v2122
      %v2147 = vpack.c.b16 %v2133, %v2131
      %v2148 = vpack.c.b16 %v2134, %v2132
      %v2149 = vpack.c.b16 %v2137, %v2135
      %v2150 = vpack.c.b16 %v2138, %v2136
      %v2151 = vpack.c.b16 %v2141, %v2139
      %v2152 = vpack.c.b16 %v2142, %v2140
      %v2153 = vpack.c.b16 %v2145, %v2143
      %v2154 = vpack.c.b16 %v2146, %v2144
      %2163 = vmatprep.subr.bf16.mxu0 0
      %2164 = vmatpush1.bf16.msra.mxu0 %v1179
      %2165 = vmatprep.subr.bf16.mxu0 0
      %2166 = vmatpush1.bf16.msra.mxu0 %v1178
      %2167 = vmatprep.subr.bf16.mxu0 0
      %2168 = vmatpush1.bf16.msra.mxu0 %v1177
      %2169 = vmatprep.subr.bf16.mxu0 0
      %2170 = vmatpush1.bf16.msra.mxu0 %v1176
      %2171 = vmatprep.subr.bf16.mxu0 0
      %2172 = vmatpush1.bf16.msra.mxu0 %v1175
      %2173 = vmatprep.subr.bf16.mxu0 0
      %2174 = vmatpush1.bf16.msra.mxu0 %v1174
      %2175 = vmatprep.subr.bf16.mxu0 0
      %2176 = vmatpush1.bf16.msra.mxu0 %v1173
      %2177 = vmatprep.subr.bf16.mxu0 0
      %2178 = vmatpush1.bf16.msra.mxu0 %v1172
      %2179 = vmatprep.subr.bf16.mxu0 0
      %2180 = vmatpush2.bf16.msra.mxu0 %v1187
      %2181 = vmatprep.subr.bf16.mxu0 0
      %2182 = vmatpush2.bf16.msra.mxu0 %v1186
      %2183 = vmatprep.subr.bf16.mxu0 0
      %2184 = vmatpush2.bf16.msra.mxu0 %v1185
      %2185 = vmatprep.subr.bf16.mxu0 0
      %2186 = vmatpush2.bf16.msra.mxu0 %v1184
      %2187 = vmatprep.subr.bf16.mxu0 0
      %2188 = vmatpush2.bf16.msra.mxu0 %v1183
      %2189 = vmatprep.subr.bf16.mxu0 0
      %2190 = vmatpush2.bf16.msra.mxu0 %v1182
      %2191 = vmatprep.subr.bf16.mxu0 0
      %2192 = vmatpush2.bf16.msra.mxu0 %v1181
      %2193 = vmatprep.subr.bf16.mxu0 0
      %2194 = vmatpush2.bf16.msra.mxu0 %v1180
      %2195 = vmatprep.mubr.bf16.mxu0 %v2148
      %2196 = vmatmul.mubr.bf16.gmra.mxu0 %v2147
      %v2197 = vpop.f32.mrf.mxu0
      %v2198 = vadd.f32 0.0, %v2197
      %v2199 = vpop.f32.mrf.mxu0
      %v2200 = vpop.f32.mrf.mxu0
      %v2201 = vadd.f32 0.0, %v2200
      %v2202 = vpop.f32.mrf.mxu0
      %2203 = vmatprep.mubr.bf16.mxu0 %v2150
      %2204 = vmatmul.mubr.bf16.gmra.mxu0 %v2149
      %v2205 = vpop.f32.mrf.mxu0
      %v2206 = vadd.f32 0.0, %v2205
      %v2207 = vpop.f32.mrf.mxu0
      %v2208 = vpop.f32.mrf.mxu0
      %v2209 = vadd.f32 0.0, %v2208
      %v2210 = vpop.f32.mrf.mxu0
      %2211 = vmatprep.mubr.bf16.mxu0 %v2152
      %2212 = vmatmul.mubr.bf16.gmra.mxu0 %v2151
      %v2213 = vpop.f32.mrf.mxu0
      %v2214 = vadd.f32 0.0, %v2213
      %v2215 = vpop.f32.mrf.mxu0
      %v2216 = vpop.f32.mrf.mxu0
      %v2217 = vadd.f32 0.0, %v2216
      %v2218 = vpop.f32.mrf.mxu0
      %2219 = vmatprep.mubr.bf16.mxu0 %v2154
      %2220 = vmatmul.mubr.bf16.gmra.mxu0 %v2153
      %v2221 = vpop.f32.mrf.mxu0
      %v2222 = vadd.f32 0.0, %v2221
      %v2223 = vpop.f32.mrf.mxu0
      %v2224 = vpop.f32.mrf.mxu0
      %v2225 = vadd.f32 0.0, %v2224
      %v2226 = vpop.f32.mrf.mxu0
      %2227 = vdwg.mxu0
      %v2228 = vpack.c.bf16 %v2201, %v2198
      %v2229 = vpack.c.bf16 %v2209, %v2206
      %v2230 = vpack.c.bf16 %v2217, %v2214
      %v2231 = vpack.c.bf16 %v2225, %v2222
      %s2232 = scalar_lea.vmem %s4, 128
      %v2233 = vld [vmem:[%s2232] sm:$0xf]
      %v2234 = vld [vmem:[%s2232 + $0x4] sm:$0xf]
      %v2235 = vld [vmem:[%s2232 + $0x8] sm:$0xf]
      %v2236 = vld [vmem:[%s2232 + $0xc] sm:$0xf]
      %v2237 = vld [vmem:[%s2232 + $0x10] sm:$0xf]
      %v2238 = vld [vmem:[%s2232 + $0x14] sm:$0xf]
      %v2239 = vld [vmem:[%s2232 + $0x18] sm:$0xf]
      %v2240 = vld [vmem:[%s2232 + $0x1c] sm:$0xf]
      %v2249 = vunpack.c.l.b16 %v2233
      %v2250 = vunpack.c.l.b16 %v2234
      %v2251 = vunpack.c.l.b16 %v2235
      %v2252 = vunpack.c.l.b16 %v2236
      %v2253 = vunpack.c.l.b16 %v2237
      %v2254 = vunpack.c.l.b16 %v2238
      %v2255 = vunpack.c.l.b16 %v2239
      %v2256 = vunpack.c.l.b16 %v2240
      %v2257 = vpack.c.b16 %v2250, %v2249
      %v2258 = vpack.c.b16 %v2252, %v2251
      %v2259 = vpack.c.b16 %v2254, %v2253
      %v2260 = vpack.c.b16 %v2256, %v2255
      %v2266 = vsel %vm836, %v2228, 0
      %v2269 = vsel %vm836, %v2229, 0
      %v2272 = vsel %vm836, %v2230, 0
      %v2275 = vsel %vm836, %v2231, 0
      %2277 = vmatprep.subr.bf16.mxu0 0
      %2278 = vmatpush1.bf16.msra.mxu0 0
      %2279 = vmatprep.subr.bf16.mxu0 0
      %2280 = vmatpush1.bf16.msra.mxu0 0
      %2281 = vmatprep.subr.bf16.mxu0 0
      %2282 = vmatpush1.bf16.msra.mxu0 0
      %2283 = vmatprep.subr.bf16.mxu0 0
      %2284 = vmatpush1.bf16.msra.mxu0 0
      %2285 = vmatprep.subr.bf16.mxu0 0
      %2286 = vmatpush1.bf16.msra.mxu0 %v2260
      %2287 = vmatprep.subr.bf16.mxu0 0
      %2288 = vmatpush1.bf16.msra.mxu0 %v2259
      %2289 = vmatprep.subr.bf16.mxu0 0
      %2290 = vmatpush1.bf16.msra.mxu0 %v2258
      %2291 = vmatprep.subr.bf16.mxu0 0
      %2292 = vmatpush1.bf16.msra.mxu0 %v2257
      %2293 = vmatprep.subr.bf16.mxu0 0
      %2294 = vmatpush2.bf16.msra.mxu0 0
      %2295 = vmatprep.subr.bf16.mxu0 0
      %2296 = vmatpush2.bf16.msra.mxu0 0
      %2297 = vmatprep.subr.bf16.mxu0 0
      %2298 = vmatpush2.bf16.msra.mxu0 0
      %2299 = vmatprep.subr.bf16.mxu0 0
      %2300 = vmatpush2.bf16.msra.mxu0 0
      %2301 = vmatprep.subr.bf16.mxu0 0
      %2302 = vmatpush2.bf16.msra.mxu0 0
      %2303 = vmatprep.subr.bf16.mxu0 0
      %2304 = vmatpush2.bf16.msra.mxu0 0
      %2305 = vmatprep.subr.bf16.mxu0 0
      %2306 = vmatpush2.bf16.msra.mxu0 0
      %2307 = vmatprep.subr.bf16.mxu0 0
      %2308 = vmatpush2.bf16.msra.mxu0 0
      %2309 = vmatprep.mubr.bf16.mxu0 0
      %2310 = vmatmul.mubr.bf16.gmra.mxu0 %v2266
      %v2311 = vpop.f32.mrf.mxu0
      %v2312 = vadd.f32 0.0, %v2311
      %v2313 = vpop.f32.mrf.mxu0
      %v2314 = vpop.f32.mrf.mxu0
      %v2315 = vadd.f32 0.0, %v2314
      %v2316 = vpop.f32.mrf.mxu0
      %2317 = vmatprep.mubr.bf16.mxu0 0
      %2318 = vmatmul.mubr.bf16.gmra.mxu0 %v2269
      %v2319 = vpop.f32.mrf.mxu0
      %v2320 = vadd.f32 0.0, %v2319
      %v2321 = vpop.f32.mrf.mxu0
      %v2322 = vpop.f32.mrf.mxu0
      %v2323 = vadd.f32 0.0, %v2322
      %v2324 = vpop.f32.mrf.mxu0
      %2325 = vmatprep.mubr.bf16.mxu0 0
      %2326 = vmatmul.mubr.bf16.gmra.mxu0 %v2272
      %v2327 = vpop.f32.mrf.mxu0
      %v2328 = vadd.f32 0.0, %v2327
      %v2329 = vpop.f32.mrf.mxu0
      %v2330 = vpop.f32.mrf.mxu0
      %v2331 = vadd.f32 0.0, %v2330
      %v2332 = vpop.f32.mrf.mxu0
      %2333 = vmatprep.mubr.bf16.mxu0 0
      %2334 = vmatmul.mubr.bf16.gmra.mxu0 %v2275
      %v2335 = vpop.f32.mrf.mxu0
      %v2336 = vadd.f32 0.0, %v2335
      %v2337 = vpop.f32.mrf.mxu0
      %v2338 = vpop.f32.mrf.mxu0
      %v2339 = vadd.f32 0.0, %v2338
      %v2340 = vpop.f32.mrf.mxu0
      %2341 = vdwg.mxu0
      %v2342 = vadd.f32 %v2106, %v2312
      %v2343 = vadd.f32 %v2107, %v2315
      %v2344 = vadd.f32 %v2108, %v2320
      %v2345 = vadd.f32 %v2109, %v2323
      %v2346 = vadd.f32 %v2110, %v2328
      %v2347 = vadd.f32 %v2111, %v2331
      %v2348 = vadd.f32 %v2112, %v2336
      %v2349 = vadd.f32 %v2113, %v2339
      %s2350 = scalar_lea.vmem %s3, 320
      %v2351 = vld [vmem:[%s2350] sm:$0xff]
      %v2352 = vld [vmem:[%s2350 + $0x8] sm:$0xff]
      %v2353 = vld [vmem:[%s2350 + $0x10] sm:$0xff]
      %v2354 = vld [vmem:[%s2350 + $0x18] sm:$0xff]
      %v2355 = vld [vmem:[%s2350 + $0x20] sm:$0xff]
      %v2356 = vld [vmem:[%s2350 + $0x28] sm:$0xff]
      %v2357 = vld [vmem:[%s2350 + $0x30] sm:$0xff]
      %v2358 = vld [vmem:[%s2350 + $0x38] sm:$0xff]
      %v2367 = vunpack.c.l.b16 %v2351
      %v2368 = vunpack.c.h.b16 %v2351
      %v2369 = vunpack.c.l.b16 %v2352
      %v2370 = vunpack.c.h.b16 %v2352
      %v2371 = vunpack.c.l.b16 %v2353
      %v2372 = vunpack.c.h.b16 %v2353
      %v2373 = vunpack.c.l.b16 %v2354
      %v2374 = vunpack.c.h.b16 %v2354
      %v2375 = vunpack.c.l.b16 %v2355
      %v2376 = vunpack.c.h.b16 %v2355
      %v2377 = vunpack.c.l.b16 %v2356
      %v2378 = vunpack.c.h.b16 %v2356
      %v2379 = vunpack.c.l.b16 %v2357
      %v2380 = vunpack.c.h.b16 %v2357
      %v2381 = vunpack.c.l.b16 %v2358
      %v2382 = vunpack.c.h.b16 %v2358
      %v2383 = vpack.c.b16 %v2369, %v2367
      %v2384 = vpack.c.b16 %v2370, %v2368
      %v2385 = vpack.c.b16 %v2373, %v2371
      %v2386 = vpack.c.b16 %v2374, %v2372
      %v2387 = vpack.c.b16 %v2377, %v2375
      %v2388 = vpack.c.b16 %v2378, %v2376
      %v2389 = vpack.c.b16 %v2381, %v2379
      %v2390 = vpack.c.b16 %v2382, %v2380
      %2399 = vmatprep.subr.bf16.mxu0 0
      %2400 = vmatpush1.bf16.msra.mxu0 %v1179
      %2401 = vmatprep.subr.bf16.mxu0 0
      %2402 = vmatpush1.bf16.msra.mxu0 %v1178
      %2403 = vmatprep.subr.bf16.mxu0 0
      %2404 = vmatpush1.bf16.msra.mxu0 %v1177
      %2405 = vmatprep.subr.bf16.mxu0 0
      %2406 = vmatpush1.bf16.msra.mxu0 %v1176
      %2407 = vmatprep.subr.bf16.mxu0 0
      %2408 = vmatpush1.bf16.msra.mxu0 %v1175
      %2409 = vmatprep.subr.bf16.mxu0 0
      %2410 = vmatpush1.bf16.msra.mxu0 %v1174
      %2411 = vmatprep.subr.bf16.mxu0 0
      %2412 = vmatpush1.bf16.msra.mxu0 %v1173
      %2413 = vmatprep.subr.bf16.mxu0 0
      %2414 = vmatpush1.bf16.msra.mxu0 %v1172
      %2415 = vmatprep.subr.bf16.mxu0 0
      %2416 = vmatpush2.bf16.msra.mxu0 %v1187
      %2417 = vmatprep.subr.bf16.mxu0 0
      %2418 = vmatpush2.bf16.msra.mxu0 %v1186
      %2419 = vmatprep.subr.bf16.mxu0 0
      %2420 = vmatpush2.bf16.msra.mxu0 %v1185
      %2421 = vmatprep.subr.bf16.mxu0 0
      %2422 = vmatpush2.bf16.msra.mxu0 %v1184
      %2423 = vmatprep.subr.bf16.mxu0 0
      %2424 = vmatpush2.bf16.msra.mxu0 %v1183
      %2425 = vmatprep.subr.bf16.mxu0 0
      %2426 = vmatpush2.bf16.msra.mxu0 %v1182
      %2427 = vmatprep.subr.bf16.mxu0 0
      %2428 = vmatpush2.bf16.msra.mxu0 %v1181
      %2429 = vmatprep.subr.bf16.mxu0 0
      %2430 = vmatpush2.bf16.msra.mxu0 %v1180
      %2431 = vmatprep.mubr.bf16.mxu0 %v2384
      %2432 = vmatmul.mubr.bf16.gmra.mxu0 %v2383
      %v2433 = vpop.f32.mrf.mxu0
      %v2434 = vadd.f32 0.0, %v2433
      %v2435 = vpop.f32.mrf.mxu0
      %v2436 = vpop.f32.mrf.mxu0
      %v2437 = vadd.f32 0.0, %v2436
      %v2438 = vpop.f32.mrf.mxu0
      %2439 = vmatprep.mubr.bf16.mxu0 %v2386
      %2440 = vmatmul.mubr.bf16.gmra.mxu0 %v2385
      %v2441 = vpop.f32.mrf.mxu0
      %v2442 = vadd.f32 0.0, %v2441
      %v2443 = vpop.f32.mrf.mxu0
      %v2444 = vpop.f32.mrf.mxu0
      %v2445 = vadd.f32 0.0, %v2444
      %v2446 = vpop.f32.mrf.mxu0
      %2447 = vmatprep.mubr.bf16.mxu0 %v2388
      %2448 = vmatmul.mubr.bf16.gmra.mxu0 %v2387
      %v2449 = vpop.f32.mrf.mxu0
      %v2450 = vadd.f32 0.0, %v2449
      %v2451 = vpop.f32.mrf.mxu0
      %v2452 = vpop.f32.mrf.mxu0
      %v2453 = vadd.f32 0.0, %v2452
      %v2454 = vpop.f32.mrf.mxu0
      %2455 = vmatprep.mubr.bf16.mxu0 %v2390
      %2456 = vmatmul.mubr.bf16.gmra.mxu0 %v2389
      %v2457 = vpop.f32.mrf.mxu0
      %v2458 = vadd.f32 0.0, %v2457
      %v2459 = vpop.f32.mrf.mxu0
      %v2460 = vpop.f32.mrf.mxu0
      %v2461 = vadd.f32 0.0, %v2460
      %v2462 = vpop.f32.mrf.mxu0
      %2463 = vdwg.mxu0
      %v2464 = vpack.c.bf16 %v2437, %v2434
      %v2465 = vpack.c.bf16 %v2445, %v2442
      %v2466 = vpack.c.bf16 %v2453, %v2450
      %v2467 = vpack.c.bf16 %v2461, %v2458
      %s2468 = scalar_lea.vmem %s4, 160
      %v2469 = vld [vmem:[%s2468] sm:$0xf]
      %v2470 = vld [vmem:[%s2468 + $0x4] sm:$0xf]
      %v2471 = vld [vmem:[%s2468 + $0x8] sm:$0xf]
      %v2472 = vld [vmem:[%s2468 + $0xc] sm:$0xf]
      %v2473 = vld [vmem:[%s2468 + $0x10] sm:$0xf]
      %v2474 = vld [vmem:[%s2468 + $0x14] sm:$0xf]
      %v2475 = vld [vmem:[%s2468 + $0x18] sm:$0xf]
      %v2476 = vld [vmem:[%s2468 + $0x1c] sm:$0xf]
      %v2485 = vunpack.c.l.b16 %v2469
      %v2486 = vunpack.c.l.b16 %v2470
      %v2487 = vunpack.c.l.b16 %v2471
      %v2488 = vunpack.c.l.b16 %v2472
      %v2489 = vunpack.c.l.b16 %v2473
      %v2490 = vunpack.c.l.b16 %v2474
      %v2491 = vunpack.c.l.b16 %v2475
      %v2492 = vunpack.c.l.b16 %v2476
      %v2493 = vpack.c.b16 %v2486, %v2485
      %v2494 = vpack.c.b16 %v2488, %v2487
      %v2495 = vpack.c.b16 %v2490, %v2489
      %v2496 = vpack.c.b16 %v2492, %v2491
      %v2502 = vsel %vm836, %v2464, 0
      %v2505 = vsel %vm836, %v2465, 0
      %v2508 = vsel %vm836, %v2466, 0
      %v2511 = vsel %vm836, %v2467, 0
      %2513 = vmatprep.subr.bf16.mxu0 0
      %2514 = vmatpush1.bf16.msra.mxu0 0
      %2515 = vmatprep.subr.bf16.mxu0 0
      %2516 = vmatpush1.bf16.msra.mxu0 0
      %2517 = vmatprep.subr.bf16.mxu0 0
      %2518 = vmatpush1.bf16.msra.mxu0 0
      %2519 = vmatprep.subr.bf16.mxu0 0
      %2520 = vmatpush1.bf16.msra.mxu0 0
      %2521 = vmatprep.subr.bf16.mxu0 0
      %2522 = vmatpush1.bf16.msra.mxu0 %v2496
      %2523 = vmatprep.subr.bf16.mxu0 0
      %2524 = vmatpush1.bf16.msra.mxu0 %v2495
      %2525 = vmatprep.subr.bf16.mxu0 0
      %2526 = vmatpush1.bf16.msra.mxu0 %v2494
      %2527 = vmatprep.subr.bf16.mxu0 0
      %2528 = vmatpush1.bf16.msra.mxu0 %v2493
      %2529 = vmatprep.subr.bf16.mxu0 0
      %2530 = vmatpush2.bf16.msra.mxu0 0
      %2531 = vmatprep.subr.bf16.mxu0 0
      %2532 = vmatpush2.bf16.msra.mxu0 0
      %2533 = vmatprep.subr.bf16.mxu0 0
      %2534 = vmatpush2.bf16.msra.mxu0 0
      %2535 = vmatprep.subr.bf16.mxu0 0
      %2536 = vmatpush2.bf16.msra.mxu0 0
      %2537 = vmatprep.subr.bf16.mxu0 0
      %2538 = vmatpush2.bf16.msra.mxu0 0
      %2539 = vmatprep.subr.bf16.mxu0 0
      %2540 = vmatpush2.bf16.msra.mxu0 0
      %2541 = vmatprep.subr.bf16.mxu0 0
      %2542 = vmatpush2.bf16.msra.mxu0 0
      %2543 = vmatprep.subr.bf16.mxu0 0
      %2544 = vmatpush2.bf16.msra.mxu0 0
      %2545 = vmatprep.mubr.bf16.mxu0 0
      %2546 = vmatmul.mubr.bf16.gmra.mxu0 %v2502
      %v2547 = vpop.f32.mrf.mxu0
      %v2548 = vadd.f32 0.0, %v2547
      %v2549 = vpop.f32.mrf.mxu0
      %v2550 = vpop.f32.mrf.mxu0
      %v2551 = vadd.f32 0.0, %v2550
      %v2552 = vpop.f32.mrf.mxu0
      %2553 = vmatprep.mubr.bf16.mxu0 0
      %2554 = vmatmul.mubr.bf16.gmra.mxu0 %v2505
      %v2555 = vpop.f32.mrf.mxu0
      %v2556 = vadd.f32 0.0, %v2555
      %v2557 = vpop.f32.mrf.mxu0
      %v2558 = vpop.f32.mrf.mxu0
      %v2559 = vadd.f32 0.0, %v2558
      %v2560 = vpop.f32.mrf.mxu0
      %2561 = vmatprep.mubr.bf16.mxu0 0
      %2562 = vmatmul.mubr.bf16.gmra.mxu0 %v2508
      %v2563 = vpop.f32.mrf.mxu0
      %v2564 = vadd.f32 0.0, %v2563
      %v2565 = vpop.f32.mrf.mxu0
      %v2566 = vpop.f32.mrf.mxu0
      %v2567 = vadd.f32 0.0, %v2566
      %v2568 = vpop.f32.mrf.mxu0
      %2569 = vmatprep.mubr.bf16.mxu0 0
      %2570 = vmatmul.mubr.bf16.gmra.mxu0 %v2511
      %v2571 = vpop.f32.mrf.mxu0
      %v2572 = vadd.f32 0.0, %v2571
      %v2573 = vpop.f32.mrf.mxu0
      %v2574 = vpop.f32.mrf.mxu0
      %v2575 = vadd.f32 0.0, %v2574
      %v2576 = vpop.f32.mrf.mxu0
      %2577 = vdwg.mxu0
      %v2578 = vadd.f32 %v2342, %v2548
      %v2579 = vadd.f32 %v2343, %v2551
      %v2580 = vadd.f32 %v2344, %v2556
      %v2581 = vadd.f32 %v2345, %v2559
      %v2582 = vadd.f32 %v2346, %v2564
      %v2583 = vadd.f32 %v2347, %v2567
      %v2584 = vadd.f32 %v2348, %v2572
      %v2585 = vadd.f32 %v2349, %v2575
      %s2586 = scalar_lea.vmem %s3, 384
      %v2587 = vld [vmem:[%s2586] sm:$0xff]
      %v2588 = vld [vmem:[%s2586 + $0x8] sm:$0xff]
      %v2589 = vld [vmem:[%s2586 + $0x10] sm:$0xff]
      %v2590 = vld [vmem:[%s2586 + $0x18] sm:$0xff]
      %v2591 = vld [vmem:[%s2586 + $0x20] sm:$0xff]
      %v2592 = vld [vmem:[%s2586 + $0x28] sm:$0xff]
      %v2593 = vld [vmem:[%s2586 + $0x30] sm:$0xff]
      %v2594 = vld [vmem:[%s2586 + $0x38] sm:$0xff]
      %v2603 = vunpack.c.l.b16 %v2587
      %v2604 = vunpack.c.h.b16 %v2587
      %v2605 = vunpack.c.l.b16 %v2588
      %v2606 = vunpack.c.h.b16 %v2588
      %v2607 = vunpack.c.l.b16 %v2589
      %v2608 = vunpack.c.h.b16 %v2589
      %v2609 = vunpack.c.l.b16 %v2590
      %v2610 = vunpack.c.h.b16 %v2590
      %v2611 = vunpack.c.l.b16 %v2591
      %v2612 = vunpack.c.h.b16 %v2591
      %v2613 = vunpack.c.l.b16 %v2592
      %v2614 = vunpack.c.h.b16 %v2592
      %v2615 = vunpack.c.l.b16 %v2593
      %v2616 = vunpack.c.h.b16 %v2593
      %v2617 = vunpack.c.l.b16 %v2594
      %v2618 = vunpack.c.h.b16 %v2594
      %v2619 = vpack.c.b16 %v2605, %v2603
      %v2620 = vpack.c.b16 %v2606, %v2604
      %v2621 = vpack.c.b16 %v2609, %v2607
      %v2622 = vpack.c.b16 %v2610, %v2608
      %v2623 = vpack.c.b16 %v2613, %v2611
      %v2624 = vpack.c.b16 %v2614, %v2612
      %v2625 = vpack.c.b16 %v2617, %v2615
      %v2626 = vpack.c.b16 %v2618, %v2616
      %2635 = vmatprep.subr.bf16.mxu0 0
      %2636 = vmatpush1.bf16.msra.mxu0 %v1179
      %2637 = vmatprep.subr.bf16.mxu0 0
      %2638 = vmatpush1.bf16.msra.mxu0 %v1178
      %2639 = vmatprep.subr.bf16.mxu0 0
      %2640 = vmatpush1.bf16.msra.mxu0 %v1177
      %2641 = vmatprep.subr.bf16.mxu0 0
      %2642 = vmatpush1.bf16.msra.mxu0 %v1176
      %2643 = vmatprep.subr.bf16.mxu0 0
      %2644 = vmatpush1.bf16.msra.mxu0 %v1175
      %2645 = vmatprep.subr.bf16.mxu0 0
      %2646 = vmatpush1.bf16.msra.mxu0 %v1174
      %2647 = vmatprep.subr.bf16.mxu0 0
      %2648 = vmatpush1.bf16.msra.mxu0 %v1173
      %2649 = vmatprep.subr.bf16.mxu0 0
      %2650 = vmatpush1.bf16.msra.mxu0 %v1172
      %2651 = vmatprep.subr.bf16.mxu0 0
      %2652 = vmatpush2.bf16.msra.mxu0 %v1187
      %2653 = vmatprep.subr.bf16.mxu0 0
      %2654 = vmatpush2.bf16.msra.mxu0 %v1186
      %2655 = vmatprep.subr.bf16.mxu0 0
      %2656 = vmatpush2.bf16.msra.mxu0 %v1185
      %2657 = vmatprep.subr.bf16.mxu0 0
      %2658 = vmatpush2.bf16.msra.mxu0 %v1184
      %2659 = vmatprep.subr.bf16.mxu0 0
      %2660 = vmatpush2.bf16.msra.mxu0 %v1183
      %2661 = vmatprep.subr.bf16.mxu0 0
      %2662 = vmatpush2.bf16.msra.mxu0 %v1182
      %2663 = vmatprep.subr.bf16.mxu0 0
      %2664 = vmatpush2.bf16.msra.mxu0 %v1181
      %2665 = vmatprep.subr.bf16.mxu0 0
      %2666 = vmatpush2.bf16.msra.mxu0 %v1180
      %2667 = vmatprep.mubr.bf16.mxu0 %v2620
      %2668 = vmatmul.mubr.bf16.gmra.mxu0 %v2619
      %v2669 = vpop.f32.mrf.mxu0
      %v2670 = vadd.f32 0.0, %v2669
      %v2671 = vpop.f32.mrf.mxu0
      %v2672 = vpop.f32.mrf.mxu0
      %v2673 = vadd.f32 0.0, %v2672
      %v2674 = vpop.f32.mrf.mxu0
      %2675 = vmatprep.mubr.bf16.mxu0 %v2622
      %2676 = vmatmul.mubr.bf16.gmra.mxu0 %v2621
      %v2677 = vpop.f32.mrf.mxu0
      %v2678 = vadd.f32 0.0, %v2677
      %v2679 = vpop.f32.mrf.mxu0
      %v2680 = vpop.f32.mrf.mxu0
      %v2681 = vadd.f32 0.0, %v2680
      %v2682 = vpop.f32.mrf.mxu0
      %2683 = vmatprep.mubr.bf16.mxu0 %v2624
      %2684 = vmatmul.mubr.bf16.gmra.mxu0 %v2623
      %v2685 = vpop.f32.mrf.mxu0
      %v2686 = vadd.f32 0.0, %v2685
      %v2687 = vpop.f32.mrf.mxu0
      %v2688 = vpop.f32.mrf.mxu0
      %v2689 = vadd.f32 0.0, %v2688
      %v2690 = vpop.f32.mrf.mxu0
      %2691 = vmatprep.mubr.bf16.mxu0 %v2626
      %2692 = vmatmul.mubr.bf16.gmra.mxu0 %v2625
      %v2693 = vpop.f32.mrf.mxu0
      %v2694 = vadd.f32 0.0, %v2693
      %v2695 = vpop.f32.mrf.mxu0
      %v2696 = vpop.f32.mrf.mxu0
      %v2697 = vadd.f32 0.0, %v2696
      %v2698 = vpop.f32.mrf.mxu0
      %2699 = vdwg.mxu0
      %v2700 = vpack.c.bf16 %v2673, %v2670
      %v2701 = vpack.c.bf16 %v2681, %v2678
      %v2702 = vpack.c.bf16 %v2689, %v2686
      %v2703 = vpack.c.bf16 %v2697, %v2694
      %s2704 = scalar_lea.vmem %s4, 192
      %v2705 = vld [vmem:[%s2704] sm:$0xf]
      %v2706 = vld [vmem:[%s2704 + $0x4] sm:$0xf]
      %v2707 = vld [vmem:[%s2704 + $0x8] sm:$0xf]
      %v2708 = vld [vmem:[%s2704 + $0xc] sm:$0xf]
      %v2709 = vld [vmem:[%s2704 + $0x10] sm:$0xf]
      %v2710 = vld [vmem:[%s2704 + $0x14] sm:$0xf]
      %v2711 = vld [vmem:[%s2704 + $0x18] sm:$0xf]
      %v2712 = vld [vmem:[%s2704 + $0x1c] sm:$0xf]
      %v2721 = vunpack.c.l.b16 %v2705
      %v2722 = vunpack.c.l.b16 %v2706
      %v2723 = vunpack.c.l.b16 %v2707
      %v2724 = vunpack.c.l.b16 %v2708
      %v2725 = vunpack.c.l.b16 %v2709
      %v2726 = vunpack.c.l.b16 %v2710
      %v2727 = vunpack.c.l.b16 %v2711
      %v2728 = vunpack.c.l.b16 %v2712
      %v2729 = vpack.c.b16 %v2722, %v2721
      %v2730 = vpack.c.b16 %v2724, %v2723
      %v2731 = vpack.c.b16 %v2726, %v2725
      %v2732 = vpack.c.b16 %v2728, %v2727
      %v2738 = vsel %vm836, %v2700, 0
      %v2741 = vsel %vm836, %v2701, 0
      %v2744 = vsel %vm836, %v2702, 0
      %v2747 = vsel %vm836, %v2703, 0
      %2749 = vmatprep.subr.bf16.mxu0 0
      %2750 = vmatpush1.bf16.msra.mxu0 0
      %2751 = vmatprep.subr.bf16.mxu0 0
      %2752 = vmatpush1.bf16.msra.mxu0 0
      %2753 = vmatprep.subr.bf16.mxu0 0
      %2754 = vmatpush1.bf16.msra.mxu0 0
      %2755 = vmatprep.subr.bf16.mxu0 0
      %2756 = vmatpush1.bf16.msra.mxu0 0
      %2757 = vmatprep.subr.bf16.mxu0 0
      %2758 = vmatpush1.bf16.msra.mxu0 %v2732
      %2759 = vmatprep.subr.bf16.mxu0 0
      %2760 = vmatpush1.bf16.msra.mxu0 %v2731
      %2761 = vmatprep.subr.bf16.mxu0 0
      %2762 = vmatpush1.bf16.msra.mxu0 %v2730
      %2763 = vmatprep.subr.bf16.mxu0 0
      %2764 = vmatpush1.bf16.msra.mxu0 %v2729
      %2765 = vmatprep.subr.bf16.mxu0 0
      %2766 = vmatpush2.bf16.msra.mxu0 0
      %2767 = vmatprep.subr.bf16.mxu0 0
      %2768 = vmatpush2.bf16.msra.mxu0 0
      %2769 = vmatprep.subr.bf16.mxu0 0
      %2770 = vmatpush2.bf16.msra.mxu0 0
      %2771 = vmatprep.subr.bf16.mxu0 0
      %2772 = vmatpush2.bf16.msra.mxu0 0
      %2773 = vmatprep.subr.bf16.mxu0 0
      %2774 = vmatpush2.bf16.msra.mxu0 0
      %2775 = vmatprep.subr.bf16.mxu0 0
      %2776 = vmatpush2.bf16.msra.mxu0 0
      %2777 = vmatprep.subr.bf16.mxu0 0
      %2778 = vmatpush2.bf16.msra.mxu0 0
      %2779 = vmatprep.subr.bf16.mxu0 0
      %2780 = vmatpush2.bf16.msra.mxu0 0
      %2781 = vmatprep.mubr.bf16.mxu0 0
      %2782 = vmatmul.mubr.bf16.gmra.mxu0 %v2738
      %v2783 = vpop.f32.mrf.mxu0
      %v2784 = vadd.f32 0.0, %v2783
      %v2785 = vpop.f32.mrf.mxu0
      %v2786 = vpop.f32.mrf.mxu0
      %v2787 = vadd.f32 0.0, %v2786
      %v2788 = vpop.f32.mrf.mxu0
      %2789 = vmatprep.mubr.bf16.mxu0 0
      %2790 = vmatmul.mubr.bf16.gmra.mxu0 %v2741
      %v2791 = vpop.f32.mrf.mxu0
      %v2792 = vadd.f32 0.0, %v2791
      %v2793 = vpop.f32.mrf.mxu0
      %v2794 = vpop.f32.mrf.mxu0
      %v2795 = vadd.f32 0.0, %v2794
      %v2796 = vpop.f32.mrf.mxu0
      %2797 = vmatprep.mubr.bf16.mxu0 0
      %2798 = vmatmul.mubr.bf16.gmra.mxu0 %v2744
      %v2799 = vpop.f32.mrf.mxu0
      %v2800 = vadd.f32 0.0, %v2799
      %v2801 = vpop.f32.mrf.mxu0
      %v2802 = vpop.f32.mrf.mxu0
      %v2803 = vadd.f32 0.0, %v2802
      %v2804 = vpop.f32.mrf.mxu0
      %2805 = vmatprep.mubr.bf16.mxu0 0
      %2806 = vmatmul.mubr.bf16.gmra.mxu0 %v2747
      %v2807 = vpop.f32.mrf.mxu0
      %v2808 = vadd.f32 0.0, %v2807
      %v2809 = vpop.f32.mrf.mxu0
      %v2810 = vpop.f32.mrf.mxu0
      %v2811 = vadd.f32 0.0, %v2810
      %v2812 = vpop.f32.mrf.mxu0
      %2813 = vdwg.mxu0
      %v2814 = vadd.f32 %v2578, %v2784
      %v2815 = vadd.f32 %v2579, %v2787
      %v2816 = vadd.f32 %v2580, %v2792
      %v2817 = vadd.f32 %v2581, %v2795
      %v2818 = vadd.f32 %v2582, %v2800
      %v2819 = vadd.f32 %v2583, %v2803
      %v2820 = vadd.f32 %v2584, %v2808
      %v2821 = vadd.f32 %v2585, %v2811
      %s2822 = scalar_lea.vmem %s3, 448
      %v2823 = vld [vmem:[%s2822] sm:$0xff]
      %v2824 = vld [vmem:[%s2822 + $0x8] sm:$0xff]
      %v2825 = vld [vmem:[%s2822 + $0x10] sm:$0xff]
      %v2826 = vld [vmem:[%s2822 + $0x18] sm:$0xff]
      %v2827 = vld [vmem:[%s2822 + $0x20] sm:$0xff]
      %v2828 = vld [vmem:[%s2822 + $0x28] sm:$0xff]
      %v2829 = vld [vmem:[%s2822 + $0x30] sm:$0xff]
      %v2830 = vld [vmem:[%s2822 + $0x38] sm:$0xff]
      %v2839 = vunpack.c.l.b16 %v2823
      %v2840 = vunpack.c.h.b16 %v2823
      %v2841 = vunpack.c.l.b16 %v2824
      %v2842 = vunpack.c.h.b16 %v2824
      %v2843 = vunpack.c.l.b16 %v2825
      %v2844 = vunpack.c.h.b16 %v2825
      %v2845 = vunpack.c.l.b16 %v2826
      %v2846 = vunpack.c.h.b16 %v2826
      %v2847 = vunpack.c.l.b16 %v2827
      %v2848 = vunpack.c.h.b16 %v2827
      %v2849 = vunpack.c.l.b16 %v2828
      %v2850 = vunpack.c.h.b16 %v2828
      %v2851 = vunpack.c.l.b16 %v2829
      %v2852 = vunpack.c.h.b16 %v2829
      %v2853 = vunpack.c.l.b16 %v2830
      %v2854 = vunpack.c.h.b16 %v2830
      %v2855 = vpack.c.b16 %v2841, %v2839
      %v2856 = vpack.c.b16 %v2842, %v2840
      %v2857 = vpack.c.b16 %v2845, %v2843
      %v2858 = vpack.c.b16 %v2846, %v2844
      %v2859 = vpack.c.b16 %v2849, %v2847
      %v2860 = vpack.c.b16 %v2850, %v2848
      %v2861 = vpack.c.b16 %v2853, %v2851
      %v2862 = vpack.c.b16 %v2854, %v2852
      %2871 = vmatprep.subr.bf16.mxu0 0
      %2872 = vmatpush1.bf16.msra.mxu0 %v1179
      %2873 = vmatprep.subr.bf16.mxu0 0
      %2874 = vmatpush1.bf16.msra.mxu0 %v1178
      %2875 = vmatprep.subr.bf16.mxu0 0
      %2876 = vmatpush1.bf16.msra.mxu0 %v1177
      %2877 = vmatprep.subr.bf16.mxu0 0
      %2878 = vmatpush1.bf16.msra.mxu0 %v1176
      %2879 = vmatprep.subr.bf16.mxu0 0
      %2880 = vmatpush1.bf16.msra.mxu0 %v1175
      %2881 = vmatprep.subr.bf16.mxu0 0
      %2882 = vmatpush1.bf16.msra.mxu0 %v1174
      %2883 = vmatprep.subr.bf16.mxu0 0
      %2884 = vmatpush1.bf16.msra.mxu0 %v1173
      %2885 = vmatprep.subr.bf16.mxu0 0
      %2886 = vmatpush1.bf16.msra.mxu0 %v1172
      %2887 = vmatprep.subr.bf16.mxu0 0
      %2888 = vmatpush2.bf16.msra.mxu0 %v1187
      %2889 = vmatprep.subr.bf16.mxu0 0
      %2890 = vmatpush2.bf16.msra.mxu0 %v1186
      %2891 = vmatprep.subr.bf16.mxu0 0
      %2892 = vmatpush2.bf16.msra.mxu0 %v1185
      %2893 = vmatprep.subr.bf16.mxu0 0
      %2894 = vmatpush2.bf16.msra.mxu0 %v1184
      %2895 = vmatprep.subr.bf16.mxu0 0
      %2896 = vmatpush2.bf16.msra.mxu0 %v1183
      %2897 = vmatprep.subr.bf16.mxu0 0
      %2898 = vmatpush2.bf16.msra.mxu0 %v1182
      %2899 = vmatprep.subr.bf16.mxu0 0
      %2900 = vmatpush2.bf16.msra.mxu0 %v1181
      %2901 = vmatprep.subr.bf16.mxu0 0
      %2902 = vmatpush2.bf16.msra.mxu0 %v1180
      %2903 = vmatprep.mubr.bf16.mxu0 %v2856
      %2904 = vmatmul.mubr.bf16.gmra.mxu0 %v2855
      %v2905 = vpop.f32.mrf.mxu0
      %v2906 = vadd.f32 0.0, %v2905
      %v2907 = vpop.f32.mrf.mxu0
      %v2908 = vpop.f32.mrf.mxu0
      %v2909 = vadd.f32 0.0, %v2908
      %v2910 = vpop.f32.mrf.mxu0
      %2911 = vmatprep.mubr.bf16.mxu0 %v2858
      %2912 = vmatmul.mubr.bf16.gmra.mxu0 %v2857
      %v2913 = vpop.f32.mrf.mxu0
      %v2914 = vadd.f32 0.0, %v2913
      %v2915 = vpop.f32.mrf.mxu0
      %v2916 = vpop.f32.mrf.mxu0
      %v2917 = vadd.f32 0.0, %v2916
      %v2918 = vpop.f32.mrf.mxu0
      %2919 = vmatprep.mubr.bf16.mxu0 %v2860
      %2920 = vmatmul.mubr.bf16.gmra.mxu0 %v2859
      %v2921 = vpop.f32.mrf.mxu0
      %v2922 = vadd.f32 0.0, %v2921
      %v2923 = vpop.f32.mrf.mxu0
      %v2924 = vpop.f32.mrf.mxu0
      %v2925 = vadd.f32 0.0, %v2924
      %v2926 = vpop.f32.mrf.mxu0
      %2927 = vmatprep.mubr.bf16.mxu0 %v2862
      %2928 = vmatmul.mubr.bf16.gmra.mxu0 %v2861
      %v2929 = vpop.f32.mrf.mxu0
      %v2930 = vadd.f32 0.0, %v2929
      %v2931 = vpop.f32.mrf.mxu0
      %v2932 = vpop.f32.mrf.mxu0
      %v2933 = vadd.f32 0.0, %v2932
      %v2934 = vpop.f32.mrf.mxu0
      %2935 = vdwg.mxu0
      %v2936 = vpack.c.bf16 %v2909, %v2906
      %v2937 = vpack.c.bf16 %v2917, %v2914
      %v2938 = vpack.c.bf16 %v2925, %v2922
      %v2939 = vpack.c.bf16 %v2933, %v2930
      %s2940 = scalar_lea.vmem %s4, 224
      %v2941 = vld [vmem:[%s2940] sm:$0xf]
      %v2942 = vld [vmem:[%s2940 + $0x4] sm:$0xf]
      %v2943 = vld [vmem:[%s2940 + $0x8] sm:$0xf]
      %v2944 = vld [vmem:[%s2940 + $0xc] sm:$0xf]
      %v2945 = vld [vmem:[%s2940 + $0x10] sm:$0xf]
      %v2946 = vld [vmem:[%s2940 + $0x14] sm:$0xf]
      %v2947 = vld [vmem:[%s2940 + $0x18] sm:$0xf]
      %v2948 = vld [vmem:[%s2940 + $0x1c] sm:$0xf]
      %v2957 = vunpack.c.l.b16 %v2941
      %v2958 = vunpack.c.l.b16 %v2942
      %v2959 = vunpack.c.l.b16 %v2943
      %v2960 = vunpack.c.l.b16 %v2944
      %v2961 = vunpack.c.l.b16 %v2945
      %v2962 = vunpack.c.l.b16 %v2946
      %v2963 = vunpack.c.l.b16 %v2947
      %v2964 = vunpack.c.l.b16 %v2948
      %v2965 = vpack.c.b16 %v2958, %v2957
      %v2966 = vpack.c.b16 %v2960, %v2959
      %v2967 = vpack.c.b16 %v2962, %v2961
      %v2968 = vpack.c.b16 %v2964, %v2963
      %v2974 = vsel %vm836, %v2936, 0
      %v2977 = vsel %vm836, %v2937, 0
      %v2980 = vsel %vm836, %v2938, 0
      %v2983 = vsel %vm836, %v2939, 0
      %2985 = vmatprep.subr.bf16.mxu0 0
      %2986 = vmatpush1.bf16.msra.mxu0 0
      %2987 = vmatprep.subr.bf16.mxu0 0
      %2988 = vmatpush1.bf16.msra.mxu0 0
      %2989 = vmatprep.subr.bf16.mxu0 0
      %2990 = vmatpush1.bf16.msra.mxu0 0
      %2991 = vmatprep.subr.bf16.mxu0 0
      %2992 = vmatpush1.bf16.msra.mxu0 0
      %2993 = vmatprep.subr.bf16.mxu0 0
      %2994 = vmatpush1.bf16.msra.mxu0 %v2968
      %2995 = vmatprep.subr.bf16.mxu0 0
      %2996 = vmatpush1.bf16.msra.mxu0 %v2967
      %2997 = vmatprep.subr.bf16.mxu0 0
      %2998 = vmatpush1.bf16.msra.mxu0 %v2966
      %2999 = vmatprep.subr.bf16.mxu0 0
      %3000 = vmatpush1.bf16.msra.mxu0 %v2965
      %3001 = vmatprep.subr.bf16.mxu0 0
      %3002 = vmatpush2.bf16.msra.mxu0 0
      %3003 = vmatprep.subr.bf16.mxu0 0
      %3004 = vmatpush2.bf16.msra.mxu0 0
      %3005 = vmatprep.subr.bf16.mxu0 0
      %3006 = vmatpush2.bf16.msra.mxu0 0
      %3007 = vmatprep.subr.bf16.mxu0 0
      %3008 = vmatpush2.bf16.msra.mxu0 0
      %3009 = vmatprep.subr.bf16.mxu0 0
      %3010 = vmatpush2.bf16.msra.mxu0 0
      %3011 = vmatprep.subr.bf16.mxu0 0
      %3012 = vmatpush2.bf16.msra.mxu0 0
      %3013 = vmatprep.subr.bf16.mxu0 0
      %3014 = vmatpush2.bf16.msra.mxu0 0
      %3015 = vmatprep.subr.bf16.mxu0 0
      %3016 = vmatpush2.bf16.msra.mxu0 0
      %3017 = vmatprep.mubr.bf16.mxu0 0
      %3018 = vmatmul.mubr.bf16.gmra.mxu0 %v2974
      %v3019 = vpop.f32.mrf.mxu0
      %v3020 = vadd.f32 0.0, %v3019
      %v3021 = vpop.f32.mrf.mxu0
      %v3022 = vpop.f32.mrf.mxu0
      %v3023 = vadd.f32 0.0, %v3022
      %v3024 = vpop.f32.mrf.mxu0
      %3025 = vmatprep.mubr.bf16.mxu0 0
      %3026 = vmatmul.mubr.bf16.gmra.mxu0 %v2977
      %v3027 = vpop.f32.mrf.mxu0
      %v3028 = vadd.f32 0.0, %v3027
      %v3029 = vpop.f32.mrf.mxu0
      %v3030 = vpop.f32.mrf.mxu0
      %v3031 = vadd.f32 0.0, %v3030
      %v3032 = vpop.f32.mrf.mxu0
      %3033 = vmatprep.mubr.bf16.mxu0 0
      %3034 = vmatmul.mubr.bf16.gmra.mxu0 %v2980
      %v3035 = vpop.f32.mrf.mxu0
      %v3036 = vadd.f32 0.0, %v3035
      %v3037 = vpop.f32.mrf.mxu0
      %v3038 = vpop.f32.mrf.mxu0
      %v3039 = vadd.f32 0.0, %v3038
      %v3040 = vpop.f32.mrf.mxu0
      %3041 = vmatprep.mubr.bf16.mxu0 0
      %3042 = vmatmul.mubr.bf16.gmra.mxu0 %v2983
      %v3043 = vpop.f32.mrf.mxu0
      %v3044 = vadd.f32 0.0, %v3043
      %v3045 = vpop.f32.mrf.mxu0
      %v3046 = vpop.f32.mrf.mxu0
      %v3047 = vadd.f32 0.0, %v3046
      %v3048 = vpop.f32.mrf.mxu0
      %3049 = vdwg.mxu0
      %v3050 = vadd.f32 %v2814, %v3020
      %v3051 = vadd.f32 %v2815, %v3023
      %v3052 = vadd.f32 %v2816, %v3028
      %v3053 = vadd.f32 %v2817, %v3031
      %v3054 = vadd.f32 %v2818, %v3036
      %v3055 = vadd.f32 %v2819, %v3039
      %v3056 = vadd.f32 %v2820, %v3044
      %v3057 = vadd.f32 %v2821, %v3047
      %s3058 = scalar_lea.vmem %s3, 512
      %v3059 = vld [vmem:[%s3058] sm:$0xff]
      %v3060 = vld [vmem:[%s3058 + $0x8] sm:$0xff]
      %v3061 = vld [vmem:[%s3058 + $0x10] sm:$0xff]
      %v3062 = vld [vmem:[%s3058 + $0x18] sm:$0xff]
      %v3063 = vld [vmem:[%s3058 + $0x20] sm:$0xff]
      %v3064 = vld [vmem:[%s3058 + $0x28] sm:$0xff]
      %v3065 = vld [vmem:[%s3058 + $0x30] sm:$0xff]
      %v3066 = vld [vmem:[%s3058 + $0x38] sm:$0xff]
      %v3075 = vunpack.c.l.b16 %v3059
      %v3076 = vunpack.c.h.b16 %v3059
      %v3077 = vunpack.c.l.b16 %v3060
      %v3078 = vunpack.c.h.b16 %v3060
      %v3079 = vunpack.c.l.b16 %v3061
      %v3080 = vunpack.c.h.b16 %v3061
      %v3081 = vunpack.c.l.b16 %v3062
      %v3082 = vunpack.c.h.b16 %v3062
      %v3083 = vunpack.c.l.b16 %v3063
      %v3084 = vunpack.c.h.b16 %v3063
      %v3085 = vunpack.c.l.b16 %v3064
      %v3086 = vunpack.c.h.b16 %v3064
      %v3087 = vunpack.c.l.b16 %v3065
      %v3088 = vunpack.c.h.b16 %v3065
      %v3089 = vunpack.c.l.b16 %v3066
      %v3090 = vunpack.c.h.b16 %v3066
      %v3091 = vpack.c.b16 %v3077, %v3075
      %v3092 = vpack.c.b16 %v3078, %v3076
      %v3093 = vpack.c.b16 %v3081, %v3079
      %v3094 = vpack.c.b16 %v3082, %v3080
      %v3095 = vpack.c.b16 %v3085, %v3083
      %v3096 = vpack.c.b16 %v3086, %v3084
      %v3097 = vpack.c.b16 %v3089, %v3087
      %v3098 = vpack.c.b16 %v3090, %v3088
      %3107 = vmatprep.subr.bf16.mxu0 0
      %3108 = vmatpush1.bf16.msra.mxu0 %v1179
      %3109 = vmatprep.subr.bf16.mxu0 0
      %3110 = vmatpush1.bf16.msra.mxu0 %v1178
      %3111 = vmatprep.subr.bf16.mxu0 0
      %3112 = vmatpush1.bf16.msra.mxu0 %v1177
      %3113 = vmatprep.subr.bf16.mxu0 0
      %3114 = vmatpush1.bf16.msra.mxu0 %v1176
      %3115 = vmatprep.subr.bf16.mxu0 0
      %3116 = vmatpush1.bf16.msra.mxu0 %v1175
      %3117 = vmatprep.subr.bf16.mxu0 0
      %3118 = vmatpush1.bf16.msra.mxu0 %v1174
      %3119 = vmatprep.subr.bf16.mxu0 0
      %3120 = vmatpush1.bf16.msra.mxu0 %v1173
      %3121 = vmatprep.subr.bf16.mxu0 0
      %3122 = vmatpush1.bf16.msra.mxu0 %v1172
      %3123 = vmatprep.subr.bf16.mxu0 0
      %3124 = vmatpush2.bf16.msra.mxu0 %v1187
      %3125 = vmatprep.subr.bf16.mxu0 0
      %3126 = vmatpush2.bf16.msra.mxu0 %v1186
      %3127 = vmatprep.subr.bf16.mxu0 0
      %3128 = vmatpush2.bf16.msra.mxu0 %v1185
      %3129 = vmatprep.subr.bf16.mxu0 0
      %3130 = vmatpush2.bf16.msra.mxu0 %v1184
      %3131 = vmatprep.subr.bf16.mxu0 0
      %3132 = vmatpush2.bf16.msra.mxu0 %v1183
      %3133 = vmatprep.subr.bf16.mxu0 0
      %3134 = vmatpush2.bf16.msra.mxu0 %v1182
      %3135 = vmatprep.subr.bf16.mxu0 0
      %3136 = vmatpush2.bf16.msra.mxu0 %v1181
      %3137 = vmatprep.subr.bf16.mxu0 0
      %3138 = vmatpush2.bf16.msra.mxu0 %v1180
      %3139 = vmatprep.mubr.bf16.mxu0 %v3092
      %3140 = vmatmul.mubr.bf16.gmra.mxu0 %v3091
      %v3141 = vpop.f32.mrf.mxu0
      %v3142 = vadd.f32 0.0, %v3141
      %v3143 = vpop.f32.mrf.mxu0
      %v3144 = vpop.f32.mrf.mxu0
      %v3145 = vadd.f32 0.0, %v3144
      %v3146 = vpop.f32.mrf.mxu0
      %3147 = vmatprep.mubr.bf16.mxu0 %v3094
      %3148 = vmatmul.mubr.bf16.gmra.mxu0 %v3093
      %v3149 = vpop.f32.mrf.mxu0
      %v3150 = vadd.f32 0.0, %v3149
      %v3151 = vpop.f32.mrf.mxu0
      %v3152 = vpop.f32.mrf.mxu0
      %v3153 = vadd.f32 0.0, %v3152
      %v3154 = vpop.f32.mrf.mxu0
      %3155 = vmatprep.mubr.bf16.mxu0 %v3096
      %3156 = vmatmul.mubr.bf16.gmra.mxu0 %v3095
      %v3157 = vpop.f32.mrf.mxu0
      %v3158 = vadd.f32 0.0, %v3157
      %v3159 = vpop.f32.mrf.mxu0
      %v3160 = vpop.f32.mrf.mxu0
      %v3161 = vadd.f32 0.0, %v3160
      %v3162 = vpop.f32.mrf.mxu0
      %3163 = vmatprep.mubr.bf16.mxu0 %v3098
      %3164 = vmatmul.mubr.bf16.gmra.mxu0 %v3097
      %v3165 = vpop.f32.mrf.mxu0
      %v3166 = vadd.f32 0.0, %v3165
      %v3167 = vpop.f32.mrf.mxu0
      %v3168 = vpop.f32.mrf.mxu0
      %v3169 = vadd.f32 0.0, %v3168
      %v3170 = vpop.f32.mrf.mxu0
      %3171 = vdwg.mxu0
      %v3172 = vpack.c.bf16 %v3145, %v3142
      %v3173 = vpack.c.bf16 %v3153, %v3150
      %v3174 = vpack.c.bf16 %v3161, %v3158
      %v3175 = vpack.c.bf16 %v3169, %v3166
      %s3176 = scalar_lea.vmem %s4, 256
      %v3177 = vld [vmem:[%s3176] sm:$0xf]
      %v3178 = vld [vmem:[%s3176 + $0x4] sm:$0xf]
      %v3179 = vld [vmem:[%s3176 + $0x8] sm:$0xf]
      %v3180 = vld [vmem:[%s3176 + $0xc] sm:$0xf]
      %v3181 = vld [vmem:[%s3176 + $0x10] sm:$0xf]
      %v3182 = vld [vmem:[%s3176 + $0x14] sm:$0xf]
      %v3183 = vld [vmem:[%s3176 + $0x18] sm:$0xf]
      %v3184 = vld [vmem:[%s3176 + $0x1c] sm:$0xf]
      %v3193 = vunpack.c.l.b16 %v3177
      %v3194 = vunpack.c.l.b16 %v3178
      %v3195 = vunpack.c.l.b16 %v3179
      %v3196 = vunpack.c.l.b16 %v3180
      %v3197 = vunpack.c.l.b16 %v3181
      %v3198 = vunpack.c.l.b16 %v3182
      %v3199 = vunpack.c.l.b16 %v3183
      %v3200 = vunpack.c.l.b16 %v3184
      %v3201 = vpack.c.b16 %v3194, %v3193
      %v3202 = vpack.c.b16 %v3196, %v3195
      %v3203 = vpack.c.b16 %v3198, %v3197
      %v3204 = vpack.c.b16 %v3200, %v3199
      %v3210 = vsel %vm836, %v3172, 0
      %v3213 = vsel %vm836, %v3173, 0
      %v3216 = vsel %vm836, %v3174, 0
      %v3219 = vsel %vm836, %v3175, 0
      %3221 = vmatprep.subr.bf16.mxu0 0
      %3222 = vmatpush1.bf16.msra.mxu0 0
      %3223 = vmatprep.subr.bf16.mxu0 0
      %3224 = vmatpush1.bf16.msra.mxu0 0
      %3225 = vmatprep.subr.bf16.mxu0 0
      %3226 = vmatpush1.bf16.msra.mxu0 0
      %3227 = vmatprep.subr.bf16.mxu0 0
      %3228 = vmatpush1.bf16.msra.mxu0 0
      %3229 = vmatprep.subr.bf16.mxu0 0
      %3230 = vmatpush1.bf16.msra.mxu0 %v3204
      %3231 = vmatprep.subr.bf16.mxu0 0
      %3232 = vmatpush1.bf16.msra.mxu0 %v3203
      %3233 = vmatprep.subr.bf16.mxu0 0
      %3234 = vmatpush1.bf16.msra.mxu0 %v3202
      %3235 = vmatprep.subr.bf16.mxu0 0
      %3236 = vmatpush1.bf16.msra.mxu0 %v3201
      %3237 = vmatprep.subr.bf16.mxu0 0
      %3238 = vmatpush2.bf16.msra.mxu0 0
      %3239 = vmatprep.subr.bf16.mxu0 0
      %3240 = vmatpush2.bf16.msra.mxu0 0
      %3241 = vmatprep.subr.bf16.mxu0 0
      %3242 = vmatpush2.bf16.msra.mxu0 0
      %3243 = vmatprep.subr.bf16.mxu0 0
      %3244 = vmatpush2.bf16.msra.mxu0 0
      %3245 = vmatprep.subr.bf16.mxu0 0
      %3246 = vmatpush2.bf16.msra.mxu0 0
      %3247 = vmatprep.subr.bf16.mxu0 0
      %3248 = vmatpush2.bf16.msra.mxu0 0
      %3249 = vmatprep.subr.bf16.mxu0 0
      %3250 = vmatpush2.bf16.msra.mxu0 0
      %3251 = vmatprep.subr.bf16.mxu0 0
      %3252 = vmatpush2.bf16.msra.mxu0 0
      %3253 = vmatprep.mubr.bf16.mxu0 0
      %3254 = vmatmul.mubr.bf16.gmra.mxu0 %v3210
      %v3255 = vpop.f32.mrf.mxu0
      %v3256 = vadd.f32 0.0, %v3255
      %v3257 = vpop.f32.mrf.mxu0
      %v3258 = vpop.f32.mrf.mxu0
      %v3259 = vadd.f32 0.0, %v3258
      %v3260 = vpop.f32.mrf.mxu0
      %3261 = vmatprep.mubr.bf16.mxu0 0
      %3262 = vmatmul.mubr.bf16.gmra.mxu0 %v3213
      %v3263 = vpop.f32.mrf.mxu0
      %v3264 = vadd.f32 0.0, %v3263
      %v3265 = vpop.f32.mrf.mxu0
      %v3266 = vpop.f32.mrf.mxu0
      %v3267 = vadd.f32 0.0, %v3266
      %v3268 = vpop.f32.mrf.mxu0
      %3269 = vmatprep.mubr.bf16.mxu0 0
      %3270 = vmatmul.mubr.bf16.gmra.mxu0 %v3216
      %v3271 = vpop.f32.mrf.mxu0
      %v3272 = vadd.f32 0.0, %v3271
      %v3273 = vpop.f32.mrf.mxu0
      %v3274 = vpop.f32.mrf.mxu0
      %v3275 = vadd.f32 0.0, %v3274
      %v3276 = vpop.f32.mrf.mxu0
      %3277 = vmatprep.mubr.bf16.mxu0 0
      %3278 = vmatmul.mubr.bf16.gmra.mxu0 %v3219
      %v3279 = vpop.f32.mrf.mxu0
      %v3280 = vadd.f32 0.0, %v3279
      %v3281 = vpop.f32.mrf.mxu0
      %v3282 = vpop.f32.mrf.mxu0
      %v3283 = vadd.f32 0.0, %v3282
      %v3284 = vpop.f32.mrf.mxu0
      %3285 = vdwg.mxu0
      %v3286 = vadd.f32 %v3050, %v3256
      %v3287 = vadd.f32 %v3051, %v3259
      %v3288 = vadd.f32 %v3052, %v3264
      %v3289 = vadd.f32 %v3053, %v3267
      %v3290 = vadd.f32 %v3054, %v3272
      %v3291 = vadd.f32 %v3055, %v3275
      %v3292 = vadd.f32 %v3056, %v3280
      %v3293 = vadd.f32 %v3057, %v3283
      %v3294 = vld [vmem:[%s5] sm:$0x1]
      %v3296 = vlaneseq
      %v3297 = vshrl.u32 %v3296, 7
      %v3298 = vsub.s32 0, %v3297
      %v3299 = vrot.slane %v3294, %v3298
      %v3301 = vadd.f32 %v3286, %v3299
      %v3302 = vadd.f32 %v3287, %v3299
      %v3303 = vadd.f32 %v3288, %v3299
      %v3304 = vadd.f32 %v3289, %v3299
      %v3305 = vadd.f32 %v3290, %v3299
      %v3306 = vadd.f32 %v3291, %v3299
      %v3307 = vadd.f32 %v3292, %v3299
      %v3308 = vadd.f32 %v3293, %v3299
      %v3309 = vadd.f32 %v3301, %v3302
      %v3310 = vadd.f32 %v3309, %v3303
      %v3311 = vadd.f32 %v3310, %v3304
      %v3312 = vadd.f32 %v3311, %v3305
      %v3313 = vadd.f32 %v3312, %v3306
      %v3314 = vadd.f32 %v3313, %v3307
      %v3315 = vadd.f32 %v3314, %v3308
      %v3316 = vrot.slane %v3315, 4
      %v3317 = vadd.f32 %v3315, %v3316
      %v3318 = vrot.slane %v3317, 2
      %v3319 = vadd.f32 %v3317, %v3318
      %v3320 = vrot.slane %v3319, 1
      %v3321 = vadd.f32 %v3319, %v3320
      %v3322 = vrcp.pop 64.0
      %v3323 = vmul.f32 %v3321, %v3322
      %v3324 = vsub.f32 %v3301, %v3323
      %v3325 = vsub.f32 %v3302, %v3323
      %v3326 = vsub.f32 %v3303, %v3323
      %v3327 = vsub.f32 %v3304, %v3323
      %v3328 = vsub.f32 %v3305, %v3323
      %v3329 = vsub.f32 %v3306, %v3323
      %v3330 = vsub.f32 %v3307, %v3323
      %v3331 = vsub.f32 %v3308, %v3323
      %v3332 = vmul.f32 %v3324, %v3324
      %v3333 = vmul.f32 %v3325, %v3325
      %v3334 = vmul.f32 %v3326, %v3326
      %v3335 = vmul.f32 %v3327, %v3327
      %v3336 = vmul.f32 %v3328, %v3328
      %v3337 = vmul.f32 %v3329, %v3329
      %v3338 = vmul.f32 %v3330, %v3330
      %v3339 = vmul.f32 %v3331, %v3331
      %v3340 = vadd.f32 %v3332, %v3333
      %v3341 = vadd.f32 %v3340, %v3334
      %v3342 = vadd.f32 %v3341, %v3335
      %v3343 = vadd.f32 %v3342, %v3336
      %v3344 = vadd.f32 %v3343, %v3337
      %v3345 = vadd.f32 %v3344, %v3338
      %v3346 = vadd.f32 %v3345, %v3339
      %v3347 = vrot.slane %v3346, 4
      %v3348 = vadd.f32 %v3346, %v3347
      %v3349 = vrot.slane %v3348, 2
      %v3350 = vadd.f32 %v3348, %v3349
      %v3351 = vrot.slane %v3350, 1
      %v3352 = vadd.f32 %v3350, %v3351
      %v3353 = vmul.f32 %v3352, %v3322
      %v3354 = vadd.f32 %v3353, 1e-05
      %v3355 = vrsqrt.pop %v3354
      %v3356 = vmul.f32 %v3324, %v3355
      %v3357 = vmul.f32 %v3325, %v3355
      %v3358 = vmul.f32 %v3326, %v3355
      %v3359 = vmul.f32 %v3327, %v3355
      %v3360 = vmul.f32 %v3328, %v3355
      %v3361 = vmul.f32 %v3329, %v3355
      %v3362 = vmul.f32 %v3330, %v3355
      %v3363 = vmul.f32 %v3331, %v3355
      %vm3364 = vcmp.ge.f32.partialorder %v3356, 0.0
      %vm3365 = vcmp.ge.f32.partialorder %v3357, 0.0
      %vm3366 = vcmp.ge.f32.partialorder %v3358, 0.0
      %vm3367 = vcmp.ge.f32.partialorder %v3359, 0.0
      %vm3368 = vcmp.ge.f32.partialorder %v3360, 0.0
      %vm3369 = vcmp.ge.f32.partialorder %v3361, 0.0
      %vm3370 = vcmp.ge.f32.partialorder %v3362, 0.0
      %vm3371 = vcmp.ge.f32.partialorder %v3363, 0.0
      %v3372 = vmul.f32 %v3356, 0.2
      %v3373 = vmul.f32 %v3357, 0.2
      %v3374 = vmul.f32 %v3358, 0.2
      %v3375 = vmul.f32 %v3359, 0.2
      %v3376 = vmul.f32 %v3360, 0.2
      %v3377 = vmul.f32 %v3361, 0.2
      %v3378 = vmul.f32 %v3362, 0.2
      %v3379 = vmul.f32 %v3363, 0.2
      %v3380 = vsel %vm3364, %v3356, %v3372
      %v3381 = vsel %vm3365, %v3357, %v3373
      %v3382 = vsel %vm3366, %v3358, %v3374
      %v3383 = vsel %vm3367, %v3359, %v3375
      %v3384 = vsel %vm3368, %v3360, %v3376
      %v3385 = vsel %vm3369, %v3361, %v3377
      %v3386 = vsel %vm3370, %v3362, %v3378
      %v3387 = vsel %vm3371, %v3363, %v3379
      %v3388 = vpack.c.bf16 %v3381, %v3380
      %v3389 = vpack.c.bf16 %v3383, %v3382
      %v3390 = vpack.c.bf16 %v3385, %v3384
      %v3391 = vpack.c.bf16 %v3387, %v3386
      %v3392 = vld [vmem:[%s6] sm:$0xf]
      %v3393 = vld [vmem:[%s6 + $0x4] sm:$0xf]
      %v3396 = vunpack.c.l.b16 %v3392
      %v3397 = vunpack.c.l.b16 %v3393
      %v3398 = vpack.c.b16 %v3397, %v3396
      %v3400 = vsel %vm836, %v3398, 0
      %3402 = vmatprep.subr.bf16.mxu0 0
      %3403 = vmatpush1.bf16.msra.mxu0 0
      %3404 = vmatprep.subr.bf16.mxu0 0
      %3405 = vmatpush1.bf16.msra.mxu0 0
      %3406 = vmatprep.subr.bf16.mxu0 0
      %3407 = vmatpush1.bf16.msra.mxu0 0
      %3408 = vmatprep.subr.bf16.mxu0 0
      %3409 = vmatpush1.bf16.msra.mxu0 0
      %3410 = vmatprep.subr.bf16.mxu0 0
      %3411 = vmatpush1.bf16.msra.mxu0 %v3391
      %3412 = vmatprep.subr.bf16.mxu0 0
      %3413 = vmatpush1.bf16.msra.mxu0 %v3390
      %3414 = vmatprep.subr.bf16.mxu0 0
      %3415 = vmatpush1.bf16.msra.mxu0 %v3389
      %3416 = vmatprep.subr.bf16.mxu0 0
      %3417 = vmatpush1.bf16.msra.mxu0 %v3388
      %3418 = vmatprep.subr.bf16.mxu0 0
      %3419 = vmatpush2.bf16.msra.mxu0 0
      %3420 = vmatprep.subr.bf16.mxu0 0
      %3421 = vmatpush2.bf16.msra.mxu0 0
      %3422 = vmatprep.subr.bf16.mxu0 0
      %3423 = vmatpush2.bf16.msra.mxu0 0
      %3424 = vmatprep.subr.bf16.mxu0 0
      %3425 = vmatpush2.bf16.msra.mxu0 0
      %3426 = vmatprep.subr.bf16.mxu0 0
      %3427 = vmatpush2.bf16.msra.mxu0 0
      %3428 = vmatprep.subr.bf16.mxu0 0
      %3429 = vmatpush2.bf16.msra.mxu0 0
      %3430 = vmatprep.subr.bf16.mxu0 0
      %3431 = vmatpush2.bf16.msra.mxu0 0
      %3432 = vmatprep.subr.bf16.mxu0 0
      %3433 = vmatpush2.bf16.msra.mxu0 0
      %3434 = vmatprep.mubr.bf16.mxu0 0
      %3435 = vmatmul.mubr.bf16.gmra.mxu0 %v3400
      %v3436 = vpop.f32.mrf.mxu0
      %v3437 = vadd.f32 0.0, %v3436
      %v3438 = vpop.f32.mrf.mxu0
      %v3439 = vpop.f32.mrf.mxu0
      %v3440 = vadd.f32 0.0, %v3439
      %v3441 = vpop.f32.mrf.mxu0
      %3442 = vdwg.mxu0
      %v3443 = vpack.c.bf16 %v3440, %v3437
      %v3444 = vld [vmem:[%s7] sm:$0xff]
      %v3445 = vld [vmem:[%s7 + $0x8] sm:$0xff]
      %v3446 = vld [vmem:[%s7 + $0x10] sm:$0xff]
      %v3447 = vld [vmem:[%s7 + $0x18] sm:$0xff]
      %v3448 = vld [vmem:[%s7 + $0x20] sm:$0xff]
      %v3449 = vld [vmem:[%s7 + $0x28] sm:$0xff]
      %v3450 = vld [vmem:[%s7 + $0x30] sm:$0xff]
      %v3451 = vld [vmem:[%s7 + $0x38] sm:$0xff]
      %v3452 = vld [vmem:[%s7 + $0x40] sm:$0xff]
      %v3453 = vld [vmem:[%s7 + $0x48] sm:$0xff]
      %v3454 = vld [vmem:[%s7 + $0x50] sm:$0xff]
      %v3455 = vld [vmem:[%s7 + $0x58] sm:$0xff]
      %v3456 = vld [vmem:[%s7 + $0x60] sm:$0xff]
      %v3457 = vld [vmem:[%s7 + $0x68] sm:$0xff]
      %v3458 = vld [vmem:[%s7 + $0x70] sm:$0xff]
      %v3459 = vld [vmem:[%s7 + $0x78] sm:$0xff]
      %s3460 = scalar_lea.vmem %s6, 8
      %v3461 = vld [vmem:[%s3460] sm:$0xf]
      %v3462 = vld [vmem:[%s3460 + $0x4] sm:$0xf]
      %v3465 = vunpack.c.l.b16 %v3461
      %v3466 = vunpack.c.l.b16 %v3462
      %v3467 = vpack.c.b16 %v3466, %v3465
      %v3469 = vsel %vm836, %v3467, 0
      %3471 = vmatprep.subr.bf16.mxu0 0
      %3472 = vmatpush1.bf16.msra.mxu0 0
      %3473 = vmatprep.subr.bf16.mxu0 0
      %3474 = vmatpush1.bf16.msra.mxu0 0
      %3475 = vmatprep.subr.bf16.mxu0 0
      %3476 = vmatpush1.bf16.msra.mxu0 0
      %3477 = vmatprep.subr.bf16.mxu0 0
      %3478 = vmatpush1.bf16.msra.mxu0 0
      %3479 = vmatprep.subr.bf16.mxu0 0
      %3480 = vmatpush1.bf16.msra.mxu0 %v3391
      %3481 = vmatprep.subr.bf16.mxu0 0
      %3482 = vmatpush1.bf16.msra.mxu0 %v3390
      %3483 = vmatprep.subr.bf16.mxu0 0
      %3484 = vmatpush1.bf16.msra.mxu0 %v3389
      %3485 = vmatprep.subr.bf16.mxu0 0
      %3486 = vmatpush1.bf16.msra.mxu0 %v3388
      %3487 = vmatprep.subr.bf16.mxu0 0
      %3488 = vmatpush2.bf16.msra.mxu0 0
      %3489 = vmatprep.subr.bf16.mxu0 0
      %3490 = vmatpush2.bf16.msra.mxu0 0
      %3491 = vmatprep.subr.bf16.mxu0 0
      %3492 = vmatpush2.bf16.msra.mxu0 0
      %3493 = vmatprep.subr.bf16.mxu0 0
      %3494 = vmatpush2.bf16.msra.mxu0 0
      %3495 = vmatprep.subr.bf16.mxu0 0
      %3496 = vmatpush2.bf16.msra.mxu0 0
      %3497 = vmatprep.subr.bf16.mxu0 0
      %3498 = vmatpush2.bf16.msra.mxu0 0
      %3499 = vmatprep.subr.bf16.mxu0 0
      %3500 = vmatpush2.bf16.msra.mxu0 0
      %3501 = vmatprep.subr.bf16.mxu0 0
      %3502 = vmatpush2.bf16.msra.mxu0 0
      %3503 = vmatprep.mubr.bf16.mxu0 0
      %3504 = vmatmul.mubr.bf16.gmra.mxu0 %v3469
      %v3505 = vpop.f32.mrf.mxu0
      %v3506 = vadd.f32 0.0, %v3505
      %v3507 = vpop.f32.mrf.mxu0
      %v3508 = vpop.f32.mrf.mxu0
      %v3509 = vadd.f32 0.0, %v3508
      %v3510 = vpop.f32.mrf.mxu0
      %3511 = vdwg.mxu0
      %v3512 = vpack.c.bf16 %v3509, %v3506
      %s3513 = scalar_lea.vmem %s7, 128
      %v3514 = vld [vmem:[%s3513] sm:$0xff]
      %v3515 = vld [vmem:[%s3513 + $0x8] sm:$0xff]
      %v3516 = vld [vmem:[%s3513 + $0x10] sm:$0xff]
      %v3517 = vld [vmem:[%s3513 + $0x18] sm:$0xff]
      %v3518 = vld [vmem:[%s3513 + $0x20] sm:$0xff]
      %v3519 = vld [vmem:[%s3513 + $0x28] sm:$0xff]
      %v3520 = vld [vmem:[%s3513 + $0x30] sm:$0xff]
      %v3521 = vld [vmem:[%s3513 + $0x38] sm:$0xff]
      %v3522 = vld [vmem:[%s3513 + $0x40] sm:$0xff]
      %v3523 = vld [vmem:[%s3513 + $0x48] sm:$0xff]
      %v3524 = vld [vmem:[%s3513 + $0x50] sm:$0xff]
      %v3525 = vld [vmem:[%s3513 + $0x58] sm:$0xff]
      %v3526 = vld [vmem:[%s3513 + $0x60] sm:$0xff]
      %v3527 = vld [vmem:[%s3513 + $0x68] sm:$0xff]
      %v3528 = vld [vmem:[%s3513 + $0x70] sm:$0xff]
      %v3529 = vld [vmem:[%s3513 + $0x78] sm:$0xff]
      %v3546 = vunpack.c.l.b16 %v3514
      %v3547 = vunpack.c.h.b16 %v3514
      %v3548 = vunpack.c.l.b16 %v3515
      %v3549 = vunpack.c.h.b16 %v3515
      %v3550 = vunpack.c.l.b16 %v3516
      %v3551 = vunpack.c.h.b16 %v3516
      %v3552 = vunpack.c.l.b16 %v3517
      %v3553 = vunpack.c.h.b16 %v3517
      %v3554 = vunpack.c.l.b16 %v3518
      %v3555 = vunpack.c.h.b16 %v3518
      %v3556 = vunpack.c.l.b16 %v3519
      %v3557 = vunpack.c.h.b16 %v3519
      %v3558 = vunpack.c.l.b16 %v3520
      %v3559 = vunpack.c.h.b16 %v3520
      %v3560 = vunpack.c.l.b16 %v3521
      %v3561 = vunpack.c.h.b16 %v3521
      %v3562 = vunpack.c.l.b16 %v3522
      %v3563 = vunpack.c.h.b16 %v3522
      %v3564 = vunpack.c.l.b16 %v3523
      %v3565 = vunpack.c.h.b16 %v3523
      %v3566 = vunpack.c.l.b16 %v3524
      %v3567 = vunpack.c.h.b16 %v3524
      %v3568 = vunpack.c.l.b16 %v3525
      %v3569 = vunpack.c.h.b16 %v3525
      %v3570 = vunpack.c.l.b16 %v3526
      %v3571 = vunpack.c.h.b16 %v3526
      %v3572 = vunpack.c.l.b16 %v3527
      %v3573 = vunpack.c.h.b16 %v3527
      %v3574 = vunpack.c.l.b16 %v3528
      %v3575 = vunpack.c.h.b16 %v3528
      %v3576 = vunpack.c.l.b16 %v3529
      %v3577 = vunpack.c.h.b16 %v3529
      %v3578 = vpack.c.b16 %v3548, %v3546
      %v3579 = vpack.c.b16 %v3549, %v3547
      %v3580 = vpack.c.b16 %v3552, %v3550
      %v3581 = vpack.c.b16 %v3553, %v3551
      %v3582 = vpack.c.b16 %v3556, %v3554
      %v3583 = vpack.c.b16 %v3557, %v3555
      %v3584 = vpack.c.b16 %v3560, %v3558
      %v3585 = vpack.c.b16 %v3561, %v3559
      %v3586 = vpack.c.b16 %v3564, %v3562
      %v3587 = vpack.c.b16 %v3565, %v3563
      %v3588 = vpack.c.b16 %v3568, %v3566
      %v3589 = vpack.c.b16 %v3569, %v3567
      %v3590 = vpack.c.b16 %v3572, %v3570
      %v3591 = vpack.c.b16 %v3573, %v3571
      %v3592 = vpack.c.b16 %v3576, %v3574
      %v3593 = vpack.c.b16 %v3577, %v3575
      %3610 = vmatprep.subr.bf16.mxu0 %v3593
      %3611 = vmatpush1.bf16.msra.mxu0 %v3592
      %3612 = vmatprep.subr.bf16.mxu0 %v3591
      %3613 = vmatpush1.bf16.msra.mxu0 %v3590
      %3614 = vmatprep.subr.bf16.mxu0 %v3589
      %3615 = vmatpush1.bf16.msra.mxu0 %v3588
      %3616 = vmatprep.subr.bf16.mxu0 %v3587
      %3617 = vmatpush1.bf16.msra.mxu0 %v3586
      %3618 = vmatprep.subr.bf16.mxu0 %v3585
      %3619 = vmatpush1.bf16.msra.mxu0 %v3584
      %3620 = vmatprep.subr.bf16.mxu0 %v3583
      %3621 = vmatpush1.bf16.msra.mxu0 %v3582
      %3622 = vmatprep.subr.bf16.mxu0 %v3581
      %3623 = vmatpush1.bf16.msra.mxu0 %v3580
      %3624 = vmatprep.subr.bf16.mxu0 %v3579
      %3625 = vmatpush1.bf16.msra.mxu0 %v3578
      %3626 = vmatprep.subr.bf16.mxu0 0
      %3627 = vmatpush2.bf16.msra.mxu0 0
      %3628 = vmatprep.subr.bf16.mxu0 0
      %3629 = vmatpush2.bf16.msra.mxu0 0
      %3630 = vmatprep.subr.bf16.mxu0 0
      %3631 = vmatpush2.bf16.msra.mxu0 0
      %3632 = vmatprep.subr.bf16.mxu0 0
      %3633 = vmatpush2.bf16.msra.mxu0 0
      %3634 = vmatprep.subr.bf16.mxu0 0
      %3635 = vmatpush2.bf16.msra.mxu0 0
      %3636 = vmatprep.subr.bf16.mxu0 0
      %3637 = vmatpush2.bf16.msra.mxu0 0
      %3638 = vmatprep.subr.bf16.mxu0 0
      %3639 = vmatpush2.bf16.msra.mxu0 0
      %3640 = vmatprep.subr.bf16.mxu0 0
      %3641 = vmatpush2.bf16.msra.mxu0 0
      %3642 = vmatprep.mubr.bf16.mxu0 0
      %3643 = vmatmul.mubr.bf16.gmra.mxu0 %v3512
      %v3644 = vpop.f32.mrf.mxu0
      %v3645 = vadd.f32 0.0, %v3644
      %v3646 = vpop.f32.mrf.mxu0
      %v3647 = vadd.f32 0.0, %v3646
      %v3648 = vpop.f32.mrf.mxu0
      %v3649 = vadd.f32 0.0, %v3648
      %v3650 = vpop.f32.mrf.mxu0
      %v3651 = vadd.f32 0.0, %v3650
      %3652 = vdwg.mxu0
      %v3669 = vunpack.c.l.b16 %v3444
      %v3670 = vunpack.c.h.b16 %v3444
      %v3671 = vunpack.c.l.b16 %v3445
      %v3672 = vunpack.c.h.b16 %v3445
      %v3673 = vunpack.c.l.b16 %v3446
      %v3674 = vunpack.c.h.b16 %v3446
      %v3675 = vunpack.c.l.b16 %v3447
      %v3676 = vunpack.c.h.b16 %v3447
      %v3677 = vunpack.c.l.b16 %v3448
      %v3678 = vunpack.c.h.b16 %v3448
      %v3679 = vunpack.c.l.b16 %v3449
      %v3680 = vunpack.c.h.b16 %v3449
      %v3681 = vunpack.c.l.b16 %v3450
      %v3682 = vunpack.c.h.b16 %v3450
      %v3683 = vunpack.c.l.b16 %v3451
      %v3684 = vunpack.c.h.b16 %v3451
      %v3685 = vunpack.c.l.b16 %v3452
      %v3686 = vunpack.c.h.b16 %v3452
      %v3687 = vunpack.c.l.b16 %v3453
      %v3688 = vunpack.c.h.b16 %v3453
      %v3689 = vunpack.c.l.b16 %v3454
      %v3690 = vunpack.c.h.b16 %v3454
      %v3691 = vunpack.c.l.b16 %v3455
      %v3692 = vunpack.c.h.b16 %v3455
      %v3693 = vunpack.c.l.b16 %v3456
      %v3694 = vunpack.c.h.b16 %v3456
      %v3695 = vunpack.c.l.b16 %v3457
      %v3696 = vunpack.c.h.b16 %v3457
      %v3697 = vunpack.c.l.b16 %v3458
      %v3698 = vunpack.c.h.b16 %v3458
      %v3699 = vunpack.c.l.b16 %v3459
      %v3700 = vunpack.c.h.b16 %v3459
      %v3701 = vpack.c.b16 %v3671, %v3669
      %v3702 = vpack.c.b16 %v3672, %v3670
      %v3703 = vpack.c.b16 %v3675, %v3673
      %v3704 = vpack.c.b16 %v3676, %v3674
      %v3705 = vpack.c.b16 %v3679, %v3677
      %v3706 = vpack.c.b16 %v3680, %v3678
      %v3707 = vpack.c.b16 %v3683, %v3681
      %v3708 = vpack.c.b16 %v3684, %v3682
      %v3709 = vpack.c.b16 %v3687, %v3685
      %v3710 = vpack.c.b16 %v3688, %v3686
      %v3711 = vpack.c.b16 %v3691, %v3689
      %v3712 = vpack.c.b16 %v3692, %v3690
      %v3713 = vpack.c.b16 %v3695, %v3693
      %v3714 = vpack.c.b16 %v3696, %v3694
      %v3715 = vpack.c.b16 %v3699, %v3697
      %v3716 = vpack.c.b16 %v3700, %v3698
      %3733 = vmatprep.subr.bf16.mxu0 %v3716
      %3734 = vmatpush1.bf16.msra.mxu0 %v3715
      %3735 = vmatprep.subr.bf16.mxu0 %v3714
      %3736 = vmatpush1.bf16.msra.mxu0 %v3713
      %3737 = vmatprep.subr.bf16.mxu0 %v3712
      %3738 = vmatpush1.bf16.msra.mxu0 %v3711
      %3739 = vmatprep.subr.bf16.mxu0 %v3710
      %3740 = vmatpush1.bf16.msra.mxu0 %v3709
      %3741 = vmatprep.subr.bf16.mxu0 %v3708
      %3742 = vmatpush1.bf16.msra.mxu0 %v3707
      %3743 = vmatprep.subr.bf16.mxu0 %v3706
      %3744 = vmatpush1.bf16.msra.mxu0 %v3705
      %3745 = vmatprep.subr.bf16.mxu0 %v3704
      %3746 = vmatpush1.bf16.msra.mxu0 %v3703
      %3747 = vmatprep.subr.bf16.mxu0 %v3702
      %3748 = vmatpush1.bf16.msra.mxu0 %v3701
      %3749 = vmatprep.subr.bf16.mxu0 0
      %3750 = vmatpush2.bf16.msra.mxu0 0
      %3751 = vmatprep.subr.bf16.mxu0 0
      %3752 = vmatpush2.bf16.msra.mxu0 0
      %3753 = vmatprep.subr.bf16.mxu0 0
      %3754 = vmatpush2.bf16.msra.mxu0 0
      %3755 = vmatprep.subr.bf16.mxu0 0
      %3756 = vmatpush2.bf16.msra.mxu0 0
      %3757 = vmatprep.subr.bf16.mxu0 0
      %3758 = vmatpush2.bf16.msra.mxu0 0
      %3759 = vmatprep.subr.bf16.mxu0 0
      %3760 = vmatpush2.bf16.msra.mxu0 0
      %3761 = vmatprep.subr.bf16.mxu0 0
      %3762 = vmatpush2.bf16.msra.mxu0 0
      %3763 = vmatprep.subr.bf16.mxu0 0
      %3764 = vmatpush2.bf16.msra.mxu0 0
      %3765 = vmatprep.mubr.bf16.mxu0 0
      %3766 = vmatmul.mubr.bf16.gmra.mxu0 %v3443
      %v3767 = vpop.f32.mrf.mxu0
      %v3768 = vadd.f32 %v3645, %v3767
      %v3769 = vpop.f32.mrf.mxu0
      %v3770 = vadd.f32 %v3647, %v3769
      %v3771 = vpop.f32.mrf.mxu0
      %v3772 = vadd.f32 %v3649, %v3771
      %v3773 = vpop.f32.mrf.mxu0
      %v3774 = vadd.f32 %v3651, %v3773
      %3775 = vdwg.mxu0
      %s3776 = scalar_lea.vmem %s6, 16
      %v3777 = vld [vmem:[%s3776] sm:$0xf]
      %v3778 = vld [vmem:[%s3776 + $0x4] sm:$0xf]
      %v3781 = vunpack.c.l.b16 %v3777
      %v3782 = vunpack.c.l.b16 %v3778
      %v3783 = vpack.c.b16 %v3782, %v3781
      %v3785 = vsel %vm836, %v3783, 0
      %3787 = vmatprep.subr.bf16.mxu0 0
      %3788 = vmatpush1.bf16.msra.mxu0 0
      %3789 = vmatprep.subr.bf16.mxu0 0
      %3790 = vmatpush1.bf16.msra.mxu0 0
      %3791 = vmatprep.subr.bf16.mxu0 0
      %3792 = vmatpush1.bf16.msra.mxu0 0
      %3793 = vmatprep.subr.bf16.mxu0 0
      %3794 = vmatpush1.bf16.msra.mxu0 0
      %3795 = vmatprep.subr.bf16.mxu0 0
      %3796 = vmatpush1.bf16.msra.mxu0 %v3391
      %3797 = vmatprep.subr.bf16.mxu0 0
      %3798 = vmatpush1.bf16.msra.mxu0 %v3390
      %3799 = vmatprep.subr.bf16.mxu0 0
      %3800 = vmatpush1.bf16.msra.mxu0 %v3389
      %3801 = vmatprep.subr.bf16.mxu0 0
      %3802 = vmatpush1.bf16.msra.mxu0 %v3388
      %3803 = vmatprep.subr.bf16.mxu0 0
      %3804 = vmatpush2.bf16.msra.mxu0 0
      %3805 = vmatprep.subr.bf16.mxu0 0
      %3806 = vmatpush2.bf16.msra.mxu0 0
      %3807 = vmatprep.subr.bf16.mxu0 0
      %3808 = vmatpush2.bf16.msra.mxu0 0
      %3809 = vmatprep.subr.bf16.mxu0 0
      %3810 = vmatpush2.bf16.msra.mxu0 0
      %3811 = vmatprep.subr.bf16.mxu0 0
      %3812 = vmatpush2.bf16.msra.mxu0 0
      %3813 = vmatprep.subr.bf16.mxu0 0
      %3814 = vmatpush2.bf16.msra.mxu0 0
      %3815 = vmatprep.subr.bf16.mxu0 0
      %3816 = vmatpush2.bf16.msra.mxu0 0
      %3817 = vmatprep.subr.bf16.mxu0 0
      %3818 = vmatpush2.bf16.msra.mxu0 0
      %3819 = vmatprep.mubr.bf16.mxu0 0
      %3820 = vmatmul.mubr.bf16.gmra.mxu0 %v3785
      %v3821 = vpop.f32.mrf.mxu0
      %v3822 = vadd.f32 0.0, %v3821
      %v3823 = vpop.f32.mrf.mxu0
      %v3824 = vpop.f32.mrf.mxu0
      %v3825 = vadd.f32 0.0, %v3824
      %v3826 = vpop.f32.mrf.mxu0
      %3827 = vdwg.mxu0
      %v3828 = vpack.c.bf16 %v3825, %v3822
      %s3829 = scalar_lea.vmem %s7, 256
      %v3830 = vld [vmem:[%s3829] sm:$0xff]
      %v3831 = vld [vmem:[%s3829 + $0x8] sm:$0xff]
      %v3832 = vld [vmem:[%s3829 + $0x10] sm:$0xff]
      %v3833 = vld [vmem:[%s3829 + $0x18] sm:$0xff]
      %v3834 = vld [vmem:[%s3829 + $0x20] sm:$0xff]
      %v3835 = vld [vmem:[%s3829 + $0x28] sm:$0xff]
      %v3836 = vld [vmem:[%s3829 + $0x30] sm:$0xff]
      %v3837 = vld [vmem:[%s3829 + $0x38] sm:$0xff]
      %v3838 = vld [vmem:[%s3829 + $0x40] sm:$0xff]
      %v3839 = vld [vmem:[%s3829 + $0x48] sm:$0xff]
      %v3840 = vld [vmem:[%s3829 + $0x50] sm:$0xff]
      %v3841 = vld [vmem:[%s3829 + $0x58] sm:$0xff]
      %v3842 = vld [vmem:[%s3829 + $0x60] sm:$0xff]
      %v3843 = vld [vmem:[%s3829 + $0x68] sm:$0xff]
      %v3844 = vld [vmem:[%s3829 + $0x70] sm:$0xff]
      %v3845 = vld [vmem:[%s3829 + $0x78] sm:$0xff]
      %v3862 = vunpack.c.l.b16 %v3830
      %v3863 = vunpack.c.h.b16 %v3830
      %v3864 = vunpack.c.l.b16 %v3831
      %v3865 = vunpack.c.h.b16 %v3831
      %v3866 = vunpack.c.l.b16 %v3832
      %v3867 = vunpack.c.h.b16 %v3832
      %v3868 = vunpack.c.l.b16 %v3833
      %v3869 = vunpack.c.h.b16 %v3833
      %v3870 = vunpack.c.l.b16 %v3834
      %v3871 = vunpack.c.h.b16 %v3834
      %v3872 = vunpack.c.l.b16 %v3835
      %v3873 = vunpack.c.h.b16 %v3835
      %v3874 = vunpack.c.l.b16 %v3836
      %v3875 = vunpack.c.h.b16 %v3836
      %v3876 = vunpack.c.l.b16 %v3837
      %v3877 = vunpack.c.h.b16 %v3837
      %v3878 = vunpack.c.l.b16 %v3838
      %v3879 = vunpack.c.h.b16 %v3838
      %v3880 = vunpack.c.l.b16 %v3839
      %v3881 = vunpack.c.h.b16 %v3839
      %v3882 = vunpack.c.l.b16 %v3840
      %v3883 = vunpack.c.h.b16 %v3840
      %v3884 = vunpack.c.l.b16 %v3841
      %v3885 = vunpack.c.h.b16 %v3841
      %v3886 = vunpack.c.l.b16 %v3842
      %v3887 = vunpack.c.h.b16 %v3842
      %v3888 = vunpack.c.l.b16 %v3843
      %v3889 = vunpack.c.h.b16 %v3843
      %v3890 = vunpack.c.l.b16 %v3844
      %v3891 = vunpack.c.h.b16 %v3844
      %v3892 = vunpack.c.l.b16 %v3845
      %v3893 = vunpack.c.h.b16 %v3845
      %v3894 = vpack.c.b16 %v3864, %v3862
      %v3895 = vpack.c.b16 %v3865, %v3863
      %v3896 = vpack.c.b16 %v3868, %v3866
      %v3897 = vpack.c.b16 %v3869, %v3867
      %v3898 = vpack.c.b16 %v3872, %v3870
      %v3899 = vpack.c.b16 %v3873, %v3871
      %v3900 = vpack.c.b16 %v3876, %v3874
      %v3901 = vpack.c.b16 %v3877, %v3875
      %v3902 = vpack.c.b16 %v3880, %v3878
      %v3903 = vpack.c.b16 %v3881, %v3879
      %v3904 = vpack.c.b16 %v3884, %v3882
      %v3905 = vpack.c.b16 %v3885, %v3883
      %v3906 = vpack.c.b16 %v3888, %v3886
      %v3907 = vpack.c.b16 %v3889, %v3887
      %v3908 = vpack.c.b16 %v3892, %v3890
      %v3909 = vpack.c.b16 %v3893, %v3891
      %3926 = vmatprep.subr.bf16.mxu0 %v3909
      %3927 = vmatpush1.bf16.msra.mxu0 %v3908
      %3928 = vmatprep.subr.bf16.mxu0 %v3907
      %3929 = vmatpush1.bf16.msra.mxu0 %v3906
      %3930 = vmatprep.subr.bf16.mxu0 %v3905
      %3931 = vmatpush1.bf16.msra.mxu0 %v3904
      %3932 = vmatprep.subr.bf16.mxu0 %v3903
      %3933 = vmatpush1.bf16.msra.mxu0 %v3902
      %3934 = vmatprep.subr.bf16.mxu0 %v3901
      %3935 = vmatpush1.bf16.msra.mxu0 %v3900
      %3936 = vmatprep.subr.bf16.mxu0 %v3899
      %3937 = vmatpush1.bf16.msra.mxu0 %v3898
      %3938 = vmatprep.subr.bf16.mxu0 %v3897
      %3939 = vmatpush1.bf16.msra.mxu0 %v3896
      %3940 = vmatprep.subr.bf16.mxu0 %v3895
      %3941 = vmatpush1.bf16.msra.mxu0 %v3894
      %3942 = vmatprep.subr.bf16.mxu0 0
      %3943 = vmatpush2.bf16.msra.mxu0 0
      %3944 = vmatprep.subr.bf16.mxu0 0
      %3945 = vmatpush2.bf16.msra.mxu0 0
      %3946 = vmatprep.subr.bf16.mxu0 0
      %3947 = vmatpush2.bf16.msra.mxu0 0
      %3948 = vmatprep.subr.bf16.mxu0 0
      %3949 = vmatpush2.bf16.msra.mxu0 0
      %3950 = vmatprep.subr.bf16.mxu0 0
      %3951 = vmatpush2.bf16.msra.mxu0 0
      %3952 = vmatprep.subr.bf16.mxu0 0
      %3953 = vmatpush2.bf16.msra.mxu0 0
      %3954 = vmatprep.subr.bf16.mxu0 0
      %3955 = vmatpush2.bf16.msra.mxu0 0
      %3956 = vmatprep.subr.bf16.mxu0 0
      %3957 = vmatpush2.bf16.msra.mxu0 0
      %3958 = vmatprep.mubr.bf16.mxu0 0
      %3959 = vmatmul.mubr.bf16.gmra.mxu0 %v3828
      %v3960 = vpop.f32.mrf.mxu0
      %v3961 = vadd.f32 0.0, %v3960
      %v3962 = vpop.f32.mrf.mxu0
      %v3963 = vadd.f32 0.0, %v3962
      %v3964 = vpop.f32.mrf.mxu0
      %v3965 = vadd.f32 0.0, %v3964
      %v3966 = vpop.f32.mrf.mxu0
      %v3967 = vadd.f32 0.0, %v3966
      %3968 = vdwg.mxu0
      %v3969 = vadd.f32 %v3768, %v3961
      %v3970 = vadd.f32 %v3770, %v3963
      %v3971 = vadd.f32 %v3772, %v3965
      %v3972 = vadd.f32 %v3774, %v3967
      %s3973 = scalar_lea.vmem %s6, 24
      %v3974 = vld [vmem:[%s3973] sm:$0xf]
      %v3975 = vld [vmem:[%s3973 + $0x4] sm:$0xf]
      %v3978 = vunpack.c.l.b16 %v3974
      %v3979 = vunpack.c.l.b16 %v3975
      %v3980 = vpack.c.b16 %v3979, %v3978
      %v3982 = vsel %vm836, %v3980, 0
      %3984 = vmatprep.subr.bf16.mxu0 0
      %3985 = vmatpush1.bf16.msra.mxu0 0
      %3986 = vmatprep.subr.bf16.mxu0 0
      %3987 = vmatpush1.bf16.msra.mxu0 0
      %3988 = vmatprep.subr.bf16.mxu0 0
      %3989 = vmatpush1.bf16.msra.mxu0 0
      %3990 = vmatprep.subr.bf16.mxu0 0
      %3991 = vmatpush1.bf16.msra.mxu0 0
      %3992 = vmatprep.subr.bf16.mxu0 0
      %3993 = vmatpush1.bf16.msra.mxu0 %v3391
      %3994 = vmatprep.subr.bf16.mxu0 0
      %3995 = vmatpush1.bf16.msra.mxu0 %v3390
      %3996 = vmatprep.subr.bf16.mxu0 0
      %3997 = vmatpush1.bf16.msra.mxu0 %v3389
      %3998 = vmatprep.subr.bf16.mxu0 0
      %3999 = vmatpush1.bf16.msra.mxu0 %v3388
      %4000 = vmatprep.subr.bf16.mxu0 0
      %4001 = vmatpush2.bf16.msra.mxu0 0
      %4002 = vmatprep.subr.bf16.mxu0 0
      %4003 = vmatpush2.bf16.msra.mxu0 0
      %4004 = vmatprep.subr.bf16.mxu0 0
      %4005 = vmatpush2.bf16.msra.mxu0 0
      %4006 = vmatprep.subr.bf16.mxu0 0
      %4007 = vmatpush2.bf16.msra.mxu0 0
      %4008 = vmatprep.subr.bf16.mxu0 0
      %4009 = vmatpush2.bf16.msra.mxu0 0
      %4010 = vmatprep.subr.bf16.mxu0 0
      %4011 = vmatpush2.bf16.msra.mxu0 0
      %4012 = vmatprep.subr.bf16.mxu0 0
      %4013 = vmatpush2.bf16.msra.mxu0 0
      %4014 = vmatprep.subr.bf16.mxu0 0
      %4015 = vmatpush2.bf16.msra.mxu0 0
      %4016 = vmatprep.mubr.bf16.mxu0 0
      %4017 = vmatmul.mubr.bf16.gmra.mxu0 %v3982
      %v4018 = vpop.f32.mrf.mxu0
      %v4019 = vadd.f32 0.0, %v4018
      %v4020 = vpop.f32.mrf.mxu0
      %v4021 = vpop.f32.mrf.mxu0
      %v4022 = vadd.f32 0.0, %v4021
      %v4023 = vpop.f32.mrf.mxu0
      %4024 = vdwg.mxu0
      %v4025 = vpack.c.bf16 %v4022, %v4019
      %s4026 = scalar_lea.vmem %s7, 384
      %v4027 = vld [vmem:[%s4026] sm:$0xff]
      %v4028 = vld [vmem:[%s4026 + $0x8] sm:$0xff]
      %v4029 = vld [vmem:[%s4026 + $0x10] sm:$0xff]
      %v4030 = vld [vmem:[%s4026 + $0x18] sm:$0xff]
      %v4031 = vld [vmem:[%s4026 + $0x20] sm:$0xff]
      %v4032 = vld [vmem:[%s4026 + $0x28] sm:$0xff]
      %v4033 = vld [vmem:[%s4026 + $0x30] sm:$0xff]
      %v4034 = vld [vmem:[%s4026 + $0x38] sm:$0xff]
      %v4035 = vld [vmem:[%s4026 + $0x40] sm:$0xff]
      %v4036 = vld [vmem:[%s4026 + $0x48] sm:$0xff]
      %v4037 = vld [vmem:[%s4026 + $0x50] sm:$0xff]
      %v4038 = vld [vmem:[%s4026 + $0x58] sm:$0xff]
      %v4039 = vld [vmem:[%s4026 + $0x60] sm:$0xff]
      %v4040 = vld [vmem:[%s4026 + $0x68] sm:$0xff]
      %v4041 = vld [vmem:[%s4026 + $0x70] sm:$0xff]
      %v4042 = vld [vmem:[%s4026 + $0x78] sm:$0xff]
      %v4059 = vunpack.c.l.b16 %v4027
      %v4060 = vunpack.c.h.b16 %v4027
      %v4061 = vunpack.c.l.b16 %v4028
      %v4062 = vunpack.c.h.b16 %v4028
      %v4063 = vunpack.c.l.b16 %v4029
      %v4064 = vunpack.c.h.b16 %v4029
      %v4065 = vunpack.c.l.b16 %v4030
      %v4066 = vunpack.c.h.b16 %v4030
      %v4067 = vunpack.c.l.b16 %v4031
      %v4068 = vunpack.c.h.b16 %v4031
      %v4069 = vunpack.c.l.b16 %v4032
      %v4070 = vunpack.c.h.b16 %v4032
      %v4071 = vunpack.c.l.b16 %v4033
      %v4072 = vunpack.c.h.b16 %v4033
      %v4073 = vunpack.c.l.b16 %v4034
      %v4074 = vunpack.c.h.b16 %v4034
      %v4075 = vunpack.c.l.b16 %v4035
      %v4076 = vunpack.c.h.b16 %v4035
      %v4077 = vunpack.c.l.b16 %v4036
      %v4078 = vunpack.c.h.b16 %v4036
      %v4079 = vunpack.c.l.b16 %v4037
      %v4080 = vunpack.c.h.b16 %v4037
      %v4081 = vunpack.c.l.b16 %v4038
      %v4082 = vunpack.c.h.b16 %v4038
      %v4083 = vunpack.c.l.b16 %v4039
      %v4084 = vunpack.c.h.b16 %v4039
      %v4085 = vunpack.c.l.b16 %v4040
      %v4086 = vunpack.c.h.b16 %v4040
      %v4087 = vunpack.c.l.b16 %v4041
      %v4088 = vunpack.c.h.b16 %v4041
      %v4089 = vunpack.c.l.b16 %v4042
      %v4090 = vunpack.c.h.b16 %v4042
      %v4091 = vpack.c.b16 %v4061, %v4059
      %v4092 = vpack.c.b16 %v4062, %v4060
      %v4093 = vpack.c.b16 %v4065, %v4063
      %v4094 = vpack.c.b16 %v4066, %v4064
      %v4095 = vpack.c.b16 %v4069, %v4067
      %v4096 = vpack.c.b16 %v4070, %v4068
      %v4097 = vpack.c.b16 %v4073, %v4071
      %v4098 = vpack.c.b16 %v4074, %v4072
      %v4099 = vpack.c.b16 %v4077, %v4075
      %v4100 = vpack.c.b16 %v4078, %v4076
      %v4101 = vpack.c.b16 %v4081, %v4079
      %v4102 = vpack.c.b16 %v4082, %v4080
      %v4103 = vpack.c.b16 %v4085, %v4083
      %v4104 = vpack.c.b16 %v4086, %v4084
      %v4105 = vpack.c.b16 %v4089, %v4087
      %v4106 = vpack.c.b16 %v4090, %v4088
      %4123 = vmatprep.subr.bf16.mxu0 %v4106
      %4124 = vmatpush1.bf16.msra.mxu0 %v4105
      %4125 = vmatprep.subr.bf16.mxu0 %v4104
      %4126 = vmatpush1.bf16.msra.mxu0 %v4103
      %4127 = vmatprep.subr.bf16.mxu0 %v4102
      %4128 = vmatpush1.bf16.msra.mxu0 %v4101
      %4129 = vmatprep.subr.bf16.mxu0 %v4100
      %4130 = vmatpush1.bf16.msra.mxu0 %v4099
      %4131 = vmatprep.subr.bf16.mxu0 %v4098
      %4132 = vmatpush1.bf16.msra.mxu0 %v4097
      %4133 = vmatprep.subr.bf16.mxu0 %v4096
      %4134 = vmatpush1.bf16.msra.mxu0 %v4095
      %4135 = vmatprep.subr.bf16.mxu0 %v4094
      %4136 = vmatpush1.bf16.msra.mxu0 %v4093
      %4137 = vmatprep.subr.bf16.mxu0 %v4092
      %4138 = vmatpush1.bf16.msra.mxu0 %v4091
      %4139 = vmatprep.subr.bf16.mxu0 0
      %4140 = vmatpush2.bf16.msra.mxu0 0
      %4141 = vmatprep.subr.bf16.mxu0 0
      %4142 = vmatpush2.bf16.msra.mxu0 0
      %4143 = vmatprep.subr.bf16.mxu0 0
      %4144 = vmatpush2.bf16.msra.mxu0 0
      %4145 = vmatprep.subr.bf16.mxu0 0
      %4146 = vmatpush2.bf16.msra.mxu0 0
      %4147 = vmatprep.subr.bf16.mxu0 0
      %4148 = vmatpush2.bf16.msra.mxu0 0
      %4149 = vmatprep.subr.bf16.mxu0 0
      %4150 = vmatpush2.bf16.msra.mxu0 0
      %4151 = vmatprep.subr.bf16.mxu0 0
      %4152 = vmatpush2.bf16.msra.mxu0 0
      %4153 = vmatprep.subr.bf16.mxu0 0
      %4154 = vmatpush2.bf16.msra.mxu0 0
      %4155 = vmatprep.mubr.bf16.mxu0 0
      %4156 = vmatmul.mubr.bf16.gmra.mxu0 %v4025
      %v4157 = vpop.f32.mrf.mxu0
      %v4158 = vadd.f32 0.0, %v4157
      %v4159 = vpop.f32.mrf.mxu0
      %v4160 = vadd.f32 0.0, %v4159
      %v4161 = vpop.f32.mrf.mxu0
      %v4162 = vadd.f32 0.0, %v4161
      %v4163 = vpop.f32.mrf.mxu0
      %v4164 = vadd.f32 0.0, %v4163
      %4165 = vdwg.mxu0
      %v4166 = vadd.f32 %v3969, %v4158
      %v4167 = vadd.f32 %v3970, %v4160
      %v4168 = vadd.f32 %v3971, %v4162
      %v4169 = vadd.f32 %v3972, %v4164
      %s4170 = scalar_lea.vmem %s6, 32
      %v4171 = vld [vmem:[%s4170] sm:$0xf]
      %v4172 = vld [vmem:[%s4170 + $0x4] sm:$0xf]
      %v4175 = vunpack.c.l.b16 %v4171
      %v4176 = vunpack.c.l.b16 %v4172
      %v4177 = vpack.c.b16 %v4176, %v4175
      %v4179 = vsel %vm836, %v4177, 0
      %4181 = vmatprep.subr.bf16.mxu0 0
      %4182 = vmatpush1.bf16.msra.mxu0 0
      %4183 = vmatprep.subr.bf16.mxu0 0
      %4184 = vmatpush1.bf16.msra.mxu0 0
      %4185 = vmatprep.subr.bf16.mxu0 0
      %4186 = vmatpush1.bf16.msra.mxu0 0
      %4187 = vmatprep.subr.bf16.mxu0 0
      %4188 = vmatpush1.bf16.msra.mxu0 0
      %4189 = vmatprep.subr.bf16.mxu0 0
      %4190 = vmatpush1.bf16.msra.mxu0 %v3391
      %4191 = vmatprep.subr.bf16.mxu0 0
      %4192 = vmatpush1.bf16.msra.mxu0 %v3390
      %4193 = vmatprep.subr.bf16.mxu0 0
      %4194 = vmatpush1.bf16.msra.mxu0 %v3389
      %4195 = vmatprep.subr.bf16.mxu0 0
      %4196 = vmatpush1.bf16.msra.mxu0 %v3388
      %4197 = vmatprep.subr.bf16.mxu0 0
      %4198 = vmatpush2.bf16.msra.mxu0 0
      %4199 = vmatprep.subr.bf16.mxu0 0
      %4200 = vmatpush2.bf16.msra.mxu0 0
      %4201 = vmatprep.subr.bf16.mxu0 0
      %4202 = vmatpush2.bf16.msra.mxu0 0
      %4203 = vmatprep.subr.bf16.mxu0 0
      %4204 = vmatpush2.bf16.msra.mxu0 0
      %4205 = vmatprep.subr.bf16.mxu0 0
      %4206 = vmatpush2.bf16.msra.mxu0 0
      %4207 = vmatprep.subr.bf16.mxu0 0
      %4208 = vmatpush2.bf16.msra.mxu0 0
      %4209 = vmatprep.subr.bf16.mxu0 0
      %4210 = vmatpush2.bf16.msra.mxu0 0
      %4211 = vmatprep.subr.bf16.mxu0 0
      %4212 = vmatpush2.bf16.msra.mxu0 0
      %4213 = vmatprep.mubr.bf16.mxu0 0
      %4214 = vmatmul.mubr.bf16.gmra.mxu0 %v4179
      %v4215 = vpop.f32.mrf.mxu0
      %v4216 = vadd.f32 0.0, %v4215
      %v4217 = vpop.f32.mrf.mxu0
      %v4218 = vpop.f32.mrf.mxu0
      %v4219 = vadd.f32 0.0, %v4218
      %v4220 = vpop.f32.mrf.mxu0
      %4221 = vdwg.mxu0
      %v4222 = vpack.c.bf16 %v4219, %v4216
      %s4223 = scalar_lea.vmem %s7, 512
      %v4224 = vld [vmem:[%s4223] sm:$0xff]
      %v4225 = vld [vmem:[%s4223 + $0x8] sm:$0xff]
      %v4226 = vld [vmem:[%s4223 + $0x10] sm:$0xff]
      %v4227 = vld [vmem:[%s4223 + $0x18] sm:$0xff]
      %v4228 = vld [vmem:[%s4223 + $0x20] sm:$0xff]
      %v4229 = vld [vmem:[%s4223 + $0x28] sm:$0xff]
      %v4230 = vld [vmem:[%s4223 + $0x30] sm:$0xff]
      %v4231 = vld [vmem:[%s4223 + $0x38] sm:$0xff]
      %v4232 = vld [vmem:[%s4223 + $0x40] sm:$0xff]
      %v4233 = vld [vmem:[%s4223 + $0x48] sm:$0xff]
      %v4234 = vld [vmem:[%s4223 + $0x50] sm:$0xff]
      %v4235 = vld [vmem:[%s4223 + $0x58] sm:$0xff]
      %v4236 = vld [vmem:[%s4223 + $0x60] sm:$0xff]
      %v4237 = vld [vmem:[%s4223 + $0x68] sm:$0xff]
      %v4238 = vld [vmem:[%s4223 + $0x70] sm:$0xff]
      %v4239 = vld [vmem:[%s4223 + $0x78] sm:$0xff]
      %v4256 = vunpack.c.l.b16 %v4224
      %v4257 = vunpack.c.h.b16 %v4224
      %v4258 = vunpack.c.l.b16 %v4225
      %v4259 = vunpack.c.h.b16 %v4225
      %v4260 = vunpack.c.l.b16 %v4226
      %v4261 = vunpack.c.h.b16 %v4226
      %v4262 = vunpack.c.l.b16 %v4227
      %v4263 = vunpack.c.h.b16 %v4227
      %v4264 = vunpack.c.l.b16 %v4228
      %v4265 = vunpack.c.h.b16 %v4228
      %v4266 = vunpack.c.l.b16 %v4229
      %v4267 = vunpack.c.h.b16 %v4229
      %v4268 = vunpack.c.l.b16 %v4230
      %v4269 = vunpack.c.h.b16 %v4230
      %v4270 = vunpack.c.l.b16 %v4231
      %v4271 = vunpack.c.h.b16 %v4231
      %v4272 = vunpack.c.l.b16 %v4232
      %v4273 = vunpack.c.h.b16 %v4232
      %v4274 = vunpack.c.l.b16 %v4233
      %v4275 = vunpack.c.h.b16 %v4233
      %v4276 = vunpack.c.l.b16 %v4234
      %v4277 = vunpack.c.h.b16 %v4234
      %v4278 = vunpack.c.l.b16 %v4235
      %v4279 = vunpack.c.h.b16 %v4235
      %v4280 = vunpack.c.l.b16 %v4236
      %v4281 = vunpack.c.h.b16 %v4236
      %v4282 = vunpack.c.l.b16 %v4237
      %v4283 = vunpack.c.h.b16 %v4237
      %v4284 = vunpack.c.l.b16 %v4238
      %v4285 = vunpack.c.h.b16 %v4238
      %v4286 = vunpack.c.l.b16 %v4239
      %v4287 = vunpack.c.h.b16 %v4239
      %v4288 = vpack.c.b16 %v4258, %v4256
      %v4289 = vpack.c.b16 %v4259, %v4257
      %v4290 = vpack.c.b16 %v4262, %v4260
      %v4291 = vpack.c.b16 %v4263, %v4261
      %v4292 = vpack.c.b16 %v4266, %v4264
      %v4293 = vpack.c.b16 %v4267, %v4265
      %v4294 = vpack.c.b16 %v4270, %v4268
      %v4295 = vpack.c.b16 %v4271, %v4269
      %v4296 = vpack.c.b16 %v4274, %v4272
      %v4297 = vpack.c.b16 %v4275, %v4273
      %v4298 = vpack.c.b16 %v4278, %v4276
      %v4299 = vpack.c.b16 %v4279, %v4277
      %v4300 = vpack.c.b16 %v4282, %v4280
      %v4301 = vpack.c.b16 %v4283, %v4281
      %v4302 = vpack.c.b16 %v4286, %v4284
      %v4303 = vpack.c.b16 %v4287, %v4285
      %4320 = vmatprep.subr.bf16.mxu0 %v4303
      %4321 = vmatpush1.bf16.msra.mxu0 %v4302
      %4322 = vmatprep.subr.bf16.mxu0 %v4301
      %4323 = vmatpush1.bf16.msra.mxu0 %v4300
      %4324 = vmatprep.subr.bf16.mxu0 %v4299
      %4325 = vmatpush1.bf16.msra.mxu0 %v4298
      %4326 = vmatprep.subr.bf16.mxu0 %v4297
      %4327 = vmatpush1.bf16.msra.mxu0 %v4296
      %4328 = vmatprep.subr.bf16.mxu0 %v4295
      %4329 = vmatpush1.bf16.msra.mxu0 %v4294
      %4330 = vmatprep.subr.bf16.mxu0 %v4293
      %4331 = vmatpush1.bf16.msra.mxu0 %v4292
      %4332 = vmatprep.subr.bf16.mxu0 %v4291
      %4333 = vmatpush1.bf16.msra.mxu0 %v4290
      %4334 = vmatprep.subr.bf16.mxu0 %v4289
      %4335 = vmatpush1.bf16.msra.mxu0 %v4288
      %4336 = vmatprep.subr.bf16.mxu0 0
      %4337 = vmatpush2.bf16.msra.mxu0 0
      %4338 = vmatprep.subr.bf16.mxu0 0
      %4339 = vmatpush2.bf16.msra.mxu0 0
      %4340 = vmatprep.subr.bf16.mxu0 0
      %4341 = vmatpush2.bf16.msra.mxu0 0
      %4342 = vmatprep.subr.bf16.mxu0 0
      %4343 = vmatpush2.bf16.msra.mxu0 0
      %4344 = vmatprep.subr.bf16.mxu0 0
      %4345 = vmatpush2.bf16.msra.mxu0 0
      %4346 = vmatprep.subr.bf16.mxu0 0
      %4347 = vmatpush2.bf16.msra.mxu0 0
      %4348 = vmatprep.subr.bf16.mxu0 0
      %4349 = vmatpush2.bf16.msra.mxu0 0
      %4350 = vmatprep.subr.bf16.mxu0 0
      %4351 = vmatpush2.bf16.msra.mxu0 0
      %4352 = vmatprep.mubr.bf16.mxu0 0
      %4353 = vmatmul.mubr.bf16.gmra.mxu0 %v4222
      %v4354 = vpop.f32.mrf.mxu0
      %v4355 = vadd.f32 0.0, %v4354
      %v4356 = vpop.f32.mrf.mxu0
      %v4357 = vadd.f32 0.0, %v4356
      %v4358 = vpop.f32.mrf.mxu0
      %v4359 = vadd.f32 0.0, %v4358
      %v4360 = vpop.f32.mrf.mxu0
      %v4361 = vadd.f32 0.0, %v4360
      %4362 = vdwg.mxu0
      %v4363 = vadd.f32 %v4166, %v4355
      %v4364 = vadd.f32 %v4167, %v4357
      %v4365 = vadd.f32 %v4168, %v4359
      %v4366 = vadd.f32 %v4169, %v4361
      %s4367 = scalar_lea.vmem %s6, 40
      %v4368 = vld [vmem:[%s4367] sm:$0xf]
      %v4369 = vld [vmem:[%s4367 + $0x4] sm:$0xf]
      %v4372 = vunpack.c.l.b16 %v4368
      %v4373 = vunpack.c.l.b16 %v4369
      %v4374 = vpack.c.b16 %v4373, %v4372
      %v4376 = vsel %vm836, %v4374, 0
      %4378 = vmatprep.subr.bf16.mxu0 0
      %4379 = vmatpush1.bf16.msra.mxu0 0
      %4380 = vmatprep.subr.bf16.mxu0 0
      %4381 = vmatpush1.bf16.msra.mxu0 0
      %4382 = vmatprep.subr.bf16.mxu0 0
      %4383 = vmatpush1.bf16.msra.mxu0 0
      %4384 = vmatprep.subr.bf16.mxu0 0
      %4385 = vmatpush1.bf16.msra.mxu0 0
      %4386 = vmatprep.subr.bf16.mxu0 0
      %4387 = vmatpush1.bf16.msra.mxu0 %v3391
      %4388 = vmatprep.subr.bf16.mxu0 0
      %4389 = vmatpush1.bf16.msra.mxu0 %v3390
      %4390 = vmatprep.subr.bf16.mxu0 0
      %4391 = vmatpush1.bf16.msra.mxu0 %v3389
      %4392 = vmatprep.subr.bf16.mxu0 0
      %4393 = vmatpush1.bf16.msra.mxu0 %v3388
      %4394 = vmatprep.subr.bf16.mxu0 0
      %4395 = vmatpush2.bf16.msra.mxu0 0
      %4396 = vmatprep.subr.bf16.mxu0 0
      %4397 = vmatpush2.bf16.msra.mxu0 0
      %4398 = vmatprep.subr.bf16.mxu0 0
      %4399 = vmatpush2.bf16.msra.mxu0 0
      %4400 = vmatprep.subr.bf16.mxu0 0
      %4401 = vmatpush2.bf16.msra.mxu0 0
      %4402 = vmatprep.subr.bf16.mxu0 0
      %4403 = vmatpush2.bf16.msra.mxu0 0
      %4404 = vmatprep.subr.bf16.mxu0 0
      %4405 = vmatpush2.bf16.msra.mxu0 0
      %4406 = vmatprep.subr.bf16.mxu0 0
      %4407 = vmatpush2.bf16.msra.mxu0 0
      %4408 = vmatprep.subr.bf16.mxu0 0
      %4409 = vmatpush2.bf16.msra.mxu0 0
      %4410 = vmatprep.mubr.bf16.mxu0 0
      %4411 = vmatmul.mubr.bf16.gmra.mxu0 %v4376
      %v4412 = vpop.f32.mrf.mxu0
      %v4413 = vadd.f32 0.0, %v4412
      %v4414 = vpop.f32.mrf.mxu0
      %v4415 = vpop.f32.mrf.mxu0
      %v4416 = vadd.f32 0.0, %v4415
      %v4417 = vpop.f32.mrf.mxu0
      %4418 = vdwg.mxu0
      %v4419 = vpack.c.bf16 %v4416, %v4413
      %s4420 = scalar_lea.vmem %s7, 640
      %v4421 = vld [vmem:[%s4420] sm:$0xff]
      %v4422 = vld [vmem:[%s4420 + $0x8] sm:$0xff]
      %v4423 = vld [vmem:[%s4420 + $0x10] sm:$0xff]
      %v4424 = vld [vmem:[%s4420 + $0x18] sm:$0xff]
      %v4425 = vld [vmem:[%s4420 + $0x20] sm:$0xff]
      %v4426 = vld [vmem:[%s4420 + $0x28] sm:$0xff]
      %v4427 = vld [vmem:[%s4420 + $0x30] sm:$0xff]
      %v4428 = vld [vmem:[%s4420 + $0x38] sm:$0xff]
      %v4429 = vld [vmem:[%s4420 + $0x40] sm:$0xff]
      %v4430 = vld [vmem:[%s4420 + $0x48] sm:$0xff]
      %v4431 = vld [vmem:[%s4420 + $0x50] sm:$0xff]
      %v4432 = vld [vmem:[%s4420 + $0x58] sm:$0xff]
      %v4433 = vld [vmem:[%s4420 + $0x60] sm:$0xff]
      %v4434 = vld [vmem:[%s4420 + $0x68] sm:$0xff]
      %v4435 = vld [vmem:[%s4420 + $0x70] sm:$0xff]
      %v4436 = vld [vmem:[%s4420 + $0x78] sm:$0xff]
      %v4453 = vunpack.c.l.b16 %v4421
      %v4454 = vunpack.c.h.b16 %v4421
      %v4455 = vunpack.c.l.b16 %v4422
      %v4456 = vunpack.c.h.b16 %v4422
      %v4457 = vunpack.c.l.b16 %v4423
      %v4458 = vunpack.c.h.b16 %v4423
      %v4459 = vunpack.c.l.b16 %v4424
      %v4460 = vunpack.c.h.b16 %v4424
      %v4461 = vunpack.c.l.b16 %v4425
      %v4462 = vunpack.c.h.b16 %v4425
      %v4463 = vunpack.c.l.b16 %v4426
      %v4464 = vunpack.c.h.b16 %v4426
      %v4465 = vunpack.c.l.b16 %v4427
      %v4466 = vunpack.c.h.b16 %v4427
      %v4467 = vunpack.c.l.b16 %v4428
      %v4468 = vunpack.c.h.b16 %v4428
      %v4469 = vunpack.c.l.b16 %v4429
      %v4470 = vunpack.c.h.b16 %v4429
      %v4471 = vunpack.c.l.b16 %v4430
      %v4472 = vunpack.c.h.b16 %v4430
      %v4473 = vunpack.c.l.b16 %v4431
      %v4474 = vunpack.c.h.b16 %v4431
      %v4475 = vunpack.c.l.b16 %v4432
      %v4476 = vunpack.c.h.b16 %v4432
      %v4477 = vunpack.c.l.b16 %v4433
      %v4478 = vunpack.c.h.b16 %v4433
      %v4479 = vunpack.c.l.b16 %v4434
      %v4480 = vunpack.c.h.b16 %v4434
      %v4481 = vunpack.c.l.b16 %v4435
      %v4482 = vunpack.c.h.b16 %v4435
      %v4483 = vunpack.c.l.b16 %v4436
      %v4484 = vunpack.c.h.b16 %v4436
      %v4485 = vpack.c.b16 %v4455, %v4453
      %v4486 = vpack.c.b16 %v4456, %v4454
      %v4487 = vpack.c.b16 %v4459, %v4457
      %v4488 = vpack.c.b16 %v4460, %v4458
      %v4489 = vpack.c.b16 %v4463, %v4461
      %v4490 = vpack.c.b16 %v4464, %v4462
      %v4491 = vpack.c.b16 %v4467, %v4465
      %v4492 = vpack.c.b16 %v4468, %v4466
      %v4493 = vpack.c.b16 %v4471, %v4469
      %v4494 = vpack.c.b16 %v4472, %v4470
      %v4495 = vpack.c.b16 %v4475, %v4473
      %v4496 = vpack.c.b16 %v4476, %v4474
      %v4497 = vpack.c.b16 %v4479, %v4477
      %v4498 = vpack.c.b16 %v4480, %v4478
      %v4499 = vpack.c.b16 %v4483, %v4481
      %v4500 = vpack.c.b16 %v4484, %v4482
      %4517 = vmatprep.subr.bf16.mxu0 %v4500
      %4518 = vmatpush1.bf16.msra.mxu0 %v4499
      %4519 = vmatprep.subr.bf16.mxu0 %v4498
      %4520 = vmatpush1.bf16.msra.mxu0 %v4497
      %4521 = vmatprep.subr.bf16.mxu0 %v4496
      %4522 = vmatpush1.bf16.msra.mxu0 %v4495
      %4523 = vmatprep.subr.bf16.mxu0 %v4494
      %4524 = vmatpush1.bf16.msra.mxu0 %v4493
      %4525 = vmatprep.subr.bf16.mxu0 %v4492
      %4526 = vmatpush1.bf16.msra.mxu0 %v4491
      %4527 = vmatprep.subr.bf16.mxu0 %v4490
      %4528 = vmatpush1.bf16.msra.mxu0 %v4489
      %4529 = vmatprep.subr.bf16.mxu0 %v4488
      %4530 = vmatpush1.bf16.msra.mxu0 %v4487
      %4531 = vmatprep.subr.bf16.mxu0 %v4486
      %4532 = vmatpush1.bf16.msra.mxu0 %v4485
      %4533 = vmatprep.subr.bf16.mxu0 0
      %4534 = vmatpush2.bf16.msra.mxu0 0
      %4535 = vmatprep.subr.bf16.mxu0 0
      %4536 = vmatpush2.bf16.msra.mxu0 0
      %4537 = vmatprep.subr.bf16.mxu0 0
      %4538 = vmatpush2.bf16.msra.mxu0 0
      %4539 = vmatprep.subr.bf16.mxu0 0
      %4540 = vmatpush2.bf16.msra.mxu0 0
      %4541 = vmatprep.subr.bf16.mxu0 0
      %4542 = vmatpush2.bf16.msra.mxu0 0
      %4543 = vmatprep.subr.bf16.mxu0 0
      %4544 = vmatpush2.bf16.msra.mxu0 0
      %4545 = vmatprep.subr.bf16.mxu0 0
      %4546 = vmatpush2.bf16.msra.mxu0 0
      %4547 = vmatprep.subr.bf16.mxu0 0
      %4548 = vmatpush2.bf16.msra.mxu0 0
      %4549 = vmatprep.mubr.bf16.mxu0 0
      %4550 = vmatmul.mubr.bf16.gmra.mxu0 %v4419
      %v4551 = vpop.f32.mrf.mxu0
      %v4552 = vadd.f32 0.0, %v4551
      %v4553 = vpop.f32.mrf.mxu0
      %v4554 = vadd.f32 0.0, %v4553
      %v4555 = vpop.f32.mrf.mxu0
      %v4556 = vadd.f32 0.0, %v4555
      %v4557 = vpop.f32.mrf.mxu0
      %v4558 = vadd.f32 0.0, %v4557
      %4559 = vdwg.mxu0
      %v4560 = vadd.f32 %v4363, %v4552
      %v4561 = vadd.f32 %v4364, %v4554
      %v4562 = vadd.f32 %v4365, %v4556
      %v4563 = vadd.f32 %v4366, %v4558
      %s4564 = scalar_lea.vmem %s6, 48
      %v4565 = vld [vmem:[%s4564] sm:$0xf]
      %v4566 = vld [vmem:[%s4564 + $0x4] sm:$0xf]
      %v4569 = vunpack.c.l.b16 %v4565
      %v4570 = vunpack.c.l.b16 %v4566
      %v4571 = vpack.c.b16 %v4570, %v4569
      %v4573 = vsel %vm836, %v4571, 0
      %4575 = vmatprep.subr.bf16.mxu0 0
      %4576 = vmatpush1.bf16.msra.mxu0 0
      %4577 = vmatprep.subr.bf16.mxu0 0
      %4578 = vmatpush1.bf16.msra.mxu0 0
      %4579 = vmatprep.subr.bf16.mxu0 0
      %4580 = vmatpush1.bf16.msra.mxu0 0
      %4581 = vmatprep.subr.bf16.mxu0 0
      %4582 = vmatpush1.bf16.msra.mxu0 0
      %4583 = vmatprep.subr.bf16.mxu0 0
      %4584 = vmatpush1.bf16.msra.mxu0 %v3391
      %4585 = vmatprep.subr.bf16.mxu0 0
      %4586 = vmatpush1.bf16.msra.mxu0 %v3390
      %4587 = vmatprep.subr.bf16.mxu0 0
      %4588 = vmatpush1.bf16.msra.mxu0 %v3389
      %4589 = vmatprep.subr.bf16.mxu0 0
      %4590 = vmatpush1.bf16.msra.mxu0 %v3388
      %4591 = vmatprep.subr.bf16.mxu0 0
      %4592 = vmatpush2.bf16.msra.mxu0 0
      %4593 = vmatprep.subr.bf16.mxu0 0
      %4594 = vmatpush2.bf16.msra.mxu0 0
      %4595 = vmatprep.subr.bf16.mxu0 0
      %4596 = vmatpush2.bf16.msra.mxu0 0
      %4597 = vmatprep.subr.bf16.mxu0 0
      %4598 = vmatpush2.bf16.msra.mxu0 0
      %4599 = vmatprep.subr.bf16.mxu0 0
      %4600 = vmatpush2.bf16.msra.mxu0 0
      %4601 = vmatprep.subr.bf16.mxu0 0
      %4602 = vmatpush2.bf16.msra.mxu0 0
      %4603 = vmatprep.subr.bf16.mxu0 0
      %4604 = vmatpush2.bf16.msra.mxu0 0
      %4605 = vmatprep.subr.bf16.mxu0 0
      %4606 = vmatpush2.bf16.msra.mxu0 0
      %4607 = vmatprep.mubr.bf16.mxu0 0
      %4608 = vmatmul.mubr.bf16.gmra.mxu0 %v4573
      %v4609 = vpop.f32.mrf.mxu0
      %v4610 = vadd.f32 0.0, %v4609
      %v4611 = vpop.f32.mrf.mxu0
      %v4612 = vpop.f32.mrf.mxu0
      %v4613 = vadd.f32 0.0, %v4612
      %v4614 = vpop.f32.mrf.mxu0
      %4615 = vdwg.mxu0
      %v4616 = vpack.c.bf16 %v4613, %v4610
      %s4617 = scalar_lea.vmem %s7, 768
      %v4618 = vld [vmem:[%s4617] sm:$0xff]
      %v4619 = vld [vmem:[%s4617 + $0x8] sm:$0xff]
      %v4620 = vld [vmem:[%s4617 + $0x10] sm:$0xff]
      %v4621 = vld [vmem:[%s4617 + $0x18] sm:$0xff]
      %v4622 = vld [vmem:[%s4617 + $0x20] sm:$0xff]
      %v4623 = vld [vmem:[%s4617 + $0x28] sm:$0xff]
      %v4624 = vld [vmem:[%s4617 + $0x30] sm:$0xff]
      %v4625 = vld [vmem:[%s4617 + $0x38] sm:$0xff]
      %v4626 = vld [vmem:[%s4617 + $0x40] sm:$0xff]
      %v4627 = vld [vmem:[%s4617 + $0x48] sm:$0xff]
      %v4628 = vld [vmem:[%s4617 + $0x50] sm:$0xff]
      %v4629 = vld [vmem:[%s4617 + $0x58] sm:$0xff]
      %v4630 = vld [vmem:[%s4617 + $0x60] sm:$0xff]
      %v4631 = vld [vmem:[%s4617 + $0x68] sm:$0xff]
      %v4632 = vld [vmem:[%s4617 + $0x70] sm:$0xff]
      %v4633 = vld [vmem:[%s4617 + $0x78] sm:$0xff]
      %v4650 = vunpack.c.l.b16 %v4618
      %v4651 = vunpack.c.h.b16 %v4618
      %v4652 = vunpack.c.l.b16 %v4619
      %v4653 = vunpack.c.h.b16 %v4619
      %v4654 = vunpack.c.l.b16 %v4620
      %v4655 = vunpack.c.h.b16 %v4620
      %v4656 = vunpack.c.l.b16 %v4621
      %v4657 = vunpack.c.h.b16 %v4621
      %v4658 = vunpack.c.l.b16 %v4622
      %v4659 = vunpack.c.h.b16 %v4622
      %v4660 = vunpack.c.l.b16 %v4623
      %v4661 = vunpack.c.h.b16 %v4623
      %v4662 = vunpack.c.l.b16 %v4624
      %v4663 = vunpack.c.h.b16 %v4624
      %v4664 = vunpack.c.l.b16 %v4625
      %v4665 = vunpack.c.h.b16 %v4625
      %v4666 = vunpack.c.l.b16 %v4626
      %v4667 = vunpack.c.h.b16 %v4626
      %v4668 = vunpack.c.l.b16 %v4627
      %v4669 = vunpack.c.h.b16 %v4627
      %v4670 = vunpack.c.l.b16 %v4628
      %v4671 = vunpack.c.h.b16 %v4628
      %v4672 = vunpack.c.l.b16 %v4629
      %v4673 = vunpack.c.h.b16 %v4629
      %v4674 = vunpack.c.l.b16 %v4630
      %v4675 = vunpack.c.h.b16 %v4630
      %v4676 = vunpack.c.l.b16 %v4631
      %v4677 = vunpack.c.h.b16 %v4631
      %v4678 = vunpack.c.l.b16 %v4632
      %v4679 = vunpack.c.h.b16 %v4632
      %v4680 = vunpack.c.l.b16 %v4633
      %v4681 = vunpack.c.h.b16 %v4633
      %v4682 = vpack.c.b16 %v4652, %v4650
      %v4683 = vpack.c.b16 %v4653, %v4651
      %v4684 = vpack.c.b16 %v4656, %v4654
      %v4685 = vpack.c.b16 %v4657, %v4655
      %v4686 = vpack.c.b16 %v4660, %v4658
      %v4687 = vpack.c.b16 %v4661, %v4659
      %v4688 = vpack.c.b16 %v4664, %v4662
      %v4689 = vpack.c.b16 %v4665, %v4663
      %v4690 = vpack.c.b16 %v4668, %v4666
      %v4691 = vpack.c.b16 %v4669, %v4667
      %v4692 = vpack.c.b16 %v4672, %v4670
      %v4693 = vpack.c.b16 %v4673, %v4671
      %v4694 = vpack.c.b16 %v4676, %v4674
      %v4695 = vpack.c.b16 %v4677, %v4675
      %v4696 = vpack.c.b16 %v4680, %v4678
      %v4697 = vpack.c.b16 %v4681, %v4679
      %4714 = vmatprep.subr.bf16.mxu0 %v4697
      %4715 = vmatpush1.bf16.msra.mxu0 %v4696
      %4716 = vmatprep.subr.bf16.mxu0 %v4695
      %4717 = vmatpush1.bf16.msra.mxu0 %v4694
      %4718 = vmatprep.subr.bf16.mxu0 %v4693
      %4719 = vmatpush1.bf16.msra.mxu0 %v4692
      %4720 = vmatprep.subr.bf16.mxu0 %v4691
      %4721 = vmatpush1.bf16.msra.mxu0 %v4690
      %4722 = vmatprep.subr.bf16.mxu0 %v4689
      %4723 = vmatpush1.bf16.msra.mxu0 %v4688
      %4724 = vmatprep.subr.bf16.mxu0 %v4687
      %4725 = vmatpush1.bf16.msra.mxu0 %v4686
      %4726 = vmatprep.subr.bf16.mxu0 %v4685
      %4727 = vmatpush1.bf16.msra.mxu0 %v4684
      %4728 = vmatprep.subr.bf16.mxu0 %v4683
      %4729 = vmatpush1.bf16.msra.mxu0 %v4682
      %4730 = vmatprep.subr.bf16.mxu0 0
      %4731 = vmatpush2.bf16.msra.mxu0 0
      %4732 = vmatprep.subr.bf16.mxu0 0
      %4733 = vmatpush2.bf16.msra.mxu0 0
      %4734 = vmatprep.subr.bf16.mxu0 0
      %4735 = vmatpush2.bf16.msra.mxu0 0
      %4736 = vmatprep.subr.bf16.mxu0 0
      %4737 = vmatpush2.bf16.msra.mxu0 0
      %4738 = vmatprep.subr.bf16.mxu0 0
      %4739 = vmatpush2.bf16.msra.mxu0 0
      %4740 = vmatprep.subr.bf16.mxu0 0
      %4741 = vmatpush2.bf16.msra.mxu0 0
      %4742 = vmatprep.subr.bf16.mxu0 0
      %4743 = vmatpush2.bf16.msra.mxu0 0
      %4744 = vmatprep.subr.bf16.mxu0 0
      %4745 = vmatpush2.bf16.msra.mxu0 0
      %4746 = vmatprep.mubr.bf16.mxu0 0
      %4747 = vmatmul.mubr.bf16.gmra.mxu0 %v4616
      %v4748 = vpop.f32.mrf.mxu0
      %v4749 = vadd.f32 0.0, %v4748
      %v4750 = vpop.f32.mrf.mxu0
      %v4751 = vadd.f32 0.0, %v4750
      %v4752 = vpop.f32.mrf.mxu0
      %v4753 = vadd.f32 0.0, %v4752
      %v4754 = vpop.f32.mrf.mxu0
      %v4755 = vadd.f32 0.0, %v4754
      %4756 = vdwg.mxu0
      %v4757 = vadd.f32 %v4560, %v4749
      %v4758 = vadd.f32 %v4561, %v4751
      %v4759 = vadd.f32 %v4562, %v4753
      %v4760 = vadd.f32 %v4563, %v4755
      %s4761 = scalar_lea.vmem %s6, 56
      %v4762 = vld [vmem:[%s4761] sm:$0xf]
      %v4763 = vld [vmem:[%s4761 + $0x4] sm:$0xf]
      %v4766 = vunpack.c.l.b16 %v4762
      %v4767 = vunpack.c.l.b16 %v4763
      %v4768 = vpack.c.b16 %v4767, %v4766
      %v4770 = vsel %vm836, %v4768, 0
      %4772 = vmatprep.subr.bf16.mxu0 0
      %4773 = vmatpush1.bf16.msra.mxu0 0
      %4774 = vmatprep.subr.bf16.mxu0 0
      %4775 = vmatpush1.bf16.msra.mxu0 0
      %4776 = vmatprep.subr.bf16.mxu0 0
      %4777 = vmatpush1.bf16.msra.mxu0 0
      %4778 = vmatprep.subr.bf16.mxu0 0
      %4779 = vmatpush1.bf16.msra.mxu0 0
      %4780 = vmatprep.subr.bf16.mxu0 0
      %4781 = vmatpush1.bf16.msra.mxu0 %v3391
      %4782 = vmatprep.subr.bf16.mxu0 0
      %4783 = vmatpush1.bf16.msra.mxu0 %v3390
      %4784 = vmatprep.subr.bf16.mxu0 0
      %4785 = vmatpush1.bf16.msra.mxu0 %v3389
      %4786 = vmatprep.subr.bf16.mxu0 0
      %4787 = vmatpush1.bf16.msra.mxu0 %v3388
      %4788 = vmatprep.subr.bf16.mxu0 0
      %4789 = vmatpush2.bf16.msra.mxu0 0
      %4790 = vmatprep.subr.bf16.mxu0 0
      %4791 = vmatpush2.bf16.msra.mxu0 0
      %4792 = vmatprep.subr.bf16.mxu0 0
      %4793 = vmatpush2.bf16.msra.mxu0 0
      %4794 = vmatprep.subr.bf16.mxu0 0
      %4795 = vmatpush2.bf16.msra.mxu0 0
      %4796 = vmatprep.subr.bf16.mxu0 0
      %4797 = vmatpush2.bf16.msra.mxu0 0
      %4798 = vmatprep.subr.bf16.mxu0 0
      %4799 = vmatpush2.bf16.msra.mxu0 0
      %4800 = vmatprep.subr.bf16.mxu0 0
      %4801 = vmatpush2.bf16.msra.mxu0 0
      %4802 = vmatprep.subr.bf16.mxu0 0
      %4803 = vmatpush2.bf16.msra.mxu0 0
      %4804 = vmatprep.mubr.bf16.mxu0 0
      %4805 = vmatmul.mubr.bf16.gmra.mxu0 %v4770
      %v4806 = vpop.f32.mrf.mxu0
      %v4807 = vadd.f32 0.0, %v4806
      %v4808 = vpop.f32.mrf.mxu0
      %v4809 = vpop.f32.mrf.mxu0
      %v4810 = vadd.f32 0.0, %v4809
      %v4811 = vpop.f32.mrf.mxu0
      %4812 = vdwg.mxu0
      %v4813 = vpack.c.bf16 %v4810, %v4807
      %s4814 = scalar_lea.vmem %s7, 896
      %v4815 = vld [vmem:[%s4814] sm:$0xff]
      %v4816 = vld [vmem:[%s4814 + $0x8] sm:$0xff]
      %v4817 = vld [vmem:[%s4814 + $0x10] sm:$0xff]
      %v4818 = vld [vmem:[%s4814 + $0x18] sm:$0xff]
      %v4819 = vld [vmem:[%s4814 + $0x20] sm:$0xff]
      %v4820 = vld [vmem:[%s4814 + $0x28] sm:$0xff]
      %v4821 = vld [vmem:[%s4814 + $0x30] sm:$0xff]
      %v4822 = vld [vmem:[%s4814 + $0x38] sm:$0xff]
      %v4823 = vld [vmem:[%s4814 + $0x40] sm:$0xff]
      %v4824 = vld [vmem:[%s4814 + $0x48] sm:$0xff]
      %v4825 = vld [vmem:[%s4814 + $0x50] sm:$0xff]
      %v4826 = vld [vmem:[%s4814 + $0x58] sm:$0xff]
      %v4827 = vld [vmem:[%s4814 + $0x60] sm:$0xff]
      %v4828 = vld [vmem:[%s4814 + $0x68] sm:$0xff]
      %v4829 = vld [vmem:[%s4814 + $0x70] sm:$0xff]
      %v4830 = vld [vmem:[%s4814 + $0x78] sm:$0xff]
      %v4847 = vunpack.c.l.b16 %v4815
      %v4848 = vunpack.c.h.b16 %v4815
      %v4849 = vunpack.c.l.b16 %v4816
      %v4850 = vunpack.c.h.b16 %v4816
      %v4851 = vunpack.c.l.b16 %v4817
      %v4852 = vunpack.c.h.b16 %v4817
      %v4853 = vunpack.c.l.b16 %v4818
      %v4854 = vunpack.c.h.b16 %v4818
      %v4855 = vunpack.c.l.b16 %v4819
      %v4856 = vunpack.c.h.b16 %v4819
      %v4857 = vunpack.c.l.b16 %v4820
      %v4858 = vunpack.c.h.b16 %v4820
      %v4859 = vunpack.c.l.b16 %v4821
      %v4860 = vunpack.c.h.b16 %v4821
      %v4861 = vunpack.c.l.b16 %v4822
      %v4862 = vunpack.c.h.b16 %v4822
      %v4863 = vunpack.c.l.b16 %v4823
      %v4864 = vunpack.c.h.b16 %v4823
      %v4865 = vunpack.c.l.b16 %v4824
      %v4866 = vunpack.c.h.b16 %v4824
      %v4867 = vunpack.c.l.b16 %v4825
      %v4868 = vunpack.c.h.b16 %v4825
      %v4869 = vunpack.c.l.b16 %v4826
      %v4870 = vunpack.c.h.b16 %v4826
      %v4871 = vunpack.c.l.b16 %v4827
      %v4872 = vunpack.c.h.b16 %v4827
      %v4873 = vunpack.c.l.b16 %v4828
      %v4874 = vunpack.c.h.b16 %v4828
      %v4875 = vunpack.c.l.b16 %v4829
      %v4876 = vunpack.c.h.b16 %v4829
      %v4877 = vunpack.c.l.b16 %v4830
      %v4878 = vunpack.c.h.b16 %v4830
      %v4879 = vpack.c.b16 %v4849, %v4847
      %v4880 = vpack.c.b16 %v4850, %v4848
      %v4881 = vpack.c.b16 %v4853, %v4851
      %v4882 = vpack.c.b16 %v4854, %v4852
      %v4883 = vpack.c.b16 %v4857, %v4855
      %v4884 = vpack.c.b16 %v4858, %v4856
      %v4885 = vpack.c.b16 %v4861, %v4859
      %v4886 = vpack.c.b16 %v4862, %v4860
      %v4887 = vpack.c.b16 %v4865, %v4863
      %v4888 = vpack.c.b16 %v4866, %v4864
      %v4889 = vpack.c.b16 %v4869, %v4867
      %v4890 = vpack.c.b16 %v4870, %v4868
      %v4891 = vpack.c.b16 %v4873, %v4871
      %v4892 = vpack.c.b16 %v4874, %v4872
      %v4893 = vpack.c.b16 %v4877, %v4875
      %v4894 = vpack.c.b16 %v4878, %v4876
      %4911 = vmatprep.subr.bf16.mxu0 %v4894
      %4912 = vmatpush1.bf16.msra.mxu0 %v4893
      %4913 = vmatprep.subr.bf16.mxu0 %v4892
      %4914 = vmatpush1.bf16.msra.mxu0 %v4891
      %4915 = vmatprep.subr.bf16.mxu0 %v4890
      %4916 = vmatpush1.bf16.msra.mxu0 %v4889
      %4917 = vmatprep.subr.bf16.mxu0 %v4888
      %4918 = vmatpush1.bf16.msra.mxu0 %v4887
      %4919 = vmatprep.subr.bf16.mxu0 %v4886
      %4920 = vmatpush1.bf16.msra.mxu0 %v4885
      %4921 = vmatprep.subr.bf16.mxu0 %v4884
      %4922 = vmatpush1.bf16.msra.mxu0 %v4883
      %4923 = vmatprep.subr.bf16.mxu0 %v4882
      %4924 = vmatpush1.bf16.msra.mxu0 %v4881
      %4925 = vmatprep.subr.bf16.mxu0 %v4880
      %4926 = vmatpush1.bf16.msra.mxu0 %v4879
      %4927 = vmatprep.subr.bf16.mxu0 0
      %4928 = vmatpush2.bf16.msra.mxu0 0
      %4929 = vmatprep.subr.bf16.mxu0 0
      %4930 = vmatpush2.bf16.msra.mxu0 0
      %4931 = vmatprep.subr.bf16.mxu0 0
      %4932 = vmatpush2.bf16.msra.mxu0 0
      %4933 = vmatprep.subr.bf16.mxu0 0
      %4934 = vmatpush2.bf16.msra.mxu0 0
      %4935 = vmatprep.subr.bf16.mxu0 0
      %4936 = vmatpush2.bf16.msra.mxu0 0
      %4937 = vmatprep.subr.bf16.mxu0 0
      %4938 = vmatpush2.bf16.msra.mxu0 0
      %4939 = vmatprep.subr.bf16.mxu0 0
      %4940 = vmatpush2.bf16.msra.mxu0 0
      %4941 = vmatprep.subr.bf16.mxu0 0
      %4942 = vmatpush2.bf16.msra.mxu0 0
      %4943 = vmatprep.mubr.bf16.mxu0 0
      %4944 = vmatmul.mubr.bf16.gmra.mxu0 %v4813
      %v4945 = vpop.f32.mrf.mxu0
      %v4946 = vadd.f32 0.0, %v4945
      %v4947 = vpop.f32.mrf.mxu0
      %v4948 = vadd.f32 0.0, %v4947
      %v4949 = vpop.f32.mrf.mxu0
      %v4950 = vadd.f32 0.0, %v4949
      %v4951 = vpop.f32.mrf.mxu0
      %v4952 = vadd.f32 0.0, %v4951
      %4953 = vdwg.mxu0
      %v4954 = vadd.f32 %v4757, %v4946
      %v4955 = vadd.f32 %v4758, %v4948
      %v4956 = vadd.f32 %v4759, %v4950
      %v4957 = vadd.f32 %v4760, %v4952
      %s4958 = scalar_lea.vmem %s6, 64
      %v4959 = vld [vmem:[%s4958] sm:$0xf]
      %v4960 = vld [vmem:[%s4958 + $0x4] sm:$0xf]
      %v4963 = vunpack.c.l.b16 %v4959
      %v4964 = vunpack.c.l.b16 %v4960
      %v4965 = vpack.c.b16 %v4964, %v4963
      %v4967 = vsel %vm836, %v4965, 0
      %4969 = vmatprep.subr.bf16.mxu0 0
      %4970 = vmatpush1.bf16.msra.mxu0 0
      %4971 = vmatprep.subr.bf16.mxu0 0
      %4972 = vmatpush1.bf16.msra.mxu0 0
      %4973 = vmatprep.subr.bf16.mxu0 0
      %4974 = vmatpush1.bf16.msra.mxu0 0
      %4975 = vmatprep.subr.bf16.mxu0 0
      %4976 = vmatpush1.bf16.msra.mxu0 0
      %4977 = vmatprep.subr.bf16.mxu0 0
      %4978 = vmatpush1.bf16.msra.mxu0 %v3391
      %4979 = vmatprep.subr.bf16.mxu0 0
      %4980 = vmatpush1.bf16.msra.mxu0 %v3390
      %4981 = vmatprep.subr.bf16.mxu0 0
      %4982 = vmatpush1.bf16.msra.mxu0 %v3389
      %4983 = vmatprep.subr.bf16.mxu0 0
      %4984 = vmatpush1.bf16.msra.mxu0 %v3388
      %4985 = vmatprep.subr.bf16.mxu0 0
      %4986 = vmatpush2.bf16.msra.mxu0 0
      %4987 = vmatprep.subr.bf16.mxu0 0
      %4988 = vmatpush2.bf16.msra.mxu0 0
      %4989 = vmatprep.subr.bf16.mxu0 0
      %4990 = vmatpush2.bf16.msra.mxu0 0
      %4991 = vmatprep.subr.bf16.mxu0 0
      %4992 = vmatpush2.bf16.msra.mxu0 0
      %4993 = vmatprep.subr.bf16.mxu0 0
      %4994 = vmatpush2.bf16.msra.mxu0 0
      %4995 = vmatprep.subr.bf16.mxu0 0
      %4996 = vmatpush2.bf16.msra.mxu0 0
      %4997 = vmatprep.subr.bf16.mxu0 0
      %4998 = vmatpush2.bf16.msra.mxu0 0
      %4999 = vmatprep.subr.bf16.mxu0 0
      %5000 = vmatpush2.bf16.msra.mxu0 0
      %5001 = vmatprep.mubr.bf16.mxu0 0
      %5002 = vmatmul.mubr.bf16.gmra.mxu0 %v4967
      %v5003 = vpop.f32.mrf.mxu0
      %v5004 = vadd.f32 0.0, %v5003
      %v5005 = vpop.f32.mrf.mxu0
      %v5006 = vpop.f32.mrf.mxu0
      %v5007 = vadd.f32 0.0, %v5006
      %v5008 = vpop.f32.mrf.mxu0
      %5009 = vdwg.mxu0
      %v5010 = vpack.c.bf16 %v5007, %v5004
      %s5011 = scalar_lea.vmem %s7, 1024
      %v5012 = vld [vmem:[%s5011] sm:$0xff]
      %v5013 = vld [vmem:[%s5011 + $0x8] sm:$0xff]
      %v5014 = vld [vmem:[%s5011 + $0x10] sm:$0xff]
      %v5015 = vld [vmem:[%s5011 + $0x18] sm:$0xff]
      %v5016 = vld [vmem:[%s5011 + $0x20] sm:$0xff]
      %v5017 = vld [vmem:[%s5011 + $0x28] sm:$0xff]
      %v5018 = vld [vmem:[%s5011 + $0x30] sm:$0xff]
      %v5019 = vld [vmem:[%s5011 + $0x38] sm:$0xff]
      %v5020 = vld [vmem:[%s5011 + $0x40] sm:$0xff]
      %v5021 = vld [vmem:[%s5011 + $0x48] sm:$0xff]
      %v5022 = vld [vmem:[%s5011 + $0x50] sm:$0xff]
      %v5023 = vld [vmem:[%s5011 + $0x58] sm:$0xff]
      %v5024 = vld [vmem:[%s5011 + $0x60] sm:$0xff]
      %v5025 = vld [vmem:[%s5011 + $0x68] sm:$0xff]
      %v5026 = vld [vmem:[%s5011 + $0x70] sm:$0xff]
      %v5027 = vld [vmem:[%s5011 + $0x78] sm:$0xff]
      %v5044 = vunpack.c.l.b16 %v5012
      %v5045 = vunpack.c.h.b16 %v5012
      %v5046 = vunpack.c.l.b16 %v5013
      %v5047 = vunpack.c.h.b16 %v5013
      %v5048 = vunpack.c.l.b16 %v5014
      %v5049 = vunpack.c.h.b16 %v5014
      %v5050 = vunpack.c.l.b16 %v5015
      %v5051 = vunpack.c.h.b16 %v5015
      %v5052 = vunpack.c.l.b16 %v5016
      %v5053 = vunpack.c.h.b16 %v5016
      %v5054 = vunpack.c.l.b16 %v5017
      %v5055 = vunpack.c.h.b16 %v5017
      %v5056 = vunpack.c.l.b16 %v5018
      %v5057 = vunpack.c.h.b16 %v5018
      %v5058 = vunpack.c.l.b16 %v5019
      %v5059 = vunpack.c.h.b16 %v5019
      %v5060 = vunpack.c.l.b16 %v5020
      %v5061 = vunpack.c.h.b16 %v5020
      %v5062 = vunpack.c.l.b16 %v5021
      %v5063 = vunpack.c.h.b16 %v5021
      %v5064 = vunpack.c.l.b16 %v5022
      %v5065 = vunpack.c.h.b16 %v5022
      %v5066 = vunpack.c.l.b16 %v5023
      %v5067 = vunpack.c.h.b16 %v5023
      %v5068 = vunpack.c.l.b16 %v5024
      %v5069 = vunpack.c.h.b16 %v5024
      %v5070 = vunpack.c.l.b16 %v5025
      %v5071 = vunpack.c.h.b16 %v5025
      %v5072 = vunpack.c.l.b16 %v5026
      %v5073 = vunpack.c.h.b16 %v5026
      %v5074 = vunpack.c.l.b16 %v5027
      %v5075 = vunpack.c.h.b16 %v5027
      %v5076 = vpack.c.b16 %v5046, %v5044
      %v5077 = vpack.c.b16 %v5047, %v5045
      %v5078 = vpack.c.b16 %v5050, %v5048
      %v5079 = vpack.c.b16 %v5051, %v5049
      %v5080 = vpack.c.b16 %v5054, %v5052
      %v5081 = vpack.c.b16 %v5055, %v5053
      %v5082 = vpack.c.b16 %v5058, %v5056
      %v5083 = vpack.c.b16 %v5059, %v5057
      %v5084 = vpack.c.b16 %v5062, %v5060
      %v5085 = vpack.c.b16 %v5063, %v5061
      %v5086 = vpack.c.b16 %v5066, %v5064
      %v5087 = vpack.c.b16 %v5067, %v5065
      %v5088 = vpack.c.b16 %v5070, %v5068
      %v5089 = vpack.c.b16 %v5071, %v5069
      %v5090 = vpack.c.b16 %v5074, %v5072
      %v5091 = vpack.c.b16 %v5075, %v5073
      %5108 = vmatprep.subr.bf16.mxu0 %v5091
      %5109 = vmatpush1.bf16.msra.mxu0 %v5090
      %5110 = vmatprep.subr.bf16.mxu0 %v5089
      %5111 = vmatpush1.bf16.msra.mxu0 %v5088
      %5112 = vmatprep.subr.bf16.mxu0 %v5087
      %5113 = vmatpush1.bf16.msra.mxu0 %v5086
      %5114 = vmatprep.subr.bf16.mxu0 %v5085
      %5115 = vmatpush1.bf16.msra.mxu0 %v5084
      %5116 = vmatprep.subr.bf16.mxu0 %v5083
      %5117 = vmatpush1.bf16.msra.mxu0 %v5082
      %5118 = vmatprep.subr.bf16.mxu0 %v5081
      %5119 = vmatpush1.bf16.msra.mxu0 %v5080
      %5120 = vmatprep.subr.bf16.mxu0 %v5079
      %5121 = vmatpush1.bf16.msra.mxu0 %v5078
      %5122 = vmatprep.subr.bf16.mxu0 %v5077
      %5123 = vmatpush1.bf16.msra.mxu0 %v5076
      %5124 = vmatprep.subr.bf16.mxu0 0
      %5125 = vmatpush2.bf16.msra.mxu0 0
      %5126 = vmatprep.subr.bf16.mxu0 0
      %5127 = vmatpush2.bf16.msra.mxu0 0
      %5128 = vmatprep.subr.bf16.mxu0 0
      %5129 = vmatpush2.bf16.msra.mxu0 0
      %5130 = vmatprep.subr.bf16.mxu0 0
      %5131 = vmatpush2.bf16.msra.mxu0 0
      %5132 = vmatprep.subr.bf16.mxu0 0
      %5133 = vmatpush2.bf16.msra.mxu0 0
      %5134 = vmatprep.subr.bf16.mxu0 0
      %5135 = vmatpush2.bf16.msra.mxu0 0
      %5136 = vmatprep.subr.bf16.mxu0 0
      %5137 = vmatpush2.bf16.msra.mxu0 0
      %5138 = vmatprep.subr.bf16.mxu0 0
      %5139 = vmatpush2.bf16.msra.mxu0 0
      %5140 = vmatprep.mubr.bf16.mxu0 0
      %5141 = vmatmul.mubr.bf16.gmra.mxu0 %v5010
      %v5142 = vpop.f32.mrf.mxu0
      %v5143 = vadd.f32 0.0, %v5142
      %v5144 = vpop.f32.mrf.mxu0
      %v5145 = vadd.f32 0.0, %v5144
      %v5146 = vpop.f32.mrf.mxu0
      %v5147 = vadd.f32 0.0, %v5146
      %v5148 = vpop.f32.mrf.mxu0
      %v5149 = vadd.f32 0.0, %v5148
      %5150 = vdwg.mxu0
      %v5151 = vadd.f32 %v4954, %v5143
      %v5152 = vadd.f32 %v4955, %v5145
      %v5153 = vadd.f32 %v4956, %v5147
      %v5154 = vadd.f32 %v4957, %v5149
      %v5155 = vld [vmem:[%s8] sm:$0x3]
      %v5157 = vlaneseq
      %v5158 = vshrl.u32 %v5157, 7
      %v5159 = vsub.s32 0, %v5158
      %v5160 = vrot.slane %v5155, %v5159
      %v5161 = vlaneseq
      %v5162 = vshrl.u32 %v5161, 7
      %v5163 = vsub.s32 1, %v5162
      %v5164 = vrot.slane %v5155, %v5163
      %v5167 = vadd.f32 %v5151, %v5160
      %v5168 = vadd.f32 %v5152, %v5164
      %v5169 = vadd.f32 %v5153, %v5160
      %v5170 = vadd.f32 %v5154, %v5164
      %v5171 = vadd.f32 %v5167, %v5169
      %v5172 = vrot.slane %v5171, 4
      %v5173 = vadd.f32 %v5171, %v5172
      %v5174 = vrot.slane %v5173, 2
      %v5175 = vadd.f32 %v5173, %v5174
      %v5176 = vrot.slane %v5175, 1
      %v5177 = vadd.f32 %v5175, %v5176
      %v5178 = vadd.f32 %v5168, %v5170
      %v5179 = vrot.slane %v5178, 4
      %v5180 = vadd.f32 %v5178, %v5179
      %v5181 = vrot.slane %v5180, 2
      %v5182 = vadd.f32 %v5180, %v5181
      %v5183 = vrot.slane %v5182, 1
      %v5184 = vadd.f32 %v5182, %v5183
      %v5185 = vrcp.pop 16.0
      %v5186 = vmul.f32 %v5177, %v5185
      %v5187 = vmul.f32 %v5184, %v5185
      %v5188 = vsub.f32 %v5167, %v5186
      %v5189 = vsub.f32 %v5168, %v5187
      %v5190 = vsub.f32 %v5169, %v5186
      %v5191 = vsub.f32 %v5170, %v5187
      %v5192 = vmul.f32 %v5188, %v5188
      %v5193 = vmul.f32 %v5189, %v5189
      %v5194 = vmul.f32 %v5190, %v5190
      %v5195 = vmul.f32 %v5191, %v5191
      %v5196 = vadd.f32 %v5192, %v5194
      %v5197 = vrot.slane %v5196, 4
      %v5198 = vadd.f32 %v5196, %v5197
      %v5199 = vrot.slane %v5198, 2
      %v5200 = vadd.f32 %v5198, %v5199
      %v5201 = vrot.slane %v5200, 1
      %v5202 = vadd.f32 %v5200, %v5201
      %v5203 = vadd.f32 %v5193, %v5195
      %v5204 = vrot.slane %v5203, 4
      %v5205 = vadd.f32 %v5203, %v5204
      %v5206 = vrot.slane %v5205, 2
      %v5207 = vadd.f32 %v5205, %v5206
      %v5208 = vrot.slane %v5207, 1
      %v5209 = vadd.f32 %v5207, %v5208
      %v5210 = vmul.f32 %v5202, %v5185
      %v5211 = vmul.f32 %v5209, %v5185
      %v5212 = vadd.f32 %v5210, 1e-05
      %v5213 = vadd.f32 %v5211, 1e-05
      %v5214 = vrsqrt.pop %v5212
      %v5215 = vrsqrt.pop %v5213
      %v5216 = vmul.f32 %v5188, %v5214
      %v5217 = vmul.f32 %v5189, %v5215
      %v5218 = vmul.f32 %v5190, %v5214
      %v5219 = vmul.f32 %v5191, %v5215
      %vm5220 = vcmp.ge.f32.partialorder %v5216, 0.0
      %vm5221 = vcmp.ge.f32.partialorder %v5217, 0.0
      %vm5222 = vcmp.ge.f32.partialorder %v5218, 0.0
      %vm5223 = vcmp.ge.f32.partialorder %v5219, 0.0
      %v5224 = vmul.f32 %v5216, 0.2
      %v5225 = vmul.f32 %v5217, 0.2
      %v5226 = vmul.f32 %v5218, 0.2
      %v5227 = vmul.f32 %v5219, 0.2
      %v5228 = vsel %vm5220, %v5216, %v5224
      %v5229 = vsel %vm5221, %v5217, %v5225
      %v5230 = vsel %vm5222, %v5218, %v5226
      %v5231 = vsel %vm5223, %v5219, %v5227
      %v5232 = vpack.c.bf16 %v5230, %v5228
      %v5233 = vpack.c.bf16 %v5231, %v5229
      %v5234 = vld [vmem:[%s9] sm:$0x3]
      %vm5235 = vcmask 130048
      %v5237 = vsel %vm5235, %v5234, 0
      %5239 = vmatprep.subr.bf16.mxu0 0
      %5240 = vmatpush1.bf16.msra.mxu0 0
      %5241 = vmatprep.subr.bf16.mxu0 0
      %5242 = vmatpush1.bf16.msra.mxu0 0
      %5243 = vmatprep.subr.bf16.mxu0 0
      %5244 = vmatpush1.bf16.msra.mxu0 0
      %5245 = vmatprep.subr.bf16.mxu0 0
      %5246 = vmatpush1.bf16.msra.mxu0 0
      %5247 = vmatprep.subr.bf16.mxu0 0
      %5248 = vmatpush1.bf16.msra.mxu0 0
      %5249 = vmatprep.subr.bf16.mxu0 0
      %5250 = vmatpush1.bf16.msra.mxu0 0
      %5251 = vmatprep.subr.bf16.mxu0 0
      %5252 = vmatpush1.bf16.msra.mxu0 0
      %5253 = vmatprep.subr.bf16.mxu0 %v5233
      %5254 = vmatpush1.bf16.msra.mxu0 %v5232
      %5255 = vmatprep.subr.bf16.mxu0 0
      %5256 = vmatpush2.bf16.msra.mxu0 0
      %5257 = vmatprep.subr.bf16.mxu0 0
      %5258 = vmatpush2.bf16.msra.mxu0 0
      %5259 = vmatprep.subr.bf16.mxu0 0
      %5260 = vmatpush2.bf16.msra.mxu0 0
      %5261 = vmatprep.subr.bf16.mxu0 0
      %5262 = vmatpush2.bf16.msra.mxu0 0
      %5263 = vmatprep.subr.bf16.mxu0 0
      %5264 = vmatpush2.bf16.msra.mxu0 0
      %5265 = vmatprep.subr.bf16.mxu0 0
      %5266 = vmatpush2.bf16.msra.mxu0 0
      %5267 = vmatprep.subr.bf16.mxu0 0
      %5268 = vmatpush2.bf16.msra.mxu0 0
      %5269 = vmatprep.subr.bf16.mxu0 0
      %5270 = vmatpush2.bf16.msra.mxu0 0
      %5271 = vmatprep.mubr.bf16.mxu0 0
      %5272 = vmatmul.mubr.bf16.gmra.mxu0 %v5237
      %v5273 = vpop.f32.mrf.mxu0
      %v5274 = vadd.f32 0.0, %v5273
      %v5275 = vpop.f32.mrf.mxu0
      %v5276 = vadd.f32 0.0, %v5275
      %v5277 = vpop.f32.mrf.mxu0
      %v5278 = vpop.f32.mrf.mxu0
      %5279 = vdwg.mxu0
      %v5280 = vpack.c.bf16 %v5274, %v5274
      %v5281 = vpack.c.bf16 %v5276, %v5276
      %v5282 = vld [vmem:[%s10] sm:$0xff]
      %v5283 = vld [vmem:[%s10 + $0x8] sm:$0xff]
      %v5284 = vld [vmem:[%s10 + $0x10] sm:$0xff]
      %v5285 = vld [vmem:[%s10 + $0x18] sm:$0xff]
      %v5286 = vld [vmem:[%s10 + $0x20] sm:$0xff]
      %v5287 = vld [vmem:[%s10 + $0x28] sm:$0xff]
      %v5288 = vld [vmem:[%s10 + $0x30] sm:$0xff]
      %v5289 = vld [vmem:[%s10 + $0x38] sm:$0xff]
      %v5290 = vld [vmem:[%s10 + $0x40] sm:$0xff]
      %v5291 = vld [vmem:[%s10 + $0x48] sm:$0xff]
      %v5292 = vld [vmem:[%s10 + $0x50] sm:$0xff]
      %v5293 = vld [vmem:[%s10 + $0x58] sm:$0xff]
      %v5294 = vld [vmem:[%s10 + $0x60] sm:$0xff]
      %v5295 = vld [vmem:[%s10 + $0x68] sm:$0xff]
      %v5296 = vld [vmem:[%s10 + $0x70] sm:$0xff]
      %v5297 = vld [vmem:[%s10 + $0x78] sm:$0xff]
      %v5298 = vld [vmem:[%s10 + $0x80] sm:$0xff]
      %v5299 = vld [vmem:[%s10 + $0x88] sm:$0xff]
      %v5300 = vld [vmem:[%s10 + $0x90] sm:$0xff]
      %v5301 = vld [vmem:[%s10 + $0x98] sm:$0xff]
      %v5302 = vld [vmem:[%s10 + $0xa0] sm:$0xff]
      %v5303 = vld [vmem:[%s10 + $0xa8] sm:$0xff]
      %v5304 = vld [vmem:[%s10 + $0xb0] sm:$0xff]
      %v5305 = vld [vmem:[%s10 + $0xb8] sm:$0xff]
      %v5306 = vld [vmem:[%s10 + $0xc0] sm:$0xff]
      %v5307 = vld [vmem:[%s10 + $0xc8] sm:$0xff]
      %v5308 = vld [vmem:[%s10 + $0xd0] sm:$0xff]
      %v5309 = vld [vmem:[%s10 + $0xd8] sm:$0xff]
      %v5310 = vld [vmem:[%s10 + $0xe0] sm:$0xff]
      %v5311 = vld [vmem:[%s10 + $0xe8] sm:$0xff]
      %v5312 = vld [vmem:[%s10 + $0xf0] sm:$0xff]
      %v5313 = vld [vmem:[%s10 + $0xf8] sm:$0xff]
      %v5314 = vld [vmem:[%s10 + $0x100] sm:$0xff]
      %v5315 = vld [vmem:[%s10 + $0x108] sm:$0xff]
      %v5316 = vld [vmem:[%s10 + $0x110] sm:$0xff]
      %v5317 = vld [vmem:[%s10 + $0x118] sm:$0xff]
      %v5318 = vld [vmem:[%s10 + $0x120] sm:$0xff]
      %v5319 = vld [vmem:[%s10 + $0x128] sm:$0xff]
      %v5320 = vld [vmem:[%s10 + $0x130] sm:$0xff]
      %v5321 = vld [vmem:[%s10 + $0x138] sm:$0xff]
      %v5322 = vld [vmem:[%s10 + $0x140] sm:$0xff]
      %v5323 = vld [vmem:[%s10 + $0x148] sm:$0xff]
      %v5324 = vld [vmem:[%s10 + $0x150] sm:$0xff]
      %v5325 = vld [vmem:[%s10 + $0x158] sm:$0xff]
      %v5326 = vld [vmem:[%s10 + $0x160] sm:$0xff]
      %v5327 = vld [vmem:[%s10 + $0x168] sm:$0xff]
      %v5328 = vld [vmem:[%s10 + $0x170] sm:$0xff]
      %v5329 = vld [vmem:[%s10 + $0x178] sm:$0xff]
      %v5330 = vld [vmem:[%s10 + $0x180] sm:$0xff]
      %v5331 = vld [vmem:[%s10 + $0x188] sm:$0xff]
      %v5332 = vld [vmem:[%s10 + $0x190] sm:$0xff]
      %v5333 = vld [vmem:[%s10 + $0x198] sm:$0xff]
      %v5334 = vld [vmem:[%s10 + $0x1a0] sm:$0xff]
      %v5335 = vld [vmem:[%s10 + $0x1a8] sm:$0xff]
      %v5336 = vld [vmem:[%s10 + $0x1b0] sm:$0xff]
      %v5337 = vld [vmem:[%s10 + $0x1b8] sm:$0xff]
      %v5338 = vld [vmem:[%s10 + $0x1c0] sm:$0xff]
      %v5339 = vld [vmem:[%s10 + $0x1c8] sm:$0xff]
      %v5340 = vld [vmem:[%s10 + $0x1d0] sm:$0xff]
      %v5341 = vld [vmem:[%s10 + $0x1d8] sm:$0xff]
      %v5342 = vld [vmem:[%s10 + $0x1e0] sm:$0xff]
      %v5343 = vld [vmem:[%s10 + $0x1e8] sm:$0xff]
      %v5344 = vld [vmem:[%s10 + $0x1f0] sm:$0xff]
      %v5345 = vld [vmem:[%s10 + $0x1f8] sm:$0xff]
      %s5346 = scalar_lea.vmem %s9, 2
      %v5347 = vld [vmem:[%s5346] sm:$0x3]
      %v5349 = vsel %vm5235, %v5347, 0
      %5351 = vmatprep.subr.bf16.mxu0 0
      %5352 = vmatpush1.bf16.msra.mxu0 0
      %5353 = vmatprep.subr.bf16.mxu0 0
      %5354 = vmatpush1.bf16.msra.mxu0 0
      %5355 = vmatprep.subr.bf16.mxu0 0
      %5356 = vmatpush1.bf16.msra.mxu0 0
      %5357 = vmatprep.subr.bf16.mxu0 0
      %5358 = vmatpush1.bf16.msra.mxu0 0
      %5359 = vmatprep.subr.bf16.mxu0 0
      %5360 = vmatpush1.bf16.msra.mxu0 0
      %5361 = vmatprep.subr.bf16.mxu0 0
      %5362 = vmatpush1.bf16.msra.mxu0 0
      %5363 = vmatprep.subr.bf16.mxu0 0
      %5364 = vmatpush1.bf16.msra.mxu0 0
      %5365 = vmatprep.subr.bf16.mxu0 %v5233
      %5366 = vmatpush1.bf16.msra.mxu0 %v5232
      %5367 = vmatprep.subr.bf16.mxu0 0
      %5368 = vmatpush2.bf16.msra.mxu0 0
      %5369 = vmatprep.subr.bf16.mxu0 0
      %5370 = vmatpush2.bf16.msra.mxu0 0
      %5371 = vmatprep.subr.bf16.mxu0 0
      %5372 = vmatpush2.bf16.msra.mxu0 0
      %5373 = vmatprep.subr.bf16.mxu0 0
      %5374 = vmatpush2.bf16.msra.mxu0 0
      %5375 = vmatprep.subr.bf16.mxu0 0
      %5376 = vmatpush2.bf16.msra.mxu0 0
      %5377 = vmatprep.subr.bf16.mxu0 0
      %5378 = vmatpush2.bf16.msra.mxu0 0
      %5379 = vmatprep.subr.bf16.mxu0 0
      %5380 = vmatpush2.bf16.msra.mxu0 0
      %5381 = vmatprep.subr.bf16.mxu0 0
      %5382 = vmatpush2.bf16.msra.mxu0 0
      %5383 = vmatprep.mubr.bf16.mxu0 0
      %5384 = vmatmul.mubr.bf16.gmra.mxu0 %v5349
      %v5385 = vpop.f32.mrf.mxu0
      %v5386 = vadd.f32 0.0, %v5385
      %v5387 = vpop.f32.mrf.mxu0
      %v5388 = vadd.f32 0.0, %v5387
      %v5389 = vpop.f32.mrf.mxu0
      %v5390 = vpop.f32.mrf.mxu0
      %5391 = vdwg.mxu0
      %v5392 = vpack.c.bf16 %v5386, %v5386
      %v5393 = vpack.c.bf16 %v5388, %v5388
      %s5394 = scalar_lea.vmem %s10, 512
      %v5395 = vld [vmem:[%s5394] sm:$0xff]
      %v5396 = vld [vmem:[%s5394 + $0x8] sm:$0xff]
      %v5397 = vld [vmem:[%s5394 + $0x10] sm:$0xff]
      %v5398 = vld [vmem:[%s5394 + $0x18] sm:$0xff]
      %v5399 = vld [vmem:[%s5394 + $0x20] sm:$0xff]
      %v5400 = vld [vmem:[%s5394 + $0x28] sm:$0xff]
      %v5401 = vld [vmem:[%s5394 + $0x30] sm:$0xff]
      %v5402 = vld [vmem:[%s5394 + $0x38] sm:$0xff]
      %v5403 = vld [vmem:[%s5394 + $0x40] sm:$0xff]
      %v5404 = vld [vmem:[%s5394 + $0x48] sm:$0xff]
      %v5405 = vld [vmem:[%s5394 + $0x50] sm:$0xff]
      %v5406 = vld [vmem:[%s5394 + $0x58] sm:$0xff]
      %v5407 = vld [vmem:[%s5394 + $0x60] sm:$0xff]
      %v5408 = vld [vmem:[%s5394 + $0x68] sm:$0xff]
      %v5409 = vld [vmem:[%s5394 + $0x70] sm:$0xff]
      %v5410 = vld [vmem:[%s5394 + $0x78] sm:$0xff]
      %v5411 = vld [vmem:[%s5394 + $0x80] sm:$0xff]
      %v5412 = vld [vmem:[%s5394 + $0x88] sm:$0xff]
      %v5413 = vld [vmem:[%s5394 + $0x90] sm:$0xff]
      %v5414 = vld [vmem:[%s5394 + $0x98] sm:$0xff]
      %v5415 = vld [vmem:[%s5394 + $0xa0] sm:$0xff]
      %v5416 = vld [vmem:[%s5394 + $0xa8] sm:$0xff]
      %v5417 = vld [vmem:[%s5394 + $0xb0] sm:$0xff]
      %v5418 = vld [vmem:[%s5394 + $0xb8] sm:$0xff]
      %v5419 = vld [vmem:[%s5394 + $0xc0] sm:$0xff]
      %v5420 = vld [vmem:[%s5394 + $0xc8] sm:$0xff]
      %v5421 = vld [vmem:[%s5394 + $0xd0] sm:$0xff]
      %v5422 = vld [vmem:[%s5394 + $0xd8] sm:$0xff]
      %v5423 = vld [vmem:[%s5394 + $0xe0] sm:$0xff]
      %v5424 = vld [vmem:[%s5394 + $0xe8] sm:$0xff]
      %v5425 = vld [vmem:[%s5394 + $0xf0] sm:$0xff]
      %v5426 = vld [vmem:[%s5394 + $0xf8] sm:$0xff]
      %v5427 = vld [vmem:[%s5394 + $0x100] sm:$0xff]
      %v5428 = vld [vmem:[%s5394 + $0x108] sm:$0xff]
      %v5429 = vld [vmem:[%s5394 + $0x110] sm:$0xff]
      %v5430 = vld [vmem:[%s5394 + $0x118] sm:$0xff]
      %v5431 = vld [vmem:[%s5394 + $0x120] sm:$0xff]
      %v5432 = vld [vmem:[%s5394 + $0x128] sm:$0xff]
      %v5433 = vld [vmem:[%s5394 + $0x130] sm:$0xff]
      %v5434 = vld [vmem:[%s5394 + $0x138] sm:$0xff]
      %v5435 = vld [vmem:[%s5394 + $0x140] sm:$0xff]
      %v5436 = vld [vmem:[%s5394 + $0x148] sm:$0xff]
      %v5437 = vld [vmem:[%s5394 + $0x150] sm:$0xff]
      %v5438 = vld [vmem:[%s5394 + $0x158] sm:$0xff]
      %v5439 = vld [vmem:[%s5394 + $0x160] sm:$0xff]
      %v5440 = vld [vmem:[%s5394 + $0x168] sm:$0xff]
      %v5441 = vld [vmem:[%s5394 + $0x170] sm:$0xff]
      %v5442 = vld [vmem:[%s5394 + $0x178] sm:$0xff]
      %v5443 = vld [vmem:[%s5394 + $0x180] sm:$0xff]
      %v5444 = vld [vmem:[%s5394 + $0x188] sm:$0xff]
      %v5445 = vld [vmem:[%s5394 + $0x190] sm:$0xff]
      %v5446 = vld [vmem:[%s5394 + $0x198] sm:$0xff]
      %v5447 = vld [vmem:[%s5394 + $0x1a0] sm:$0xff]
      %v5448 = vld [vmem:[%s5394 + $0x1a8] sm:$0xff]
      %v5449 = vld [vmem:[%s5394 + $0x1b0] sm:$0xff]
      %v5450 = vld [vmem:[%s5394 + $0x1b8] sm:$0xff]
      %v5451 = vld [vmem:[%s5394 + $0x1c0] sm:$0xff]
      %v5452 = vld [vmem:[%s5394 + $0x1c8] sm:$0xff]
      %v5453 = vld [vmem:[%s5394 + $0x1d0] sm:$0xff]
      %v5454 = vld [vmem:[%s5394 + $0x1d8] sm:$0xff]
      %v5455 = vld [vmem:[%s5394 + $0x1e0] sm:$0xff]
      %v5456 = vld [vmem:[%s5394 + $0x1e8] sm:$0xff]
      %v5457 = vld [vmem:[%s5394 + $0x1f0] sm:$0xff]
      %v5458 = vld [vmem:[%s5394 + $0x1f8] sm:$0xff]
      %v5523 = vunpack.c.l.b16 %v5395
      %v5524 = vunpack.c.h.b16 %v5395
      %v5525 = vunpack.c.l.b16 %v5396
      %v5526 = vunpack.c.h.b16 %v5396
      %v5527 = vunpack.c.l.b16 %v5397
      %v5528 = vunpack.c.h.b16 %v5397
      %v5529 = vunpack.c.l.b16 %v5398
      %v5530 = vunpack.c.h.b16 %v5398
      %v5531 = vunpack.c.l.b16 %v5399
      %v5532 = vunpack.c.h.b16 %v5399
      %v5533 = vunpack.c.l.b16 %v5400
      %v5534 = vunpack.c.h.b16 %v5400
      %v5535 = vunpack.c.l.b16 %v5401
      %v5536 = vunpack.c.h.b16 %v5401
      %v5537 = vunpack.c.l.b16 %v5402
      %v5538 = vunpack.c.h.b16 %v5402
      %v5539 = vunpack.c.l.b16 %v5403
      %v5540 = vunpack.c.h.b16 %v5403
      %v5541 = vunpack.c.l.b16 %v5404
      %v5542 = vunpack.c.h.b16 %v5404
      %v5543 = vunpack.c.l.b16 %v5405
      %v5544 = vunpack.c.h.b16 %v5405
      %v5545 = vunpack.c.l.b16 %v5406
      %v5546 = vunpack.c.h.b16 %v5406
      %v5547 = vunpack.c.l.b16 %v5407
      %v5548 = vunpack.c.h.b16 %v5407
      %v5549 = vunpack.c.l.b16 %v5408
      %v5550 = vunpack.c.h.b16 %v5408
      %v5551 = vunpack.c.l.b16 %v5409
      %v5552 = vunpack.c.h.b16 %v5409
      %v5553 = vunpack.c.l.b16 %v5410
      %v5554 = vunpack.c.h.b16 %v5410
      %v5555 = vunpack.c.l.b16 %v5411
      %v5556 = vunpack.c.h.b16 %v5411
      %v5557 = vunpack.c.l.b16 %v5412
      %v5558 = vunpack.c.h.b16 %v5412
      %v5559 = vunpack.c.l.b16 %v5413
      %v5560 = vunpack.c.h.b16 %v5413
      %v5561 = vunpack.c.l.b16 %v5414
      %v5562 = vunpack.c.h.b16 %v5414
      %v5563 = vunpack.c.l.b16 %v5415
      %v5564 = vunpack.c.h.b16 %v5415
      %v5565 = vunpack.c.l.b16 %v5416
      %v5566 = vunpack.c.h.b16 %v5416
      %v5567 = vunpack.c.l.b16 %v5417
      %v5568 = vunpack.c.h.b16 %v5417
      %v5569 = vunpack.c.l.b16 %v5418
      %v5570 = vunpack.c.h.b16 %v5418
      %v5571 = vunpack.c.l.b16 %v5419
      %v5572 = vunpack.c.h.b16 %v5419
      %v5573 = vunpack.c.l.b16 %v5420
      %v5574 = vunpack.c.h.b16 %v5420
      %v5575 = vunpack.c.l.b16 %v5421
      %v5576 = vunpack.c.h.b16 %v5421
      %v5577 = vunpack.c.l.b16 %v5422
      %v5578 = vunpack.c.h.b16 %v5422
      %v5579 = vunpack.c.l.b16 %v5423
      %v5580 = vunpack.c.h.b16 %v5423
      %v5581 = vunpack.c.l.b16 %v5424
      %v5582 = vunpack.c.h.b16 %v5424
      %v5583 = vunpack.c.l.b16 %v5425
      %v5584 = vunpack.c.h.b16 %v5425
      %v5585 = vunpack.c.l.b16 %v5426
      %v5586 = vunpack.c.h.b16 %v5426
      %v5587 = vunpack.c.l.b16 %v5427
      %v5588 = vunpack.c.h.b16 %v5427
      %v5589 = vunpack.c.l.b16 %v5428
      %v5590 = vunpack.c.h.b16 %v5428
      %v5591 = vunpack.c.l.b16 %v5429
      %v5592 = vunpack.c.h.b16 %v5429
      %v5593 = vunpack.c.l.b16 %v5430
      %v5594 = vunpack.c.h.b16 %v5430
      %v5595 = vunpack.c.l.b16 %v5431
      %v5596 = vunpack.c.h.b16 %v5431
      %v5597 = vunpack.c.l.b16 %v5432
      %v5598 = vunpack.c.h.b16 %v5432
      %v5599 = vunpack.c.l.b16 %v5433
      %v5600 = vunpack.c.h.b16 %v5433
      %v5601 = vunpack.c.l.b16 %v5434
      %v5602 = vunpack.c.h.b16 %v5434
      %v5603 = vunpack.c.l.b16 %v5435
      %v5604 = vunpack.c.h.b16 %v5435
      %v5605 = vunpack.c.l.b16 %v5436
      %v5606 = vunpack.c.h.b16 %v5436
      %v5607 = vunpack.c.l.b16 %v5437
      %v5608 = vunpack.c.h.b16 %v5437
      %v5609 = vunpack.c.l.b16 %v5438
      %v5610 = vunpack.c.h.b16 %v5438
      %v5611 = vunpack.c.l.b16 %v5439
      %v5612 = vunpack.c.h.b16 %v5439
      %v5613 = vunpack.c.l.b16 %v5440
      %v5614 = vunpack.c.h.b16 %v5440
      %v5615 = vunpack.c.l.b16 %v5441
      %v5616 = vunpack.c.h.b16 %v5441
      %v5617 = vunpack.c.l.b16 %v5442
      %v5618 = vunpack.c.h.b16 %v5442
      %v5619 = vunpack.c.l.b16 %v5443
      %v5620 = vunpack.c.h.b16 %v5443
      %v5621 = vunpack.c.l.b16 %v5444
      %v5622 = vunpack.c.h.b16 %v5444
      %v5623 = vunpack.c.l.b16 %v5445
      %v5624 = vunpack.c.h.b16 %v5445
      %v5625 = vunpack.c.l.b16 %v5446
      %v5626 = vunpack.c.h.b16 %v5446
      %v5627 = vunpack.c.l.b16 %v5447
      %v5628 = vunpack.c.h.b16 %v5447
      %v5629 = vunpack.c.l.b16 %v5448
      %v5630 = vunpack.c.h.b16 %v5448
      %v5631 = vunpack.c.l.b16 %v5449
      %v5632 = vunpack.c.h.b16 %v5449
      %v5633 = vunpack.c.l.b16 %v5450
      %v5634 = vunpack.c.h.b16 %v5450
      %v5635 = vunpack.c.l.b16 %v5451
      %v5636 = vunpack.c.h.b16 %v5451
      %v5637 = vunpack.c.l.b16 %v5452
      %v5638 = vunpack.c.h.b16 %v5452
      %v5639 = vunpack.c.l.b16 %v5453
      %v5640 = vunpack.c.h.b16 %v5453
      %v5641 = vunpack.c.l.b16 %v5454
      %v5642 = vunpack.c.h.b16 %v5454
      %v5643 = vunpack.c.l.b16 %v5455
      %v5644 = vunpack.c.h.b16 %v5455
      %v5645 = vunpack.c.l.b16 %v5456
      %v5646 = vunpack.c.h.b16 %v5456
      %v5647 = vunpack.c.l.b16 %v5457
      %v5648 = vunpack.c.h.b16 %v5457
      %v5649 = vunpack.c.l.b16 %v5458
      %v5650 = vunpack.c.h.b16 %v5458
      %v5651 = vpack.c.b16 %v5527, %v5523
      %v5652 = vpack.c.b16 %v5528, %v5524
      %v5653 = vpack.c.b16 %v5529, %v5525
      %v5654 = vpack.c.b16 %v5530, %v5526
      %v5655 = vpack.c.b16 %v5535, %v5531
      %v5656 = vpack.c.b16 %v5536, %v5532
      %v5657 = vpack.c.b16 %v5537, %v5533
      %v5658 = vpack.c.b16 %v5538, %v5534
      %v5659 = vpack.c.b16 %v5543, %v5539
      %v5660 = vpack.c.b16 %v5544, %v5540
      %v5661 = vpack.c.b16 %v5545, %v5541
      %v5662 = vpack.c.b16 %v5546, %v5542
      %v5663 = vpack.c.b16 %v5551, %v5547
      %v5664 = vpack.c.b16 %v5552, %v5548
      %v5665 = vpack.c.b16 %v5553, %v5549
      %v5666 = vpack.c.b16 %v5554, %v5550
      %v5667 = vpack.c.b16 %v5559, %v5555
      %v5668 = vpack.c.b16 %v5560, %v5556
      %v5669 = vpack.c.b16 %v5561, %v5557
      %v5670 = vpack.c.b16 %v5562, %v5558
      %v5671 = vpack.c.b16 %v5567, %v5563
      %v5672 = vpack.c.b16 %v5568, %v5564
      %v5673 = vpack.c.b16 %v5569, %v5565
      %v5674 = vpack.c.b16 %v5570, %v5566
      %v5675 = vpack.c.b16 %v5575, %v5571
      %v5676 = vpack.c.b16 %v5576, %v5572
      %v5677 = vpack.c.b16 %v5577, %v5573
      %v5678 = vpack.c.b16 %v5578, %v5574
      %v5679 = vpack.c.b16 %v5583, %v5579
      %v5680 = vpack.c.b16 %v5584, %v5580
      %v5681 = vpack.c.b16 %v5585, %v5581
      %v5682 = vpack.c.b16 %v5586, %v5582
      %v5683 = vpack.c.b16 %v5591, %v5587
      %v5684 = vpack.c.b16 %v5592, %v5588
      %v5685 = vpack.c.b16 %v5593, %v5589
      %v5686 = vpack.c.b16 %v5594, %v5590
      %v5687 = vpack.c.b16 %v5599, %v5595
      %v5688 = vpack.c.b16 %v5600, %v5596
      %v5689 = vpack.c.b16 %v5601, %v5597
      %v5690 = vpack.c.b16 %v5602, %v5598
      %v5691 = vpack.c.b16 %v5607, %v5603
      %v5692 = vpack.c.b16 %v5608, %v5604
      %v5693 = vpack.c.b16 %v5609, %v5605
      %v5694 = vpack.c.b16 %v5610, %v5606
      %v5695 = vpack.c.b16 %v5615, %v5611
      %v5696 = vpack.c.b16 %v5616, %v5612
      %v5697 = vpack.c.b16 %v5617, %v5613
      %v5698 = vpack.c.b16 %v5618, %v5614
      %v5699 = vpack.c.b16 %v5623, %v5619
      %v5700 = vpack.c.b16 %v5624, %v5620
      %v5701 = vpack.c.b16 %v5625, %v5621
      %v5702 = vpack.c.b16 %v5626, %v5622
      %v5703 = vpack.c.b16 %v5631, %v5627
      %v5704 = vpack.c.b16 %v5632, %v5628
      %v5705 = vpack.c.b16 %v5633, %v5629
      %v5706 = vpack.c.b16 %v5634, %v5630
      %v5707 = vpack.c.b16 %v5639, %v5635
      %v5708 = vpack.c.b16 %v5640, %v5636
      %v5709 = vpack.c.b16 %v5641, %v5637
      %v5710 = vpack.c.b16 %v5642, %v5638
      %v5711 = vpack.c.b16 %v5647, %v5643
      %v5712 = vpack.c.b16 %v5648, %v5644
      %v5713 = vpack.c.b16 %v5649, %v5645
      %v5714 = vpack.c.b16 %v5650, %v5646
      %5779 = vmatprep.subr.bf16.mxu0 %v5680
      %5780 = vmatpush1.bf16.msra.mxu0 %v5679
      %5781 = vmatprep.subr.bf16.mxu0 %v5676
      %5782 = vmatpush1.bf16.msra.mxu0 %v5675
      %5783 = vmatprep.subr.bf16.mxu0 %v5672
      %5784 = vmatpush1.bf16.msra.mxu0 %v5671
      %5785 = vmatprep.subr.bf16.mxu0 %v5668
      %5786 = vmatpush1.bf16.msra.mxu0 %v5667
      %5787 = vmatprep.subr.bf16.mxu0 %v5664
      %5788 = vmatpush1.bf16.msra.mxu0 %v5663
      %5789 = vmatprep.subr.bf16.mxu0 %v5660
      %5790 = vmatpush1.bf16.msra.mxu0 %v5659
      %5791 = vmatprep.subr.bf16.mxu0 %v5656
      %5792 = vmatpush1.bf16.msra.mxu0 %v5655
      %5793 = vmatprep.subr.bf16.mxu0 %v5652
      %5794 = vmatpush1.bf16.msra.mxu0 %v5651
      %5795 = vmatprep.subr.bf16.mxu0 %v5712
      %5796 = vmatpush2.bf16.msra.mxu0 %v5711
      %5797 = vmatprep.subr.bf16.mxu0 %v5708
      %5798 = vmatpush2.bf16.msra.mxu0 %v5707
      %5799 = vmatprep.subr.bf16.mxu0 %v5704
      %5800 = vmatpush2.bf16.msra.mxu0 %v5703
      %5801 = vmatprep.subr.bf16.mxu0 %v5700
      %5802 = vmatpush2.bf16.msra.mxu0 %v5699
      %5803 = vmatprep.subr.bf16.mxu0 %v5696
      %5804 = vmatpush2.bf16.msra.mxu0 %v5695
      %5805 = vmatprep.subr.bf16.mxu0 %v5692
      %5806 = vmatpush2.bf16.msra.mxu0 %v5691
      %5807 = vmatprep.subr.bf16.mxu0 %v5688
      %5808 = vmatpush2.bf16.msra.mxu0 %v5687
      %5809 = vmatprep.subr.bf16.mxu0 %v5684
      %5810 = vmatpush2.bf16.msra.mxu0 %v5683
      %5811 = vmatprep.mubr.bf16.mxu0 %v5393
      %5812 = vmatmul.mubr.bf16.gmra.mxu0 %v5392
      %v5813 = vpop.f32.mrf.mxu0
      %v5814 = vadd.f32 0.0, %v5813
      %v5815 = vpop.f32.mrf.mxu0
      %v5816 = vadd.f32 0.0, %v5815
      %v5817 = vpop.f32.mrf.mxu0
      %v5818 = vpop.f32.mrf.mxu0
      %5819 = vdwg.mxu0
      %5820 = vmatprep.subr.bf16.mxu0 %v5682
      %5821 = vmatpush1.bf16.msra.mxu0 %v5681
      %5822 = vmatprep.subr.bf16.mxu0 %v5678
      %5823 = vmatpush1.bf16.msra.mxu0 %v5677
      %5824 = vmatprep.subr.bf16.mxu0 %v5674
      %5825 = vmatpush1.bf16.msra.mxu0 %v5673
      %5826 = vmatprep.subr.bf16.mxu0 %v5670
      %5827 = vmatpush1.bf16.msra.mxu0 %v5669
      %5828 = vmatprep.subr.bf16.mxu0 %v5666
      %5829 = vmatpush1.bf16.msra.mxu0 %v5665
      %5830 = vmatprep.subr.bf16.mxu0 %v5662
      %5831 = vmatpush1.bf16.msra.mxu0 %v5661
      %5832 = vmatprep.subr.bf16.mxu0 %v5658
      %5833 = vmatpush1.bf16.msra.mxu0 %v5657
      %5834 = vmatprep.subr.bf16.mxu0 %v5654
      %5835 = vmatpush1.bf16.msra.mxu0 %v5653
      %5836 = vmatprep.subr.bf16.mxu0 %v5714
      %5837 = vmatpush2.bf16.msra.mxu0 %v5713
      %5838 = vmatprep.subr.bf16.mxu0 %v5710
      %5839 = vmatpush2.bf16.msra.mxu0 %v5709
      %5840 = vmatprep.subr.bf16.mxu0 %v5706
      %5841 = vmatpush2.bf16.msra.mxu0 %v5705
      %5842 = vmatprep.subr.bf16.mxu0 %v5702
      %5843 = vmatpush2.bf16.msra.mxu0 %v5701
      %5844 = vmatprep.subr.bf16.mxu0 %v5698
      %5845 = vmatpush2.bf16.msra.mxu0 %v5697
      %5846 = vmatprep.subr.bf16.mxu0 %v5694
      %5847 = vmatpush2.bf16.msra.mxu0 %v5693
      %5848 = vmatprep.subr.bf16.mxu0 %v5690
      %5849 = vmatpush2.bf16.msra.mxu0 %v5689
      %5850 = vmatprep.subr.bf16.mxu0 %v5686
      %5851 = vmatpush2.bf16.msra.mxu0 %v5685
      %5852 = vmatprep.mubr.bf16.mxu0 %v5393
      %5853 = vmatmul.mubr.bf16.gmra.mxu0 %v5392
      %v5854 = vpop.f32.mrf.mxu0
      %v5855 = vadd.f32 0.0, %v5854
      %v5856 = vpop.f32.mrf.mxu0
      %v5857 = vadd.f32 0.0, %v5856
      %v5858 = vpop.f32.mrf.mxu0
      %v5859 = vpop.f32.mrf.mxu0
      %5860 = vdwg.mxu0
      %v5925 = vunpack.c.l.b16 %v5282
      %v5926 = vunpack.c.h.b16 %v5282
      %v5927 = vunpack.c.l.b16 %v5283
      %v5928 = vunpack.c.h.b16 %v5283
      %v5929 = vunpack.c.l.b16 %v5284
      %v5930 = vunpack.c.h.b16 %v5284
      %v5931 = vunpack.c.l.b16 %v5285
      %v5932 = vunpack.c.h.b16 %v5285
      %v5933 = vunpack.c.l.b16 %v5286
      %v5934 = vunpack.c.h.b16 %v5286
      %v5935 = vunpack.c.l.b16 %v5287
      %v5936 = vunpack.c.h.b16 %v5287
      %v5937 = vunpack.c.l.b16 %v5288
      %v5938 = vunpack.c.h.b16 %v5288
      %v5939 = vunpack.c.l.b16 %v5289
      %v5940 = vunpack.c.h.b16 %v5289
      %v5941 = vunpack.c.l.b16 %v5290
      %v5942 = vunpack.c.h.b16 %v5290
      %v5943 = vunpack.c.l.b16 %v5291
      %v5944 = vunpack.c.h.b16 %v5291
      %v5945 = vunpack.c.l.b16 %v5292
      %v5946 = vunpack.c.h.b16 %v5292
      %v5947 = vunpack.c.l.b16 %v5293
      %v5948 = vunpack.c.h.b16 %v5293
      %v5949 = vunpack.c.l.b16 %v5294
      %v5950 = vunpack.c.h.b16 %v5294
      %v5951 = vunpack.c.l.b16 %v5295
      %v5952 = vunpack.c.h.b16 %v5295
      %v5953 = vunpack.c.l.b16 %v5296
      %v5954 = vunpack.c.h.b16 %v5296
      %v5955 = vunpack.c.l.b16 %v5297
      %v5956 = vunpack.c.h.b16 %v5297
      %v5957 = vunpack.c.l.b16 %v5298
      %v5958 = vunpack.c.h.b16 %v5298
      %v5959 = vunpack.c.l.b16 %v5299
      %v5960 = vunpack.c.h.b16 %v5299
      %v5961 = vunpack.c.l.b16 %v5300
      %v5962 = vunpack.c.h.b16 %v5300
      %v5963 = vunpack.c.l.b16 %v5301
      %v5964 = vunpack.c.h.b16 %v5301
      %v5965 = vunpack.c.l.b16 %v5302
      %v5966 = vunpack.c.h.b16 %v5302
      %v5967 = vunpack.c.l.b16 %v5303
      %v5968 = vunpack.c.h.b16 %v5303
      %v5969 = vunpack.c.l.b16 %v5304
      %v5970 = vunpack.c.h.b16 %v5304
      %v5971 = vunpack.c.l.b16 %v5305
      %v5972 = vunpack.c.h.b16 %v5305
      %v5973 = vunpack.c.l.b16 %v5306
      %v5974 = vunpack.c.h.b16 %v5306
      %v5975 = vunpack.c.l.b16 %v5307
      %v5976 = vunpack.c.h.b16 %v5307
      %v5977 = vunpack.c.l.b16 %v5308
      %v5978 = vunpack.c.h.b16 %v5308
      %v5979 = vunpack.c.l.b16 %v5309
      %v5980 = vunpack.c.h.b16 %v5309
      %v5981 = vunpack.c.l.b16 %v5310
      %v5982 = vunpack.c.h.b16 %v5310
      %v5983 = vunpack.c.l.b16 %v5311
      %v5984 = vunpack.c.h.b16 %v5311
      %v5985 = vunpack.c.l.b16 %v5312
      %v5986 = vunpack.c.h.b16 %v5312
      %v5987 = vunpack.c.l.b16 %v5313
      %v5988 = vunpack.c.h.b16 %v5313
      %v5989 = vunpack.c.l.b16 %v5314
      %v5990 = vunpack.c.h.b16 %v5314
      %v5991 = vunpack.c.l.b16 %v5315
      %v5992 = vunpack.c.h.b16 %v5315
      %v5993 = vunpack.c.l.b16 %v5316
      %v5994 = vunpack.c.h.b16 %v5316
      %v5995 = vunpack.c.l.b16 %v5317
      %v5996 = vunpack.c.h.b16 %v5317
      %v5997 = vunpack.c.l.b16 %v5318
      %v5998 = vunpack.c.h.b16 %v5318
      %v5999 = vunpack.c.l.b16 %v5319
      %v6000 = vunpack.c.h.b16 %v5319
      %v6001 = vunpack.c.l.b16 %v5320
      %v6002 = vunpack.c.h.b16 %v5320
      %v6003 = vunpack.c.l.b16 %v5321
      %v6004 = vunpack.c.h.b16 %v5321
      %v6005 = vunpack.c.l.b16 %v5322
      %v6006 = vunpack.c.h.b16 %v5322
      %v6007 = vunpack.c.l.b16 %v5323
      %v6008 = vunpack.c.h.b16 %v5323
      %v6009 = vunpack.c.l.b16 %v5324
      %v6010 = vunpack.c.h.b16 %v5324
      %v6011 = vunpack.c.l.b16 %v5325
      %v6012 = vunpack.c.h.b16 %v5325
      %v6013 = vunpack.c.l.b16 %v5326
      %v6014 = vunpack.c.h.b16 %v5326
      %v6015 = vunpack.c.l.b16 %v5327
      %v6016 = vunpack.c.h.b16 %v5327
      %v6017 = vunpack.c.l.b16 %v5328
      %v6018 = vunpack.c.h.b16 %v5328
      %v6019 = vunpack.c.l.b16 %v5329
      %v6020 = vunpack.c.h.b16 %v5329
      %v6021 = vunpack.c.l.b16 %v5330
      %v6022 = vunpack.c.h.b16 %v5330
      %v6023 = vunpack.c.l.b16 %v5331
      %v6024 = vunpack.c.h.b16 %v5331
      %v6025 = vunpack.c.l.b16 %v5332
      %v6026 = vunpack.c.h.b16 %v5332
      %v6027 = vunpack.c.l.b16 %v5333
      %v6028 = vunpack.c.h.b16 %v5333
      %v6029 = vunpack.c.l.b16 %v5334
      %v6030 = vunpack.c.h.b16 %v5334
      %v6031 = vunpack.c.l.b16 %v5335
      %v6032 = vunpack.c.h.b16 %v5335
      %v6033 = vunpack.c.l.b16 %v5336
      %v6034 = vunpack.c.h.b16 %v5336
      %v6035 = vunpack.c.l.b16 %v5337
      %v6036 = vunpack.c.h.b16 %v5337
      %v6037 = vunpack.c.l.b16 %v5338
      %v6038 = vunpack.c.h.b16 %v5338
      %v6039 = vunpack.c.l.b16 %v5339
      %v6040 = vunpack.c.h.b16 %v5339
      %v6041 = vunpack.c.l.b16 %v5340
      %v6042 = vunpack.c.h.b16 %v5340
      %v6043 = vunpack.c.l.b16 %v5341
      %v6044 = vunpack.c.h.b16 %v5341
      %v6045 = vunpack.c.l.b16 %v5342
      %v6046 = vunpack.c.h.b16 %v5342
      %v6047 = vunpack.c.l.b16 %v5343
      %v6048 = vunpack.c.h.b16 %v5343
      %v6049 = vunpack.c.l.b16 %v5344
      %v6050 = vunpack.c.h.b16 %v5344
      %v6051 = vunpack.c.l.b16 %v5345
      %v6052 = vunpack.c.h.b16 %v5345
      %v6053 = vpack.c.b16 %v5929, %v5925
      %v6054 = vpack.c.b16 %v5930, %v5926
      %v6055 = vpack.c.b16 %v5931, %v5927
      %v6056 = vpack.c.b16 %v5932, %v5928
      %v6057 = vpack.c.b16 %v5937, %v5933
      %v6058 = vpack.c.b16 %v5938, %v5934
      %v6059 = vpack.c.b16 %v5939, %v5935
      %v6060 = vpack.c.b16 %v5940, %v5936
      %v6061 = vpack.c.b16 %v5945, %v5941
      %v6062 = vpack.c.b16 %v5946, %v5942
      %v6063 = vpack.c.b16 %v5947, %v5943
      %v6064 = vpack.c.b16 %v5948, %v5944
      %v6065 = vpack.c.b16 %v5953, %v5949
      %v6066 = vpack.c.b16 %v5954, %v5950
      %v6067 = vpack.c.b16 %v5955, %v5951
      %v6068 = vpack.c.b16 %v5956, %v5952
      %v6069 = vpack.c.b16 %v5961, %v5957
      %v6070 = vpack.c.b16 %v5962, %v5958
      %v6071 = vpack.c.b16 %v5963, %v5959
      %v6072 = vpack.c.b16 %v5964, %v5960
      %v6073 = vpack.c.b16 %v5969, %v5965
      %v6074 = vpack.c.b16 %v5970, %v5966
      %v6075 = vpack.c.b16 %v5971, %v5967
      %v6076 = vpack.c.b16 %v5972, %v5968
      %v6077 = vpack.c.b16 %v5977, %v5973
      %v6078 = vpack.c.b16 %v5978, %v5974
      %v6079 = vpack.c.b16 %v5979, %v5975
      %v6080 = vpack.c.b16 %v5980, %v5976
      %v6081 = vpack.c.b16 %v5985, %v5981
      %v6082 = vpack.c.b16 %v5986, %v5982
      %v6083 = vpack.c.b16 %v5987, %v5983
      %v6084 = vpack.c.b16 %v5988, %v5984
      %v6085 = vpack.c.b16 %v5993, %v5989
      %v6086 = vpack.c.b16 %v5994, %v5990
      %v6087 = vpack.c.b16 %v5995, %v5991
      %v6088 = vpack.c.b16 %v5996, %v5992
      %v6089 = vpack.c.b16 %v6001, %v5997
      %v6090 = vpack.c.b16 %v6002, %v5998
      %v6091 = vpack.c.b16 %v6003, %v5999
      %v6092 = vpack.c.b16 %v6004, %v6000
      %v6093 = vpack.c.b16 %v6009, %v6005
      %v6094 = vpack.c.b16 %v6010, %v6006
      %v6095 = vpack.c.b16 %v6011, %v6007
      %v6096 = vpack.c.b16 %v6012, %v6008
      %v6097 = vpack.c.b16 %v6017, %v6013
      %v6098 = vpack.c.b16 %v6018, %v6014
      %v6099 = vpack.c.b16 %v6019, %v6015
      %v6100 = vpack.c.b16 %v6020, %v6016
      %v6101 = vpack.c.b16 %v6025, %v6021
      %v6102 = vpack.c.b16 %v6026, %v6022
      %v6103 = vpack.c.b16 %v6027, %v6023
      %v6104 = vpack.c.b16 %v6028, %v6024
      %v6105 = vpack.c.b16 %v6033, %v6029
      %v6106 = vpack.c.b16 %v6034, %v6030
      %v6107 = vpack.c.b16 %v6035, %v6031
      %v6108 = vpack.c.b16 %v6036, %v6032
      %v6109 = vpack.c.b16 %v6041, %v6037
      %v6110 = vpack.c.b16 %v6042, %v6038
      %v6111 = vpack.c.b16 %v6043, %v6039
      %v6112 = vpack.c.b16 %v6044, %v6040
      %v6113 = vpack.c.b16 %v6049, %v6045
      %v6114 = vpack.c.b16 %v6050, %v6046
      %v6115 = vpack.c.b16 %v6051, %v6047
      %v6116 = vpack.c.b16 %v6052, %v6048
      %6181 = vmatprep.subr.bf16.mxu0 %v6082
      %6182 = vmatpush1.bf16.msra.mxu0 %v6081
      %6183 = vmatprep.subr.bf16.mxu0 %v6078
      %6184 = vmatpush1.bf16.msra.mxu0 %v6077
      %6185 = vmatprep.subr.bf16.mxu0 %v6074
      %6186 = vmatpush1.bf16.msra.mxu0 %v6073
      %6187 = vmatprep.subr.bf16.mxu0 %v6070
      %6188 = vmatpush1.bf16.msra.mxu0 %v6069
      %6189 = vmatprep.subr.bf16.mxu0 %v6066
      %6190 = vmatpush1.bf16.msra.mxu0 %v6065
      %6191 = vmatprep.subr.bf16.mxu0 %v6062
      %6192 = vmatpush1.bf16.msra.mxu0 %v6061
      %6193 = vmatprep.subr.bf16.mxu0 %v6058
      %6194 = vmatpush1.bf16.msra.mxu0 %v6057
      %6195 = vmatprep.subr.bf16.mxu0 %v6054
      %6196 = vmatpush1.bf16.msra.mxu0 %v6053
      %6197 = vmatprep.subr.bf16.mxu0 %v6114
      %6198 = vmatpush2.bf16.msra.mxu0 %v6113
      %6199 = vmatprep.subr.bf16.mxu0 %v6110
      %6200 = vmatpush2.bf16.msra.mxu0 %v6109
      %6201 = vmatprep.subr.bf16.mxu0 %v6106
      %6202 = vmatpush2.bf16.msra.mxu0 %v6105
      %6203 = vmatprep.subr.bf16.mxu0 %v6102
      %6204 = vmatpush2.bf16.msra.mxu0 %v6101
      %6205 = vmatprep.subr.bf16.mxu0 %v6098
      %6206 = vmatpush2.bf16.msra.mxu0 %v6097
      %6207 = vmatprep.subr.bf16.mxu0 %v6094
      %6208 = vmatpush2.bf16.msra.mxu0 %v6093
      %6209 = vmatprep.subr.bf16.mxu0 %v6090
      %6210 = vmatpush2.bf16.msra.mxu0 %v6089
      %6211 = vmatprep.subr.bf16.mxu0 %v6086
      %6212 = vmatpush2.bf16.msra.mxu0 %v6085
      %6213 = vmatprep.mubr.bf16.mxu0 %v5281
      %6214 = vmatmul.mubr.bf16.gmra.mxu0 %v5280
      %v6215 = vpop.f32.mrf.mxu0
      %v6216 = vadd.f32 %v5814, %v6215
      %v6217 = vpop.f32.mrf.mxu0
      %v6218 = vadd.f32 %v5816, %v6217
      %v6219 = vpop.f32.mrf.mxu0
      %v6220 = vpop.f32.mrf.mxu0
      %6221 = vdwg.mxu0
      %6222 = vmatprep.subr.bf16.mxu0 %v6084
      %6223 = vmatpush1.bf16.msra.mxu0 %v6083
      %6224 = vmatprep.subr.bf16.mxu0 %v6080
      %6225 = vmatpush1.bf16.msra.mxu0 %v6079
      %6226 = vmatprep.subr.bf16.mxu0 %v6076
      %6227 = vmatpush1.bf16.msra.mxu0 %v6075
      %6228 = vmatprep.subr.bf16.mxu0 %v6072
      %6229 = vmatpush1.bf16.msra.mxu0 %v6071
      %6230 = vmatprep.subr.bf16.mxu0 %v6068
      %6231 = vmatpush1.bf16.msra.mxu0 %v6067
      %6232 = vmatprep.subr.bf16.mxu0 %v6064
      %6233 = vmatpush1.bf16.msra.mxu0 %v6063
      %6234 = vmatprep.subr.bf16.mxu0 %v6060
      %6235 = vmatpush1.bf16.msra.mxu0 %v6059
      %6236 = vmatprep.subr.bf16.mxu0 %v6056
      %6237 = vmatpush1.bf16.msra.mxu0 %v6055
      %6238 = vmatprep.subr.bf16.mxu0 %v6116
      %6239 = vmatpush2.bf16.msra.mxu0 %v6115
      %6240 = vmatprep.subr.bf16.mxu0 %v6112
      %6241 = vmatpush2.bf16.msra.mxu0 %v6111
      %6242 = vmatprep.subr.bf16.mxu0 %v6108
      %6243 = vmatpush2.bf16.msra.mxu0 %v6107
      %6244 = vmatprep.subr.bf16.mxu0 %v6104
      %6245 = vmatpush2.bf16.msra.mxu0 %v6103
      %6246 = vmatprep.subr.bf16.mxu0 %v6100
      %6247 = vmatpush2.bf16.msra.mxu0 %v6099
      %6248 = vmatprep.subr.bf16.mxu0 %v6096
      %6249 = vmatpush2.bf16.msra.mxu0 %v6095
      %6250 = vmatprep.subr.bf16.mxu0 %v6092
      %6251 = vmatpush2.bf16.msra.mxu0 %v6091
      %6252 = vmatprep.subr.bf16.mxu0 %v6088
      %6253 = vmatpush2.bf16.msra.mxu0 %v6087
      %6254 = vmatprep.mubr.bf16.mxu0 %v5281
      %6255 = vmatmul.mubr.bf16.gmra.mxu0 %v5280
      %v6256 = vpop.f32.mrf.mxu0
      %v6257 = vadd.f32 %v5855, %v6256
      %v6258 = vpop.f32.mrf.mxu0
      %v6259 = vadd.f32 %v5857, %v6258
      %v6260 = vpop.f32.mrf.mxu0
      %v6261 = vpop.f32.mrf.mxu0
      %6262 = vdwg.mxu0
      %s6263 = scalar_lea.vmem %s9, 4
      %v6264 = vld [vmem:[%s6263] sm:$0x3]
      %v6266 = vsel %vm5235, %v6264, 0
      %6268 = vmatprep.subr.bf16.mxu0 0
      %6269 = vmatpush1.bf16.msra.mxu0 0
      %6270 = vmatprep.subr.bf16.mxu0 0
      %6271 = vmatpush1.bf16.msra.mxu0 0
      %6272 = vmatprep.subr.bf16.mxu0 0
      %6273 = vmatpush1.bf16.msra.mxu0 0
      %6274 = vmatprep.subr.bf16.mxu0 0
      %6275 = vmatpush1.bf16.msra.mxu0 0
      %6276 = vmatprep.subr.bf16.mxu0 0
      %6277 = vmatpush1.bf16.msra.mxu0 0
      %6278 = vmatprep.subr.bf16.mxu0 0
      %6279 = vmatpush1.bf16.msra.mxu0 0
      %6280 = vmatprep.subr.bf16.mxu0 0
      %6281 = vmatpush1.bf16.msra.mxu0 0
      %6282 = vmatprep.subr.bf16.mxu0 %v5233
      %6283 = vmatpush1.bf16.msra.mxu0 %v5232
      %6284 = vmatprep.subr.bf16.mxu0 0
      %6285 = vmatpush2.bf16.msra.mxu0 0
      %6286 = vmatprep.subr.bf16.mxu0 0
      %6287 = vmatpush2.bf16.msra.mxu0 0
      %6288 = vmatprep.subr.bf16.mxu0 0
      %6289 = vmatpush2.bf16.msra.mxu0 0
      %6290 = vmatprep.subr.bf16.mxu0 0
      %6291 = vmatpush2.bf16.msra.mxu0 0
      %6292 = vmatprep.subr.bf16.mxu0 0
      %6293 = vmatpush2.bf16.msra.mxu0 0
      %6294 = vmatprep.subr.bf16.mxu0 0
      %6295 = vmatpush2.bf16.msra.mxu0 0
      %6296 = vmatprep.subr.bf16.mxu0 0
      %6297 = vmatpush2.bf16.msra.mxu0 0
      %6298 = vmatprep.subr.bf16.mxu0 0
      %6299 = vmatpush2.bf16.msra.mxu0 0
      %6300 = vmatprep.mubr.bf16.mxu0 0
      %6301 = vmatmul.mubr.bf16.gmra.mxu0 %v6266
      %v6302 = vpop.f32.mrf.mxu0
      %v6303 = vadd.f32 0.0, %v6302
      %v6304 = vpop.f32.mrf.mxu0
      %v6305 = vadd.f32 0.0, %v6304
      %v6306 = vpop.f32.mrf.mxu0
      %v6307 = vpop.f32.mrf.mxu0
      %6308 = vdwg.mxu0
      %v6309 = vpack.c.bf16 %v6303, %v6303
      %v6310 = vpack.c.bf16 %v6305, %v6305
      %s6311 = scalar_lea.vmem %s10, 1024
      %v6312 = vld [vmem:[%s6311] sm:$0xff]
      %v6313 = vld [vmem:[%s6311 + $0x8] sm:$0xff]
      %v6314 = vld [vmem:[%s6311 + $0x10] sm:$0xff]
      %v6315 = vld [vmem:[%s6311 + $0x18] sm:$0xff]
      %v6316 = vld [vmem:[%s6311 + $0x20] sm:$0xff]
      %v6317 = vld [vmem:[%s6311 + $0x28] sm:$0xff]
      %v6318 = vld [vmem:[%s6311 + $0x30] sm:$0xff]
      %v6319 = vld [vmem:[%s6311 + $0x38] sm:$0xff]
      %v6320 = vld [vmem:[%s6311 + $0x40] sm:$0xff]
      %v6321 = vld [vmem:[%s6311 + $0x48] sm:$0xff]
      %v6322 = vld [vmem:[%s6311 + $0x50] sm:$0xff]
      %v6323 = vld [vmem:[%s6311 + $0x58] sm:$0xff]
      %v6324 = vld [vmem:[%s6311 + $0x60] sm:$0xff]
      %v6325 = vld [vmem:[%s6311 + $0x68] sm:$0xff]
      %v6326 = vld [vmem:[%s6311 + $0x70] sm:$0xff]
      %v6327 = vld [vmem:[%s6311 + $0x78] sm:$0xff]
      %v6328 = vld [vmem:[%s6311 + $0x80] sm:$0xff]
      %v6329 = vld [vmem:[%s6311 + $0x88] sm:$0xff]
      %v6330 = vld [vmem:[%s6311 + $0x90] sm:$0xff]
      %v6331 = vld [vmem:[%s6311 + $0x98] sm:$0xff]
      %v6332 = vld [vmem:[%s6311 + $0xa0] sm:$0xff]
      %v6333 = vld [vmem:[%s6311 + $0xa8] sm:$0xff]
      %v6334 = vld [vmem:[%s6311 + $0xb0] sm:$0xff]
      %v6335 = vld [vmem:[%s6311 + $0xb8] sm:$0xff]
      %v6336 = vld [vmem:[%s6311 + $0xc0] sm:$0xff]
      %v6337 = vld [vmem:[%s6311 + $0xc8] sm:$0xff]
      %v6338 = vld [vmem:[%s6311 + $0xd0] sm:$0xff]
      %v6339 = vld [vmem:[%s6311 + $0xd8] sm:$0xff]
      %v6340 = vld [vmem:[%s6311 + $0xe0] sm:$0xff]
      %v6341 = vld [vmem:[%s6311 + $0xe8] sm:$0xff]
      %v6342 = vld [vmem:[%s6311 + $0xf0] sm:$0xff]
      %v6343 = vld [vmem:[%s6311 + $0xf8] sm:$0xff]
      %v6344 = vld [vmem:[%s6311 + $0x100] sm:$0xff]
      %v6345 = vld [vmem:[%s6311 + $0x108] sm:$0xff]
      %v6346 = vld [vmem:[%s6311 + $0x110] sm:$0xff]
      %v6347 = vld [vmem:[%s6311 + $0x118] sm:$0xff]
      %v6348 = vld [vmem:[%s6311 + $0x120] sm:$0xff]
      %v6349 = vld [vmem:[%s6311 + $0x128] sm:$0xff]
      %v6350 = vld [vmem:[%s6311 + $0x130] sm:$0xff]
      %v6351 = vld [vmem:[%s6311 + $0x138] sm:$0xff]
      %v6352 = vld [vmem:[%s6311 + $0x140] sm:$0xff]
      %v6353 = vld [vmem:[%s6311 + $0x148] sm:$0xff]
      %v6354 = vld [vmem:[%s6311 + $0x150] sm:$0xff]
      %v6355 = vld [vmem:[%s6311 + $0x158] sm:$0xff]
      %v6356 = vld [vmem:[%s6311 + $0x160] sm:$0xff]
      %v6357 = vld [vmem:[%s6311 + $0x168] sm:$0xff]
      %v6358 = vld [vmem:[%s6311 + $0x170] sm:$0xff]
      %v6359 = vld [vmem:[%s6311 + $0x178] sm:$0xff]
      %v6360 = vld [vmem:[%s6311 + $0x180] sm:$0xff]
      %v6361 = vld [vmem:[%s6311 + $0x188] sm:$0xff]
      %v6362 = vld [vmem:[%s6311 + $0x190] sm:$0xff]
      %v6363 = vld [vmem:[%s6311 + $0x198] sm:$0xff]
      %v6364 = vld [vmem:[%s6311 + $0x1a0] sm:$0xff]
      %v6365 = vld [vmem:[%s6311 + $0x1a8] sm:$0xff]
      %v6366 = vld [vmem:[%s6311 + $0x1b0] sm:$0xff]
      %v6367 = vld [vmem:[%s6311 + $0x1b8] sm:$0xff]
      %v6368 = vld [vmem:[%s6311 + $0x1c0] sm:$0xff]
      %v6369 = vld [vmem:[%s6311 + $0x1c8] sm:$0xff]
      %v6370 = vld [vmem:[%s6311 + $0x1d0] sm:$0xff]
      %v6371 = vld [vmem:[%s6311 + $0x1d8] sm:$0xff]
      %v6372 = vld [vmem:[%s6311 + $0x1e0] sm:$0xff]
      %v6373 = vld [vmem:[%s6311 + $0x1e8] sm:$0xff]
      %v6374 = vld [vmem:[%s6311 + $0x1f0] sm:$0xff]
      %v6375 = vld [vmem:[%s6311 + $0x1f8] sm:$0xff]
      %v6440 = vunpack.c.l.b16 %v6312
      %v6441 = vunpack.c.h.b16 %v6312
      %v6442 = vunpack.c.l.b16 %v6313
      %v6443 = vunpack.c.h.b16 %v6313
      %v6444 = vunpack.c.l.b16 %v6314
      %v6445 = vunpack.c.h.b16 %v6314
      %v6446 = vunpack.c.l.b16 %v6315
      %v6447 = vunpack.c.h.b16 %v6315
      %v6448 = vunpack.c.l.b16 %v6316
      %v6449 = vunpack.c.h.b16 %v6316
      %v6450 = vunpack.c.l.b16 %v6317
      %v6451 = vunpack.c.h.b16 %v6317
      %v6452 = vunpack.c.l.b16 %v6318
      %v6453 = vunpack.c.h.b16 %v6318
      %v6454 = vunpack.c.l.b16 %v6319
      %v6455 = vunpack.c.h.b16 %v6319
      %v6456 = vunpack.c.l.b16 %v6320
      %v6457 = vunpack.c.h.b16 %v6320
      %v6458 = vunpack.c.l.b16 %v6321
      %v6459 = vunpack.c.h.b16 %v6321
      %v6460 = vunpack.c.l.b16 %v6322
      %v6461 = vunpack.c.h.b16 %v6322
      %v6462 = vunpack.c.l.b16 %v6323
      %v6463 = vunpack.c.h.b16 %v6323
      %v6464 = vunpack.c.l.b16 %v6324
      %v6465 = vunpack.c.h.b16 %v6324
      %v6466 = vunpack.c.l.b16 %v6325
      %v6467 = vunpack.c.h.b16 %v6325
      %v6468 = vunpack.c.l.b16 %v6326
      %v6469 = vunpack.c.h.b16 %v6326
      %v6470 = vunpack.c.l.b16 %v6327
      %v6471 = vunpack.c.h.b16 %v6327
      %v6472 = vunpack.c.l.b16 %v6328
      %v6473 = vunpack.c.h.b16 %v6328
      %v6474 = vunpack.c.l.b16 %v6329
      %v6475 = vunpack.c.h.b16 %v6329
      %v6476 = vunpack.c.l.b16 %v6330
      %v6477 = vunpack.c.h.b16 %v6330
      %v6478 = vunpack.c.l.b16 %v6331
      %v6479 = vunpack.c.h.b16 %v6331
      %v6480 = vunpack.c.l.b16 %v6332
      %v6481 = vunpack.c.h.b16 %v6332
      %v6482 = vunpack.c.l.b16 %v6333
      %v6483 = vunpack.c.h.b16 %v6333
      %v6484 = vunpack.c.l.b16 %v6334
      %v6485 = vunpack.c.h.b16 %v6334
      %v6486 = vunpack.c.l.b16 %v6335
      %v6487 = vunpack.c.h.b16 %v6335
      %v6488 = vunpack.c.l.b16 %v6336
      %v6489 = vunpack.c.h.b16 %v6336
      %v6490 = vunpack.c.l.b16 %v6337
      %v6491 = vunpack.c.h.b16 %v6337
      %v6492 = vunpack.c.l.b16 %v6338
      %v6493 = vunpack.c.h.b16 %v6338
      %v6494 = vunpack.c.l.b16 %v6339
      %v6495 = vunpack.c.h.b16 %v6339
      %v6496 = vunpack.c.l.b16 %v6340
      %v6497 = vunpack.c.h.b16 %v6340
      %v6498 = vunpack.c.l.b16 %v6341
      %v6499 = vunpack.c.h.b16 %v6341
      %v6500 = vunpack.c.l.b16 %v6342
      %v6501 = vunpack.c.h.b16 %v6342
      %v6502 = vunpack.c.l.b16 %v6343
      %v6503 = vunpack.c.h.b16 %v6343
      %v6504 = vunpack.c.l.b16 %v6344
      %v6505 = vunpack.c.h.b16 %v6344
      %v6506 = vunpack.c.l.b16 %v6345
      %v6507 = vunpack.c.h.b16 %v6345
      %v6508 = vunpack.c.l.b16 %v6346
      %v6509 = vunpack.c.h.b16 %v6346
      %v6510 = vunpack.c.l.b16 %v6347
      %v6511 = vunpack.c.h.b16 %v6347
      %v6512 = vunpack.c.l.b16 %v6348
      %v6513 = vunpack.c.h.b16 %v6348
      %v6514 = vunpack.c.l.b16 %v6349
      %v6515 = vunpack.c.h.b16 %v6349
      %v6516 = vunpack.c.l.b16 %v6350
      %v6517 = vunpack.c.h.b16 %v6350
      %v6518 = vunpack.c.l.b16 %v6351
      %v6519 = vunpack.c.h.b16 %v6351
      %v6520 = vunpack.c.l.b16 %v6352
      %v6521 = vunpack.c.h.b16 %v6352
      %v6522 = vunpack.c.l.b16 %v6353
      %v6523 = vunpack.c.h.b16 %v6353
      %v6524 = vunpack.c.l.b16 %v6354
      %v6525 = vunpack.c.h.b16 %v6354
      %v6526 = vunpack.c.l.b16 %v6355
      %v6527 = vunpack.c.h.b16 %v6355
      %v6528 = vunpack.c.l.b16 %v6356
      %v6529 = vunpack.c.h.b16 %v6356
      %v6530 = vunpack.c.l.b16 %v6357
      %v6531 = vunpack.c.h.b16 %v6357
      %v6532 = vunpack.c.l.b16 %v6358
      %v6533 = vunpack.c.h.b16 %v6358
      %v6534 = vunpack.c.l.b16 %v6359
      %v6535 = vunpack.c.h.b16 %v6359
      %v6536 = vunpack.c.l.b16 %v6360
      %v6537 = vunpack.c.h.b16 %v6360
      %v6538 = vunpack.c.l.b16 %v6361
      %v6539 = vunpack.c.h.b16 %v6361
      %v6540 = vunpack.c.l.b16 %v6362
      %v6541 = vunpack.c.h.b16 %v6362
      %v6542 = vunpack.c.l.b16 %v6363
      %v6543 = vunpack.c.h.b16 %v6363
      %v6544 = vunpack.c.l.b16 %v6364
      %v6545 = vunpack.c.h.b16 %v6364
      %v6546 = vunpack.c.l.b16 %v6365
      %v6547 = vunpack.c.h.b16 %v6365
      %v6548 = vunpack.c.l.b16 %v6366
      %v6549 = vunpack.c.h.b16 %v6366
      %v6550 = vunpack.c.l.b16 %v6367
      %v6551 = vunpack.c.h.b16 %v6367
      %v6552 = vunpack.c.l.b16 %v6368
      %v6553 = vunpack.c.h.b16 %v6368
      %v6554 = vunpack.c.l.b16 %v6369
      %v6555 = vunpack.c.h.b16 %v6369
      %v6556 = vunpack.c.l.b16 %v6370
      %v6557 = vunpack.c.h.b16 %v6370
      %v6558 = vunpack.c.l.b16 %v6371
      %v6559 = vunpack.c.h.b16 %v6371
      %v6560 = vunpack.c.l.b16 %v6372
      %v6561 = vunpack.c.h.b16 %v6372
      %v6562 = vunpack.c.l.b16 %v6373
      %v6563 = vunpack.c.h.b16 %v6373
      %v6564 = vunpack.c.l.b16 %v6374
      %v6565 = vunpack.c.h.b16 %v6374
      %v6566 = vunpack.c.l.b16 %v6375
      %v6567 = vunpack.c.h.b16 %v6375
      %v6568 = vpack.c.b16 %v6444, %v6440
      %v6569 = vpack.c.b16 %v6445, %v6441
      %v6570 = vpack.c.b16 %v6446, %v6442
      %v6571 = vpack.c.b16 %v6447, %v6443
      %v6572 = vpack.c.b16 %v6452, %v6448
      %v6573 = vpack.c.b16 %v6453, %v6449
      %v6574 = vpack.c.b16 %v6454, %v6450
      %v6575 = vpack.c.b16 %v6455, %v6451
      %v6576 = vpack.c.b16 %v6460, %v6456
      %v6577 = vpack.c.b16 %v6461, %v6457
      %v6578 = vpack.c.b16 %v6462, %v6458
      %v6579 = vpack.c.b16 %v6463, %v6459
      %v6580 = vpack.c.b16 %v6468, %v6464
      %v6581 = vpack.c.b16 %v6469, %v6465
      %v6582 = vpack.c.b16 %v6470, %v6466
      %v6583 = vpack.c.b16 %v6471, %v6467
      %v6584 = vpack.c.b16 %v6476, %v6472
      %v6585 = vpack.c.b16 %v6477, %v6473
      %v6586 = vpack.c.b16 %v6478, %v6474
      %v6587 = vpack.c.b16 %v6479, %v6475
      %v6588 = vpack.c.b16 %v6484, %v6480
      %v6589 = vpack.c.b16 %v6485, %v6481
      %v6590 = vpack.c.b16 %v6486, %v6482
      %v6591 = vpack.c.b16 %v6487, %v6483
      %v6592 = vpack.c.b16 %v6492, %v6488
      %v6593 = vpack.c.b16 %v6493, %v6489
      %v6594 = vpack.c.b16 %v6494, %v6490
      %v6595 = vpack.c.b16 %v6495, %v6491
      %v6596 = vpack.c.b16 %v6500, %v6496
      %v6597 = vpack.c.b16 %v6501, %v6497
      %v6598 = vpack.c.b16 %v6502, %v6498
      %v6599 = vpack.c.b16 %v6503, %v6499
      %v6600 = vpack.c.b16 %v6508, %v6504
      %v6601 = vpack.c.b16 %v6509, %v6505
      %v6602 = vpack.c.b16 %v6510, %v6506
      %v6603 = vpack.c.b16 %v6511, %v6507
      %v6604 = vpack.c.b16 %v6516, %v6512
      %v6605 = vpack.c.b16 %v6517, %v6513
      %v6606 = vpack.c.b16 %v6518, %v6514
      %v6607 = vpack.c.b16 %v6519, %v6515
      %v6608 = vpack.c.b16 %v6524, %v6520
      %v6609 = vpack.c.b16 %v6525, %v6521
      %v6610 = vpack.c.b16 %v6526, %v6522
      %v6611 = vpack.c.b16 %v6527, %v6523
      %v6612 = vpack.c.b16 %v6532, %v6528
      %v6613 = vpack.c.b16 %v6533, %v6529
      %v6614 = vpack.c.b16 %v6534, %v6530
      %v6615 = vpack.c.b16 %v6535, %v6531
      %v6616 = vpack.c.b16 %v6540, %v6536
      %v6617 = vpack.c.b16 %v6541, %v6537
      %v6618 = vpack.c.b16 %v6542, %v6538
      %v6619 = vpack.c.b16 %v6543, %v6539
      %v6620 = vpack.c.b16 %v6548, %v6544
      %v6621 = vpack.c.b16 %v6549, %v6545
      %v6622 = vpack.c.b16 %v6550, %v6546
      %v6623 = vpack.c.b16 %v6551, %v6547
      %v6624 = vpack.c.b16 %v6556, %v6552
      %v6625 = vpack.c.b16 %v6557, %v6553
      %v6626 = vpack.c.b16 %v6558, %v6554
      %v6627 = vpack.c.b16 %v6559, %v6555
      %v6628 = vpack.c.b16 %v6564, %v6560
      %v6629 = vpack.c.b16 %v6565, %v6561
      %v6630 = vpack.c.b16 %v6566, %v6562
      %v6631 = vpack.c.b16 %v6567, %v6563
      %6696 = vmatprep.subr.bf16.mxu0 %v6597
      %6697 = vmatpush1.bf16.msra.mxu0 %v6596
      %6698 = vmatprep.subr.bf16.mxu0 %v6593
      %6699 = vmatpush1.bf16.msra.mxu0 %v6592
      %6700 = vmatprep.subr.bf16.mxu0 %v6589
      %6701 = vmatpush1.bf16.msra.mxu0 %v6588
      %6702 = vmatprep.subr.bf16.mxu0 %v6585
      %6703 = vmatpush1.bf16.msra.mxu0 %v6584
      %6704 = vmatprep.subr.bf16.mxu0 %v6581
      %6705 = vmatpush1.bf16.msra.mxu0 %v6580
      %6706 = vmatprep.subr.bf16.mxu0 %v6577
      %6707 = vmatpush1.bf16.msra.mxu0 %v6576
      %6708 = vmatprep.subr.bf16.mxu0 %v6573
      %6709 = vmatpush1.bf16.msra.mxu0 %v6572
      %6710 = vmatprep.subr.bf16.mxu0 %v6569
      %6711 = vmatpush1.bf16.msra.mxu0 %v6568
      %6712 = vmatprep.subr.bf16.mxu0 %v6629
      %6713 = vmatpush2.bf16.msra.mxu0 %v6628
      %6714 = vmatprep.subr.bf16.mxu0 %v6625
      %6715 = vmatpush2.bf16.msra.mxu0 %v6624
      %6716 = vmatprep.subr.bf16.mxu0 %v6621
      %6717 = vmatpush2.bf16.msra.mxu0 %v6620
      %6718 = vmatprep.subr.bf16.mxu0 %v6617
      %6719 = vmatpush2.bf16.msra.mxu0 %v6616
      %6720 = vmatprep.subr.bf16.mxu0 %v6613
      %6721 = vmatpush2.bf16.msra.mxu0 %v6612
      %6722 = vmatprep.subr.bf16.mxu0 %v6609
      %6723 = vmatpush2.bf16.msra.mxu0 %v6608
      %6724 = vmatprep.subr.bf16.mxu0 %v6605
      %6725 = vmatpush2.bf16.msra.mxu0 %v6604
      %6726 = vmatprep.subr.bf16.mxu0 %v6601
      %6727 = vmatpush2.bf16.msra.mxu0 %v6600
      %6728 = vmatprep.mubr.bf16.mxu0 %v6310
      %6729 = vmatmul.mubr.bf16.gmra.mxu0 %v6309
      %v6730 = vpop.f32.mrf.mxu0
      %v6731 = vadd.f32 0.0, %v6730
      %v6732 = vpop.f32.mrf.mxu0
      %v6733 = vadd.f32 0.0, %v6732
      %v6734 = vpop.f32.mrf.mxu0
      %v6735 = vpop.f32.mrf.mxu0
      %6736 = vdwg.mxu0
      %6737 = vmatprep.subr.bf16.mxu0 %v6599
      %6738 = vmatpush1.bf16.msra.mxu0 %v6598
      %6739 = vmatprep.subr.bf16.mxu0 %v6595
      %6740 = vmatpush1.bf16.msra.mxu0 %v6594
      %6741 = vmatprep.subr.bf16.mxu0 %v6591
      %6742 = vmatpush1.bf16.msra.mxu0 %v6590
      %6743 = vmatprep.subr.bf16.mxu0 %v6587
      %6744 = vmatpush1.bf16.msra.mxu0 %v6586
      %6745 = vmatprep.subr.bf16.mxu0 %v6583
      %6746 = vmatpush1.bf16.msra.mxu0 %v6582
      %6747 = vmatprep.subr.bf16.mxu0 %v6579
      %6748 = vmatpush1.bf16.msra.mxu0 %v6578
      %6749 = vmatprep.subr.bf16.mxu0 %v6575
      %6750 = vmatpush1.bf16.msra.mxu0 %v6574
      %6751 = vmatprep.subr.bf16.mxu0 %v6571
      %6752 = vmatpush1.bf16.msra.mxu0 %v6570
      %6753 = vmatprep.subr.bf16.mxu0 %v6631
      %6754 = vmatpush2.bf16.msra.mxu0 %v6630
      %6755 = vmatprep.subr.bf16.mxu0 %v6627
      %6756 = vmatpush2.bf16.msra.mxu0 %v6626
      %6757 = vmatprep.subr.bf16.mxu0 %v6623
      %6758 = vmatpush2.bf16.msra.mxu0 %v6622
      %6759 = vmatprep.subr.bf16.mxu0 %v6619
      %6760 = vmatpush2.bf16.msra.mxu0 %v6618
      %6761 = vmatprep.subr.bf16.mxu0 %v6615
      %6762 = vmatpush2.bf16.msra.mxu0 %v6614
      %6763 = vmatprep.subr.bf16.mxu0 %v6611
      %6764 = vmatpush2.bf16.msra.mxu0 %v6610
      %6765 = vmatprep.subr.bf16.mxu0 %v6607
      %6766 = vmatpush2.bf16.msra.mxu0 %v6606
      %6767 = vmatprep.subr.bf16.mxu0 %v6603
      %6768 = vmatpush2.bf16.msra.mxu0 %v6602
      %6769 = vmatprep.mubr.bf16.mxu0 %v6310
      %6770 = vmatmul.mubr.bf16.gmra.mxu0 %v6309
      %v6771 = vpop.f32.mrf.mxu0
      %v6772 = vadd.f32 0.0, %v6771
      %v6773 = vpop.f32.mrf.mxu0
      %v6774 = vadd.f32 0.0, %v6773
      %v6775 = vpop.f32.mrf.mxu0
      %v6776 = vpop.f32.mrf.mxu0
      %6777 = vdwg.mxu0
      %v6778 = vadd.f32 %v6216, %v6731
      %v6779 = vadd.f32 %v6218, %v6733
      %v6780 = vadd.f32 %v6257, %v6772
      %v6781 = vadd.f32 %v6259, %v6774
      %s6782 = scalar_lea.vmem %s9, 6
      %v6783 = vld [vmem:[%s6782] sm:$0x3]
      %v6785 = vsel %vm5235, %v6783, 0
      %6787 = vmatprep.subr.bf16.mxu0 0
      %6788 = vmatpush1.bf16.msra.mxu0 0
      %6789 = vmatprep.subr.bf16.mxu0 0
      %6790 = vmatpush1.bf16.msra.mxu0 0
      %6791 = vmatprep.subr.bf16.mxu0 0
      %6792 = vmatpush1.bf16.msra.mxu0 0
      %6793 = vmatprep.subr.bf16.mxu0 0
      %6794 = vmatpush1.bf16.msra.mxu0 0
      %6795 = vmatprep.subr.bf16.mxu0 0
      %6796 = vmatpush1.bf16.msra.mxu0 0
      %6797 = vmatprep.subr.bf16.mxu0 0
      %6798 = vmatpush1.bf16.msra.mxu0 0
      %6799 = vmatprep.subr.bf16.mxu0 0
      %6800 = vmatpush1.bf16.msra.mxu0 0
      %6801 = vmatprep.subr.bf16.mxu0 %v5233
      %6802 = vmatpush1.bf16.msra.mxu0 %v5232
      %6803 = vmatprep.subr.bf16.mxu0 0
      %6804 = vmatpush2.bf16.msra.mxu0 0
      %6805 = vmatprep.subr.bf16.mxu0 0
      %6806 = vmatpush2.bf16.msra.mxu0 0
      %6807 = vmatprep.subr.bf16.mxu0 0
      %6808 = vmatpush2.bf16.msra.mxu0 0
      %6809 = vmatprep.subr.bf16.mxu0 0
      %6810 = vmatpush2.bf16.msra.mxu0 0
      %6811 = vmatprep.subr.bf16.mxu0 0
      %6812 = vmatpush2.bf16.msra.mxu0 0
      %6813 = vmatprep.subr.bf16.mxu0 0
      %6814 = vmatpush2.bf16.msra.mxu0 0
      %6815 = vmatprep.subr.bf16.mxu0 0
      %6816 = vmatpush2.bf16.msra.mxu0 0
      %6817 = vmatprep.subr.bf16.mxu0 0
      %6818 = vmatpush2.bf16.msra.mxu0 0
      %6819 = vmatprep.mubr.bf16.mxu0 0
      %6820 = vmatmul.mubr.bf16.gmra.mxu0 %v6785
      %v6821 = vpop.f32.mrf.mxu0
      %v6822 = vadd.f32 0.0, %v6821
      %v6823 = vpop.f32.mrf.mxu0
      %v6824 = vadd.f32 0.0, %v6823
      %v6825 = vpop.f32.mrf.mxu0
      %v6826 = vpop.f32.mrf.mxu0
      %6827 = vdwg.mxu0
      %v6828 = vpack.c.bf16 %v6822, %v6822
      %v6829 = vpack.c.bf16 %v6824, %v6824
      %s6830 = scalar_lea.vmem %s10, 1536
      %v6831 = vld [vmem:[%s6830] sm:$0xff]
      %v6832 = vld [vmem:[%s6830 + $0x8] sm:$0xff]
      %v6833 = vld [vmem:[%s6830 + $0x10] sm:$0xff]
      %v6834 = vld [vmem:[%s6830 + $0x18] sm:$0xff]
      %v6835 = vld [vmem:[%s6830 + $0x20] sm:$0xff]
      %v6836 = vld [vmem:[%s6830 + $0x28] sm:$0xff]
      %v6837 = vld [vmem:[%s6830 + $0x30] sm:$0xff]
      %v6838 = vld [vmem:[%s6830 + $0x38] sm:$0xff]
      %v6839 = vld [vmem:[%s6830 + $0x40] sm:$0xff]
      %v6840 = vld [vmem:[%s6830 + $0x48] sm:$0xff]
      %v6841 = vld [vmem:[%s6830 + $0x50] sm:$0xff]
      %v6842 = vld [vmem:[%s6830 + $0x58] sm:$0xff]
      %v6843 = vld [vmem:[%s6830 + $0x60] sm:$0xff]
      %v6844 = vld [vmem:[%s6830 + $0x68] sm:$0xff]
      %v6845 = vld [vmem:[%s6830 + $0x70] sm:$0xff]
      %v6846 = vld [vmem:[%s6830 + $0x78] sm:$0xff]
      %v6847 = vld [vmem:[%s6830 + $0x80] sm:$0xff]
      %v6848 = vld [vmem:[%s6830 + $0x88] sm:$0xff]
      %v6849 = vld [vmem:[%s6830 + $0x90] sm:$0xff]
      %v6850 = vld [vmem:[%s6830 + $0x98] sm:$0xff]
      %v6851 = vld [vmem:[%s6830 + $0xa0] sm:$0xff]
      %v6852 = vld [vmem:[%s6830 + $0xa8] sm:$0xff]
      %v6853 = vld [vmem:[%s6830 + $0xb0] sm:$0xff]
      %v6854 = vld [vmem:[%s6830 + $0xb8] sm:$0xff]
      %v6855 = vld [vmem:[%s6830 + $0xc0] sm:$0xff]
      %v6856 = vld [vmem:[%s6830 + $0xc8] sm:$0xff]
      %v6857 = vld [vmem:[%s6830 + $0xd0] sm:$0xff]
      %v6858 = vld [vmem:[%s6830 + $0xd8] sm:$0xff]
      %v6859 = vld [vmem:[%s6830 + $0xe0] sm:$0xff]
      %v6860 = vld [vmem:[%s6830 + $0xe8] sm:$0xff]
      %v6861 = vld [vmem:[%s6830 + $0xf0] sm:$0xff]
      %v6862 = vld [vmem:[%s6830 + $0xf8] sm:$0xff]
      %v6863 = vld [vmem:[%s6830 + $0x100] sm:$0xff]
      %v6864 = vld [vmem:[%s6830 + $0x108] sm:$0xff]
      %v6865 = vld [vmem:[%s6830 + $0x110] sm:$0xff]
      %v6866 = vld [vmem:[%s6830 + $0x118] sm:$0xff]
      %v6867 = vld [vmem:[%s6830 + $0x120] sm:$0xff]
      %v6868 = vld [vmem:[%s6830 + $0x128] sm:$0xff]
      %v6869 = vld [vmem:[%s6830 + $0x130] sm:$0xff]
      %v6870 = vld [vmem:[%s6830 + $0x138] sm:$0xff]
      %v6871 = vld [vmem:[%s6830 + $0x140] sm:$0xff]
      %v6872 = vld [vmem:[%s6830 + $0x148] sm:$0xff]
      %v6873 = vld [vmem:[%s6830 + $0x150] sm:$0xff]
      %v6874 = vld [vmem:[%s6830 + $0x158] sm:$0xff]
      %v6875 = vld [vmem:[%s6830 + $0x160] sm:$0xff]
      %v6876 = vld [vmem:[%s6830 + $0x168] sm:$0xff]
      %v6877 = vld [vmem:[%s6830 + $0x170] sm:$0xff]
      %v6878 = vld [vmem:[%s6830 + $0x178] sm:$0xff]
      %v6879 = vld [vmem:[%s6830 + $0x180] sm:$0xff]
      %v6880 = vld [vmem:[%s6830 + $0x188] sm:$0xff]
      %v6881 = vld [vmem:[%s6830 + $0x190] sm:$0xff]
      %v6882 = vld [vmem:[%s6830 + $0x198] sm:$0xff]
      %v6883 = vld [vmem:[%s6830 + $0x1a0] sm:$0xff]
      %v6884 = vld [vmem:[%s6830 + $0x1a8] sm:$0xff]
      %v6885 = vld [vmem:[%s6830 + $0x1b0] sm:$0xff]
      %v6886 = vld [vmem:[%s6830 + $0x1b8] sm:$0xff]
      %v6887 = vld [vmem:[%s6830 + $0x1c0] sm:$0xff]
      %v6888 = vld [vmem:[%s6830 + $0x1c8] sm:$0xff]
      %v6889 = vld [vmem:[%s6830 + $0x1d0] sm:$0xff]
      %v6890 = vld [vmem:[%s6830 + $0x1d8] sm:$0xff]
      %v6891 = vld [vmem:[%s6830 + $0x1e0] sm:$0xff]
      %v6892 = vld [vmem:[%s6830 + $0x1e8] sm:$0xff]
      %v6893 = vld [vmem:[%s6830 + $0x1f0] sm:$0xff]
      %v6894 = vld [vmem:[%s6830 + $0x1f8] sm:$0xff]
      %v6959 = vunpack.c.l.b16 %v6831
      %v6960 = vunpack.c.h.b16 %v6831
      %v6961 = vunpack.c.l.b16 %v6832
      %v6962 = vunpack.c.h.b16 %v6832
      %v6963 = vunpack.c.l.b16 %v6833
      %v6964 = vunpack.c.h.b16 %v6833
      %v6965 = vunpack.c.l.b16 %v6834
      %v6966 = vunpack.c.h.b16 %v6834
      %v6967 = vunpack.c.l.b16 %v6835
      %v6968 = vunpack.c.h.b16 %v6835
      %v6969 = vunpack.c.l.b16 %v6836
      %v6970 = vunpack.c.h.b16 %v6836
      %v6971 = vunpack.c.l.b16 %v6837
      %v6972 = vunpack.c.h.b16 %v6837
      %v6973 = vunpack.c.l.b16 %v6838
      %v6974 = vunpack.c.h.b16 %v6838
      %v6975 = vunpack.c.l.b16 %v6839
      %v6976 = vunpack.c.h.b16 %v6839
      %v6977 = vunpack.c.l.b16 %v6840
      %v6978 = vunpack.c.h.b16 %v6840
      %v6979 = vunpack.c.l.b16 %v6841
      %v6980 = vunpack.c.h.b16 %v6841
      %v6981 = vunpack.c.l.b16 %v6842
      %v6982 = vunpack.c.h.b16 %v6842
      %v6983 = vunpack.c.l.b16 %v6843
      %v6984 = vunpack.c.h.b16 %v6843
      %v6985 = vunpack.c.l.b16 %v6844
      %v6986 = vunpack.c.h.b16 %v6844
      %v6987 = vunpack.c.l.b16 %v6845
      %v6988 = vunpack.c.h.b16 %v6845
      %v6989 = vunpack.c.l.b16 %v6846
      %v6990 = vunpack.c.h.b16 %v6846
      %v6991 = vunpack.c.l.b16 %v6847
      %v6992 = vunpack.c.h.b16 %v6847
      %v6993 = vunpack.c.l.b16 %v6848
      %v6994 = vunpack.c.h.b16 %v6848
      %v6995 = vunpack.c.l.b16 %v6849
      %v6996 = vunpack.c.h.b16 %v6849
      %v6997 = vunpack.c.l.b16 %v6850
      %v6998 = vunpack.c.h.b16 %v6850
      %v6999 = vunpack.c.l.b16 %v6851
      %v7000 = vunpack.c.h.b16 %v6851
      %v7001 = vunpack.c.l.b16 %v6852
      %v7002 = vunpack.c.h.b16 %v6852
      %v7003 = vunpack.c.l.b16 %v6853
      %v7004 = vunpack.c.h.b16 %v6853
      %v7005 = vunpack.c.l.b16 %v6854
      %v7006 = vunpack.c.h.b16 %v6854
      %v7007 = vunpack.c.l.b16 %v6855
      %v7008 = vunpack.c.h.b16 %v6855
      %v7009 = vunpack.c.l.b16 %v6856
      %v7010 = vunpack.c.h.b16 %v6856
      %v7011 = vunpack.c.l.b16 %v6857
      %v7012 = vunpack.c.h.b16 %v6857
      %v7013 = vunpack.c.l.b16 %v6858
      %v7014 = vunpack.c.h.b16 %v6858
      %v7015 = vunpack.c.l.b16 %v6859
      %v7016 = vunpack.c.h.b16 %v6859
      %v7017 = vunpack.c.l.b16 %v6860
      %v7018 = vunpack.c.h.b16 %v6860
      %v7019 = vunpack.c.l.b16 %v6861
      %v7020 = vunpack.c.h.b16 %v6861
      %v7021 = vunpack.c.l.b16 %v6862
      %v7022 = vunpack.c.h.b16 %v6862
      %v7023 = vunpack.c.l.b16 %v6863
      %v7024 = vunpack.c.h.b16 %v6863
      %v7025 = vunpack.c.l.b16 %v6864
      %v7026 = vunpack.c.h.b16 %v6864
      %v7027 = vunpack.c.l.b16 %v6865
      %v7028 = vunpack.c.h.b16 %v6865
      %v7029 = vunpack.c.l.b16 %v6866
      %v7030 = vunpack.c.h.b16 %v6866
      %v7031 = vunpack.c.l.b16 %v6867
      %v7032 = vunpack.c.h.b16 %v6867
      %v7033 = vunpack.c.l.b16 %v6868
      %v7034 = vunpack.c.h.b16 %v6868
      %v7035 = vunpack.c.l.b16 %v6869
      %v7036 = vunpack.c.h.b16 %v6869
      %v7037 = vunpack.c.l.b16 %v6870
      %v7038 = vunpack.c.h.b16 %v6870
      %v7039 = vunpack.c.l.b16 %v6871
      %v7040 = vunpack.c.h.b16 %v6871
      %v7041 = vunpack.c.l.b16 %v6872
      %v7042 = vunpack.c.h.b16 %v6872
      %v7043 = vunpack.c.l.b16 %v6873
      %v7044 = vunpack.c.h.b16 %v6873
      %v7045 = vunpack.c.l.b16 %v6874
      %v7046 = vunpack.c.h.b16 %v6874
      %v7047 = vunpack.c.l.b16 %v6875
      %v7048 = vunpack.c.h.b16 %v6875
      %v7049 = vunpack.c.l.b16 %v6876
      %v7050 = vunpack.c.h.b16 %v6876
      %v7051 = vunpack.c.l.b16 %v6877
      %v7052 = vunpack.c.h.b16 %v6877
      %v7053 = vunpack.c.l.b16 %v6878
      %v7054 = vunpack.c.h.b16 %v6878
      %v7055 = vunpack.c.l.b16 %v6879
      %v7056 = vunpack.c.h.b16 %v6879
      %v7057 = vunpack.c.l.b16 %v6880
      %v7058 = vunpack.c.h.b16 %v6880
      %v7059 = vunpack.c.l.b16 %v6881
      %v7060 = vunpack.c.h.b16 %v6881
      %v7061 = vunpack.c.l.b16 %v6882
      %v7062 = vunpack.c.h.b16 %v6882
      %v7063 = vunpack.c.l.b16 %v6883
      %v7064 = vunpack.c.h.b16 %v6883
      %v7065 = vunpack.c.l.b16 %v6884
      %v7066 = vunpack.c.h.b16 %v6884
      %v7067 = vunpack.c.l.b16 %v6885
      %v7068 = vunpack.c.h.b16 %v6885
      %v7069 = vunpack.c.l.b16 %v6886
      %v7070 = vunpack.c.h.b16 %v6886
      %v7071 = vunpack.c.l.b16 %v6887
      %v7072 = vunpack.c.h.b16 %v6887
      %v7073 = vunpack.c.l.b16 %v6888
      %v7074 = vunpack.c.h.b16 %v6888
      %v7075 = vunpack.c.l.b16 %v6889
      %v7076 = vunpack.c.h.b16 %v6889
      %v7077 = vunpack.c.l.b16 %v6890
      %v7078 = vunpack.c.h.b16 %v6890
      %v7079 = vunpack.c.l.b16 %v6891
      %v7080 = vunpack.c.h.b16 %v6891
      %v7081 = vunpack.c.l.b16 %v6892
      %v7082 = vunpack.c.h.b16 %v6892
      %v7083 = vunpack.c.l.b16 %v6893
      %v7084 = vunpack.c.h.b16 %v6893
      %v7085 = vunpack.c.l.b16 %v6894
      %v7086 = vunpack.c.h.b16 %v6894
      %v7087 = vpack.c.b16 %v6963, %v6959
      %v7088 = vpack.c.b16 %v6964, %v6960
      %v7089 = vpack.c.b16 %v6965, %v6961
      %v7090 = vpack.c.b16 %v6966, %v6962
      %v7091 = vpack.c.b16 %v6971, %v6967
      %v7092 = vpack.c.b16 %v6972, %v6968
      %v7093 = vpack.c.b16 %v6973, %v6969
      %v7094 = vpack.c.b16 %v6974, %v6970
      %v7095 = vpack.c.b16 %v6979, %v6975
      %v7096 = vpack.c.b16 %v6980, %v6976
      %v7097 = vpack.c.b16 %v6981, %v6977
      %v7098 = vpack.c.b16 %v6982, %v6978
      %v7099 = vpack.c.b16 %v6987, %v6983
      %v7100 = vpack.c.b16 %v6988, %v6984
      %v7101 = vpack.c.b16 %v6989, %v6985
      %v7102 = vpack.c.b16 %v6990, %v6986
      %v7103 = vpack.c.b16 %v6995, %v6991
      %v7104 = vpack.c.b16 %v6996, %v6992
      %v7105 = vpack.c.b16 %v6997, %v6993
      %v7106 = vpack.c.b16 %v6998, %v6994
      %v7107 = vpack.c.b16 %v7003, %v6999
      %v7108 = vpack.c.b16 %v7004, %v7000
      %v7109 = vpack.c.b16 %v7005, %v7001
      %v7110 = vpack.c.b16 %v7006, %v7002
      %v7111 = vpack.c.b16 %v7011, %v7007
      %v7112 = vpack.c.b16 %v7012, %v7008
      %v7113 = vpack.c.b16 %v7013, %v7009
      %v7114 = vpack.c.b16 %v7014, %v7010
      %v7115 = vpack.c.b16 %v7019, %v7015
      %v7116 = vpack.c.b16 %v7020, %v7016
      %v7117 = vpack.c.b16 %v7021, %v7017
      %v7118 = vpack.c.b16 %v7022, %v7018
      %v7119 = vpack.c.b16 %v7027, %v7023
      %v7120 = vpack.c.b16 %v7028, %v7024
      %v7121 = vpack.c.b16 %v7029, %v7025
      %v7122 = vpack.c.b16 %v7030, %v7026
      %v7123 = vpack.c.b16 %v7035, %v7031
      %v7124 = vpack.c.b16 %v7036, %v7032
      %v7125 = vpack.c.b16 %v7037, %v7033
      %v7126 = vpack.c.b16 %v7038, %v7034
      %v7127 = vpack.c.b16 %v7043, %v7039
      %v7128 = vpack.c.b16 %v7044, %v7040
      %v7129 = vpack.c.b16 %v7045, %v7041
      %v7130 = vpack.c.b16 %v7046, %v7042
      %v7131 = vpack.c.b16 %v7051, %v7047
      %v7132 = vpack.c.b16 %v7052, %v7048
      %v7133 = vpack.c.b16 %v7053, %v7049
      %v7134 = vpack.c.b16 %v7054, %v7050
      %v7135 = vpack.c.b16 %v7059, %v7055
      %v7136 = vpack.c.b16 %v7060, %v7056
      %v7137 = vpack.c.b16 %v7061, %v7057
      %v7138 = vpack.c.b16 %v7062, %v7058
      %v7139 = vpack.c.b16 %v7067, %v7063
      %v7140 = vpack.c.b16 %v7068, %v7064
      %v7141 = vpack.c.b16 %v7069, %v7065
      %v7142 = vpack.c.b16 %v7070, %v7066
      %v7143 = vpack.c.b16 %v7075, %v7071
      %v7144 = vpack.c.b16 %v7076, %v7072
      %v7145 = vpack.c.b16 %v7077, %v7073
      %v7146 = vpack.c.b16 %v7078, %v7074
      %v7147 = vpack.c.b16 %v7083, %v7079
      %v7148 = vpack.c.b16 %v7084, %v7080
      %v7149 = vpack.c.b16 %v7085, %v7081
      %v7150 = vpack.c.b16 %v7086, %v7082
      %7215 = vmatprep.subr.bf16.mxu0 %v7116
      %7216 = vmatpush1.bf16.msra.mxu0 %v7115
      %7217 = vmatprep.subr.bf16.mxu0 %v7112
      %7218 = vmatpush1.bf16.msra.mxu0 %v7111
      %7219 = vmatprep.subr.bf16.mxu0 %v7108
      %7220 = vmatpush1.bf16.msra.mxu0 %v7107
      %7221 = vmatprep.subr.bf16.mxu0 %v7104
      %7222 = vmatpush1.bf16.msra.mxu0 %v7103
      %7223 = vmatprep.subr.bf16.mxu0 %v7100
      %7224 = vmatpush1.bf16.msra.mxu0 %v7099
      %7225 = vmatprep.subr.bf16.mxu0 %v7096
      %7226 = vmatpush1.bf16.msra.mxu0 %v7095
      %7227 = vmatprep.subr.bf16.mxu0 %v7092
      %7228 = vmatpush1.bf16.msra.mxu0 %v7091
      %7229 = vmatprep.subr.bf16.mxu0 %v7088
      %7230 = vmatpush1.bf16.msra.mxu0 %v7087
      %7231 = vmatprep.subr.bf16.mxu0 %v7148
      %7232 = vmatpush2.bf16.msra.mxu0 %v7147
      %7233 = vmatprep.subr.bf16.mxu0 %v7144
      %7234 = vmatpush2.bf16.msra.mxu0 %v7143
      %7235 = vmatprep.subr.bf16.mxu0 %v7140
      %7236 = vmatpush2.bf16.msra.mxu0 %v7139
      %7237 = vmatprep.subr.bf16.mxu0 %v7136
      %7238 = vmatpush2.bf16.msra.mxu0 %v7135
      %7239 = vmatprep.subr.bf16.mxu0 %v7132
      %7240 = vmatpush2.bf16.msra.mxu0 %v7131
      %7241 = vmatprep.subr.bf16.mxu0 %v7128
      %7242 = vmatpush2.bf16.msra.mxu0 %v7127
      %7243 = vmatprep.subr.bf16.mxu0 %v7124
      %7244 = vmatpush2.bf16.msra.mxu0 %v7123
      %7245 = vmatprep.subr.bf16.mxu0 %v7120
      %7246 = vmatpush2.bf16.msra.mxu0 %v7119
      %7247 = vmatprep.mubr.bf16.mxu0 %v6829
      %7248 = vmatmul.mubr.bf16.gmra.mxu0 %v6828
      %v7249 = vpop.f32.mrf.mxu0
      %v7250 = vadd.f32 0.0, %v7249
      %v7251 = vpop.f32.mrf.mxu0
      %v7252 = vadd.f32 0.0, %v7251
      %v7253 = vpop.f32.mrf.mxu0
      %v7254 = vpop.f32.mrf.mxu0
      %7255 = vdwg.mxu0
      %7256 = vmatprep.subr.bf16.mxu0 %v7118
      %7257 = vmatpush1.bf16.msra.mxu0 %v7117
      %7258 = vmatprep.subr.bf16.mxu0 %v7114
      %7259 = vmatpush1.bf16.msra.mxu0 %v7113
      %7260 = vmatprep.subr.bf16.mxu0 %v7110
      %7261 = vmatpush1.bf16.msra.mxu0 %v7109
      %7262 = vmatprep.subr.bf16.mxu0 %v7106
      %7263 = vmatpush1.bf16.msra.mxu0 %v7105
      %7264 = vmatprep.subr.bf16.mxu0 %v7102
      %7265 = vmatpush1.bf16.msra.mxu0 %v7101
      %7266 = vmatprep.subr.bf16.mxu0 %v7098
      %7267 = vmatpush1.bf16.msra.mxu0 %v7097
      %7268 = vmatprep.subr.bf16.mxu0 %v7094
      %7269 = vmatpush1.bf16.msra.mxu0 %v7093
      %7270 = vmatprep.subr.bf16.mxu0 %v7090
      %7271 = vmatpush1.bf16.msra.mxu0 %v7089
      %7272 = vmatprep.subr.bf16.mxu0 %v7150
      %7273 = vmatpush2.bf16.msra.mxu0 %v7149
      %7274 = vmatprep.subr.bf16.mxu0 %v7146
      %7275 = vmatpush2.bf16.msra.mxu0 %v7145
      %7276 = vmatprep.subr.bf16.mxu0 %v7142
      %7277 = vmatpush2.bf16.msra.mxu0 %v7141
      %7278 = vmatprep.subr.bf16.mxu0 %v7138
      %7279 = vmatpush2.bf16.msra.mxu0 %v7137
      %7280 = vmatprep.subr.bf16.mxu0 %v7134
      %7281 = vmatpush2.bf16.msra.mxu0 %v7133
      %7282 = vmatprep.subr.bf16.mxu0 %v7130
      %7283 = vmatpush2.bf16.msra.mxu0 %v7129
      %7284 = vmatprep.subr.bf16.mxu0 %v7126
      %7285 = vmatpush2.bf16.msra.mxu0 %v7125
      %7286 = vmatprep.subr.bf16.mxu0 %v7122
      %7287 = vmatpush2.bf16.msra.mxu0 %v7121
      %7288 = vmatprep.mubr.bf16.mxu0 %v6829
      %7289 = vmatmul.mubr.bf16.gmra.mxu0 %v6828
      %v7290 = vpop.f32.mrf.mxu0
      %v7291 = vadd.f32 0.0, %v7290
      %v7292 = vpop.f32.mrf.mxu0
      %v7293 = vadd.f32 0.0, %v7292
      %v7294 = vpop.f32.mrf.mxu0
      %v7295 = vpop.f32.mrf.mxu0
      %7296 = vdwg.mxu0
      %v7297 = vadd.f32 %v6778, %v7250
      %v7298 = vadd.f32 %v6779, %v7252
      %v7299 = vadd.f32 %v6780, %v7291
      %v7300 = vadd.f32 %v6781, %v7293
      %s7301 = scalar_lea.vmem %s9, 8
      %v7302 = vld [vmem:[%s7301] sm:$0x3]
      %v7304 = vsel %vm5235, %v7302, 0
      %7306 = vmatprep.subr.bf16.mxu0 0
      %7307 = vmatpush1.bf16.msra.mxu0 0
      %7308 = vmatprep.subr.bf16.mxu0 0
      %7309 = vmatpush1.bf16.msra.mxu0 0
      %7310 = vmatprep.subr.bf16.mxu0 0
      %7311 = vmatpush1.bf16.msra.mxu0 0
      %7312 = vmatprep.subr.bf16.mxu0 0
      %7313 = vmatpush1.bf16.msra.mxu0 0
      %7314 = vmatprep.subr.bf16.mxu0 0
      %7315 = vmatpush1.bf16.msra.mxu0 0
      %7316 = vmatprep.subr.bf16.mxu0 0
      %7317 = vmatpush1.bf16.msra.mxu0 0
      %7318 = vmatprep.subr.bf16.mxu0 0
      %7319 = vmatpush1.bf16.msra.mxu0 0
      %7320 = vmatprep.subr.bf16.mxu0 %v5233
      %7321 = vmatpush1.bf16.msra.mxu0 %v5232
      %7322 = vmatprep.subr.bf16.mxu0 0
      %7323 = vmatpush2.bf16.msra.mxu0 0
      %7324 = vmatprep.subr.bf16.mxu0 0
      %7325 = vmatpush2.bf16.msra.mxu0 0
      %7326 = vmatprep.subr.bf16.mxu0 0
      %7327 = vmatpush2.bf16.msra.mxu0 0
      %7328 = vmatprep.subr.bf16.mxu0 0
      %7329 = vmatpush2.bf16.msra.mxu0 0
      %7330 = vmatprep.subr.bf16.mxu0 0
      %7331 = vmatpush2.bf16.msra.mxu0 0
      %7332 = vmatprep.subr.bf16.mxu0 0
      %7333 = vmatpush2.bf16.msra.mxu0 0
      %7334 = vmatprep.subr.bf16.mxu0 0
      %7335 = vmatpush2.bf16.msra.mxu0 0
      %7336 = vmatprep.subr.bf16.mxu0 0
      %7337 = vmatpush2.bf16.msra.mxu0 0
      %7338 = vmatprep.mubr.bf16.mxu0 0
      %7339 = vmatmul.mubr.bf16.gmra.mxu0 %v7304
      %v7340 = vpop.f32.mrf.mxu0
      %v7341 = vadd.f32 0.0, %v7340
      %v7342 = vpop.f32.mrf.mxu0
      %v7343 = vadd.f32 0.0, %v7342
      %v7344 = vpop.f32.mrf.mxu0
      %v7345 = vpop.f32.mrf.mxu0
      %7346 = vdwg.mxu0
      %v7347 = vpack.c.bf16 %v7341, %v7341
      %v7348 = vpack.c.bf16 %v7343, %v7343
      %s7349 = scalar_lea.vmem %s10, 2048
      %v7350 = vld [vmem:[%s7349] sm:$0xff]
      %v7351 = vld [vmem:[%s7349 + $0x8] sm:$0xff]
      %v7352 = vld [vmem:[%s7349 + $0x10] sm:$0xff]
      %v7353 = vld [vmem:[%s7349 + $0x18] sm:$0xff]
      %v7354 = vld [vmem:[%s7349 + $0x20] sm:$0xff]
      %v7355 = vld [vmem:[%s7349 + $0x28] sm:$0xff]
      %v7356 = vld [vmem:[%s7349 + $0x30] sm:$0xff]
      %v7357 = vld [vmem:[%s7349 + $0x38] sm:$0xff]
      %v7358 = vld [vmem:[%s7349 + $0x40] sm:$0xff]
      %v7359 = vld [vmem:[%s7349 + $0x48] sm:$0xff]
      %v7360 = vld [vmem:[%s7349 + $0x50] sm:$0xff]
      %v7361 = vld [vmem:[%s7349 + $0x58] sm:$0xff]
      %v7362 = vld [vmem:[%s7349 + $0x60] sm:$0xff]
      %v7363 = vld [vmem:[%s7349 + $0x68] sm:$0xff]
      %v7364 = vld [vmem:[%s7349 + $0x70] sm:$0xff]
      %v7365 = vld [vmem:[%s7349 + $0x78] sm:$0xff]
      %v7366 = vld [vmem:[%s7349 + $0x80] sm:$0xff]
      %v7367 = vld [vmem:[%s7349 + $0x88] sm:$0xff]
      %v7368 = vld [vmem:[%s7349 + $0x90] sm:$0xff]
      %v7369 = vld [vmem:[%s7349 + $0x98] sm:$0xff]
      %v7370 = vld [vmem:[%s7349 + $0xa0] sm:$0xff]
      %v7371 = vld [vmem:[%s7349 + $0xa8] sm:$0xff]
      %v7372 = vld [vmem:[%s7349 + $0xb0] sm:$0xff]
      %v7373 = vld [vmem:[%s7349 + $0xb8] sm:$0xff]
      %v7374 = vld [vmem:[%s7349 + $0xc0] sm:$0xff]
      %v7375 = vld [vmem:[%s7349 + $0xc8] sm:$0xff]
      %v7376 = vld [vmem:[%s7349 + $0xd0] sm:$0xff]
      %v7377 = vld [vmem:[%s7349 + $0xd8] sm:$0xff]
      %v7378 = vld [vmem:[%s7349 + $0xe0] sm:$0xff]
      %v7379 = vld [vmem:[%s7349 + $0xe8] sm:$0xff]
      %v7380 = vld [vmem:[%s7349 + $0xf0] sm:$0xff]
      %v7381 = vld [vmem:[%s7349 + $0xf8] sm:$0xff]
      %v7382 = vld [vmem:[%s7349 + $0x100] sm:$0xff]
      %v7383 = vld [vmem:[%s7349 + $0x108] sm:$0xff]
      %v7384 = vld [vmem:[%s7349 + $0x110] sm:$0xff]
      %v7385 = vld [vmem:[%s7349 + $0x118] sm:$0xff]
      %v7386 = vld [vmem:[%s7349 + $0x120] sm:$0xff]
      %v7387 = vld [vmem:[%s7349 + $0x128] sm:$0xff]
      %v7388 = vld [vmem:[%s7349 + $0x130] sm:$0xff]
      %v7389 = vld [vmem:[%s7349 + $0x138] sm:$0xff]
      %v7390 = vld [vmem:[%s7349 + $0x140] sm:$0xff]
      %v7391 = vld [vmem:[%s7349 + $0x148] sm:$0xff]
      %v7392 = vld [vmem:[%s7349 + $0x150] sm:$0xff]
      %v7393 = vld [vmem:[%s7349 + $0x158] sm:$0xff]
      %v7394 = vld [vmem:[%s7349 + $0x160] sm:$0xff]
      %v7395 = vld [vmem:[%s7349 + $0x168] sm:$0xff]
      %v7396 = vld [vmem:[%s7349 + $0x170] sm:$0xff]
      %v7397 = vld [vmem:[%s7349 + $0x178] sm:$0xff]
      %v7398 = vld [vmem:[%s7349 + $0x180] sm:$0xff]
      %v7399 = vld [vmem:[%s7349 + $0x188] sm:$0xff]
      %v7400 = vld [vmem:[%s7349 + $0x190] sm:$0xff]
      %v7401 = vld [vmem:[%s7349 + $0x198] sm:$0xff]
      %v7402 = vld [vmem:[%s7349 + $0x1a0] sm:$0xff]
      %v7403 = vld [vmem:[%s7349 + $0x1a8] sm:$0xff]
      %v7404 = vld [vmem:[%s7349 + $0x1b0] sm:$0xff]
      %v7405 = vld [vmem:[%s7349 + $0x1b8] sm:$0xff]
      %v7406 = vld [vmem:[%s7349 + $0x1c0] sm:$0xff]
      %v7407 = vld [vmem:[%s7349 + $0x1c8] sm:$0xff]
      %v7408 = vld [vmem:[%s7349 + $0x1d0] sm:$0xff]
      %v7409 = vld [vmem:[%s7349 + $0x1d8] sm:$0xff]
      %v7410 = vld [vmem:[%s7349 + $0x1e0] sm:$0xff]
      %v7411 = vld [vmem:[%s7349 + $0x1e8] sm:$0xff]
      %v7412 = vld [vmem:[%s7349 + $0x1f0] sm:$0xff]
      %v7413 = vld [vmem:[%s7349 + $0x1f8] sm:$0xff]
      %v7478 = vunpack.c.l.b16 %v7350
      %v7479 = vunpack.c.h.b16 %v7350
      %v7480 = vunpack.c.l.b16 %v7351
      %v7481 = vunpack.c.h.b16 %v7351
      %v7482 = vunpack.c.l.b16 %v7352
      %v7483 = vunpack.c.h.b16 %v7352
      %v7484 = vunpack.c.l.b16 %v7353
      %v7485 = vunpack.c.h.b16 %v7353
      %v7486 = vunpack.c.l.b16 %v7354
      %v7487 = vunpack.c.h.b16 %v7354
      %v7488 = vunpack.c.l.b16 %v7355
      %v7489 = vunpack.c.h.b16 %v7355
      %v7490 = vunpack.c.l.b16 %v7356
      %v7491 = vunpack.c.h.b16 %v7356
      %v7492 = vunpack.c.l.b16 %v7357
      %v7493 = vunpack.c.h.b16 %v7357
      %v7494 = vunpack.c.l.b16 %v7358
      %v7495 = vunpack.c.h.b16 %v7358
      %v7496 = vunpack.c.l.b16 %v7359
      %v7497 = vunpack.c.h.b16 %v7359
      %v7498 = vunpack.c.l.b16 %v7360
      %v7499 = vunpack.c.h.b16 %v7360
      %v7500 = vunpack.c.l.b16 %v7361
      %v7501 = vunpack.c.h.b16 %v7361
      %v7502 = vunpack.c.l.b16 %v7362
      %v7503 = vunpack.c.h.b16 %v7362
      %v7504 = vunpack.c.l.b16 %v7363
      %v7505 = vunpack.c.h.b16 %v7363
      %v7506 = vunpack.c.l.b16 %v7364
      %v7507 = vunpack.c.h.b16 %v7364
      %v7508 = vunpack.c.l.b16 %v7365
      %v7509 = vunpack.c.h.b16 %v7365
      %v7510 = vunpack.c.l.b16 %v7366
      %v7511 = vunpack.c.h.b16 %v7366
      %v7512 = vunpack.c.l.b16 %v7367
      %v7513 = vunpack.c.h.b16 %v7367
      %v7514 = vunpack.c.l.b16 %v7368
      %v7515 = vunpack.c.h.b16 %v7368
      %v7516 = vunpack.c.l.b16 %v7369
      %v7517 = vunpack.c.h.b16 %v7369
      %v7518 = vunpack.c.l.b16 %v7370
      %v7519 = vunpack.c.h.b16 %v7370
      %v7520 = vunpack.c.l.b16 %v7371
      %v7521 = vunpack.c.h.b16 %v7371
      %v7522 = vunpack.c.l.b16 %v7372
      %v7523 = vunpack.c.h.b16 %v7372
      %v7524 = vunpack.c.l.b16 %v7373
      %v7525 = vunpack.c.h.b16 %v7373
      %v7526 = vunpack.c.l.b16 %v7374
      %v7527 = vunpack.c.h.b16 %v7374
      %v7528 = vunpack.c.l.b16 %v7375
      %v7529 = vunpack.c.h.b16 %v7375
      %v7530 = vunpack.c.l.b16 %v7376
      %v7531 = vunpack.c.h.b16 %v7376
      %v7532 = vunpack.c.l.b16 %v7377
      %v7533 = vunpack.c.h.b16 %v7377
      %v7534 = vunpack.c.l.b16 %v7378
      %v7535 = vunpack.c.h.b16 %v7378
      %v7536 = vunpack.c.l.b16 %v7379
      %v7537 = vunpack.c.h.b16 %v7379
      %v7538 = vunpack.c.l.b16 %v7380
      %v7539 = vunpack.c.h.b16 %v7380
      %v7540 = vunpack.c.l.b16 %v7381
      %v7541 = vunpack.c.h.b16 %v7381
      %v7542 = vunpack.c.l.b16 %v7382
      %v7543 = vunpack.c.h.b16 %v7382
      %v7544 = vunpack.c.l.b16 %v7383
      %v7545 = vunpack.c.h.b16 %v7383
      %v7546 = vunpack.c.l.b16 %v7384
      %v7547 = vunpack.c.h.b16 %v7384
      %v7548 = vunpack.c.l.b16 %v7385
      %v7549 = vunpack.c.h.b16 %v7385
      %v7550 = vunpack.c.l.b16 %v7386
      %v7551 = vunpack.c.h.b16 %v7386
      %v7552 = vunpack.c.l.b16 %v7387
      %v7553 = vunpack.c.h.b16 %v7387
      %v7554 = vunpack.c.l.b16 %v7388
      %v7555 = vunpack.c.h.b16 %v7388
      %v7556 = vunpack.c.l.b16 %v7389
      %v7557 = vunpack.c.h.b16 %v7389
      %v7558 = vunpack.c.l.b16 %v7390
      %v7559 = vunpack.c.h.b16 %v7390
      %v7560 = vunpack.c.l.b16 %v7391
      %v7561 = vunpack.c.h.b16 %v7391
      %v7562 = vunpack.c.l.b16 %v7392
      %v7563 = vunpack.c.h.b16 %v7392
      %v7564 = vunpack.c.l.b16 %v7393
      %v7565 = vunpack.c.h.b16 %v7393
      %v7566 = vunpack.c.l.b16 %v7394
      %v7567 = vunpack.c.h.b16 %v7394
      %v7568 = vunpack.c.l.b16 %v7395
      %v7569 = vunpack.c.h.b16 %v7395
      %v7570 = vunpack.c.l.b16 %v7396
      %v7571 = vunpack.c.h.b16 %v7396
      %v7572 = vunpack.c.l.b16 %v7397
      %v7573 = vunpack.c.h.b16 %v7397
      %v7574 = vunpack.c.l.b16 %v7398
      %v7575 = vunpack.c.h.b16 %v7398
      %v7576 = vunpack.c.l.b16 %v7399
      %v7577 = vunpack.c.h.b16 %v7399
      %v7578 = vunpack.c.l.b16 %v7400
      %v7579 = vunpack.c.h.b16 %v7400
      %v7580 = vunpack.c.l.b16 %v7401
      %v7581 = vunpack.c.h.b16 %v7401
      %v7582 = vunpack.c.l.b16 %v7402
      %v7583 = vunpack.c.h.b16 %v7402
      %v7584 = vunpack.c.l.b16 %v7403
      %v7585 = vunpack.c.h.b16 %v7403
      %v7586 = vunpack.c.l.b16 %v7404
      %v7587 = vunpack.c.h.b16 %v7404
      %v7588 = vunpack.c.l.b16 %v7405
      %v7589 = vunpack.c.h.b16 %v7405
      %v7590 = vunpack.c.l.b16 %v7406
      %v7591 = vunpack.c.h.b16 %v7406
      %v7592 = vunpack.c.l.b16 %v7407
      %v7593 = vunpack.c.h.b16 %v7407
      %v7594 = vunpack.c.l.b16 %v7408
      %v7595 = vunpack.c.h.b16 %v7408
      %v7596 = vunpack.c.l.b16 %v7409
      %v7597 = vunpack.c.h.b16 %v7409
      %v7598 = vunpack.c.l.b16 %v7410
      %v7599 = vunpack.c.h.b16 %v7410
      %v7600 = vunpack.c.l.b16 %v7411
      %v7601 = vunpack.c.h.b16 %v7411
      %v7602 = vunpack.c.l.b16 %v7412
      %v7603 = vunpack.c.h.b16 %v7412
      %v7604 = vunpack.c.l.b16 %v7413
      %v7605 = vunpack.c.h.b16 %v7413
      %v7606 = vpack.c.b16 %v7482, %v7478
      %v7607 = vpack.c.b16 %v7483, %v7479
      %v7608 = vpack.c.b16 %v7484, %v7480
      %v7609 = vpack.c.b16 %v7485, %v7481
      %v7610 = vpack.c.b16 %v7490, %v7486
      %v7611 = vpack.c.b16 %v7491, %v7487
      %v7612 = vpack.c.b16 %v7492, %v7488
      %v7613 = vpack.c.b16 %v7493, %v7489
      %v7614 = vpack.c.b16 %v7498, %v7494
      %v7615 = vpack.c.b16 %v7499, %v7495
      %v7616 = vpack.c.b16 %v7500, %v7496
      %v7617 = vpack.c.b16 %v7501, %v7497
      %v7618 = vpack.c.b16 %v7506, %v7502
      %v7619 = vpack.c.b16 %v7507, %v7503
      %v7620 = vpack.c.b16 %v7508, %v7504
      %v7621 = vpack.c.b16 %v7509, %v7505
      %v7622 = vpack.c.b16 %v7514, %v7510
      %v7623 = vpack.c.b16 %v7515, %v7511
      %v7624 = vpack.c.b16 %v7516, %v7512
      %v7625 = vpack.c.b16 %v7517, %v7513
      %v7626 = vpack.c.b16 %v7522, %v7518
      %v7627 = vpack.c.b16 %v7523, %v7519
      %v7628 = vpack.c.b16 %v7524, %v7520
      %v7629 = vpack.c.b16 %v7525, %v7521
      %v7630 = vpack.c.b16 %v7530, %v7526
      %v7631 = vpack.c.b16 %v7531, %v7527
      %v7632 = vpack.c.b16 %v7532, %v7528
      %v7633 = vpack.c.b16 %v7533, %v7529
      %v7634 = vpack.c.b16 %v7538, %v7534
      %v7635 = vpack.c.b16 %v7539, %v7535
      %v7636 = vpack.c.b16 %v7540, %v7536
      %v7637 = vpack.c.b16 %v7541, %v7537
      %v7638 = vpack.c.b16 %v7546, %v7542
      %v7639 = vpack.c.b16 %v7547, %v7543
      %v7640 = vpack.c.b16 %v7548, %v7544
      %v7641 = vpack.c.b16 %v7549, %v7545
      %v7642 = vpack.c.b16 %v7554, %v7550
      %v7643 = vpack.c.b16 %v7555, %v7551
      %v7644 = vpack.c.b16 %v7556, %v7552
      %v7645 = vpack.c.b16 %v7557, %v7553
      %v7646 = vpack.c.b16 %v7562, %v7558
      %v7647 = vpack.c.b16 %v7563, %v7559
      %v7648 = vpack.c.b16 %v7564, %v7560
      %v7649 = vpack.c.b16 %v7565, %v7561
      %v7650 = vpack.c.b16 %v7570, %v7566
      %v7651 = vpack.c.b16 %v7571, %v7567
      %v7652 = vpack.c.b16 %v7572, %v7568
      %v7653 = vpack.c.b16 %v7573, %v7569
      %v7654 = vpack.c.b16 %v7578, %v7574
      %v7655 = vpack.c.b16 %v7579, %v7575
      %v7656 = vpack.c.b16 %v7580, %v7576
      %v7657 = vpack.c.b16 %v7581, %v7577
      %v7658 = vpack.c.b16 %v7586, %v7582
      %v7659 = vpack.c.b16 %v7587, %v7583
      %v7660 = vpack.c.b16 %v7588, %v7584
      %v7661 = vpack.c.b16 %v7589, %v7585
      %v7662 = vpack.c.b16 %v7594, %v7590
      %v7663 = vpack.c.b16 %v7595, %v7591
      %v7664 = vpack.c.b16 %v7596, %v7592
      %v7665 = vpack.c.b16 %v7597, %v7593
      %v7666 = vpack.c.b16 %v7602, %v7598
      %v7667 = vpack.c.b16 %v7603, %v7599
      %v7668 = vpack.c.b16 %v7604, %v7600
      %v7669 = vpack.c.b16 %v7605, %v7601
      %7734 = vmatprep.subr.bf16.mxu0 %v7635
      %7735 = vmatpush1.bf16.msra.mxu0 %v7634
      %7736 = vmatprep.subr.bf16.mxu0 %v7631
      %7737 = vmatpush1.bf16.msra.mxu0 %v7630
      %7738 = vmatprep.subr.bf16.mxu0 %v7627
      %7739 = vmatpush1.bf16.msra.mxu0 %v7626
      %7740 = vmatprep.subr.bf16.mxu0 %v7623
      %7741 = vmatpush1.bf16.msra.mxu0 %v7622
      %7742 = vmatprep.subr.bf16.mxu0 %v7619
      %7743 = vmatpush1.bf16.msra.mxu0 %v7618
      %7744 = vmatprep.subr.bf16.mxu0 %v7615
      %7745 = vmatpush1.bf16.msra.mxu0 %v7614
      %7746 = vmatprep.subr.bf16.mxu0 %v7611
      %7747 = vmatpush1.bf16.msra.mxu0 %v7610
      %7748 = vmatprep.subr.bf16.mxu0 %v7607
      %7749 = vmatpush1.bf16.msra.mxu0 %v7606
      %7750 = vmatprep.subr.bf16.mxu0 %v7667
      %7751 = vmatpush2.bf16.msra.mxu0 %v7666
      %7752 = vmatprep.subr.bf16.mxu0 %v7663
      %7753 = vmatpush2.bf16.msra.mxu0 %v7662
      %7754 = vmatprep.subr.bf16.mxu0 %v7659
      %7755 = vmatpush2.bf16.msra.mxu0 %v7658
      %7756 = vmatprep.subr.bf16.mxu0 %v7655
      %7757 = vmatpush2.bf16.msra.mxu0 %v7654
      %7758 = vmatprep.subr.bf16.mxu0 %v7651
      %7759 = vmatpush2.bf16.msra.mxu0 %v7650
      %7760 = vmatprep.subr.bf16.mxu0 %v7647
      %7761 = vmatpush2.bf16.msra.mxu0 %v7646
      %7762 = vmatprep.subr.bf16.mxu0 %v7643
      %7763 = vmatpush2.bf16.msra.mxu0 %v7642
      %7764 = vmatprep.subr.bf16.mxu0 %v7639
      %7765 = vmatpush2.bf16.msra.mxu0 %v7638
      %7766 = vmatprep.mubr.bf16.mxu0 %v7348
      %7767 = vmatmul.mubr.bf16.gmra.mxu0 %v7347
      %v7768 = vpop.f32.mrf.mxu0
      %v7769 = vadd.f32 0.0, %v7768
      %v7770 = vpop.f32.mrf.mxu0
      %v7771 = vadd.f32 0.0, %v7770
      %v7772 = vpop.f32.mrf.mxu0
      %v7773 = vpop.f32.mrf.mxu0
      %7774 = vdwg.mxu0
      %7775 = vmatprep.subr.bf16.mxu0 %v7637
      %7776 = vmatpush1.bf16.msra.mxu0 %v7636
      %7777 = vmatprep.subr.bf16.mxu0 %v7633
      %7778 = vmatpush1.bf16.msra.mxu0 %v7632
      %7779 = vmatprep.subr.bf16.mxu0 %v7629
      %7780 = vmatpush1.bf16.msra.mxu0 %v7628
      %7781 = vmatprep.subr.bf16.mxu0 %v7625
      %7782 = vmatpush1.bf16.msra.mxu0 %v7624
      %7783 = vmatprep.subr.bf16.mxu0 %v7621
      %7784 = vmatpush1.bf16.msra.mxu0 %v7620
      %7785 = vmatprep.subr.bf16.mxu0 %v7617
      %7786 = vmatpush1.bf16.msra.mxu0 %v7616
      %7787 = vmatprep.subr.bf16.mxu0 %v7613
      %7788 = vmatpush1.bf16.msra.mxu0 %v7612
      %7789 = vmatprep.subr.bf16.mxu0 %v7609
      %7790 = vmatpush1.bf16.msra.mxu0 %v7608
      %7791 = vmatprep.subr.bf16.mxu0 %v7669
      %7792 = vmatpush2.bf16.msra.mxu0 %v7668
      %7793 = vmatprep.subr.bf16.mxu0 %v7665
      %7794 = vmatpush2.bf16.msra.mxu0 %v7664
      %7795 = vmatprep.subr.bf16.mxu0 %v7661
      %7796 = vmatpush2.bf16.msra.mxu0 %v7660
      %7797 = vmatprep.subr.bf16.mxu0 %v7657
      %7798 = vmatpush2.bf16.msra.mxu0 %v7656
      %7799 = vmatprep.subr.bf16.mxu0 %v7653
      %7800 = vmatpush2.bf16.msra.mxu0 %v7652
      %7801 = vmatprep.subr.bf16.mxu0 %v7649
      %7802 = vmatpush2.bf16.msra.mxu0 %v7648
      %7803 = vmatprep.subr.bf16.mxu0 %v7645
      %7804 = vmatpush2.bf16.msra.mxu0 %v7644
      %7805 = vmatprep.subr.bf16.mxu0 %v7641
      %7806 = vmatpush2.bf16.msra.mxu0 %v7640
      %7807 = vmatprep.mubr.bf16.mxu0 %v7348
      %7808 = vmatmul.mubr.bf16.gmra.mxu0 %v7347
      %v7809 = vpop.f32.mrf.mxu0
      %v7810 = vadd.f32 0.0, %v7809
      %v7811 = vpop.f32.mrf.mxu0
      %v7812 = vadd.f32 0.0, %v7811
      %v7813 = vpop.f32.mrf.mxu0
      %v7814 = vpop.f32.mrf.mxu0
      %7815 = vdwg.mxu0
      %v7816 = vadd.f32 %v7297, %v7769
      %v7817 = vadd.f32 %v7298, %v7771
      %v7818 = vadd.f32 %v7299, %v7810
      %v7819 = vadd.f32 %v7300, %v7812
      %s7820 = scalar_lea.vmem %s9, 10
      %v7821 = vld [vmem:[%s7820] sm:$0x3]
      %v7823 = vsel %vm5235, %v7821, 0
      %7825 = vmatprep.subr.bf16.mxu0 0
      %7826 = vmatpush1.bf16.msra.mxu0 0
      %7827 = vmatprep.subr.bf16.mxu0 0
      %7828 = vmatpush1.bf16.msra.mxu0 0
      %7829 = vmatprep.subr.bf16.mxu0 0
      %7830 = vmatpush1.bf16.msra.mxu0 0
      %7831 = vmatprep.subr.bf16.mxu0 0
      %7832 = vmatpush1.bf16.msra.mxu0 0
      %7833 = vmatprep.subr.bf16.mxu0 0
      %7834 = vmatpush1.bf16.msra.mxu0 0
      %7835 = vmatprep.subr.bf16.mxu0 0
      %7836 = vmatpush1.bf16.msra.mxu0 0
      %7837 = vmatprep.subr.bf16.mxu0 0
      %7838 = vmatpush1.bf16.msra.mxu0 0
      %7839 = vmatprep.subr.bf16.mxu0 %v5233
      %7840 = vmatpush1.bf16.msra.mxu0 %v5232
      %7841 = vmatprep.subr.bf16.mxu0 0
      %7842 = vmatpush2.bf16.msra.mxu0 0
      %7843 = vmatprep.subr.bf16.mxu0 0
      %7844 = vmatpush2.bf16.msra.mxu0 0
      %7845 = vmatprep.subr.bf16.mxu0 0
      %7846 = vmatpush2.bf16.msra.mxu0 0
      %7847 = vmatprep.subr.bf16.mxu0 0
      %7848 = vmatpush2.bf16.msra.mxu0 0
      %7849 = vmatprep.subr.bf16.mxu0 0
      %7850 = vmatpush2.bf16.msra.mxu0 0
      %7851 = vmatprep.subr.bf16.mxu0 0
      %7852 = vmatpush2.bf16.msra.mxu0 0
      %7853 = vmatprep.subr.bf16.mxu0 0
      %7854 = vmatpush2.bf16.msra.mxu0 0
      %7855 = vmatprep.subr.bf16.mxu0 0
      %7856 = vmatpush2.bf16.msra.mxu0 0
      %7857 = vmatprep.mubr.bf16.mxu0 0
      %7858 = vmatmul.mubr.bf16.gmra.mxu0 %v7823
      %v7859 = vpop.f32.mrf.mxu0
      %v7860 = vadd.f32 0.0, %v7859
      %v7861 = vpop.f32.mrf.mxu0
      %v7862 = vadd.f32 0.0, %v7861
      %v7863 = vpop.f32.mrf.mxu0
      %v7864 = vpop.f32.mrf.mxu0
      %7865 = vdwg.mxu0
      %v7866 = vpack.c.bf16 %v7860, %v7860
      %v7867 = vpack.c.bf16 %v7862, %v7862
      %s7868 = scalar_lea.vmem %s10, 2560
      %v7869 = vld [vmem:[%s7868] sm:$0xff]
      %v7870 = vld [vmem:[%s7868 + $0x8] sm:$0xff]
      %v7871 = vld [vmem:[%s7868 + $0x10] sm:$0xff]
      %v7872 = vld [vmem:[%s7868 + $0x18] sm:$0xff]
      %v7873 = vld [vmem:[%s7868 + $0x20] sm:$0xff]
      %v7874 = vld [vmem:[%s7868 + $0x28] sm:$0xff]
      %v7875 = vld [vmem:[%s7868 + $0x30] sm:$0xff]
      %v7876 = vld [vmem:[%s7868 + $0x38] sm:$0xff]
      %v7877 = vld [vmem:[%s7868 + $0x40] sm:$0xff]
      %v7878 = vld [vmem:[%s7868 + $0x48] sm:$0xff]
      %v7879 = vld [vmem:[%s7868 + $0x50] sm:$0xff]
      %v7880 = vld [vmem:[%s7868 + $0x58] sm:$0xff]
      %v7881 = vld [vmem:[%s7868 + $0x60] sm:$0xff]
      %v7882 = vld [vmem:[%s7868 + $0x68] sm:$0xff]
      %v7883 = vld [vmem:[%s7868 + $0x70] sm:$0xff]
      %v7884 = vld [vmem:[%s7868 + $0x78] sm:$0xff]
      %v7885 = vld [vmem:[%s7868 + $0x80] sm:$0xff]
      %v7886 = vld [vmem:[%s7868 + $0x88] sm:$0xff]
      %v7887 = vld [vmem:[%s7868 + $0x90] sm:$0xff]
      %v7888 = vld [vmem:[%s7868 + $0x98] sm:$0xff]
      %v7889 = vld [vmem:[%s7868 + $0xa0] sm:$0xff]
      %v7890 = vld [vmem:[%s7868 + $0xa8] sm:$0xff]
      %v7891 = vld [vmem:[%s7868 + $0xb0] sm:$0xff]
      %v7892 = vld [vmem:[%s7868 + $0xb8] sm:$0xff]
      %v7893 = vld [vmem:[%s7868 + $0xc0] sm:$0xff]
      %v7894 = vld [vmem:[%s7868 + $0xc8] sm:$0xff]
      %v7895 = vld [vmem:[%s7868 + $0xd0] sm:$0xff]
      %v7896 = vld [vmem:[%s7868 + $0xd8] sm:$0xff]
      %v7897 = vld [vmem:[%s7868 + $0xe0] sm:$0xff]
      %v7898 = vld [vmem:[%s7868 + $0xe8] sm:$0xff]
      %v7899 = vld [vmem:[%s7868 + $0xf0] sm:$0xff]
      %v7900 = vld [vmem:[%s7868 + $0xf8] sm:$0xff]
      %v7901 = vld [vmem:[%s7868 + $0x100] sm:$0xff]
      %v7902 = vld [vmem:[%s7868 + $0x108] sm:$0xff]
      %v7903 = vld [vmem:[%s7868 + $0x110] sm:$0xff]
      %v7904 = vld [vmem:[%s7868 + $0x118] sm:$0xff]
      %v7905 = vld [vmem:[%s7868 + $0x120] sm:$0xff]
      %v7906 = vld [vmem:[%s7868 + $0x128] sm:$0xff]
      %v7907 = vld [vmem:[%s7868 + $0x130] sm:$0xff]
      %v7908 = vld [vmem:[%s7868 + $0x138] sm:$0xff]
      %v7909 = vld [vmem:[%s7868 + $0x140] sm:$0xff]
      %v7910 = vld [vmem:[%s7868 + $0x148] sm:$0xff]
      %v7911 = vld [vmem:[%s7868 + $0x150] sm:$0xff]
      %v7912 = vld [vmem:[%s7868 + $0x158] sm:$0xff]
      %v7913 = vld [vmem:[%s7868 + $0x160] sm:$0xff]
      %v7914 = vld [vmem:[%s7868 + $0x168] sm:$0xff]
      %v7915 = vld [vmem:[%s7868 + $0x170] sm:$0xff]
      %v7916 = vld [vmem:[%s7868 + $0x178] sm:$0xff]
      %v7917 = vld [vmem:[%s7868 + $0x180] sm:$0xff]
      %v7918 = vld [vmem:[%s7868 + $0x188] sm:$0xff]
      %v7919 = vld [vmem:[%s7868 + $0x190] sm:$0xff]
      %v7920 = vld [vmem:[%s7868 + $0x198] sm:$0xff]
      %v7921 = vld [vmem:[%s7868 + $0x1a0] sm:$0xff]
      %v7922 = vld [vmem:[%s7868 + $0x1a8] sm:$0xff]
      %v7923 = vld [vmem:[%s7868 + $0x1b0] sm:$0xff]
      %v7924 = vld [vmem:[%s7868 + $0x1b8] sm:$0xff]
      %v7925 = vld [vmem:[%s7868 + $0x1c0] sm:$0xff]
      %v7926 = vld [vmem:[%s7868 + $0x1c8] sm:$0xff]
      %v7927 = vld [vmem:[%s7868 + $0x1d0] sm:$0xff]
      %v7928 = vld [vmem:[%s7868 + $0x1d8] sm:$0xff]
      %v7929 = vld [vmem:[%s7868 + $0x1e0] sm:$0xff]
      %v7930 = vld [vmem:[%s7868 + $0x1e8] sm:$0xff]
      %v7931 = vld [vmem:[%s7868 + $0x1f0] sm:$0xff]
      %v7932 = vld [vmem:[%s7868 + $0x1f8] sm:$0xff]
      %v7997 = vunpack.c.l.b16 %v7869
      %v7998 = vunpack.c.h.b16 %v7869
      %v7999 = vunpack.c.l.b16 %v7870
      %v8000 = vunpack.c.h.b16 %v7870
      %v8001 = vunpack.c.l.b16 %v7871
      %v8002 = vunpack.c.h.b16 %v7871
      %v8003 = vunpack.c.l.b16 %v7872
      %v8004 = vunpack.c.h.b16 %v7872
      %v8005 = vunpack.c.l.b16 %v7873
      %v8006 = vunpack.c.h.b16 %v7873
      %v8007 = vunpack.c.l.b16 %v7874
      %v8008 = vunpack.c.h.b16 %v7874
      %v8009 = vunpack.c.l.b16 %v7875
      %v8010 = vunpack.c.h.b16 %v7875
      %v8011 = vunpack.c.l.b16 %v7876
      %v8012 = vunpack.c.h.b16 %v7876
      %v8013 = vunpack.c.l.b16 %v7877
      %v8014 = vunpack.c.h.b16 %v7877
      %v8015 = vunpack.c.l.b16 %v7878
      %v8016 = vunpack.c.h.b16 %v7878
      %v8017 = vunpack.c.l.b16 %v7879
      %v8018 = vunpack.c.h.b16 %v7879
      %v8019 = vunpack.c.l.b16 %v7880
      %v8020 = vunpack.c.h.b16 %v7880
      %v8021 = vunpack.c.l.b16 %v7881
      %v8022 = vunpack.c.h.b16 %v7881
      %v8023 = vunpack.c.l.b16 %v7882
      %v8024 = vunpack.c.h.b16 %v7882
      %v8025 = vunpack.c.l.b16 %v7883
      %v8026 = vunpack.c.h.b16 %v7883
      %v8027 = vunpack.c.l.b16 %v7884
      %v8028 = vunpack.c.h.b16 %v7884
      %v8029 = vunpack.c.l.b16 %v7885
      %v8030 = vunpack.c.h.b16 %v7885
      %v8031 = vunpack.c.l.b16 %v7886
      %v8032 = vunpack.c.h.b16 %v7886
      %v8033 = vunpack.c.l.b16 %v7887
      %v8034 = vunpack.c.h.b16 %v7887
      %v8035 = vunpack.c.l.b16 %v7888
      %v8036 = vunpack.c.h.b16 %v7888
      %v8037 = vunpack.c.l.b16 %v7889
      %v8038 = vunpack.c.h.b16 %v7889
      %v8039 = vunpack.c.l.b16 %v7890
      %v8040 = vunpack.c.h.b16 %v7890
      %v8041 = vunpack.c.l.b16 %v7891
      %v8042 = vunpack.c.h.b16 %v7891
      %v8043 = vunpack.c.l.b16 %v7892
      %v8044 = vunpack.c.h.b16 %v7892
      %v8045 = vunpack.c.l.b16 %v7893
      %v8046 = vunpack.c.h.b16 %v7893
      %v8047 = vunpack.c.l.b16 %v7894
      %v8048 = vunpack.c.h.b16 %v7894
      %v8049 = vunpack.c.l.b16 %v7895
      %v8050 = vunpack.c.h.b16 %v7895
      %v8051 = vunpack.c.l.b16 %v7896
      %v8052 = vunpack.c.h.b16 %v7896
      %v8053 = vunpack.c.l.b16 %v7897
      %v8054 = vunpack.c.h.b16 %v7897
      %v8055 = vunpack.c.l.b16 %v7898
      %v8056 = vunpack.c.h.b16 %v7898
      %v8057 = vunpack.c.l.b16 %v7899
      %v8058 = vunpack.c.h.b16 %v7899
      %v8059 = vunpack.c.l.b16 %v7900
      %v8060 = vunpack.c.h.b16 %v7900
      %v8061 = vunpack.c.l.b16 %v7901
      %v8062 = vunpack.c.h.b16 %v7901
      %v8063 = vunpack.c.l.b16 %v7902
      %v8064 = vunpack.c.h.b16 %v7902
      %v8065 = vunpack.c.l.b16 %v7903
      %v8066 = vunpack.c.h.b16 %v7903
      %v8067 = vunpack.c.l.b16 %v7904
      %v8068 = vunpack.c.h.b16 %v7904
      %v8069 = vunpack.c.l.b16 %v7905
      %v8070 = vunpack.c.h.b16 %v7905
      %v8071 = vunpack.c.l.b16 %v7906
      %v8072 = vunpack.c.h.b16 %v7906
      %v8073 = vunpack.c.l.b16 %v7907
      %v8074 = vunpack.c.h.b16 %v7907
      %v8075 = vunpack.c.l.b16 %v7908
      %v8076 = vunpack.c.h.b16 %v7908
      %v8077 = vunpack.c.l.b16 %v7909
      %v8078 = vunpack.c.h.b16 %v7909
      %v8079 = vunpack.c.l.b16 %v7910
      %v8080 = vunpack.c.h.b16 %v7910
      %v8081 = vunpack.c.l.b16 %v7911
      %v8082 = vunpack.c.h.b16 %v7911
      %v8083 = vunpack.c.l.b16 %v7912
      %v8084 = vunpack.c.h.b16 %v7912
      %v8085 = vunpack.c.l.b16 %v7913
      %v8086 = vunpack.c.h.b16 %v7913
      %v8087 = vunpack.c.l.b16 %v7914
      %v8088 = vunpack.c.h.b16 %v7914
      %v8089 = vunpack.c.l.b16 %v7915
      %v8090 = vunpack.c.h.b16 %v7915
      %v8091 = vunpack.c.l.b16 %v7916
      %v8092 = vunpack.c.h.b16 %v7916
      %v8093 = vunpack.c.l.b16 %v7917
      %v8094 = vunpack.c.h.b16 %v7917
      %v8095 = vunpack.c.l.b16 %v7918
      %v8096 = vunpack.c.h.b16 %v7918
      %v8097 = vunpack.c.l.b16 %v7919
      %v8098 = vunpack.c.h.b16 %v7919
      %v8099 = vunpack.c.l.b16 %v7920
      %v8100 = vunpack.c.h.b16 %v7920
      %v8101 = vunpack.c.l.b16 %v7921
      %v8102 = vunpack.c.h.b16 %v7921
      %v8103 = vunpack.c.l.b16 %v7922
      %v8104 = vunpack.c.h.b16 %v7922
      %v8105 = vunpack.c.l.b16 %v7923
      %v8106 = vunpack.c.h.b16 %v7923
      %v8107 = vunpack.c.l.b16 %v7924
      %v8108 = vunpack.c.h.b16 %v7924
      %v8109 = vunpack.c.l.b16 %v7925
      %v8110 = vunpack.c.h.b16 %v7925
      %v8111 = vunpack.c.l.b16 %v7926
      %v8112 = vunpack.c.h.b16 %v7926
      %v8113 = vunpack.c.l.b16 %v7927
      %v8114 = vunpack.c.h.b16 %v7927
      %v8115 = vunpack.c.l.b16 %v7928
      %v8116 = vunpack.c.h.b16 %v7928
      %v8117 = vunpack.c.l.b16 %v7929
      %v8118 = vunpack.c.h.b16 %v7929
      %v8119 = vunpack.c.l.b16 %v7930
      %v8120 = vunpack.c.h.b16 %v7930
      %v8121 = vunpack.c.l.b16 %v7931
      %v8122 = vunpack.c.h.b16 %v7931
      %v8123 = vunpack.c.l.b16 %v7932
      %v8124 = vunpack.c.h.b16 %v7932
      %v8125 = vpack.c.b16 %v8001, %v7997
      %v8126 = vpack.c.b16 %v8002, %v7998
      %v8127 = vpack.c.b16 %v8003, %v7999
      %v8128 = vpack.c.b16 %v8004, %v8000
      %v8129 = vpack.c.b16 %v8009, %v8005
      %v8130 = vpack.c.b16 %v8010, %v8006
      %v8131 = vpack.c.b16 %v8011, %v8007
      %v8132 = vpack.c.b16 %v8012, %v8008
      %v8133 = vpack.c.b16 %v8017, %v8013
      %v8134 = vpack.c.b16 %v8018, %v8014
      %v8135 = vpack.c.b16 %v8019, %v8015
      %v8136 = vpack.c.b16 %v8020, %v8016
      %v8137 = vpack.c.b16 %v8025, %v8021
      %v8138 = vpack.c.b16 %v8026, %v8022
      %v8139 = vpack.c.b16 %v8027, %v8023
      %v8140 = vpack.c.b16 %v8028, %v8024
      %v8141 = vpack.c.b16 %v8033, %v8029
      %v8142 = vpack.c.b16 %v8034, %v8030
      %v8143 = vpack.c.b16 %v8035, %v8031
      %v8144 = vpack.c.b16 %v8036, %v8032
      %v8145 = vpack.c.b16 %v8041, %v8037
      %v8146 = vpack.c.b16 %v8042, %v8038
      %v8147 = vpack.c.b16 %v8043, %v8039
      %v8148 = vpack.c.b16 %v8044, %v8040
      %v8149 = vpack.c.b16 %v8049, %v8045
      %v8150 = vpack.c.b16 %v8050, %v8046
      %v8151 = vpack.c.b16 %v8051, %v8047
      %v8152 = vpack.c.b16 %v8052, %v8048
      %v8153 = vpack.c.b16 %v8057, %v8053
      %v8154 = vpack.c.b16 %v8058, %v8054
      %v8155 = vpack.c.b16 %v8059, %v8055
      %v8156 = vpack.c.b16 %v8060, %v8056
      %v8157 = vpack.c.b16 %v8065, %v8061
      %v8158 = vpack.c.b16 %v8066, %v8062
      %v8159 = vpack.c.b16 %v8067, %v8063
      %v8160 = vpack.c.b16 %v8068, %v8064
      %v8161 = vpack.c.b16 %v8073, %v8069
      %v8162 = vpack.c.b16 %v8074, %v8070
      %v8163 = vpack.c.b16 %v8075, %v8071
      %v8164 = vpack.c.b16 %v8076, %v8072
      %v8165 = vpack.c.b16 %v8081, %v8077
      %v8166 = vpack.c.b16 %v8082, %v8078
      %v8167 = vpack.c.b16 %v8083, %v8079
      %v8168 = vpack.c.b16 %v8084, %v8080
      %v8169 = vpack.c.b16 %v8089, %v8085
      %v8170 = vpack.c.b16 %v8090, %v8086
      %v8171 = vpack.c.b16 %v8091, %v8087
      %v8172 = vpack.c.b16 %v8092, %v8088
      %v8173 = vpack.c.b16 %v8097, %v8093
      %v8174 = vpack.c.b16 %v8098, %v8094
      %v8175 = vpack.c.b16 %v8099, %v8095
      %v8176 = vpack.c.b16 %v8100, %v8096
      %v8177 = vpack.c.b16 %v8105, %v8101
      %v8178 = vpack.c.b16 %v8106, %v8102
      %v8179 = vpack.c.b16 %v8107, %v8103
      %v8180 = vpack.c.b16 %v8108, %v8104
      %v8181 = vpack.c.b16 %v8113, %v8109
      %v8182 = vpack.c.b16 %v8114, %v8110
      %v8183 = vpack.c.b16 %v8115, %v8111
      %v8184 = vpack.c.b16 %v8116, %v8112
      %v8185 = vpack.c.b16 %v8121, %v8117
      %v8186 = vpack.c.b16 %v8122, %v8118
      %v8187 = vpack.c.b16 %v8123, %v8119
      %v8188 = vpack.c.b16 %v8124, %v8120
      %8253 = vmatprep.subr.bf16.mxu0 %v8154
      %8254 = vmatpush1.bf16.msra.mxu0 %v8153
      %8255 = vmatprep.subr.bf16.mxu0 %v8150
      %8256 = vmatpush1.bf16.msra.mxu0 %v8149
      %8257 = vmatprep.subr.bf16.mxu0 %v8146
      %8258 = vmatpush1.bf16.msra.mxu0 %v8145
      %8259 = vmatprep.subr.bf16.mxu0 %v8142
      %8260 = vmatpush1.bf16.msra.mxu0 %v8141
      %8261 = vmatprep.subr.bf16.mxu0 %v8138
      %8262 = vmatpush1.bf16.msra.mxu0 %v8137
      %8263 = vmatprep.subr.bf16.mxu0 %v8134
      %8264 = vmatpush1.bf16.msra.mxu0 %v8133
      %8265 = vmatprep.subr.bf16.mxu0 %v8130
      %8266 = vmatpush1.bf16.msra.mxu0 %v8129
      %8267 = vmatprep.subr.bf16.mxu0 %v8126
      %8268 = vmatpush1.bf16.msra.mxu0 %v8125
      %8269 = vmatprep.subr.bf16.mxu0 %v8186
      %8270 = vmatpush2.bf16.msra.mxu0 %v8185
      %8271 = vmatprep.subr.bf16.mxu0 %v8182
      %8272 = vmatpush2.bf16.msra.mxu0 %v8181
      %8273 = vmatprep.subr.bf16.mxu0 %v8178
      %8274 = vmatpush2.bf16.msra.mxu0 %v8177
      %8275 = vmatprep.subr.bf16.mxu0 %v8174
      %8276 = vmatpush2.bf16.msra.mxu0 %v8173
      %8277 = vmatprep.subr.bf16.mxu0 %v8170
      %8278 = vmatpush2.bf16.msra.mxu0 %v8169
      %8279 = vmatprep.subr.bf16.mxu0 %v8166
      %8280 = vmatpush2.bf16.msra.mxu0 %v8165
      %8281 = vmatprep.subr.bf16.mxu0 %v8162
      %8282 = vmatpush2.bf16.msra.mxu0 %v8161
      %8283 = vmatprep.subr.bf16.mxu0 %v8158
      %8284 = vmatpush2.bf16.msra.mxu0 %v8157
      %8285 = vmatprep.mubr.bf16.mxu0 %v7867
      %8286 = vmatmul.mubr.bf16.gmra.mxu0 %v7866
      %v8287 = vpop.f32.mrf.mxu0
      %v8288 = vadd.f32 0.0, %v8287
      %v8289 = vpop.f32.mrf.mxu0
      %v8290 = vadd.f32 0.0, %v8289
      %v8291 = vpop.f32.mrf.mxu0
      %v8292 = vpop.f32.mrf.mxu0
      %8293 = vdwg.mxu0
      %8294 = vmatprep.subr.bf16.mxu0 %v8156
      %8295 = vmatpush1.bf16.msra.mxu0 %v8155
      %8296 = vmatprep.subr.bf16.mxu0 %v8152
      %8297 = vmatpush1.bf16.msra.mxu0 %v8151
      %8298 = vmatprep.subr.bf16.mxu0 %v8148
      %8299 = vmatpush1.bf16.msra.mxu0 %v8147
      %8300 = vmatprep.subr.bf16.mxu0 %v8144
      %8301 = vmatpush1.bf16.msra.mxu0 %v8143
      %8302 = vmatprep.subr.bf16.mxu0 %v8140
      %8303 = vmatpush1.bf16.msra.mxu0 %v8139
      %8304 = vmatprep.subr.bf16.mxu0 %v8136
      %8305 = vmatpush1.bf16.msra.mxu0 %v8135
      %8306 = vmatprep.subr.bf16.mxu0 %v8132
      %8307 = vmatpush1.bf16.msra.mxu0 %v8131
      %8308 = vmatprep.subr.bf16.mxu0 %v8128
      %8309 = vmatpush1.bf16.msra.mxu0 %v8127
      %8310 = vmatprep.subr.bf16.mxu0 %v8188
      %8311 = vmatpush2.bf16.msra.mxu0 %v8187
      %8312 = vmatprep.subr.bf16.mxu0 %v8184
      %8313 = vmatpush2.bf16.msra.mxu0 %v8183
      %8314 = vmatprep.subr.bf16.mxu0 %v8180
      %8315 = vmatpush2.bf16.msra.mxu0 %v8179
      %8316 = vmatprep.subr.bf16.mxu0 %v8176
      %8317 = vmatpush2.bf16.msra.mxu0 %v8175
      %8318 = vmatprep.subr.bf16.mxu0 %v8172
      %8319 = vmatpush2.bf16.msra.mxu0 %v8171
      %8320 = vmatprep.subr.bf16.mxu0 %v8168
      %8321 = vmatpush2.bf16.msra.mxu0 %v8167
      %8322 = vmatprep.subr.bf16.mxu0 %v8164
      %8323 = vmatpush2.bf16.msra.mxu0 %v8163
      %8324 = vmatprep.subr.bf16.mxu0 %v8160
      %8325 = vmatpush2.bf16.msra.mxu0 %v8159
      %8326 = vmatprep.mubr.bf16.mxu0 %v7867
      %8327 = vmatmul.mubr.bf16.gmra.mxu0 %v7866
      %v8328 = vpop.f32.mrf.mxu0
      %v8329 = vadd.f32 0.0, %v8328
      %v8330 = vpop.f32.mrf.mxu0
      %v8331 = vadd.f32 0.0, %v8330
      %v8332 = vpop.f32.mrf.mxu0
      %v8333 = vpop.f32.mrf.mxu0
      %8334 = vdwg.mxu0
      %v8335 = vadd.f32 %v7816, %v8288
      %v8336 = vadd.f32 %v7817, %v8290
      %v8337 = vadd.f32 %v7818, %v8329
      %v8338 = vadd.f32 %v7819, %v8331
      %s8339 = scalar_lea.vmem %s9, 12
      %v8340 = vld [vmem:[%s8339] sm:$0x3]
      %v8342 = vsel %vm5235, %v8340, 0
      %8344 = vmatprep.subr.bf16.mxu0 0
      %8345 = vmatpush1.bf16.msra.mxu0 0
      %8346 = vmatprep.subr.bf16.mxu0 0
      %8347 = vmatpush1.bf16.msra.mxu0 0
      %8348 = vmatprep.subr.bf16.mxu0 0
      %8349 = vmatpush1.bf16.msra.mxu0 0
      %8350 = vmatprep.subr.bf16.mxu0 0
      %8351 = vmatpush1.bf16.msra.mxu0 0
      %8352 = vmatprep.subr.bf16.mxu0 0
      %8353 = vmatpush1.bf16.msra.mxu0 0
      %8354 = vmatprep.subr.bf16.mxu0 0
      %8355 = vmatpush1.bf16.msra.mxu0 0
      %8356 = vmatprep.subr.bf16.mxu0 0
      %8357 = vmatpush1.bf16.msra.mxu0 0
      %8358 = vmatprep.subr.bf16.mxu0 %v5233
      %8359 = vmatpush1.bf16.msra.mxu0 %v5232
      %8360 = vmatprep.subr.bf16.mxu0 0
      %8361 = vmatpush2.bf16.msra.mxu0 0
      %8362 = vmatprep.subr.bf16.mxu0 0
      %8363 = vmatpush2.bf16.msra.mxu0 0
      %8364 = vmatprep.subr.bf16.mxu0 0
      %8365 = vmatpush2.bf16.msra.mxu0 0
      %8366 = vmatprep.subr.bf16.mxu0 0
      %8367 = vmatpush2.bf16.msra.mxu0 0
      %8368 = vmatprep.subr.bf16.mxu0 0
      %8369 = vmatpush2.bf16.msra.mxu0 0
      %8370 = vmatprep.subr.bf16.mxu0 0
      %8371 = vmatpush2.bf16.msra.mxu0 0
      %8372 = vmatprep.subr.bf16.mxu0 0
      %8373 = vmatpush2.bf16.msra.mxu0 0
      %8374 = vmatprep.subr.bf16.mxu0 0
      %8375 = vmatpush2.bf16.msra.mxu0 0
      %8376 = vmatprep.mubr.bf16.mxu0 0
      %8377 = vmatmul.mubr.bf16.gmra.mxu0 %v8342
      %v8378 = vpop.f32.mrf.mxu0
      %v8379 = vadd.f32 0.0, %v8378
      %v8380 = vpop.f32.mrf.mxu0
      %v8381 = vadd.f32 0.0, %v8380
      %v8382 = vpop.f32.mrf.mxu0
      %v8383 = vpop.f32.mrf.mxu0
      %8384 = vdwg.mxu0
      %v8385 = vpack.c.bf16 %v8379, %v8379
      %v8386 = vpack.c.bf16 %v8381, %v8381
      %s8387 = scalar_lea.vmem %s10, 3072
      %v8388 = vld [vmem:[%s8387] sm:$0xff]
      %v8389 = vld [vmem:[%s8387 + $0x8] sm:$0xff]
      %v8390 = vld [vmem:[%s8387 + $0x10] sm:$0xff]
      %v8391 = vld [vmem:[%s8387 + $0x18] sm:$0xff]
      %v8392 = vld [vmem:[%s8387 + $0x20] sm:$0xff]
      %v8393 = vld [vmem:[%s8387 + $0x28] sm:$0xff]
      %v8394 = vld [vmem:[%s8387 + $0x30] sm:$0xff]
      %v8395 = vld [vmem:[%s8387 + $0x38] sm:$0xff]
      %v8396 = vld [vmem:[%s8387 + $0x40] sm:$0xff]
      %v8397 = vld [vmem:[%s8387 + $0x48] sm:$0xff]
      %v8398 = vld [vmem:[%s8387 + $0x50] sm:$0xff]
      %v8399 = vld [vmem:[%s8387 + $0x58] sm:$0xff]
      %v8400 = vld [vmem:[%s8387 + $0x60] sm:$0xff]
      %v8401 = vld [vmem:[%s8387 + $0x68] sm:$0xff]
      %v8402 = vld [vmem:[%s8387 + $0x70] sm:$0xff]
      %v8403 = vld [vmem:[%s8387 + $0x78] sm:$0xff]
      %v8404 = vld [vmem:[%s8387 + $0x80] sm:$0xff]
      %v8405 = vld [vmem:[%s8387 + $0x88] sm:$0xff]
      %v8406 = vld [vmem:[%s8387 + $0x90] sm:$0xff]
      %v8407 = vld [vmem:[%s8387 + $0x98] sm:$0xff]
      %v8408 = vld [vmem:[%s8387 + $0xa0] sm:$0xff]
      %v8409 = vld [vmem:[%s8387 + $0xa8] sm:$0xff]
      %v8410 = vld [vmem:[%s8387 + $0xb0] sm:$0xff]
      %v8411 = vld [vmem:[%s8387 + $0xb8] sm:$0xff]
      %v8412 = vld [vmem:[%s8387 + $0xc0] sm:$0xff]
      %v8413 = vld [vmem:[%s8387 + $0xc8] sm:$0xff]
      %v8414 = vld [vmem:[%s8387 + $0xd0] sm:$0xff]
      %v8415 = vld [vmem:[%s8387 + $0xd8] sm:$0xff]
      %v8416 = vld [vmem:[%s8387 + $0xe0] sm:$0xff]
      %v8417 = vld [vmem:[%s8387 + $0xe8] sm:$0xff]
      %v8418 = vld [vmem:[%s8387 + $0xf0] sm:$0xff]
      %v8419 = vld [vmem:[%s8387 + $0xf8] sm:$0xff]
      %v8420 = vld [vmem:[%s8387 + $0x100] sm:$0xff]
      %v8421 = vld [vmem:[%s8387 + $0x108] sm:$0xff]
      %v8422 = vld [vmem:[%s8387 + $0x110] sm:$0xff]
      %v8423 = vld [vmem:[%s8387 + $0x118] sm:$0xff]
      %v8424 = vld [vmem:[%s8387 + $0x120] sm:$0xff]
      %v8425 = vld [vmem:[%s8387 + $0x128] sm:$0xff]
      %v8426 = vld [vmem:[%s8387 + $0x130] sm:$0xff]
      %v8427 = vld [vmem:[%s8387 + $0x138] sm:$0xff]
      %v8428 = vld [vmem:[%s8387 + $0x140] sm:$0xff]
      %v8429 = vld [vmem:[%s8387 + $0x148] sm:$0xff]
      %v8430 = vld [vmem:[%s8387 + $0x150] sm:$0xff]
      %v8431 = vld [vmem:[%s8387 + $0x158] sm:$0xff]
      %v8432 = vld [vmem:[%s8387 + $0x160] sm:$0xff]
      %v8433 = vld [vmem:[%s8387 + $0x168] sm:$0xff]
      %v8434 = vld [vmem:[%s8387 + $0x170] sm:$0xff]
      %v8435 = vld [vmem:[%s8387 + $0x178] sm:$0xff]
      %v8436 = vld [vmem:[%s8387 + $0x180] sm:$0xff]
      %v8437 = vld [vmem:[%s8387 + $0x188] sm:$0xff]
      %v8438 = vld [vmem:[%s8387 + $0x190] sm:$0xff]
      %v8439 = vld [vmem:[%s8387 + $0x198] sm:$0xff]
      %v8440 = vld [vmem:[%s8387 + $0x1a0] sm:$0xff]
      %v8441 = vld [vmem:[%s8387 + $0x1a8] sm:$0xff]
      %v8442 = vld [vmem:[%s8387 + $0x1b0] sm:$0xff]
      %v8443 = vld [vmem:[%s8387 + $0x1b8] sm:$0xff]
      %v8444 = vld [vmem:[%s8387 + $0x1c0] sm:$0xff]
      %v8445 = vld [vmem:[%s8387 + $0x1c8] sm:$0xff]
      %v8446 = vld [vmem:[%s8387 + $0x1d0] sm:$0xff]
      %v8447 = vld [vmem:[%s8387 + $0x1d8] sm:$0xff]
      %v8448 = vld [vmem:[%s8387 + $0x1e0] sm:$0xff]
      %v8449 = vld [vmem:[%s8387 + $0x1e8] sm:$0xff]
      %v8450 = vld [vmem:[%s8387 + $0x1f0] sm:$0xff]
      %v8451 = vld [vmem:[%s8387 + $0x1f8] sm:$0xff]
      %v8516 = vunpack.c.l.b16 %v8388
      %v8517 = vunpack.c.h.b16 %v8388
      %v8518 = vunpack.c.l.b16 %v8389
      %v8519 = vunpack.c.h.b16 %v8389
      %v8520 = vunpack.c.l.b16 %v8390
      %v8521 = vunpack.c.h.b16 %v8390
      %v8522 = vunpack.c.l.b16 %v8391
      %v8523 = vunpack.c.h.b16 %v8391
      %v8524 = vunpack.c.l.b16 %v8392
      %v8525 = vunpack.c.h.b16 %v8392
      %v8526 = vunpack.c.l.b16 %v8393
      %v8527 = vunpack.c.h.b16 %v8393
      %v8528 = vunpack.c.l.b16 %v8394
      %v8529 = vunpack.c.h.b16 %v8394
      %v8530 = vunpack.c.l.b16 %v8395
      %v8531 = vunpack.c.h.b16 %v8395
      %v8532 = vunpack.c.l.b16 %v8396
      %v8533 = vunpack.c.h.b16 %v8396
      %v8534 = vunpack.c.l.b16 %v8397
      %v8535 = vunpack.c.h.b16 %v8397
      %v8536 = vunpack.c.l.b16 %v8398
      %v8537 = vunpack.c.h.b16 %v8398
      %v8538 = vunpack.c.l.b16 %v8399
      %v8539 = vunpack.c.h.b16 %v8399
      %v8540 = vunpack.c.l.b16 %v8400
      %v8541 = vunpack.c.h.b16 %v8400
      %v8542 = vunpack.c.l.b16 %v8401
      %v8543 = vunpack.c.h.b16 %v8401
      %v8544 = vunpack.c.l.b16 %v8402
      %v8545 = vunpack.c.h.b16 %v8402
      %v8546 = vunpack.c.l.b16 %v8403
      %v8547 = vunpack.c.h.b16 %v8403
      %v8548 = vunpack.c.l.b16 %v8404
      %v8549 = vunpack.c.h.b16 %v8404
      %v8550 = vunpack.c.l.b16 %v8405
      %v8551 = vunpack.c.h.b16 %v8405
      %v8552 = vunpack.c.l.b16 %v8406
      %v8553 = vunpack.c.h.b16 %v8406
      %v8554 = vunpack.c.l.b16 %v8407
      %v8555 = vunpack.c.h.b16 %v8407
      %v8556 = vunpack.c.l.b16 %v8408
      %v8557 = vunpack.c.h.b16 %v8408
      %v8558 = vunpack.c.l.b16 %v8409
      %v8559 = vunpack.c.h.b16 %v8409
      %v8560 = vunpack.c.l.b16 %v8410
      %v8561 = vunpack.c.h.b16 %v8410
      %v8562 = vunpack.c.l.b16 %v8411
      %v8563 = vunpack.c.h.b16 %v8411
      %v8564 = vunpack.c.l.b16 %v8412
      %v8565 = vunpack.c.h.b16 %v8412
      %v8566 = vunpack.c.l.b16 %v8413
      %v8567 = vunpack.c.h.b16 %v8413
      %v8568 = vunpack.c.l.b16 %v8414
      %v8569 = vunpack.c.h.b16 %v8414
      %v8570 = vunpack.c.l.b16 %v8415
      %v8571 = vunpack.c.h.b16 %v8415
      %v8572 = vunpack.c.l.b16 %v8416
      %v8573 = vunpack.c.h.b16 %v8416
      %v8574 = vunpack.c.l.b16 %v8417
      %v8575 = vunpack.c.h.b16 %v8417
      %v8576 = vunpack.c.l.b16 %v8418
      %v8577 = vunpack.c.h.b16 %v8418
      %v8578 = vunpack.c.l.b16 %v8419
      %v8579 = vunpack.c.h.b16 %v8419
      %v8580 = vunpack.c.l.b16 %v8420
      %v8581 = vunpack.c.h.b16 %v8420
      %v8582 = vunpack.c.l.b16 %v8421
      %v8583 = vunpack.c.h.b16 %v8421
      %v8584 = vunpack.c.l.b16 %v8422
      %v8585 = vunpack.c.h.b16 %v8422
      %v8586 = vunpack.c.l.b16 %v8423
      %v8587 = vunpack.c.h.b16 %v8423
      %v8588 = vunpack.c.l.b16 %v8424
      %v8589 = vunpack.c.h.b16 %v8424
      %v8590 = vunpack.c.l.b16 %v8425
      %v8591 = vunpack.c.h.b16 %v8425
      %v8592 = vunpack.c.l.b16 %v8426
      %v8593 = vunpack.c.h.b16 %v8426
      %v8594 = vunpack.c.l.b16 %v8427
      %v8595 = vunpack.c.h.b16 %v8427
      %v8596 = vunpack.c.l.b16 %v8428
      %v8597 = vunpack.c.h.b16 %v8428
      %v8598 = vunpack.c.l.b16 %v8429
      %v8599 = vunpack.c.h.b16 %v8429
      %v8600 = vunpack.c.l.b16 %v8430
      %v8601 = vunpack.c.h.b16 %v8430
      %v8602 = vunpack.c.l.b16 %v8431
      %v8603 = vunpack.c.h.b16 %v8431
      %v8604 = vunpack.c.l.b16 %v8432
      %v8605 = vunpack.c.h.b16 %v8432
      %v8606 = vunpack.c.l.b16 %v8433
      %v8607 = vunpack.c.h.b16 %v8433
      %v8608 = vunpack.c.l.b16 %v8434
      %v8609 = vunpack.c.h.b16 %v8434
      %v8610 = vunpack.c.l.b16 %v8435
      %v8611 = vunpack.c.h.b16 %v8435
      %v8612 = vunpack.c.l.b16 %v8436
      %v8613 = vunpack.c.h.b16 %v8436
      %v8614 = vunpack.c.l.b16 %v8437
      %v8615 = vunpack.c.h.b16 %v8437
      %v8616 = vunpack.c.l.b16 %v8438
      %v8617 = vunpack.c.h.b16 %v8438
      %v8618 = vunpack.c.l.b16 %v8439
      %v8619 = vunpack.c.h.b16 %v8439
      %v8620 = vunpack.c.l.b16 %v8440
      %v8621 = vunpack.c.h.b16 %v8440
      %v8622 = vunpack.c.l.b16 %v8441
      %v8623 = vunpack.c.h.b16 %v8441
      %v8624 = vunpack.c.l.b16 %v8442
      %v8625 = vunpack.c.h.b16 %v8442
      %v8626 = vunpack.c.l.b16 %v8443
      %v8627 = vunpack.c.h.b16 %v8443
      %v8628 = vunpack.c.l.b16 %v8444
      %v8629 = vunpack.c.h.b16 %v8444
      %v8630 = vunpack.c.l.b16 %v8445
      %v8631 = vunpack.c.h.b16 %v8445
      %v8632 = vunpack.c.l.b16 %v8446
      %v8633 = vunpack.c.h.b16 %v8446
      %v8634 = vunpack.c.l.b16 %v8447
      %v8635 = vunpack.c.h.b16 %v8447
      %v8636 = vunpack.c.l.b16 %v8448
      %v8637 = vunpack.c.h.b16 %v8448
      %v8638 = vunpack.c.l.b16 %v8449
      %v8639 = vunpack.c.h.b16 %v8449
      %v8640 = vunpack.c.l.b16 %v8450
      %v8641 = vunpack.c.h.b16 %v8450
      %v8642 = vunpack.c.l.b16 %v8451
      %v8643 = vunpack.c.h.b16 %v8451
      %v8644 = vpack.c.b16 %v8520, %v8516
      %v8645 = vpack.c.b16 %v8521, %v8517
      %v8646 = vpack.c.b16 %v8522, %v8518
      %v8647 = vpack.c.b16 %v8523, %v8519
      %v8648 = vpack.c.b16 %v8528, %v8524
      %v8649 = vpack.c.b16 %v8529, %v8525
      %v8650 = vpack.c.b16 %v8530, %v8526
      %v8651 = vpack.c.b16 %v8531, %v8527
      %v8652 = vpack.c.b16 %v8536, %v8532
      %v8653 = vpack.c.b16 %v8537, %v8533
      %v8654 = vpack.c.b16 %v8538, %v8534
      %v8655 = vpack.c.b16 %v8539, %v8535
      %v8656 = vpack.c.b16 %v8544, %v8540
      %v8657 = vpack.c.b16 %v8545, %v8541
      %v8658 = vpack.c.b16 %v8546, %v8542
      %v8659 = vpack.c.b16 %v8547, %v8543
      %v8660 = vpack.c.b16 %v8552, %v8548
      %v8661 = vpack.c.b16 %v8553, %v8549
      %v8662 = vpack.c.b16 %v8554, %v8550
      %v8663 = vpack.c.b16 %v8555, %v8551
      %v8664 = vpack.c.b16 %v8560, %v8556
      %v8665 = vpack.c.b16 %v8561, %v8557
      %v8666 = vpack.c.b16 %v8562, %v8558
      %v8667 = vpack.c.b16 %v8563, %v8559
      %v8668 = vpack.c.b16 %v8568, %v8564
      %v8669 = vpack.c.b16 %v8569, %v8565
      %v8670 = vpack.c.b16 %v8570, %v8566
      %v8671 = vpack.c.b16 %v8571, %v8567
      %v8672 = vpack.c.b16 %v8576, %v8572
      %v8673 = vpack.c.b16 %v8577, %v8573
      %v8674 = vpack.c.b16 %v8578, %v8574
      %v8675 = vpack.c.b16 %v8579, %v8575
      %v8676 = vpack.c.b16 %v8584, %v8580
      %v8677 = vpack.c.b16 %v8585, %v8581
      %v8678 = vpack.c.b16 %v8586, %v8582
      %v8679 = vpack.c.b16 %v8587, %v8583
      %v8680 = vpack.c.b16 %v8592, %v8588
      %v8681 = vpack.c.b16 %v8593, %v8589
      %v8682 = vpack.c.b16 %v8594, %v8590
      %v8683 = vpack.c.b16 %v8595, %v8591
      %v8684 = vpack.c.b16 %v8600, %v8596
      %v8685 = vpack.c.b16 %v8601, %v8597
      %v8686 = vpack.c.b16 %v8602, %v8598
      %v8687 = vpack.c.b16 %v8603, %v8599
      %v8688 = vpack.c.b16 %v8608, %v8604
      %v8689 = vpack.c.b16 %v8609, %v8605
      %v8690 = vpack.c.b16 %v8610, %v8606
      %v8691 = vpack.c.b16 %v8611, %v8607
      %v8692 = vpack.c.b16 %v8616, %v8612
      %v8693 = vpack.c.b16 %v8617, %v8613
      %v8694 = vpack.c.b16 %v8618, %v8614
      %v8695 = vpack.c.b16 %v8619, %v8615
      %v8696 = vpack.c.b16 %v8624, %v8620
      %v8697 = vpack.c.b16 %v8625, %v8621
      %v8698 = vpack.c.b16 %v8626, %v8622
      %v8699 = vpack.c.b16 %v8627, %v8623
      %v8700 = vpack.c.b16 %v8632, %v8628
      %v8701 = vpack.c.b16 %v8633, %v8629
      %v8702 = vpack.c.b16 %v8634, %v8630
      %v8703 = vpack.c.b16 %v8635, %v8631
      %v8704 = vpack.c.b16 %v8640, %v8636
      %v8705 = vpack.c.b16 %v8641, %v8637
      %v8706 = vpack.c.b16 %v8642, %v8638
      %v8707 = vpack.c.b16 %v8643, %v8639
      %8772 = vmatprep.subr.bf16.mxu0 %v8673
      %8773 = vmatpush1.bf16.msra.mxu0 %v8672
      %8774 = vmatprep.subr.bf16.mxu0 %v8669
      %8775 = vmatpush1.bf16.msra.mxu0 %v8668
      %8776 = vmatprep.subr.bf16.mxu0 %v8665
      %8777 = vmatpush1.bf16.msra.mxu0 %v8664
      %8778 = vmatprep.subr.bf16.mxu0 %v8661
      %8779 = vmatpush1.bf16.msra.mxu0 %v8660
      %8780 = vmatprep.subr.bf16.mxu0 %v8657
      %8781 = vmatpush1.bf16.msra.mxu0 %v8656
      %8782 = vmatprep.subr.bf16.mxu0 %v8653
      %8783 = vmatpush1.bf16.msra.mxu0 %v8652
      %8784 = vmatprep.subr.bf16.mxu0 %v8649
      %8785 = vmatpush1.bf16.msra.mxu0 %v8648
      %8786 = vmatprep.subr.bf16.mxu0 %v8645
      %8787 = vmatpush1.bf16.msra.mxu0 %v8644
      %8788 = vmatprep.subr.bf16.mxu0 %v8705
      %8789 = vmatpush2.bf16.msra.mxu0 %v8704
      %8790 = vmatprep.subr.bf16.mxu0 %v8701
      %8791 = vmatpush2.bf16.msra.mxu0 %v8700
      %8792 = vmatprep.subr.bf16.mxu0 %v8697
      %8793 = vmatpush2.bf16.msra.mxu0 %v8696
      %8794 = vmatprep.subr.bf16.mxu0 %v8693
      %8795 = vmatpush2.bf16.msra.mxu0 %v8692
      %8796 = vmatprep.subr.bf16.mxu0 %v8689
      %8797 = vmatpush2.bf16.msra.mxu0 %v8688
      %8798 = vmatprep.subr.bf16.mxu0 %v8685
      %8799 = vmatpush2.bf16.msra.mxu0 %v8684
      %8800 = vmatprep.subr.bf16.mxu0 %v8681
      %8801 = vmatpush2.bf16.msra.mxu0 %v8680
      %8802 = vmatprep.subr.bf16.mxu0 %v8677
      %8803 = vmatpush2.bf16.msra.mxu0 %v8676
      %8804 = vmatprep.mubr.bf16.mxu0 %v8386
      %8805 = vmatmul.mubr.bf16.gmra.mxu0 %v8385
      %v8806 = vpop.f32.mrf.mxu0
      %v8807 = vadd.f32 0.0, %v8806
      %v8808 = vpop.f32.mrf.mxu0
      %v8809 = vadd.f32 0.0, %v8808
      %v8810 = vpop.f32.mrf.mxu0
      %v8811 = vpop.f32.mrf.mxu0
      %8812 = vdwg.mxu0
      %8813 = vmatprep.subr.bf16.mxu0 %v8675
      %8814 = vmatpush1.bf16.msra.mxu0 %v8674
      %8815 = vmatprep.subr.bf16.mxu0 %v8671
      %8816 = vmatpush1.bf16.msra.mxu0 %v8670
      %8817 = vmatprep.subr.bf16.mxu0 %v8667
      %8818 = vmatpush1.bf16.msra.mxu0 %v8666
      %8819 = vmatprep.subr.bf16.mxu0 %v8663
      %8820 = vmatpush1.bf16.msra.mxu0 %v8662
      %8821 = vmatprep.subr.bf16.mxu0 %v8659
      %8822 = vmatpush1.bf16.msra.mxu0 %v8658
      %8823 = vmatprep.subr.bf16.mxu0 %v8655
      %8824 = vmatpush1.bf16.msra.mxu0 %v8654
      %8825 = vmatprep.subr.bf16.mxu0 %v8651
      %8826 = vmatpush1.bf16.msra.mxu0 %v8650
      %8827 = vmatprep.subr.bf16.mxu0 %v8647
      %8828 = vmatpush1.bf16.msra.mxu0 %v8646
      %8829 = vmatprep.subr.bf16.mxu0 %v8707
      %8830 = vmatpush2.bf16.msra.mxu0 %v8706
      %8831 = vmatprep.subr.bf16.mxu0 %v8703
      %8832 = vmatpush2.bf16.msra.mxu0 %v8702
      %8833 = vmatprep.subr.bf16.mxu0 %v8699
      %8834 = vmatpush2.bf16.msra.mxu0 %v8698
      %8835 = vmatprep.subr.bf16.mxu0 %v8695
      %8836 = vmatpush2.bf16.msra.mxu0 %v8694
      %8837 = vmatprep.subr.bf16.mxu0 %v8691
      %8838 = vmatpush2.bf16.msra.mxu0 %v8690
      %8839 = vmatprep.subr.bf16.mxu0 %v8687
      %8840 = vmatpush2.bf16.msra.mxu0 %v8686
      %8841 = vmatprep.subr.bf16.mxu0 %v8683
      %8842 = vmatpush2.bf16.msra.mxu0 %v8682
      %8843 = vmatprep.subr.bf16.mxu0 %v8679
      %8844 = vmatpush2.bf16.msra.mxu0 %v8678
      %8845 = vmatprep.mubr.bf16.mxu0 %v8386
      %8846 = vmatmul.mubr.bf16.gmra.mxu0 %v8385
      %v8847 = vpop.f32.mrf.mxu0
      %v8848 = vadd.f32 0.0, %v8847
      %v8849 = vpop.f32.mrf.mxu0
      %v8850 = vadd.f32 0.0, %v8849
      %v8851 = vpop.f32.mrf.mxu0
      %v8852 = vpop.f32.mrf.mxu0
      %8853 = vdwg.mxu0
      %v8854 = vadd.f32 %v8335, %v8807
      %v8855 = vadd.f32 %v8336, %v8809
      %v8856 = vadd.f32 %v8337, %v8848
      %v8857 = vadd.f32 %v8338, %v8850
      %s8858 = scalar_lea.vmem %s9, 14
      %v8859 = vld [vmem:[%s8858] sm:$0x3]
      %v8861 = vsel %vm5235, %v8859, 0
      %8863 = vmatprep.subr.bf16.mxu0 0
      %8864 = vmatpush1.bf16.msra.mxu0 0
      %8865 = vmatprep.subr.bf16.mxu0 0
      %8866 = vmatpush1.bf16.msra.mxu0 0
      %8867 = vmatprep.subr.bf16.mxu0 0
      %8868 = vmatpush1.bf16.msra.mxu0 0
      %8869 = vmatprep.subr.bf16.mxu0 0
      %8870 = vmatpush1.bf16.msra.mxu0 0
      %8871 = vmatprep.subr.bf16.mxu0 0
      %8872 = vmatpush1.bf16.msra.mxu0 0
      %8873 = vmatprep.subr.bf16.mxu0 0
      %8874 = vmatpush1.bf16.msra.mxu0 0
      %8875 = vmatprep.subr.bf16.mxu0 0
      %8876 = vmatpush1.bf16.msra.mxu0 0
      %8877 = vmatprep.subr.bf16.mxu0 %v5233
      %8878 = vmatpush1.bf16.msra.mxu0 %v5232
      %8879 = vmatprep.subr.bf16.mxu0 0
      %8880 = vmatpush2.bf16.msra.mxu0 0
      %8881 = vmatprep.subr.bf16.mxu0 0
      %8882 = vmatpush2.bf16.msra.mxu0 0
      %8883 = vmatprep.subr.bf16.mxu0 0
      %8884 = vmatpush2.bf16.msra.mxu0 0
      %8885 = vmatprep.subr.bf16.mxu0 0
      %8886 = vmatpush2.bf16.msra.mxu0 0
      %8887 = vmatprep.subr.bf16.mxu0 0
      %8888 = vmatpush2.bf16.msra.mxu0 0
      %8889 = vmatprep.subr.bf16.mxu0 0
      %8890 = vmatpush2.bf16.msra.mxu0 0
      %8891 = vmatprep.subr.bf16.mxu0 0
      %8892 = vmatpush2.bf16.msra.mxu0 0
      %8893 = vmatprep.subr.bf16.mxu0 0
      %8894 = vmatpush2.bf16.msra.mxu0 0
      %8895 = vmatprep.mubr.bf16.mxu0 0
      %8896 = vmatmul.mubr.bf16.gmra.mxu0 %v8861
      %v8897 = vpop.f32.mrf.mxu0
      %v8898 = vadd.f32 0.0, %v8897
      %v8899 = vpop.f32.mrf.mxu0
      %v8900 = vadd.f32 0.0, %v8899
      %v8901 = vpop.f32.mrf.mxu0
      %v8902 = vpop.f32.mrf.mxu0
      %8903 = vdwg.mxu0
      %v8904 = vpack.c.bf16 %v8898, %v8898
      %v8905 = vpack.c.bf16 %v8900, %v8900
      %s8906 = scalar_lea.vmem %s10, 3584
      %v8907 = vld [vmem:[%s8906] sm:$0xff]
      %v8908 = vld [vmem:[%s8906 + $0x8] sm:$0xff]
      %v8909 = vld [vmem:[%s8906 + $0x10] sm:$0xff]
      %v8910 = vld [vmem:[%s8906 + $0x18] sm:$0xff]
      %v8911 = vld [vmem:[%s8906 + $0x20] sm:$0xff]
      %v8912 = vld [vmem:[%s8906 + $0x28] sm:$0xff]
      %v8913 = vld [vmem:[%s8906 + $0x30] sm:$0xff]
      %v8914 = vld [vmem:[%s8906 + $0x38] sm:$0xff]
      %v8915 = vld [vmem:[%s8906 + $0x40] sm:$0xff]
      %v8916 = vld [vmem:[%s8906 + $0x48] sm:$0xff]
      %v8917 = vld [vmem:[%s8906 + $0x50] sm:$0xff]
      %v8918 = vld [vmem:[%s8906 + $0x58] sm:$0xff]
      %v8919 = vld [vmem:[%s8906 + $0x60] sm:$0xff]
      %v8920 = vld [vmem:[%s8906 + $0x68] sm:$0xff]
      %v8921 = vld [vmem:[%s8906 + $0x70] sm:$0xff]
      %v8922 = vld [vmem:[%s8906 + $0x78] sm:$0xff]
      %v8923 = vld [vmem:[%s8906 + $0x80] sm:$0xff]
      %v8924 = vld [vmem:[%s8906 + $0x88] sm:$0xff]
      %v8925 = vld [vmem:[%s8906 + $0x90] sm:$0xff]
      %v8926 = vld [vmem:[%s8906 + $0x98] sm:$0xff]
      %v8927 = vld [vmem:[%s8906 + $0xa0] sm:$0xff]
      %v8928 = vld [vmem:[%s8906 + $0xa8] sm:$0xff]
      %v8929 = vld [vmem:[%s8906 + $0xb0] sm:$0xff]
      %v8930 = vld [vmem:[%s8906 + $0xb8] sm:$0xff]
      %v8931 = vld [vmem:[%s8906 + $0xc0] sm:$0xff]
      %v8932 = vld [vmem:[%s8906 + $0xc8] sm:$0xff]
      %v8933 = vld [vmem:[%s8906 + $0xd0] sm:$0xff]
      %v8934 = vld [vmem:[%s8906 + $0xd8] sm:$0xff]
      %v8935 = vld [vmem:[%s8906 + $0xe0] sm:$0xff]
      %v8936 = vld [vmem:[%s8906 + $0xe8] sm:$0xff]
      %v8937 = vld [vmem:[%s8906 + $0xf0] sm:$0xff]
      %v8938 = vld [vmem:[%s8906 + $0xf8] sm:$0xff]
      %v8939 = vld [vmem:[%s8906 + $0x100] sm:$0xff]
      %v8940 = vld [vmem:[%s8906 + $0x108] sm:$0xff]
      %v8941 = vld [vmem:[%s8906 + $0x110] sm:$0xff]
      %v8942 = vld [vmem:[%s8906 + $0x118] sm:$0xff]
      %v8943 = vld [vmem:[%s8906 + $0x120] sm:$0xff]
      %v8944 = vld [vmem:[%s8906 + $0x128] sm:$0xff]
      %v8945 = vld [vmem:[%s8906 + $0x130] sm:$0xff]
      %v8946 = vld [vmem:[%s8906 + $0x138] sm:$0xff]
      %v8947 = vld [vmem:[%s8906 + $0x140] sm:$0xff]
      %v8948 = vld [vmem:[%s8906 + $0x148] sm:$0xff]
      %v8949 = vld [vmem:[%s8906 + $0x150] sm:$0xff]
      %v8950 = vld [vmem:[%s8906 + $0x158] sm:$0xff]
      %v8951 = vld [vmem:[%s8906 + $0x160] sm:$0xff]
      %v8952 = vld [vmem:[%s8906 + $0x168] sm:$0xff]
      %v8953 = vld [vmem:[%s8906 + $0x170] sm:$0xff]
      %v8954 = vld [vmem:[%s8906 + $0x178] sm:$0xff]
      %v8955 = vld [vmem:[%s8906 + $0x180] sm:$0xff]
      %v8956 = vld [vmem:[%s8906 + $0x188] sm:$0xff]
      %v8957 = vld [vmem:[%s8906 + $0x190] sm:$0xff]
      %v8958 = vld [vmem:[%s8906 + $0x198] sm:$0xff]
      %v8959 = vld [vmem:[%s8906 + $0x1a0] sm:$0xff]
      %v8960 = vld [vmem:[%s8906 + $0x1a8] sm:$0xff]
      %v8961 = vld [vmem:[%s8906 + $0x1b0] sm:$0xff]
      %v8962 = vld [vmem:[%s8906 + $0x1b8] sm:$0xff]
      %v8963 = vld [vmem:[%s8906 + $0x1c0] sm:$0xff]
      %v8964 = vld [vmem:[%s8906 + $0x1c8] sm:$0xff]
      %v8965 = vld [vmem:[%s8906 + $0x1d0] sm:$0xff]
      %v8966 = vld [vmem:[%s8906 + $0x1d8] sm:$0xff]
      %v8967 = vld [vmem:[%s8906 + $0x1e0] sm:$0xff]
      %v8968 = vld [vmem:[%s8906 + $0x1e8] sm:$0xff]
      %v8969 = vld [vmem:[%s8906 + $0x1f0] sm:$0xff]
      %v8970 = vld [vmem:[%s8906 + $0x1f8] sm:$0xff]
      %v9035 = vunpack.c.l.b16 %v8907
      %v9036 = vunpack.c.h.b16 %v8907
      %v9037 = vunpack.c.l.b16 %v8908
      %v9038 = vunpack.c.h.b16 %v8908
      %v9039 = vunpack.c.l.b16 %v8909
      %v9040 = vunpack.c.h.b16 %v8909
      %v9041 = vunpack.c.l.b16 %v8910
      %v9042 = vunpack.c.h.b16 %v8910
      %v9043 = vunpack.c.l.b16 %v8911
      %v9044 = vunpack.c.h.b16 %v8911
      %v9045 = vunpack.c.l.b16 %v8912
      %v9046 = vunpack.c.h.b16 %v8912
      %v9047 = vunpack.c.l.b16 %v8913
      %v9048 = vunpack.c.h.b16 %v8913
      %v9049 = vunpack.c.l.b16 %v8914
      %v9050 = vunpack.c.h.b16 %v8914
      %v9051 = vunpack.c.l.b16 %v8915
      %v9052 = vunpack.c.h.b16 %v8915
      %v9053 = vunpack.c.l.b16 %v8916
      %v9054 = vunpack.c.h.b16 %v8916
      %v9055 = vunpack.c.l.b16 %v8917
      %v9056 = vunpack.c.h.b16 %v8917
      %v9057 = vunpack.c.l.b16 %v8918
      %v9058 = vunpack.c.h.b16 %v8918
      %v9059 = vunpack.c.l.b16 %v8919
      %v9060 = vunpack.c.h.b16 %v8919
      %v9061 = vunpack.c.l.b16 %v8920
      %v9062 = vunpack.c.h.b16 %v8920
      %v9063 = vunpack.c.l.b16 %v8921
      %v9064 = vunpack.c.h.b16 %v8921
      %v9065 = vunpack.c.l.b16 %v8922
      %v9066 = vunpack.c.h.b16 %v8922
      %v9067 = vunpack.c.l.b16 %v8923
      %v9068 = vunpack.c.h.b16 %v8923
      %v9069 = vunpack.c.l.b16 %v8924
      %v9070 = vunpack.c.h.b16 %v8924
      %v9071 = vunpack.c.l.b16 %v8925
      %v9072 = vunpack.c.h.b16 %v8925
      %v9073 = vunpack.c.l.b16 %v8926
      %v9074 = vunpack.c.h.b16 %v8926
      %v9075 = vunpack.c.l.b16 %v8927
      %v9076 = vunpack.c.h.b16 %v8927
      %v9077 = vunpack.c.l.b16 %v8928
      %v9078 = vunpack.c.h.b16 %v8928
      %v9079 = vunpack.c.l.b16 %v8929
      %v9080 = vunpack.c.h.b16 %v8929
      %v9081 = vunpack.c.l.b16 %v8930
      %v9082 = vunpack.c.h.b16 %v8930
      %v9083 = vunpack.c.l.b16 %v8931
      %v9084 = vunpack.c.h.b16 %v8931
      %v9085 = vunpack.c.l.b16 %v8932
      %v9086 = vunpack.c.h.b16 %v8932
      %v9087 = vunpack.c.l.b16 %v8933
      %v9088 = vunpack.c.h.b16 %v8933
      %v9089 = vunpack.c.l.b16 %v8934
      %v9090 = vunpack.c.h.b16 %v8934
      %v9091 = vunpack.c.l.b16 %v8935
      %v9092 = vunpack.c.h.b16 %v8935
      %v9093 = vunpack.c.l.b16 %v8936
      %v9094 = vunpack.c.h.b16 %v8936
      %v9095 = vunpack.c.l.b16 %v8937
      %v9096 = vunpack.c.h.b16 %v8937
      %v9097 = vunpack.c.l.b16 %v8938
      %v9098 = vunpack.c.h.b16 %v8938
      %v9099 = vunpack.c.l.b16 %v8939
      %v9100 = vunpack.c.h.b16 %v8939
      %v9101 = vunpack.c.l.b16 %v8940
      %v9102 = vunpack.c.h.b16 %v8940
      %v9103 = vunpack.c.l.b16 %v8941
      %v9104 = vunpack.c.h.b16 %v8941
      %v9105 = vunpack.c.l.b16 %v8942
      %v9106 = vunpack.c.h.b16 %v8942
      %v9107 = vunpack.c.l.b16 %v8943
      %v9108 = vunpack.c.h.b16 %v8943
      %v9109 = vunpack.c.l.b16 %v8944
      %v9110 = vunpack.c.h.b16 %v8944
      %v9111 = vunpack.c.l.b16 %v8945
      %v9112 = vunpack.c.h.b16 %v8945
      %v9113 = vunpack.c.l.b16 %v8946
      %v9114 = vunpack.c.h.b16 %v8946
      %v9115 = vunpack.c.l.b16 %v8947
      %v9116 = vunpack.c.h.b16 %v8947
      %v9117 = vunpack.c.l.b16 %v8948
      %v9118 = vunpack.c.h.b16 %v8948
      %v9119 = vunpack.c.l.b16 %v8949
      %v9120 = vunpack.c.h.b16 %v8949
      %v9121 = vunpack.c.l.b16 %v8950
      %v9122 = vunpack.c.h.b16 %v8950
      %v9123 = vunpack.c.l.b16 %v8951
      %v9124 = vunpack.c.h.b16 %v8951
      %v9125 = vunpack.c.l.b16 %v8952
      %v9126 = vunpack.c.h.b16 %v8952
      %v9127 = vunpack.c.l.b16 %v8953
      %v9128 = vunpack.c.h.b16 %v8953
      %v9129 = vunpack.c.l.b16 %v8954
      %v9130 = vunpack.c.h.b16 %v8954
      %v9131 = vunpack.c.l.b16 %v8955
      %v9132 = vunpack.c.h.b16 %v8955
      %v9133 = vunpack.c.l.b16 %v8956
      %v9134 = vunpack.c.h.b16 %v8956
      %v9135 = vunpack.c.l.b16 %v8957
      %v9136 = vunpack.c.h.b16 %v8957
      %v9137 = vunpack.c.l.b16 %v8958
      %v9138 = vunpack.c.h.b16 %v8958
      %v9139 = vunpack.c.l.b16 %v8959
      %v9140 = vunpack.c.h.b16 %v8959
      %v9141 = vunpack.c.l.b16 %v8960
      %v9142 = vunpack.c.h.b16 %v8960
      %v9143 = vunpack.c.l.b16 %v8961
      %v9144 = vunpack.c.h.b16 %v8961
      %v9145 = vunpack.c.l.b16 %v8962
      %v9146 = vunpack.c.h.b16 %v8962
      %v9147 = vunpack.c.l.b16 %v8963
      %v9148 = vunpack.c.h.b16 %v8963
      %v9149 = vunpack.c.l.b16 %v8964
      %v9150 = vunpack.c.h.b16 %v8964
      %v9151 = vunpack.c.l.b16 %v8965
      %v9152 = vunpack.c.h.b16 %v8965
      %v9153 = vunpack.c.l.b16 %v8966
      %v9154 = vunpack.c.h.b16 %v8966
      %v9155 = vunpack.c.l.b16 %v8967
      %v9156 = vunpack.c.h.b16 %v8967
      %v9157 = vunpack.c.l.b16 %v8968
      %v9158 = vunpack.c.h.b16 %v8968
      %v9159 = vunpack.c.l.b16 %v8969
      %v9160 = vunpack.c.h.b16 %v8969
      %v9161 = vunpack.c.l.b16 %v8970
      %v9162 = vunpack.c.h.b16 %v8970
      %v9163 = vpack.c.b16 %v9039, %v9035
      %v9164 = vpack.c.b16 %v9040, %v9036
      %v9165 = vpack.c.b16 %v9041, %v9037
      %v9166 = vpack.c.b16 %v9042, %v9038
      %v9167 = vpack.c.b16 %v9047, %v9043
      %v9168 = vpack.c.b16 %v9048, %v9044
      %v9169 = vpack.c.b16 %v9049, %v9045
      %v9170 = vpack.c.b16 %v9050, %v9046
      %v9171 = vpack.c.b16 %v9055, %v9051
      %v9172 = vpack.c.b16 %v9056, %v9052
      %v9173 = vpack.c.b16 %v9057, %v9053
      %v9174 = vpack.c.b16 %v9058, %v9054
      %v9175 = vpack.c.b16 %v9063, %v9059
      %v9176 = vpack.c.b16 %v9064, %v9060
      %v9177 = vpack.c.b16 %v9065, %v9061
      %v9178 = vpack.c.b16 %v9066, %v9062
      %v9179 = vpack.c.b16 %v9071, %v9067
      %v9180 = vpack.c.b16 %v9072, %v9068
      %v9181 = vpack.c.b16 %v9073, %v9069
      %v9182 = vpack.c.b16 %v9074, %v9070
      %v9183 = vpack.c.b16 %v9079, %v9075
      %v9184 = vpack.c.b16 %v9080, %v9076
      %v9185 = vpack.c.b16 %v9081, %v9077
      %v9186 = vpack.c.b16 %v9082, %v9078
      %v9187 = vpack.c.b16 %v9087, %v9083
      %v9188 = vpack.c.b16 %v9088, %v9084
      %v9189 = vpack.c.b16 %v9089, %v9085
      %v9190 = vpack.c.b16 %v9090, %v9086
      %v9191 = vpack.c.b16 %v9095, %v9091
      %v9192 = vpack.c.b16 %v9096, %v9092
      %v9193 = vpack.c.b16 %v9097, %v9093
      %v9194 = vpack.c.b16 %v9098, %v9094
      %v9195 = vpack.c.b16 %v9103, %v9099
      %v9196 = vpack.c.b16 %v9104, %v9100
      %v9197 = vpack.c.b16 %v9105, %v9101
      %v9198 = vpack.c.b16 %v9106, %v9102
      %v9199 = vpack.c.b16 %v9111, %v9107
      %v9200 = vpack.c.b16 %v9112, %v9108
      %v9201 = vpack.c.b16 %v9113, %v9109
      %v9202 = vpack.c.b16 %v9114, %v9110
      %v9203 = vpack.c.b16 %v9119, %v9115
      %v9204 = vpack.c.b16 %v9120, %v9116
      %v9205 = vpack.c.b16 %v9121, %v9117
      %v9206 = vpack.c.b16 %v9122, %v9118
      %v9207 = vpack.c.b16 %v9127, %v9123
      %v9208 = vpack.c.b16 %v9128, %v9124
      %v9209 = vpack.c.b16 %v9129, %v9125
      %v9210 = vpack.c.b16 %v9130, %v9126
      %v9211 = vpack.c.b16 %v9135, %v9131
      %v9212 = vpack.c.b16 %v9136, %v9132
      %v9213 = vpack.c.b16 %v9137, %v9133
      %v9214 = vpack.c.b16 %v9138, %v9134
      %v9215 = vpack.c.b16 %v9143, %v9139
      %v9216 = vpack.c.b16 %v9144, %v9140
      %v9217 = vpack.c.b16 %v9145, %v9141
      %v9218 = vpack.c.b16 %v9146, %v9142
      %v9219 = vpack.c.b16 %v9151, %v9147
      %v9220 = vpack.c.b16 %v9152, %v9148
      %v9221 = vpack.c.b16 %v9153, %v9149
      %v9222 = vpack.c.b16 %v9154, %v9150
      %v9223 = vpack.c.b16 %v9159, %v9155
      %v9224 = vpack.c.b16 %v9160, %v9156
      %v9225 = vpack.c.b16 %v9161, %v9157
      %v9226 = vpack.c.b16 %v9162, %v9158
      %9291 = vmatprep.subr.bf16.mxu0 %v9192
      %9292 = vmatpush1.bf16.msra.mxu0 %v9191
      %9293 = vmatprep.subr.bf16.mxu0 %v9188
      %9294 = vmatpush1.bf16.msra.mxu0 %v9187
      %9295 = vmatprep.subr.bf16.mxu0 %v9184
      %9296 = vmatpush1.bf16.msra.mxu0 %v9183
      %9297 = vmatprep.subr.bf16.mxu0 %v9180
      %9298 = vmatpush1.bf16.msra.mxu0 %v9179
      %9299 = vmatprep.subr.bf16.mxu0 %v9176
      %9300 = vmatpush1.bf16.msra.mxu0 %v9175
      %9301 = vmatprep.subr.bf16.mxu0 %v9172
      %9302 = vmatpush1.bf16.msra.mxu0 %v9171
      %9303 = vmatprep.subr.bf16.mxu0 %v9168
      %9304 = vmatpush1.bf16.msra.mxu0 %v9167
      %9305 = vmatprep.subr.bf16.mxu0 %v9164
      %9306 = vmatpush1.bf16.msra.mxu0 %v9163
      %9307 = vmatprep.subr.bf16.mxu0 %v9224
      %9308 = vmatpush2.bf16.msra.mxu0 %v9223
      %9309 = vmatprep.subr.bf16.mxu0 %v9220
      %9310 = vmatpush2.bf16.msra.mxu0 %v9219
      %9311 = vmatprep.subr.bf16.mxu0 %v9216
      %9312 = vmatpush2.bf16.msra.mxu0 %v9215
      %9313 = vmatprep.subr.bf16.mxu0 %v9212
      %9314 = vmatpush2.bf16.msra.mxu0 %v9211
      %9315 = vmatprep.subr.bf16.mxu0 %v9208
      %9316 = vmatpush2.bf16.msra.mxu0 %v9207
      %9317 = vmatprep.subr.bf16.mxu0 %v9204
      %9318 = vmatpush2.bf16.msra.mxu0 %v9203
      %9319 = vmatprep.subr.bf16.mxu0 %v9200
      %9320 = vmatpush2.bf16.msra.mxu0 %v9199
      %9321 = vmatprep.subr.bf16.mxu0 %v9196
      %9322 = vmatpush2.bf16.msra.mxu0 %v9195
      %9323 = vmatprep.mubr.bf16.mxu0 %v8905
      %9324 = vmatmul.mubr.bf16.gmra.mxu0 %v8904
      %v9325 = vpop.f32.mrf.mxu0
      %v9326 = vadd.f32 0.0, %v9325
      %v9327 = vpop.f32.mrf.mxu0
      %v9328 = vadd.f32 0.0, %v9327
      %v9329 = vpop.f32.mrf.mxu0
      %v9330 = vpop.f32.mrf.mxu0
      %9331 = vdwg.mxu0
      %9332 = vmatprep.subr.bf16.mxu0 %v9194
      %9333 = vmatpush1.bf16.msra.mxu0 %v9193
      %9334 = vmatprep.subr.bf16.mxu0 %v9190
      %9335 = vmatpush1.bf16.msra.mxu0 %v9189
      %9336 = vmatprep.subr.bf16.mxu0 %v9186
      %9337 = vmatpush1.bf16.msra.mxu0 %v9185
      %9338 = vmatprep.subr.bf16.mxu0 %v9182
      %9339 = vmatpush1.bf16.msra.mxu0 %v9181
      %9340 = vmatprep.subr.bf16.mxu0 %v9178
      %9341 = vmatpush1.bf16.msra.mxu0 %v9177
      %9342 = vmatprep.subr.bf16.mxu0 %v9174
      %9343 = vmatpush1.bf16.msra.mxu0 %v9173
      %9344 = vmatprep.subr.bf16.mxu0 %v9170
      %9345 = vmatpush1.bf16.msra.mxu0 %v9169
      %9346 = vmatprep.subr.bf16.mxu0 %v9166
      %9347 = vmatpush1.bf16.msra.mxu0 %v9165
      %9348 = vmatprep.subr.bf16.mxu0 %v9226
      %9349 = vmatpush2.bf16.msra.mxu0 %v9225
      %9350 = vmatprep.subr.bf16.mxu0 %v9222
      %9351 = vmatpush2.bf16.msra.mxu0 %v9221
      %9352 = vmatprep.subr.bf16.mxu0 %v9218
      %9353 = vmatpush2.bf16.msra.mxu0 %v9217
      %9354 = vmatprep.subr.bf16.mxu0 %v9214
      %9355 = vmatpush2.bf16.msra.mxu0 %v9213
      %9356 = vmatprep.subr.bf16.mxu0 %v9210
      %9357 = vmatpush2.bf16.msra.mxu0 %v9209
      %9358 = vmatprep.subr.bf16.mxu0 %v9206
      %9359 = vmatpush2.bf16.msra.mxu0 %v9205
      %9360 = vmatprep.subr.bf16.mxu0 %v9202
      %9361 = vmatpush2.bf16.msra.mxu0 %v9201
      %9362 = vmatprep.subr.bf16.mxu0 %v9198
      %9363 = vmatpush2.bf16.msra.mxu0 %v9197
      %9364 = vmatprep.mubr.bf16.mxu0 %v8905
      %9365 = vmatmul.mubr.bf16.gmra.mxu0 %v8904
      %v9366 = vpop.f32.mrf.mxu0
      %v9367 = vadd.f32 0.0, %v9366
      %v9368 = vpop.f32.mrf.mxu0
      %v9369 = vadd.f32 0.0, %v9368
      %v9370 = vpop.f32.mrf.mxu0
      %v9371 = vpop.f32.mrf.mxu0
      %9372 = vdwg.mxu0
      %v9373 = vadd.f32 %v8854, %v9326
      %v9374 = vadd.f32 %v8855, %v9328
      %v9375 = vadd.f32 %v8856, %v9367
      %v9376 = vadd.f32 %v8857, %v9369
      %s9377 = scalar_lea.vmem %s9, 16
      %v9378 = vld [vmem:[%s9377] sm:$0x3]
      %v9380 = vsel %vm5235, %v9378, 0
      %9382 = vmatprep.subr.bf16.mxu0 0
      %9383 = vmatpush1.bf16.msra.mxu0 0
      %9384 = vmatprep.subr.bf16.mxu0 0
      %9385 = vmatpush1.bf16.msra.mxu0 0
      %9386 = vmatprep.subr.bf16.mxu0 0
      %9387 = vmatpush1.bf16.msra.mxu0 0
      %9388 = vmatprep.subr.bf16.mxu0 0
      %9389 = vmatpush1.bf16.msra.mxu0 0
      %9390 = vmatprep.subr.bf16.mxu0 0
      %9391 = vmatpush1.bf16.msra.mxu0 0
      %9392 = vmatprep.subr.bf16.mxu0 0
      %9393 = vmatpush1.bf16.msra.mxu0 0
      %9394 = vmatprep.subr.bf16.mxu0 0
      %9395 = vmatpush1.bf16.msra.mxu0 0
      %9396 = vmatprep.subr.bf16.mxu0 %v5233
      %9397 = vmatpush1.bf16.msra.mxu0 %v5232
      %9398 = vmatprep.subr.bf16.mxu0 0
      %9399 = vmatpush2.bf16.msra.mxu0 0
      %9400 = vmatprep.subr.bf16.mxu0 0
      %9401 = vmatpush2.bf16.msra.mxu0 0
      %9402 = vmatprep.subr.bf16.mxu0 0
      %9403 = vmatpush2.bf16.msra.mxu0 0
      %9404 = vmatprep.subr.bf16.mxu0 0
      %9405 = vmatpush2.bf16.msra.mxu0 0
      %9406 = vmatprep.subr.bf16.mxu0 0
      %9407 = vmatpush2.bf16.msra.mxu0 0
      %9408 = vmatprep.subr.bf16.mxu0 0
      %9409 = vmatpush2.bf16.msra.mxu0 0
      %9410 = vmatprep.subr.bf16.mxu0 0
      %9411 = vmatpush2.bf16.msra.mxu0 0
      %9412 = vmatprep.subr.bf16.mxu0 0
      %9413 = vmatpush2.bf16.msra.mxu0 0
      %9414 = vmatprep.mubr.bf16.mxu0 0
      %9415 = vmatmul.mubr.bf16.gmra.mxu0 %v9380
      %v9416 = vpop.f32.mrf.mxu0
      %v9417 = vadd.f32 0.0, %v9416
      %v9418 = vpop.f32.mrf.mxu0
      %v9419 = vadd.f32 0.0, %v9418
      %v9420 = vpop.f32.mrf.mxu0
      %v9421 = vpop.f32.mrf.mxu0
      %9422 = vdwg.mxu0
      %v9423 = vpack.c.bf16 %v9417, %v9417
      %v9424 = vpack.c.bf16 %v9419, %v9419
      %s9425 = scalar_lea.vmem %s10, 4096
      %v9426 = vld [vmem:[%s9425] sm:$0xff]
      %v9427 = vld [vmem:[%s9425 + $0x8] sm:$0xff]
      %v9428 = vld [vmem:[%s9425 + $0x10] sm:$0xff]
      %v9429 = vld [vmem:[%s9425 + $0x18] sm:$0xff]
      %v9430 = vld [vmem:[%s9425 + $0x20] sm:$0xff]
      %v9431 = vld [vmem:[%s9425 + $0x28] sm:$0xff]
      %v9432 = vld [vmem:[%s9425 + $0x30] sm:$0xff]
      %v9433 = vld [vmem:[%s9425 + $0x38] sm:$0xff]
      %v9434 = vld [vmem:[%s9425 + $0x40] sm:$0xff]
      %v9435 = vld [vmem:[%s9425 + $0x48] sm:$0xff]
      %v9436 = vld [vmem:[%s9425 + $0x50] sm:$0xff]
      %v9437 = vld [vmem:[%s9425 + $0x58] sm:$0xff]
      %v9438 = vld [vmem:[%s9425 + $0x60] sm:$0xff]
      %v9439 = vld [vmem:[%s9425 + $0x68] sm:$0xff]
      %v9440 = vld [vmem:[%s9425 + $0x70] sm:$0xff]
      %v9441 = vld [vmem:[%s9425 + $0x78] sm:$0xff]
      %v9442 = vld [vmem:[%s9425 + $0x80] sm:$0xff]
      %v9443 = vld [vmem:[%s9425 + $0x88] sm:$0xff]
      %v9444 = vld [vmem:[%s9425 + $0x90] sm:$0xff]
      %v9445 = vld [vmem:[%s9425 + $0x98] sm:$0xff]
      %v9446 = vld [vmem:[%s9425 + $0xa0] sm:$0xff]
      %v9447 = vld [vmem:[%s9425 + $0xa8] sm:$0xff]
      %v9448 = vld [vmem:[%s9425 + $0xb0] sm:$0xff]
      %v9449 = vld [vmem:[%s9425 + $0xb8] sm:$0xff]
      %v9450 = vld [vmem:[%s9425 + $0xc0] sm:$0xff]
      %v9451 = vld [vmem:[%s9425 + $0xc8] sm:$0xff]
      %v9452 = vld [vmem:[%s9425 + $0xd0] sm:$0xff]
      %v9453 = vld [vmem:[%s9425 + $0xd8] sm:$0xff]
      %v9454 = vld [vmem:[%s9425 + $0xe0] sm:$0xff]
      %v9455 = vld [vmem:[%s9425 + $0xe8] sm:$0xff]
      %v9456 = vld [vmem:[%s9425 + $0xf0] sm:$0xff]
      %v9457 = vld [vmem:[%s9425 + $0xf8] sm:$0xff]
      %v9458 = vld [vmem:[%s9425 + $0x100] sm:$0xff]
      %v9459 = vld [vmem:[%s9425 + $0x108] sm:$0xff]
      %v9460 = vld [vmem:[%s9425 + $0x110] sm:$0xff]
      %v9461 = vld [vmem:[%s9425 + $0x118] sm:$0xff]
      %v9462 = vld [vmem:[%s9425 + $0x120] sm:$0xff]
      %v9463 = vld [vmem:[%s9425 + $0x128] sm:$0xff]
      %v9464 = vld [vmem:[%s9425 + $0x130] sm:$0xff]
      %v9465 = vld [vmem:[%s9425 + $0x138] sm:$0xff]
      %v9466 = vld [vmem:[%s9425 + $0x140] sm:$0xff]
      %v9467 = vld [vmem:[%s9425 + $0x148] sm:$0xff]
      %v9468 = vld [vmem:[%s9425 + $0x150] sm:$0xff]
      %v9469 = vld [vmem:[%s9425 + $0x158] sm:$0xff]
      %v9470 = vld [vmem:[%s9425 + $0x160] sm:$0xff]
      %v9471 = vld [vmem:[%s9425 + $0x168] sm:$0xff]
      %v9472 = vld [vmem:[%s9425 + $0x170] sm:$0xff]
      %v9473 = vld [vmem:[%s9425 + $0x178] sm:$0xff]
      %v9474 = vld [vmem:[%s9425 + $0x180] sm:$0xff]
      %v9475 = vld [vmem:[%s9425 + $0x188] sm:$0xff]
      %v9476 = vld [vmem:[%s9425 + $0x190] sm:$0xff]
      %v9477 = vld [vmem:[%s9425 + $0x198] sm:$0xff]
      %v9478 = vld [vmem:[%s9425 + $0x1a0] sm:$0xff]
      %v9479 = vld [vmem:[%s9425 + $0x1a8] sm:$0xff]
      %v9480 = vld [vmem:[%s9425 + $0x1b0] sm:$0xff]
      %v9481 = vld [vmem:[%s9425 + $0x1b8] sm:$0xff]
      %v9482 = vld [vmem:[%s9425 + $0x1c0] sm:$0xff]
      %v9483 = vld [vmem:[%s9425 + $0x1c8] sm:$0xff]
      %v9484 = vld [vmem:[%s9425 + $0x1d0] sm:$0xff]
      %v9485 = vld [vmem:[%s9425 + $0x1d8] sm:$0xff]
      %v9486 = vld [vmem:[%s9425 + $0x1e0] sm:$0xff]
      %v9487 = vld [vmem:[%s9425 + $0x1e8] sm:$0xff]
      %v9488 = vld [vmem:[%s9425 + $0x1f0] sm:$0xff]
      %v9489 = vld [vmem:[%s9425 + $0x1f8] sm:$0xff]
      %v9554 = vunpack.c.l.b16 %v9426
      %v9555 = vunpack.c.h.b16 %v9426
      %v9556 = vunpack.c.l.b16 %v9427
      %v9557 = vunpack.c.h.b16 %v9427
      %v9558 = vunpack.c.l.b16 %v9428
      %v9559 = vunpack.c.h.b16 %v9428
      %v9560 = vunpack.c.l.b16 %v9429
      %v9561 = vunpack.c.h.b16 %v9429
      %v9562 = vunpack.c.l.b16 %v9430
      %v9563 = vunpack.c.h.b16 %v9430
      %v9564 = vunpack.c.l.b16 %v9431
      %v9565 = vunpack.c.h.b16 %v9431
      %v9566 = vunpack.c.l.b16 %v9432
      %v9567 = vunpack.c.h.b16 %v9432
      %v9568 = vunpack.c.l.b16 %v9433
      %v9569 = vunpack.c.h.b16 %v9433
      %v9570 = vunpack.c.l.b16 %v9434
      %v9571 = vunpack.c.h.b16 %v9434
      %v9572 = vunpack.c.l.b16 %v9435
      %v9573 = vunpack.c.h.b16 %v9435
      %v9574 = vunpack.c.l.b16 %v9436
      %v9575 = vunpack.c.h.b16 %v9436
      %v9576 = vunpack.c.l.b16 %v9437
      %v9577 = vunpack.c.h.b16 %v9437
      %v9578 = vunpack.c.l.b16 %v9438
      %v9579 = vunpack.c.h.b16 %v9438
      %v9580 = vunpack.c.l.b16 %v9439
      %v9581 = vunpack.c.h.b16 %v9439
      %v9582 = vunpack.c.l.b16 %v9440
      %v9583 = vunpack.c.h.b16 %v9440
      %v9584 = vunpack.c.l.b16 %v9441
      %v9585 = vunpack.c.h.b16 %v9441
      %v9586 = vunpack.c.l.b16 %v9442
      %v9587 = vunpack.c.h.b16 %v9442
      %v9588 = vunpack.c.l.b16 %v9443
      %v9589 = vunpack.c.h.b16 %v9443
      %v9590 = vunpack.c.l.b16 %v9444
      %v9591 = vunpack.c.h.b16 %v9444
      %v9592 = vunpack.c.l.b16 %v9445
      %v9593 = vunpack.c.h.b16 %v9445
      %v9594 = vunpack.c.l.b16 %v9446
      %v9595 = vunpack.c.h.b16 %v9446
      %v9596 = vunpack.c.l.b16 %v9447
      %v9597 = vunpack.c.h.b16 %v9447
      %v9598 = vunpack.c.l.b16 %v9448
      %v9599 = vunpack.c.h.b16 %v9448
      %v9600 = vunpack.c.l.b16 %v9449
      %v9601 = vunpack.c.h.b16 %v9449
      %v9602 = vunpack.c.l.b16 %v9450
      %v9603 = vunpack.c.h.b16 %v9450
      %v9604 = vunpack.c.l.b16 %v9451
      %v9605 = vunpack.c.h.b16 %v9451
      %v9606 = vunpack.c.l.b16 %v9452
      %v9607 = vunpack.c.h.b16 %v9452
      %v9608 = vunpack.c.l.b16 %v9453
      %v9609 = vunpack.c.h.b16 %v9453
      %v9610 = vunpack.c.l.b16 %v9454
      %v9611 = vunpack.c.h.b16 %v9454
      %v9612 = vunpack.c.l.b16 %v9455
      %v9613 = vunpack.c.h.b16 %v9455
      %v9614 = vunpack.c.l.b16 %v9456
      %v9615 = vunpack.c.h.b16 %v9456
      %v9616 = vunpack.c.l.b16 %v9457
      %v9617 = vunpack.c.h.b16 %v9457
      %v9618 = vunpack.c.l.b16 %v9458
      %v9619 = vunpack.c.h.b16 %v9458
      %v9620 = vunpack.c.l.b16 %v9459
      %v9621 = vunpack.c.h.b16 %v9459
      %v9622 = vunpack.c.l.b16 %v9460
      %v9623 = vunpack.c.h.b16 %v9460
      %v9624 = vunpack.c.l.b16 %v9461
      %v9625 = vunpack.c.h.b16 %v9461
      %v9626 = vunpack.c.l.b16 %v9462
      %v9627 = vunpack.c.h.b16 %v9462
      %v9628 = vunpack.c.l.b16 %v9463
      %v9629 = vunpack.c.h.b16 %v9463
      %v9630 = vunpack.c.l.b16 %v9464
      %v9631 = vunpack.c.h.b16 %v9464
      %v9632 = vunpack.c.l.b16 %v9465
      %v9633 = vunpack.c.h.b16 %v9465
      %v9634 = vunpack.c.l.b16 %v9466
      %v9635 = vunpack.c.h.b16 %v9466
      %v9636 = vunpack.c.l.b16 %v9467
      %v9637 = vunpack.c.h.b16 %v9467
      %v9638 = vunpack.c.l.b16 %v9468
      %v9639 = vunpack.c.h.b16 %v9468
      %v9640 = vunpack.c.l.b16 %v9469
      %v9641 = vunpack.c.h.b16 %v9469
      %v9642 = vunpack.c.l.b16 %v9470
      %v9643 = vunpack.c.h.b16 %v9470
      %v9644 = vunpack.c.l.b16 %v9471
      %v9645 = vunpack.c.h.b16 %v9471
      %v9646 = vunpack.c.l.b16 %v9472
      %v9647 = vunpack.c.h.b16 %v9472
      %v9648 = vunpack.c.l.b16 %v9473
      %v9649 = vunpack.c.h.b16 %v9473
      %v9650 = vunpack.c.l.b16 %v9474
      %v9651 = vunpack.c.h.b16 %v9474
      %v9652 = vunpack.c.l.b16 %v9475
      %v9653 = vunpack.c.h.b16 %v9475
      %v9654 = vunpack.c.l.b16 %v9476
      %v9655 = vunpack.c.h.b16 %v9476
      %v9656 = vunpack.c.l.b16 %v9477
      %v9657 = vunpack.c.h.b16 %v9477
      %v9658 = vunpack.c.l.b16 %v9478
      %v9659 = vunpack.c.h.b16 %v9478
      %v9660 = vunpack.c.l.b16 %v9479
      %v9661 = vunpack.c.h.b16 %v9479
      %v9662 = vunpack.c.l.b16 %v9480
      %v9663 = vunpack.c.h.b16 %v9480
      %v9664 = vunpack.c.l.b16 %v9481
      %v9665 = vunpack.c.h.b16 %v9481
      %v9666 = vunpack.c.l.b16 %v9482
      %v9667 = vunpack.c.h.b16 %v9482
      %v9668 = vunpack.c.l.b16 %v9483
      %v9669 = vunpack.c.h.b16 %v9483
      %v9670 = vunpack.c.l.b16 %v9484
      %v9671 = vunpack.c.h.b16 %v9484
      %v9672 = vunpack.c.l.b16 %v9485
      %v9673 = vunpack.c.h.b16 %v9485
      %v9674 = vunpack.c.l.b16 %v9486
      %v9675 = vunpack.c.h.b16 %v9486
      %v9676 = vunpack.c.l.b16 %v9487
      %v9677 = vunpack.c.h.b16 %v9487
      %v9678 = vunpack.c.l.b16 %v9488
      %v9679 = vunpack.c.h.b16 %v9488
      %v9680 = vunpack.c.l.b16 %v9489
      %v9681 = vunpack.c.h.b16 %v9489
      %v9682 = vpack.c.b16 %v9558, %v9554
      %v9683 = vpack.c.b16 %v9559, %v9555
      %v9684 = vpack.c.b16 %v9560, %v9556
      %v9685 = vpack.c.b16 %v9561, %v9557
      %v9686 = vpack.c.b16 %v9566, %v9562
      %v9687 = vpack.c.b16 %v9567, %v9563
      %v9688 = vpack.c.b16 %v9568, %v9564
      %v9689 = vpack.c.b16 %v9569, %v9565
      %v9690 = vpack.c.b16 %v9574, %v9570
      %v9691 = vpack.c.b16 %v9575, %v9571
      %v9692 = vpack.c.b16 %v9576, %v9572
      %v9693 = vpack.c.b16 %v9577, %v9573
      %v9694 = vpack.c.b16 %v9582, %v9578
      %v9695 = vpack.c.b16 %v9583, %v9579
      %v9696 = vpack.c.b16 %v9584, %v9580
      %v9697 = vpack.c.b16 %v9585, %v9581
      %v9698 = vpack.c.b16 %v9590, %v9586
      %v9699 = vpack.c.b16 %v9591, %v9587
      %v9700 = vpack.c.b16 %v9592, %v9588
      %v9701 = vpack.c.b16 %v9593, %v9589
      %v9702 = vpack.c.b16 %v9598, %v9594
      %v9703 = vpack.c.b16 %v9599, %v9595
      %v9704 = vpack.c.b16 %v9600, %v9596
      %v9705 = vpack.c.b16 %v9601, %v9597
      %v9706 = vpack.c.b16 %v9606, %v9602
      %v9707 = vpack.c.b16 %v9607, %v9603
      %v9708 = vpack.c.b16 %v9608, %v9604
      %v9709 = vpack.c.b16 %v9609, %v9605
      %v9710 = vpack.c.b16 %v9614, %v9610
      %v9711 = vpack.c.b16 %v9615, %v9611
      %v9712 = vpack.c.b16 %v9616, %v9612
      %v9713 = vpack.c.b16 %v9617, %v9613
      %v9714 = vpack.c.b16 %v9622, %v9618
      %v9715 = vpack.c.b16 %v9623, %v9619
      %v9716 = vpack.c.b16 %v9624, %v9620
      %v9717 = vpack.c.b16 %v9625, %v9621
      %v9718 = vpack.c.b16 %v9630, %v9626
      %v9719 = vpack.c.b16 %v9631, %v9627
      %v9720 = vpack.c.b16 %v9632, %v9628
      %v9721 = vpack.c.b16 %v9633, %v9629
      %v9722 = vpack.c.b16 %v9638, %v9634
      %v9723 = vpack.c.b16 %v9639, %v9635
      %v9724 = vpack.c.b16 %v9640, %v9636
      %v9725 = vpack.c.b16 %v9641, %v9637
      %v9726 = vpack.c.b16 %v9646, %v9642
      %v9727 = vpack.c.b16 %v9647, %v9643
      %v9728 = vpack.c.b16 %v9648, %v9644
      %v9729 = vpack.c.b16 %v9649, %v9645
      %v9730 = vpack.c.b16 %v9654, %v9650
      %v9731 = vpack.c.b16 %v9655, %v9651
      %v9732 = vpack.c.b16 %v9656, %v9652
      %v9733 = vpack.c.b16 %v9657, %v9653
      %v9734 = vpack.c.b16 %v9662, %v9658
      %v9735 = vpack.c.b16 %v9663, %v9659
      %v9736 = vpack.c.b16 %v9664, %v9660
      %v9737 = vpack.c.b16 %v9665, %v9661
      %v9738 = vpack.c.b16 %v9670, %v9666
      %v9739 = vpack.c.b16 %v9671, %v9667
      %v9740 = vpack.c.b16 %v9672, %v9668
      %v9741 = vpack.c.b16 %v9673, %v9669
      %v9742 = vpack.c.b16 %v9678, %v9674
      %v9743 = vpack.c.b16 %v9679, %v9675
      %v9744 = vpack.c.b16 %v9680, %v9676
      %v9745 = vpack.c.b16 %v9681, %v9677
      %9810 = vmatprep.subr.bf16.mxu0 %v9711
      %9811 = vmatpush1.bf16.msra.mxu0 %v9710
      %9812 = vmatprep.subr.bf16.mxu0 %v9707
      %9813 = vmatpush1.bf16.msra.mxu0 %v9706
      %9814 = vmatprep.subr.bf16.mxu0 %v9703
      %9815 = vmatpush1.bf16.msra.mxu0 %v9702
      %9816 = vmatprep.subr.bf16.mxu0 %v9699
      %9817 = vmatpush1.bf16.msra.mxu0 %v9698
      %9818 = vmatprep.subr.bf16.mxu0 %v9695
      %9819 = vmatpush1.bf16.msra.mxu0 %v9694
      %9820 = vmatprep.subr.bf16.mxu0 %v9691
      %9821 = vmatpush1.bf16.msra.mxu0 %v9690
      %9822 = vmatprep.subr.bf16.mxu0 %v9687
      %9823 = vmatpush1.bf16.msra.mxu0 %v9686
      %9824 = vmatprep.subr.bf16.mxu0 %v9683
      %9825 = vmatpush1.bf16.msra.mxu0 %v9682
      %9826 = vmatprep.subr.bf16.mxu0 %v9743
      %9827 = vmatpush2.bf16.msra.mxu0 %v9742
      %9828 = vmatprep.subr.bf16.mxu0 %v9739
      %9829 = vmatpush2.bf16.msra.mxu0 %v9738
      %9830 = vmatprep.subr.bf16.mxu0 %v9735
      %9831 = vmatpush2.bf16.msra.mxu0 %v9734
      %9832 = vmatprep.subr.bf16.mxu0 %v9731
      %9833 = vmatpush2.bf16.msra.mxu0 %v9730
      %9834 = vmatprep.subr.bf16.mxu0 %v9727
      %9835 = vmatpush2.bf16.msra.mxu0 %v9726
      %9836 = vmatprep.subr.bf16.mxu0 %v9723
      %9837 = vmatpush2.bf16.msra.mxu0 %v9722
      %9838 = vmatprep.subr.bf16.mxu0 %v9719
      %9839 = vmatpush2.bf16.msra.mxu0 %v9718
      %9840 = vmatprep.subr.bf16.mxu0 %v9715
      %9841 = vmatpush2.bf16.msra.mxu0 %v9714
      %9842 = vmatprep.mubr.bf16.mxu0 %v9424
      %9843 = vmatmul.mubr.bf16.gmra.mxu0 %v9423
      %v9844 = vpop.f32.mrf.mxu0
      %v9845 = vadd.f32 0.0, %v9844
      %v9846 = vpop.f32.mrf.mxu0
      %v9847 = vadd.f32 0.0, %v9846
      %v9848 = vpop.f32.mrf.mxu0
      %v9849 = vpop.f32.mrf.mxu0
      %9850 = vdwg.mxu0
      %9851 = vmatprep.subr.bf16.mxu0 %v9713
      %9852 = vmatpush1.bf16.msra.mxu0 %v9712
      %9853 = vmatprep.subr.bf16.mxu0 %v9709
      %9854 = vmatpush1.bf16.msra.mxu0 %v9708
      %9855 = vmatprep.subr.bf16.mxu0 %v9705
      %9856 = vmatpush1.bf16.msra.mxu0 %v9704
      %9857 = vmatprep.subr.bf16.mxu0 %v9701
      %9858 = vmatpush1.bf16.msra.mxu0 %v9700
      %9859 = vmatprep.subr.bf16.mxu0 %v9697
      %9860 = vmatpush1.bf16.msra.mxu0 %v9696
      %9861 = vmatprep.subr.bf16.mxu0 %v9693
      %9862 = vmatpush1.bf16.msra.mxu0 %v9692
      %9863 = vmatprep.subr.bf16.mxu0 %v9689
      %9864 = vmatpush1.bf16.msra.mxu0 %v9688
      %9865 = vmatprep.subr.bf16.mxu0 %v9685
      %9866 = vmatpush1.bf16.msra.mxu0 %v9684
      %9867 = vmatprep.subr.bf16.mxu0 %v9745
      %9868 = vmatpush2.bf16.msra.mxu0 %v9744
      %9869 = vmatprep.subr.bf16.mxu0 %v9741
      %9870 = vmatpush2.bf16.msra.mxu0 %v9740
      %9871 = vmatprep.subr.bf16.mxu0 %v9737
      %9872 = vmatpush2.bf16.msra.mxu0 %v9736
      %9873 = vmatprep.subr.bf16.mxu0 %v9733
      %9874 = vmatpush2.bf16.msra.mxu0 %v9732
      %9875 = vmatprep.subr.bf16.mxu0 %v9729
      %9876 = vmatpush2.bf16.msra.mxu0 %v9728
      %9877 = vmatprep.subr.bf16.mxu0 %v9725
      %9878 = vmatpush2.bf16.msra.mxu0 %v9724
      %9879 = vmatprep.subr.bf16.mxu0 %v9721
      %9880 = vmatpush2.bf16.msra.mxu0 %v9720
      %9881 = vmatprep.subr.bf16.mxu0 %v9717
      %9882 = vmatpush2.bf16.msra.mxu0 %v9716
      %9883 = vmatprep.mubr.bf16.mxu0 %v9424
      %9884 = vmatmul.mubr.bf16.gmra.mxu0 %v9423
      %v9885 = vpop.f32.mrf.mxu0
      %v9886 = vadd.f32 0.0, %v9885
      %v9887 = vpop.f32.mrf.mxu0
      %v9888 = vadd.f32 0.0, %v9887
      %v9889 = vpop.f32.mrf.mxu0
      %v9890 = vpop.f32.mrf.mxu0
      %9891 = vdwg.mxu0
      %v9892 = vadd.f32 %v9373, %v9845
      %v9893 = vadd.f32 %v9374, %v9847
      %v9894 = vadd.f32 %v9375, %v9886
      %v9895 = vadd.f32 %v9376, %v9888
      %v9896 = vld [vmem:[%s11] sm:$0xf]
      %v9898 = vlaneseq
      %v9899 = vshrl.u32 %v9898, 7
      %v9900 = vsub.s32 0, %v9899
      %v9901 = vrot.slane %v9896, %v9900
      %v9902 = vlaneseq
      %v9903 = vshrl.u32 %v9902, 7
      %v9904 = vsub.s32 1, %v9903
      %v9905 = vrot.slane %v9896, %v9904
      %v9906 = vlaneseq
      %v9907 = vshrl.u32 %v9906, 7
      %v9908 = vsub.s32 2, %v9907
      %v9909 = vrot.slane %v9896, %v9908
      %v9910 = vlaneseq
      %v9911 = vshrl.u32 %v9910, 7
      %v9912 = vsub.s32 3, %v9911
      %v9913 = vrot.slane %v9896, %v9912
      %v9918 = vadd.f32 %v9892, %v9901
      %v9919 = vadd.f32 %v9893, %v9905
      %v9920 = vadd.f32 %v9894, %v9909
      %v9921 = vadd.f32 %v9895, %v9913
      %v9922 = vsel %vm668, %v9918, 0.0
      %v9923 = vrot.slane %v9922, 4
      %v9924 = vadd.f32 %v9922, %v9923
      %v9925 = vrot.slane %v9924, 2
      %v9926 = vadd.f32 %v9924, %v9925
      %v9927 = vrot.slane %v9926, 1
      %v9928 = vadd.f32 %v9926, %v9927
      %v9929 = vsel %vm668, %v9919, 0.0
      %v9930 = vrot.slane %v9929, 4
      %v9931 = vadd.f32 %v9929, %v9930
      %v9932 = vrot.slane %v9931, 2
      %v9933 = vadd.f32 %v9931, %v9932
      %v9934 = vrot.slane %v9933, 1
      %v9935 = vadd.f32 %v9933, %v9934
      %v9936 = vsel %vm668, %v9920, 0.0
      %v9937 = vrot.slane %v9936, 4
      %v9938 = vadd.f32 %v9936, %v9937
      %v9939 = vrot.slane %v9938, 2
      %v9940 = vadd.f32 %v9938, %v9939
      %v9941 = vrot.slane %v9940, 1
      %v9942 = vadd.f32 %v9940, %v9941
      %v9943 = vsel %vm668, %v9921, 0.0
      %v9944 = vrot.slane %v9943, 4
      %v9945 = vadd.f32 %v9943, %v9944
      %v9946 = vrot.slane %v9945, 2
      %v9947 = vadd.f32 %v9945, %v9946
      %v9948 = vrot.slane %v9947, 1
      %v9949 = vadd.f32 %v9947, %v9948
      %v9950 = vrcp.pop 4.0
      %v9951 = vmul.f32 %v9928, %v9950
      %v9952 = vmul.f32 %v9935, %v9950
      %v9953 = vmul.f32 %v9942, %v9950
      %v9954 = vmul.f32 %v9949, %v9950
      %v9955 = vsub.f32 %v9918, %v9951
      %v9956 = vsub.f32 %v9919, %v9952
      %v9957 = vsub.f32 %v9920, %v9953
      %v9958 = vsub.f32 %v9921, %v9954
      %v9959 = vmul.f32 %v9955, %v9955
      %v9960 = vmul.f32 %v9956, %v9956
      %v9961 = vmul.f32 %v9957, %v9957
      %v9962 = vmul.f32 %v9958, %v9958
      %v9963 = vsel %vm668, %v9959, 0.0
      %v9964 = vrot.slane %v9963, 4
      %v9965 = vadd.f32 %v9963, %v9964
      %v9966 = vrot.slane %v9965, 2
      %v9967 = vadd.f32 %v9965, %v9966
      %v9968 = vrot.slane %v9967, 1
      %v9969 = vadd.f32 %v9967, %v9968
      %v9970 = vsel %vm668, %v9960, 0.0
      %v9971 = vrot.slane %v9970, 4
      %v9972 = vadd.f32 %v9970, %v9971
      %v9973 = vrot.slane %v9972, 2
      %v9974 = vadd.f32 %v9972, %v9973
      %v9975 = vrot.slane %v9974, 1
      %v9976 = vadd.f32 %v9974, %v9975
      %v9977 = vsel %vm668, %v9961, 0.0
      %v9978 = vrot.slane %v9977, 4
      %v9979 = vadd.f32 %v9977, %v9978
      %v9980 = vrot.slane %v9979, 2
      %v9981 = vadd.f32 %v9979, %v9980
      %v9982 = vrot.slane %v9981, 1
      %v9983 = vadd.f32 %v9981, %v9982
      %v9984 = vsel %vm668, %v9962, 0.0
      %v9985 = vrot.slane %v9984, 4
      %v9986 = vadd.f32 %v9984, %v9985
      %v9987 = vrot.slane %v9986, 2
      %v9988 = vadd.f32 %v9986, %v9987
      %v9989 = vrot.slane %v9988, 1
      %v9990 = vadd.f32 %v9988, %v9989
      %v9991 = vmul.f32 %v9969, %v9950
      %v9992 = vmul.f32 %v9976, %v9950
      %v9993 = vmul.f32 %v9983, %v9950
      %v9994 = vmul.f32 %v9990, %v9950
      %v9995 = vadd.f32 %v9991, 1e-05
      %v9996 = vadd.f32 %v9992, 1e-05
      %v9997 = vadd.f32 %v9993, 1e-05
      %v9998 = vadd.f32 %v9994, 1e-05
      %v9999 = vrsqrt.pop %v9995
      %v10000 = vrsqrt.pop %v9996
      %v10001 = vrsqrt.pop %v9997
      %v10002 = vrsqrt.pop %v9998
      %v10003 = vmul.f32 %v9955, %v9999
      %v10004 = vmul.f32 %v9956, %v10000
      %v10005 = vmul.f32 %v9957, %v10001
      %v10006 = vmul.f32 %v9958, %v10002
      %vm10007 = vcmp.ge.f32.partialorder %v10003, 0.0
      %vm10008 = vcmp.ge.f32.partialorder %v10004, 0.0
      %vm10009 = vcmp.ge.f32.partialorder %v10005, 0.0
      %vm10010 = vcmp.ge.f32.partialorder %v10006, 0.0
      %v10011 = vmul.f32 %v10003, 0.2
      %v10012 = vmul.f32 %v10004, 0.2
      %v10013 = vmul.f32 %v10005, 0.2
      %v10014 = vmul.f32 %v10006, 0.2
      %v10015 = vsel %vm10007, %v10003, %v10011
      %v10016 = vsel %vm10008, %v10004, %v10012
      %v10017 = vsel %vm10009, %v10005, %v10013
      %v10018 = vsel %vm10010, %v10006, %v10014
      %v10019 = vpack.c.bf16 %v10015, %v10015
      %v10020 = vpack.c.bf16 %v10016, %v10016
      %v10021 = vpack.c.bf16 %v10017, %v10017
      %v10022 = vpack.c.bf16 %v10018, %v10018
      %v10023 = vld [vmem:[%s12] sm:$0x3]
      %vm10024 = vcmask 31744
      %v10026 = vsel %vm10024, %v10023, 0
      %vm10028 = vcmask 1041408
      %v10030 = vsel %vm10028, %v10019, 0
      %v10033 = vsel %vm10028, %v10020, 0
      %v10036 = vsel %vm10028, %v10021, 0
      %v10039 = vsel %vm10028, %v10022, 0
      %10041 = vmatprep.subr.bf16.mxu0 0
      %10042 = vmatpush1.bf16.msra.mxu0 0
      %10043 = vmatprep.subr.bf16.mxu0 0
      %10044 = vmatpush1.bf16.msra.mxu0 0
      %10045 = vmatprep.subr.bf16.mxu0 0
      %10046 = vmatpush1.bf16.msra.mxu0 0
      %10047 = vmatprep.subr.bf16.mxu0 0
      %10048 = vmatpush1.bf16.msra.mxu0 0
      %10049 = vmatprep.subr.bf16.mxu0 0
      %10050 = vmatpush1.bf16.msra.mxu0 0
      %10051 = vmatprep.subr.bf16.mxu0 0
      %10052 = vmatpush1.bf16.msra.mxu0 0
      %10053 = vmatprep.subr.bf16.mxu0 0
      %10054 = vmatpush1.bf16.msra.mxu0 0
      %10055 = vmatprep.subr.bf16.mxu0 %v10033
      %10056 = vmatpush1.bf16.msra.mxu0 %v10030
      %10057 = vmatprep.subr.bf16.mxu0 0
      %10058 = vmatpush2.bf16.msra.mxu0 0
      %10059 = vmatprep.subr.bf16.mxu0 0
      %10060 = vmatpush2.bf16.msra.mxu0 0
      %10061 = vmatprep.subr.bf16.mxu0 0
      %10062 = vmatpush2.bf16.msra.mxu0 0
      %10063 = vmatprep.subr.bf16.mxu0 0
      %10064 = vmatpush2.bf16.msra.mxu0 0
      %10065 = vmatprep.subr.bf16.mxu0 0
      %10066 = vmatpush2.bf16.msra.mxu0 0
      %10067 = vmatprep.subr.bf16.mxu0 0
      %10068 = vmatpush2.bf16.msra.mxu0 0
      %10069 = vmatprep.subr.bf16.mxu0 0
      %10070 = vmatpush2.bf16.msra.mxu0 0
      %10071 = vmatprep.subr.bf16.mxu0 0
      %10072 = vmatpush2.bf16.msra.mxu0 0
      %10073 = vmatprep.mubr.bf16.mxu0 0
      %10074 = vmatmul.mubr.bf16.gmra.mxu0 %v10026
      %v10075 = vpop.f32.mrf.mxu0
      %v10076 = vadd.f32 0.0, %v10075
      %v10077 = vpop.f32.mrf.mxu0
      %v10078 = vadd.f32 0.0, %v10077
      %v10079 = vpop.f32.mrf.mxu0
      %v10080 = vpop.f32.mrf.mxu0
      %10081 = vdwg.mxu0
      %10082 = vmatprep.subr.bf16.mxu0 0
      %10083 = vmatpush1.bf16.msra.mxu0 0
      %10084 = vmatprep.subr.bf16.mxu0 0
      %10085 = vmatpush1.bf16.msra.mxu0 0
      %10086 = vmatprep.subr.bf16.mxu0 0
      %10087 = vmatpush1.bf16.msra.mxu0 0
      %10088 = vmatprep.subr.bf16.mxu0 0
      %10089 = vmatpush1.bf16.msra.mxu0 0
      %10090 = vmatprep.subr.bf16.mxu0 0
      %10091 = vmatpush1.bf16.msra.mxu0 0
      %10092 = vmatprep.subr.bf16.mxu0 0
      %10093 = vmatpush1.bf16.msra.mxu0 0
      %10094 = vmatprep.subr.bf16.mxu0 0
      %10095 = vmatpush1.bf16.msra.mxu0 0
      %10096 = vmatprep.subr.bf16.mxu0 %v10039
      %10097 = vmatpush1.bf16.msra.mxu0 %v10036
      %10098 = vmatprep.subr.bf16.mxu0 0
      %10099 = vmatpush2.bf16.msra.mxu0 0
      %10100 = vmatprep.subr.bf16.mxu0 0
      %10101 = vmatpush2.bf16.msra.mxu0 0
      %10102 = vmatprep.subr.bf16.mxu0 0
      %10103 = vmatpush2.bf16.msra.mxu0 0
      %10104 = vmatprep.subr.bf16.mxu0 0
      %10105 = vmatpush2.bf16.msra.mxu0 0
      %10106 = vmatprep.subr.bf16.mxu0 0
      %10107 = vmatpush2.bf16.msra.mxu0 0
      %10108 = vmatprep.subr.bf16.mxu0 0
      %10109 = vmatpush2.bf16.msra.mxu0 0
      %10110 = vmatprep.subr.bf16.mxu0 0
      %10111 = vmatpush2.bf16.msra.mxu0 0
      %10112 = vmatprep.subr.bf16.mxu0 0
      %10113 = vmatpush2.bf16.msra.mxu0 0
      %10114 = vmatprep.mubr.bf16.mxu0 0
      %10115 = vmatmul.mubr.bf16.gmra.mxu0 %v10026
      %v10116 = vpop.f32.mrf.mxu0
      %v10117 = vadd.f32 0.0, %v10116
      %v10118 = vpop.f32.mrf.mxu0
      %v10119 = vadd.f32 0.0, %v10118
      %v10120 = vpop.f32.mrf.mxu0
      %v10121 = vpop.f32.mrf.mxu0
      %10122 = vdwg.mxu0
      %v10123 = vld [vmem:[%s13] sm:$0xf]
      %v10124 = vunpack.c.l.bf16 %v10123
      %v10126 = vlaneseq
      %v10127 = vshrl.u32 %v10126, 7
      %v10128 = vsub.s32 0, %v10127
      %v10129 = vrot.slane %v10124, %v10128
      %v10130 = vlaneseq
      %v10131 = vshrl.u32 %v10130, 7
      %v10132 = vsub.s32 2, %v10131
      %v10133 = vrot.slane %v10124, %v10132
      %v10134 = vlaneseq
      %v10135 = vshrl.u32 %v10134, 7
      %v10136 = vsub.s32 4, %v10135
      %v10137 = vrot.slane %v10124, %v10136
      %v10138 = vlaneseq
      %v10139 = vshrl.u32 %v10138, 7
      %v10140 = vsub.s32 6, %v10139
      %v10141 = vrot.slane %v10124, %v10140
      %v10146 = vlaneseq
      %v10147 = vshrl.u32 %v10146, 7
      %v10148 = vsub.s32 0, %v10147
      %v10149 = vrot.slane %v10129, %v10148
      %v10150 = vlaneseq
      %v10151 = vshrl.u32 %v10150, 7
      %v10152 = vsub.s32 0, %v10151
      %v10153 = vrot.slane %v10133, %v10152
      %v10154 = vlaneseq
      %v10155 = vshrl.u32 %v10154, 7
      %v10156 = vsub.s32 0, %v10155
      %v10157 = vrot.slane %v10137, %v10156
      %v10158 = vlaneseq
      %v10159 = vshrl.u32 %v10158, 7
      %v10160 = vsub.s32 0, %v10159
      %v10161 = vrot.slane %v10141, %v10160
      %v10162 = vmul.f32 %v10076, %v10149
      %v10163 = vmul.f32 %v10078, %v10153
      %v10164 = vmul.f32 %v10117, %v10157
      %v10165 = vmul.f32 %v10119, %v10161
      %v10166 = vadd.f32 %v10162, 0.0
      %v10167 = vadd.f32 %v10163, 0.0
      %v10168 = vadd.f32 %v10164, 0.0
      %v10169 = vadd.f32 %v10165, 0.0
      %s10170 = scalar_lea.vmem %s12, 2
      %v10171 = vld [vmem:[%s10170] sm:$0x3]
      %v10173 = vsel %vm10024, %v10171, 0
      %10175 = vmatprep.subr.bf16.mxu0 0
      %10176 = vmatpush1.bf16.msra.mxu0 0
      %10177 = vmatprep.subr.bf16.mxu0 0
      %10178 = vmatpush1.bf16.msra.mxu0 0
      %10179 = vmatprep.subr.bf16.mxu0 0
      %10180 = vmatpush1.bf16.msra.mxu0 0
      %10181 = vmatprep.subr.bf16.mxu0 0
      %10182 = vmatpush1.bf16.msra.mxu0 0
      %10183 = vmatprep.subr.bf16.mxu0 0
      %10184 = vmatpush1.bf16.msra.mxu0 0
      %10185 = vmatprep.subr.bf16.mxu0 0
      %10186 = vmatpush1.bf16.msra.mxu0 0
      %10187 = vmatprep.subr.bf16.mxu0 0
      %10188 = vmatpush1.bf16.msra.mxu0 0
      %10189 = vmatprep.subr.bf16.mxu0 %v10033
      %10190 = vmatpush1.bf16.msra.mxu0 %v10030
      %10191 = vmatprep.subr.bf16.mxu0 0
      %10192 = vmatpush2.bf16.msra.mxu0 0
      %10193 = vmatprep.subr.bf16.mxu0 0
      %10194 = vmatpush2.bf16.msra.mxu0 0
      %10195 = vmatprep.subr.bf16.mxu0 0
      %10196 = vmatpush2.bf16.msra.mxu0 0
      %10197 = vmatprep.subr.bf16.mxu0 0
      %10198 = vmatpush2.bf16.msra.mxu0 0
      %10199 = vmatprep.subr.bf16.mxu0 0
      %10200 = vmatpush2.bf16.msra.mxu0 0
      %10201 = vmatprep.subr.bf16.mxu0 0
      %10202 = vmatpush2.bf16.msra.mxu0 0
      %10203 = vmatprep.subr.bf16.mxu0 0
      %10204 = vmatpush2.bf16.msra.mxu0 0
      %10205 = vmatprep.subr.bf16.mxu0 0
      %10206 = vmatpush2.bf16.msra.mxu0 0
      %10207 = vmatprep.mubr.bf16.mxu0 0
      %10208 = vmatmul.mubr.bf16.gmra.mxu0 %v10173
      %v10209 = vpop.f32.mrf.mxu0
      %v10210 = vadd.f32 0.0, %v10209
      %v10211 = vpop.f32.mrf.mxu0
      %v10212 = vadd.f32 0.0, %v10211
      %v10213 = vpop.f32.mrf.mxu0
      %v10214 = vpop.f32.mrf.mxu0
      %10215 = vdwg.mxu0
      %10216 = vmatprep.subr.bf16.mxu0 0
      %10217 = vmatpush1.bf16.msra.mxu0 0
      %10218 = vmatprep.subr.bf16.mxu0 0
      %10219 = vmatpush1.bf16.msra.mxu0 0
      %10220 = vmatprep.subr.bf16.mxu0 0
      %10221 = vmatpush1.bf16.msra.mxu0 0
      %10222 = vmatprep.subr.bf16.mxu0 0
      %10223 = vmatpush1.bf16.msra.mxu0 0
      %10224 = vmatprep.subr.bf16.mxu0 0
      %10225 = vmatpush1.bf16.msra.mxu0 0
      %10226 = vmatprep.subr.bf16.mxu0 0
      %10227 = vmatpush1.bf16.msra.mxu0 0
      %10228 = vmatprep.subr.bf16.mxu0 0
      %10229 = vmatpush1.bf16.msra.mxu0 0
      %10230 = vmatprep.subr.bf16.mxu0 %v10039
      %10231 = vmatpush1.bf16.msra.mxu0 %v10036
      %10232 = vmatprep.subr.bf16.mxu0 0
      %10233 = vmatpush2.bf16.msra.mxu0 0
      %10234 = vmatprep.subr.bf16.mxu0 0
      %10235 = vmatpush2.bf16.msra.mxu0 0
      %10236 = vmatprep.subr.bf16.mxu0 0
      %10237 = vmatpush2.bf16.msra.mxu0 0
      %10238 = vmatprep.subr.bf16.mxu0 0
      %10239 = vmatpush2.bf16.msra.mxu0 0
      %10240 = vmatprep.subr.bf16.mxu0 0
      %10241 = vmatpush2.bf16.msra.mxu0 0
      %10242 = vmatprep.subr.bf16.mxu0 0
      %10243 = vmatpush2.bf16.msra.mxu0 0
      %10244 = vmatprep.subr.bf16.mxu0 0
      %10245 = vmatpush2.bf16.msra.mxu0 0
      %10246 = vmatprep.subr.bf16.mxu0 0
      %10247 = vmatpush2.bf16.msra.mxu0 0
      %10248 = vmatprep.mubr.bf16.mxu0 0
      %10249 = vmatmul.mubr.bf16.gmra.mxu0 %v10173
      %v10250 = vpop.f32.mrf.mxu0
      %v10251 = vadd.f32 0.0, %v10250
      %v10252 = vpop.f32.mrf.mxu0
      %v10253 = vadd.f32 0.0, %v10252
      %v10254 = vpop.f32.mrf.mxu0
      %v10255 = vpop.f32.mrf.mxu0
      %10256 = vdwg.mxu0
      %s10257 = scalar_lea.vmem %s13, 4
      %v10258 = vld [vmem:[%s10257] sm:$0xf]
      %v10259 = vunpack.c.l.bf16 %v10258
      %v10261 = vlaneseq
      %v10262 = vshrl.u32 %v10261, 7
      %v10263 = vsub.s32 0, %v10262
      %v10264 = vrot.slane %v10259, %v10263
      %v10265 = vlaneseq
      %v10266 = vshrl.u32 %v10265, 7
      %v10267 = vsub.s32 2, %v10266
      %v10268 = vrot.slane %v10259, %v10267
      %v10269 = vlaneseq
      %v10270 = vshrl.u32 %v10269, 7
      %v10271 = vsub.s32 4, %v10270
      %v10272 = vrot.slane %v10259, %v10271
      %v10273 = vlaneseq
      %v10274 = vshrl.u32 %v10273, 7
      %v10275 = vsub.s32 6, %v10274
      %v10276 = vrot.slane %v10259, %v10275
      %v10281 = vlaneseq
      %v10282 = vshrl.u32 %v10281, 7
      %v10283 = vsub.s32 0, %v10282
      %v10284 = vrot.slane %v10264, %v10283
      %v10285 = vlaneseq
      %v10286 = vshrl.u32 %v10285, 7
      %v10287 = vsub.s32 0, %v10286
      %v10288 = vrot.slane %v10268, %v10287
      %v10289 = vlaneseq
      %v10290 = vshrl.u32 %v10289, 7
      %v10291 = vsub.s32 0, %v10290
      %v10292 = vrot.slane %v10272, %v10291
      %v10293 = vlaneseq
      %v10294 = vshrl.u32 %v10293, 7
      %v10295 = vsub.s32 0, %v10294
      %v10296 = vrot.slane %v10276, %v10295
      %v10297 = vmul.f32 %v10210, %v10284
      %v10298 = vmul.f32 %v10212, %v10288
      %v10299 = vmul.f32 %v10251, %v10292
      %v10300 = vmul.f32 %v10253, %v10296
      %v10301 = vadd.f32 %v10166, %v10297
      %v10302 = vadd.f32 %v10167, %v10298
      %v10303 = vadd.f32 %v10168, %v10299
      %v10304 = vadd.f32 %v10169, %v10300
      %s10305 = scalar_lea.vmem %s12, 4
      %v10306 = vld [vmem:[%s10305] sm:$0x3]
      %v10308 = vsel %vm10024, %v10306, 0
      %10310 = vmatprep.subr.bf16.mxu0 0
      %10311 = vmatpush1.bf16.msra.mxu0 0
      %10312 = vmatprep.subr.bf16.mxu0 0
      %10313 = vmatpush1.bf16.msra.mxu0 0
      %10314 = vmatprep.subr.bf16.mxu0 0
      %10315 = vmatpush1.bf16.msra.mxu0 0
      %10316 = vmatprep.subr.bf16.mxu0 0
      %10317 = vmatpush1.bf16.msra.mxu0 0
      %10318 = vmatprep.subr.bf16.mxu0 0
      %10319 = vmatpush1.bf16.msra.mxu0 0
      %10320 = vmatprep.subr.bf16.mxu0 0
      %10321 = vmatpush1.bf16.msra.mxu0 0
      %10322 = vmatprep.subr.bf16.mxu0 0
      %10323 = vmatpush1.bf16.msra.mxu0 0
      %10324 = vmatprep.subr.bf16.mxu0 %v10033
      %10325 = vmatpush1.bf16.msra.mxu0 %v10030
      %10326 = vmatprep.subr.bf16.mxu0 0
      %10327 = vmatpush2.bf16.msra.mxu0 0
      %10328 = vmatprep.subr.bf16.mxu0 0
      %10329 = vmatpush2.bf16.msra.mxu0 0
      %10330 = vmatprep.subr.bf16.mxu0 0
      %10331 = vmatpush2.bf16.msra.mxu0 0
      %10332 = vmatprep.subr.bf16.mxu0 0
      %10333 = vmatpush2.bf16.msra.mxu0 0
      %10334 = vmatprep.subr.bf16.mxu0 0
      %10335 = vmatpush2.bf16.msra.mxu0 0
      %10336 = vmatprep.subr.bf16.mxu0 0
      %10337 = vmatpush2.bf16.msra.mxu0 0
      %10338 = vmatprep.subr.bf16.mxu0 0
      %10339 = vmatpush2.bf16.msra.mxu0 0
      %10340 = vmatprep.subr.bf16.mxu0 0
      %10341 = vmatpush2.bf16.msra.mxu0 0
      %10342 = vmatprep.mubr.bf16.mxu0 0
      %10343 = vmatmul.mubr.bf16.gmra.mxu0 %v10308
      %v10344 = vpop.f32.mrf.mxu0
      %v10345 = vadd.f32 0.0, %v10344
      %v10346 = vpop.f32.mrf.mxu0
      %v10347 = vadd.f32 0.0, %v10346
      %v10348 = vpop.f32.mrf.mxu0
      %v10349 = vpop.f32.mrf.mxu0
      %10350 = vdwg.mxu0
      %10351 = vmatprep.subr.bf16.mxu0 0
      %10352 = vmatpush1.bf16.msra.mxu0 0
      %10353 = vmatprep.subr.bf16.mxu0 0
      %10354 = vmatpush1.bf16.msra.mxu0 0
      %10355 = vmatprep.subr.bf16.mxu0 0
      %10356 = vmatpush1.bf16.msra.mxu0 0
      %10357 = vmatprep.subr.bf16.mxu0 0
      %10358 = vmatpush1.bf16.msra.mxu0 0
      %10359 = vmatprep.subr.bf16.mxu0 0
      %10360 = vmatpush1.bf16.msra.mxu0 0
      %10361 = vmatprep.subr.bf16.mxu0 0
      %10362 = vmatpush1.bf16.msra.mxu0 0
      %10363 = vmatprep.subr.bf16.mxu0 0
      %10364 = vmatpush1.bf16.msra.mxu0 0
      %10365 = vmatprep.subr.bf16.mxu0 %v10039
      %10366 = vmatpush1.bf16.msra.mxu0 %v10036
      %10367 = vmatprep.subr.bf16.mxu0 0
      %10368 = vmatpush2.bf16.msra.mxu0 0
      %10369 = vmatprep.subr.bf16.mxu0 0
      %10370 = vmatpush2.bf16.msra.mxu0 0
      %10371 = vmatprep.subr.bf16.mxu0 0
      %10372 = vmatpush2.bf16.msra.mxu0 0
      %10373 = vmatprep.subr.bf16.mxu0 0
      %10374 = vmatpush2.bf16.msra.mxu0 0
      %10375 = vmatprep.subr.bf16.mxu0 0
      %10376 = vmatpush2.bf16.msra.mxu0 0
      %10377 = vmatprep.subr.bf16.mxu0 0
      %10378 = vmatpush2.bf16.msra.mxu0 0
      %10379 = vmatprep.subr.bf16.mxu0 0
      %10380 = vmatpush2.bf16.msra.mxu0 0
      %10381 = vmatprep.subr.bf16.mxu0 0
      %10382 = vmatpush2.bf16.msra.mxu0 0
      %10383 = vmatprep.mubr.bf16.mxu0 0
      %10384 = vmatmul.mubr.bf16.gmra.mxu0 %v10308
      %v10385 = vpop.f32.mrf.mxu0
      %v10386 = vadd.f32 0.0, %v10385
      %v10387 = vpop.f32.mrf.mxu0
      %v10388 = vadd.f32 0.0, %v10387
      %v10389 = vpop.f32.mrf.mxu0
      %v10390 = vpop.f32.mrf.mxu0
      %10391 = vdwg.mxu0
      %s10392 = scalar_lea.vmem %s13, 8
      %v10393 = vld [vmem:[%s10392] sm:$0xf]
      %v10394 = vunpack.c.l.bf16 %v10393
      %v10396 = vlaneseq
      %v10397 = vshrl.u32 %v10396, 7
      %v10398 = vsub.s32 0, %v10397
      %v10399 = vrot.slane %v10394, %v10398
      %v10400 = vlaneseq
      %v10401 = vshrl.u32 %v10400, 7
      %v10402 = vsub.s32 2, %v10401
      %v10403 = vrot.slane %v10394, %v10402
      %v10404 = vlaneseq
      %v10405 = vshrl.u32 %v10404, 7
      %v10406 = vsub.s32 4, %v10405
      %v10407 = vrot.slane %v10394, %v10406
      %v10408 = vlaneseq
      %v10409 = vshrl.u32 %v10408, 7
      %v10410 = vsub.s32 6, %v10409
      %v10411 = vrot.slane %v10394, %v10410
      %v10416 = vlaneseq
      %v10417 = vshrl.u32 %v10416, 7
      %v10418 = vsub.s32 0, %v10417
      %v10419 = vrot.slane %v10399, %v10418
      %v10420 = vlaneseq
      %v10421 = vshrl.u32 %v10420, 7
      %v10422 = vsub.s32 0, %v10421
      %v10423 = vrot.slane %v10403, %v10422
      %v10424 = vlaneseq
      %v10425 = vshrl.u32 %v10424, 7
      %v10426 = vsub.s32 0, %v10425
      %v10427 = vrot.slane %v10407, %v10426
      %v10428 = vlaneseq
      %v10429 = vshrl.u32 %v10428, 7
      %v10430 = vsub.s32 0, %v10429
      %v10431 = vrot.slane %v10411, %v10430
      %v10432 = vmul.f32 %v10345, %v10419
      %v10433 = vmul.f32 %v10347, %v10423
      %v10434 = vmul.f32 %v10386, %v10427
      %v10435 = vmul.f32 %v10388, %v10431
      %v10436 = vadd.f32 %v10301, %v10432
      %v10437 = vadd.f32 %v10302, %v10433
      %v10438 = vadd.f32 %v10303, %v10434
      %v10439 = vadd.f32 %v10304, %v10435
      %s10440 = scalar_lea.vmem %s12, 6
      %v10441 = vld [vmem:[%s10440] sm:$0x3]
      %v10443 = vsel %vm10024, %v10441, 0
      %10445 = vmatprep.subr.bf16.mxu0 0
      %10446 = vmatpush1.bf16.msra.mxu0 0
      %10447 = vmatprep.subr.bf16.mxu0 0
      %10448 = vmatpush1.bf16.msra.mxu0 0
      %10449 = vmatprep.subr.bf16.mxu0 0
      %10450 = vmatpush1.bf16.msra.mxu0 0
      %10451 = vmatprep.subr.bf16.mxu0 0
      %10452 = vmatpush1.bf16.msra.mxu0 0
      %10453 = vmatprep.subr.bf16.mxu0 0
      %10454 = vmatpush1.bf16.msra.mxu0 0
      %10455 = vmatprep.subr.bf16.mxu0 0
      %10456 = vmatpush1.bf16.msra.mxu0 0
      %10457 = vmatprep.subr.bf16.mxu0 0
      %10458 = vmatpush1.bf16.msra.mxu0 0
      %10459 = vmatprep.subr.bf16.mxu0 %v10033
      %10460 = vmatpush1.bf16.msra.mxu0 %v10030
      %10461 = vmatprep.subr.bf16.mxu0 0
      %10462 = vmatpush2.bf16.msra.mxu0 0
      %10463 = vmatprep.subr.bf16.mxu0 0
      %10464 = vmatpush2.bf16.msra.mxu0 0
      %10465 = vmatprep.subr.bf16.mxu0 0
      %10466 = vmatpush2.bf16.msra.mxu0 0
      %10467 = vmatprep.subr.bf16.mxu0 0
      %10468 = vmatpush2.bf16.msra.mxu0 0
      %10469 = vmatprep.subr.bf16.mxu0 0
      %10470 = vmatpush2.bf16.msra.mxu0 0
      %10471 = vmatprep.subr.bf16.mxu0 0
      %10472 = vmatpush2.bf16.msra.mxu0 0
      %10473 = vmatprep.subr.bf16.mxu0 0
      %10474 = vmatpush2.bf16.msra.mxu0 0
      %10475 = vmatprep.subr.bf16.mxu0 0
      %10476 = vmatpush2.bf16.msra.mxu0 0
      %10477 = vmatprep.mubr.bf16.mxu0 0
      %10478 = vmatmul.mubr.bf16.gmra.mxu0 %v10443
      %v10479 = vpop.f32.mrf.mxu0
      %v10480 = vadd.f32 0.0, %v10479
      %v10481 = vpop.f32.mrf.mxu0
      %v10482 = vadd.f32 0.0, %v10481
      %v10483 = vpop.f32.mrf.mxu0
      %v10484 = vpop.f32.mrf.mxu0
      %10485 = vdwg.mxu0
      %10486 = vmatprep.subr.bf16.mxu0 0
      %10487 = vmatpush1.bf16.msra.mxu0 0
      %10488 = vmatprep.subr.bf16.mxu0 0
      %10489 = vmatpush1.bf16.msra.mxu0 0
      %10490 = vmatprep.subr.bf16.mxu0 0
      %10491 = vmatpush1.bf16.msra.mxu0 0
      %10492 = vmatprep.subr.bf16.mxu0 0
      %10493 = vmatpush1.bf16.msra.mxu0 0
      %10494 = vmatprep.subr.bf16.mxu0 0
      %10495 = vmatpush1.bf16.msra.mxu0 0
      %10496 = vmatprep.subr.bf16.mxu0 0
      %10497 = vmatpush1.bf16.msra.mxu0 0
      %10498 = vmatprep.subr.bf16.mxu0 0
      %10499 = vmatpush1.bf16.msra.mxu0 0
      %10500 = vmatprep.subr.bf16.mxu0 %v10039
      %10501 = vmatpush1.bf16.msra.mxu0 %v10036
      %10502 = vmatprep.subr.bf16.mxu0 0
      %10503 = vmatpush2.bf16.msra.mxu0 0
      %10504 = vmatprep.subr.bf16.mxu0 0
      %10505 = vmatpush2.bf16.msra.mxu0 0
      %10506 = vmatprep.subr.bf16.mxu0 0
      %10507 = vmatpush2.bf16.msra.mxu0 0
      %10508 = vmatprep.subr.bf16.mxu0 0
      %10509 = vmatpush2.bf16.msra.mxu0 0
      %10510 = vmatprep.subr.bf16.mxu0 0
      %10511 = vmatpush2.bf16.msra.mxu0 0
      %10512 = vmatprep.subr.bf16.mxu0 0
      %10513 = vmatpush2.bf16.msra.mxu0 0
      %10514 = vmatprep.subr.bf16.mxu0 0
      %10515 = vmatpush2.bf16.msra.mxu0 0
      %10516 = vmatprep.subr.bf16.mxu0 0
      %10517 = vmatpush2.bf16.msra.mxu0 0
      %10518 = vmatprep.mubr.bf16.mxu0 0
      %10519 = vmatmul.mubr.bf16.gmra.mxu0 %v10443
      %v10520 = vpop.f32.mrf.mxu0
      %v10521 = vadd.f32 0.0, %v10520
      %v10522 = vpop.f32.mrf.mxu0
      %v10523 = vadd.f32 0.0, %v10522
      %v10524 = vpop.f32.mrf.mxu0
      %v10525 = vpop.f32.mrf.mxu0
      %10526 = vdwg.mxu0
      %s10527 = scalar_lea.vmem %s13, 12
      %v10528 = vld [vmem:[%s10527] sm:$0xf]
      %v10529 = vunpack.c.l.bf16 %v10528
      %v10531 = vlaneseq
      %v10532 = vshrl.u32 %v10531, 7
      %v10533 = vsub.s32 0, %v10532
      %v10534 = vrot.slane %v10529, %v10533
      %v10535 = vlaneseq
      %v10536 = vshrl.u32 %v10535, 7
      %v10537 = vsub.s32 2, %v10536
      %v10538 = vrot.slane %v10529, %v10537
      %v10539 = vlaneseq
      %v10540 = vshrl.u32 %v10539, 7
      %v10541 = vsub.s32 4, %v10540
      %v10542 = vrot.slane %v10529, %v10541
      %v10543 = vlaneseq
      %v10544 = vshrl.u32 %v10543, 7
      %v10545 = vsub.s32 6, %v10544
      %v10546 = vrot.slane %v10529, %v10545
      %v10551 = vlaneseq
      %v10552 = vshrl.u32 %v10551, 7
      %v10553 = vsub.s32 0, %v10552
      %v10554 = vrot.slane %v10534, %v10553
      %v10555 = vlaneseq
      %v10556 = vshrl.u32 %v10555, 7
      %v10557 = vsub.s32 0, %v10556
      %v10558 = vrot.slane %v10538, %v10557
      %v10559 = vlaneseq
      %v10560 = vshrl.u32 %v10559, 7
      %v10561 = vsub.s32 0, %v10560
      %v10562 = vrot.slane %v10542, %v10561
      %v10563 = vlaneseq
      %v10564 = vshrl.u32 %v10563, 7
      %v10565 = vsub.s32 0, %v10564
      %v10566 = vrot.slane %v10546, %v10565
      %v10567 = vmul.f32 %v10480, %v10554
      %v10568 = vmul.f32 %v10482, %v10558
      %v10569 = vmul.f32 %v10521, %v10562
      %v10570 = vmul.f32 %v10523, %v10566
      %v10571 = vadd.f32 %v10436, %v10567
      %v10572 = vadd.f32 %v10437, %v10568
      %v10573 = vadd.f32 %v10438, %v10569
      %v10574 = vadd.f32 %v10439, %v10570
      %s10575 = scalar_lea.vmem %s12, 8
      %v10576 = vld [vmem:[%s10575] sm:$0x3]
      %v10578 = vsel %vm10024, %v10576, 0
      %10580 = vmatprep.subr.bf16.mxu0 0
      %10581 = vmatpush1.bf16.msra.mxu0 0
      %10582 = vmatprep.subr.bf16.mxu0 0
      %10583 = vmatpush1.bf16.msra.mxu0 0
      %10584 = vmatprep.subr.bf16.mxu0 0
      %10585 = vmatpush1.bf16.msra.mxu0 0
      %10586 = vmatprep.subr.bf16.mxu0 0
      %10587 = vmatpush1.bf16.msra.mxu0 0
      %10588 = vmatprep.subr.bf16.mxu0 0
      %10589 = vmatpush1.bf16.msra.mxu0 0
      %10590 = vmatprep.subr.bf16.mxu0 0
      %10591 = vmatpush1.bf16.msra.mxu0 0
      %10592 = vmatprep.subr.bf16.mxu0 0
      %10593 = vmatpush1.bf16.msra.mxu0 0
      %10594 = vmatprep.subr.bf16.mxu0 %v10033
      %10595 = vmatpush1.bf16.msra.mxu0 %v10030
      %10596 = vmatprep.subr.bf16.mxu0 0
      %10597 = vmatpush2.bf16.msra.mxu0 0
      %10598 = vmatprep.subr.bf16.mxu0 0
      %10599 = vmatpush2.bf16.msra.mxu0 0
      %10600 = vmatprep.subr.bf16.mxu0 0
      %10601 = vmatpush2.bf16.msra.mxu0 0
      %10602 = vmatprep.subr.bf16.mxu0 0
      %10603 = vmatpush2.bf16.msra.mxu0 0
      %10604 = vmatprep.subr.bf16.mxu0 0
      %10605 = vmatpush2.bf16.msra.mxu0 0
      %10606 = vmatprep.subr.bf16.mxu0 0
      %10607 = vmatpush2.bf16.msra.mxu0 0
      %10608 = vmatprep.subr.bf16.mxu0 0
      %10609 = vmatpush2.bf16.msra.mxu0 0
      %10610 = vmatprep.subr.bf16.mxu0 0
      %10611 = vmatpush2.bf16.msra.mxu0 0
      %10612 = vmatprep.mubr.bf16.mxu0 0
      %10613 = vmatmul.mubr.bf16.gmra.mxu0 %v10578
      %v10614 = vpop.f32.mrf.mxu0
      %v10615 = vadd.f32 0.0, %v10614
      %v10616 = vpop.f32.mrf.mxu0
      %v10617 = vadd.f32 0.0, %v10616
      %v10618 = vpop.f32.mrf.mxu0
      %v10619 = vpop.f32.mrf.mxu0
      %10620 = vdwg.mxu0
      %10621 = vmatprep.subr.bf16.mxu0 0
      %10622 = vmatpush1.bf16.msra.mxu0 0
      %10623 = vmatprep.subr.bf16.mxu0 0
      %10624 = vmatpush1.bf16.msra.mxu0 0
      %10625 = vmatprep.subr.bf16.mxu0 0
      %10626 = vmatpush1.bf16.msra.mxu0 0
      %10627 = vmatprep.subr.bf16.mxu0 0
      %10628 = vmatpush1.bf16.msra.mxu0 0
      %10629 = vmatprep.subr.bf16.mxu0 0
      %10630 = vmatpush1.bf16.msra.mxu0 0
      %10631 = vmatprep.subr.bf16.mxu0 0
      %10632 = vmatpush1.bf16.msra.mxu0 0
      %10633 = vmatprep.subr.bf16.mxu0 0
      %10634 = vmatpush1.bf16.msra.mxu0 0
      %10635 = vmatprep.subr.bf16.mxu0 %v10039
      %10636 = vmatpush1.bf16.msra.mxu0 %v10036
      %10637 = vmatprep.subr.bf16.mxu0 0
      %10638 = vmatpush2.bf16.msra.mxu0 0
      %10639 = vmatprep.subr.bf16.mxu0 0
      %10640 = vmatpush2.bf16.msra.mxu0 0
      %10641 = vmatprep.subr.bf16.mxu0 0
      %10642 = vmatpush2.bf16.msra.mxu0 0
      %10643 = vmatprep.subr.bf16.mxu0 0
      %10644 = vmatpush2.bf16.msra.mxu0 0
      %10645 = vmatprep.subr.bf16.mxu0 0
      %10646 = vmatpush2.bf16.msra.mxu0 0
      %10647 = vmatprep.subr.bf16.mxu0 0
      %10648 = vmatpush2.bf16.msra.mxu0 0
      %10649 = vmatprep.subr.bf16.mxu0 0
      %10650 = vmatpush2.bf16.msra.mxu0 0
      %10651 = vmatprep.subr.bf16.mxu0 0
      %10652 = vmatpush2.bf16.msra.mxu0 0
      %10653 = vmatprep.mubr.bf16.mxu0 0
      %10654 = vmatmul.mubr.bf16.gmra.mxu0 %v10578
      %v10655 = vpop.f32.mrf.mxu0
      %v10656 = vadd.f32 0.0, %v10655
      %v10657 = vpop.f32.mrf.mxu0
      %v10658 = vadd.f32 0.0, %v10657
      %v10659 = vpop.f32.mrf.mxu0
      %v10660 = vpop.f32.mrf.mxu0
      %10661 = vdwg.mxu0
      %s10662 = scalar_lea.vmem %s13, 16
      %v10663 = vld [vmem:[%s10662] sm:$0xf]
      %v10664 = vunpack.c.l.bf16 %v10663
      %v10666 = vlaneseq
      %v10667 = vshrl.u32 %v10666, 7
      %v10668 = vsub.s32 0, %v10667
      %v10669 = vrot.slane %v10664, %v10668
      %v10670 = vlaneseq
      %v10671 = vshrl.u32 %v10670, 7
      %v10672 = vsub.s32 2, %v10671
      %v10673 = vrot.slane %v10664, %v10672
      %v10674 = vlaneseq
      %v10675 = vshrl.u32 %v10674, 7
      %v10676 = vsub.s32 4, %v10675
      %v10677 = vrot.slane %v10664, %v10676
      %v10678 = vlaneseq
      %v10679 = vshrl.u32 %v10678, 7
      %v10680 = vsub.s32 6, %v10679
      %v10681 = vrot.slane %v10664, %v10680
      %v10686 = vlaneseq
      %v10687 = vshrl.u32 %v10686, 7
      %v10688 = vsub.s32 0, %v10687
      %v10689 = vrot.slane %v10669, %v10688
      %v10690 = vlaneseq
      %v10691 = vshrl.u32 %v10690, 7
      %v10692 = vsub.s32 0, %v10691
      %v10693 = vrot.slane %v10673, %v10692
      %v10694 = vlaneseq
      %v10695 = vshrl.u32 %v10694, 7
      %v10696 = vsub.s32 0, %v10695
      %v10697 = vrot.slane %v10677, %v10696
      %v10698 = vlaneseq
      %v10699 = vshrl.u32 %v10698, 7
      %v10700 = vsub.s32 0, %v10699
      %v10701 = vrot.slane %v10681, %v10700
      %v10702 = vmul.f32 %v10615, %v10689
      %v10703 = vmul.f32 %v10617, %v10693
      %v10704 = vmul.f32 %v10656, %v10697
      %v10705 = vmul.f32 %v10658, %v10701
      %v10706 = vadd.f32 %v10571, %v10702
      %v10707 = vadd.f32 %v10572, %v10703
      %v10708 = vadd.f32 %v10573, %v10704
      %v10709 = vadd.f32 %v10574, %v10705
      %s10710 = scalar_lea.vmem %s12, 10
      %v10711 = vld [vmem:[%s10710] sm:$0x3]
      %v10713 = vsel %vm10024, %v10711, 0
      %10715 = vmatprep.subr.bf16.mxu0 0
      %10716 = vmatpush1.bf16.msra.mxu0 0
      %10717 = vmatprep.subr.bf16.mxu0 0
      %10718 = vmatpush1.bf16.msra.mxu0 0
      %10719 = vmatprep.subr.bf16.mxu0 0
      %10720 = vmatpush1.bf16.msra.mxu0 0
      %10721 = vmatprep.subr.bf16.mxu0 0
      %10722 = vmatpush1.bf16.msra.mxu0 0
      %10723 = vmatprep.subr.bf16.mxu0 0
      %10724 = vmatpush1.bf16.msra.mxu0 0
      %10725 = vmatprep.subr.bf16.mxu0 0
      %10726 = vmatpush1.bf16.msra.mxu0 0
      %10727 = vmatprep.subr.bf16.mxu0 0
      %10728 = vmatpush1.bf16.msra.mxu0 0
      %10729 = vmatprep.subr.bf16.mxu0 %v10033
      %10730 = vmatpush1.bf16.msra.mxu0 %v10030
      %10731 = vmatprep.subr.bf16.mxu0 0
      %10732 = vmatpush2.bf16.msra.mxu0 0
      %10733 = vmatprep.subr.bf16.mxu0 0
      %10734 = vmatpush2.bf16.msra.mxu0 0
      %10735 = vmatprep.subr.bf16.mxu0 0
      %10736 = vmatpush2.bf16.msra.mxu0 0
      %10737 = vmatprep.subr.bf16.mxu0 0
      %10738 = vmatpush2.bf16.msra.mxu0 0
      %10739 = vmatprep.subr.bf16.mxu0 0
      %10740 = vmatpush2.bf16.msra.mxu0 0
      %10741 = vmatprep.subr.bf16.mxu0 0
      %10742 = vmatpush2.bf16.msra.mxu0 0
      %10743 = vmatprep.subr.bf16.mxu0 0
      %10744 = vmatpush2.bf16.msra.mxu0 0
      %10745 = vmatprep.subr.bf16.mxu0 0
      %10746 = vmatpush2.bf16.msra.mxu0 0
      %10747 = vmatprep.mubr.bf16.mxu0 0
      %10748 = vmatmul.mubr.bf16.gmra.mxu0 %v10713
      %v10749 = vpop.f32.mrf.mxu0
      %v10750 = vadd.f32 0.0, %v10749
      %v10751 = vpop.f32.mrf.mxu0
      %v10752 = vadd.f32 0.0, %v10751
      %v10753 = vpop.f32.mrf.mxu0
      %v10754 = vpop.f32.mrf.mxu0
      %10755 = vdwg.mxu0
      %10756 = vmatprep.subr.bf16.mxu0 0
      %10757 = vmatpush1.bf16.msra.mxu0 0
      %10758 = vmatprep.subr.bf16.mxu0 0
      %10759 = vmatpush1.bf16.msra.mxu0 0
      %10760 = vmatprep.subr.bf16.mxu0 0
      %10761 = vmatpush1.bf16.msra.mxu0 0
      %10762 = vmatprep.subr.bf16.mxu0 0
      %10763 = vmatpush1.bf16.msra.mxu0 0
      %10764 = vmatprep.subr.bf16.mxu0 0
      %10765 = vmatpush1.bf16.msra.mxu0 0
      %10766 = vmatprep.subr.bf16.mxu0 0
      %10767 = vmatpush1.bf16.msra.mxu0 0
      %10768 = vmatprep.subr.bf16.mxu0 0
      %10769 = vmatpush1.bf16.msra.mxu0 0
      %10770 = vmatprep.subr.bf16.mxu0 %v10039
      %10771 = vmatpush1.bf16.msra.mxu0 %v10036
      %10772 = vmatprep.subr.bf16.mxu0 0
      %10773 = vmatpush2.bf16.msra.mxu0 0
      %10774 = vmatprep.subr.bf16.mxu0 0
      %10775 = vmatpush2.bf16.msra.mxu0 0
      %10776 = vmatprep.subr.bf16.mxu0 0
      %10777 = vmatpush2.bf16.msra.mxu0 0
      %10778 = vmatprep.subr.bf16.mxu0 0
      %10779 = vmatpush2.bf16.msra.mxu0 0
      %10780 = vmatprep.subr.bf16.mxu0 0
      %10781 = vmatpush2.bf16.msra.mxu0 0
      %10782 = vmatprep.subr.bf16.mxu0 0
      %10783 = vmatpush2.bf16.msra.mxu0 0
      %10784 = vmatprep.subr.bf16.mxu0 0
      %10785 = vmatpush2.bf16.msra.mxu0 0
      %10786 = vmatprep.subr.bf16.mxu0 0
      %10787 = vmatpush2.bf16.msra.mxu0 0
      %10788 = vmatprep.mubr.bf16.mxu0 0
      %10789 = vmatmul.mubr.bf16.gmra.mxu0 %v10713
      %v10790 = vpop.f32.mrf.mxu0
      %v10791 = vadd.f32 0.0, %v10790
      %v10792 = vpop.f32.mrf.mxu0
      %v10793 = vadd.f32 0.0, %v10792
      %v10794 = vpop.f32.mrf.mxu0
      %v10795 = vpop.f32.mrf.mxu0
      %10796 = vdwg.mxu0
      %s10797 = scalar_lea.vmem %s13, 20
      %v10798 = vld [vmem:[%s10797] sm:$0xf]
      %v10799 = vunpack.c.l.bf16 %v10798
      %v10801 = vlaneseq
      %v10802 = vshrl.u32 %v10801, 7
      %v10803 = vsub.s32 0, %v10802
      %v10804 = vrot.slane %v10799, %v10803
      %v10805 = vlaneseq
      %v10806 = vshrl.u32 %v10805, 7
      %v10807 = vsub.s32 2, %v10806
      %v10808 = vrot.slane %v10799, %v10807
      %v10809 = vlaneseq
      %v10810 = vshrl.u32 %v10809, 7
      %v10811 = vsub.s32 4, %v10810
      %v10812 = vrot.slane %v10799, %v10811
      %v10813 = vlaneseq
      %v10814 = vshrl.u32 %v10813, 7
      %v10815 = vsub.s32 6, %v10814
      %v10816 = vrot.slane %v10799, %v10815
      %v10821 = vlaneseq
      %v10822 = vshrl.u32 %v10821, 7
      %v10823 = vsub.s32 0, %v10822
      %v10824 = vrot.slane %v10804, %v10823
      %v10825 = vlaneseq
      %v10826 = vshrl.u32 %v10825, 7
      %v10827 = vsub.s32 0, %v10826
      %v10828 = vrot.slane %v10808, %v10827
      %v10829 = vlaneseq
      %v10830 = vshrl.u32 %v10829, 7
      %v10831 = vsub.s32 0, %v10830
      %v10832 = vrot.slane %v10812, %v10831
      %v10833 = vlaneseq
      %v10834 = vshrl.u32 %v10833, 7
      %v10835 = vsub.s32 0, %v10834
      %v10836 = vrot.slane %v10816, %v10835
      %v10837 = vmul.f32 %v10750, %v10824
      %v10838 = vmul.f32 %v10752, %v10828
      %v10839 = vmul.f32 %v10791, %v10832
      %v10840 = vmul.f32 %v10793, %v10836
      %v10841 = vadd.f32 %v10706, %v10837
      %v10842 = vadd.f32 %v10707, %v10838
      %v10843 = vadd.f32 %v10708, %v10839
      %v10844 = vadd.f32 %v10709, %v10840
      %s10845 = scalar_lea.vmem %s12, 12
      %v10846 = vld [vmem:[%s10845] sm:$0x3]
      %v10848 = vsel %vm10024, %v10846, 0
      %10850 = vmatprep.subr.bf16.mxu0 0
      %10851 = vmatpush1.bf16.msra.mxu0 0
      %10852 = vmatprep.subr.bf16.mxu0 0
      %10853 = vmatpush1.bf16.msra.mxu0 0
      %10854 = vmatprep.subr.bf16.mxu0 0
      %10855 = vmatpush1.bf16.msra.mxu0 0
      %10856 = vmatprep.subr.bf16.mxu0 0
      %10857 = vmatpush1.bf16.msra.mxu0 0
      %10858 = vmatprep.subr.bf16.mxu0 0
      %10859 = vmatpush1.bf16.msra.mxu0 0
      %10860 = vmatprep.subr.bf16.mxu0 0
      %10861 = vmatpush1.bf16.msra.mxu0 0
      %10862 = vmatprep.subr.bf16.mxu0 0
      %10863 = vmatpush1.bf16.msra.mxu0 0
      %10864 = vmatprep.subr.bf16.mxu0 %v10033
      %10865 = vmatpush1.bf16.msra.mxu0 %v10030
      %10866 = vmatprep.subr.bf16.mxu0 0
      %10867 = vmatpush2.bf16.msra.mxu0 0
      %10868 = vmatprep.subr.bf16.mxu0 0
      %10869 = vmatpush2.bf16.msra.mxu0 0
      %10870 = vmatprep.subr.bf16.mxu0 0
      %10871 = vmatpush2.bf16.msra.mxu0 0
      %10872 = vmatprep.subr.bf16.mxu0 0
      %10873 = vmatpush2.bf16.msra.mxu0 0
      %10874 = vmatprep.subr.bf16.mxu0 0
      %10875 = vmatpush2.bf16.msra.mxu0 0
      %10876 = vmatprep.subr.bf16.mxu0 0
      %10877 = vmatpush2.bf16.msra.mxu0 0
      %10878 = vmatprep.subr.bf16.mxu0 0
      %10879 = vmatpush2.bf16.msra.mxu0 0
      %10880 = vmatprep.subr.bf16.mxu0 0
      %10881 = vmatpush2.bf16.msra.mxu0 0
      %10882 = vmatprep.mubr.bf16.mxu0 0
      %10883 = vmatmul.mubr.bf16.gmra.mxu0 %v10848
      %v10884 = vpop.f32.mrf.mxu0
      %v10885 = vadd.f32 0.0, %v10884
      %v10886 = vpop.f32.mrf.mxu0
      %v10887 = vadd.f32 0.0, %v10886
      %v10888 = vpop.f32.mrf.mxu0
      %v10889 = vpop.f32.mrf.mxu0
      %10890 = vdwg.mxu0
      %10891 = vmatprep.subr.bf16.mxu0 0
      %10892 = vmatpush1.bf16.msra.mxu0 0
      %10893 = vmatprep.subr.bf16.mxu0 0
      %10894 = vmatpush1.bf16.msra.mxu0 0
      %10895 = vmatprep.subr.bf16.mxu0 0
      %10896 = vmatpush1.bf16.msra.mxu0 0
      %10897 = vmatprep.subr.bf16.mxu0 0
      %10898 = vmatpush1.bf16.msra.mxu0 0
      %10899 = vmatprep.subr.bf16.mxu0 0
      %10900 = vmatpush1.bf16.msra.mxu0 0
      %10901 = vmatprep.subr.bf16.mxu0 0
      %10902 = vmatpush1.bf16.msra.mxu0 0
      %10903 = vmatprep.subr.bf16.mxu0 0
      %10904 = vmatpush1.bf16.msra.mxu0 0
      %10905 = vmatprep.subr.bf16.mxu0 %v10039
      %10906 = vmatpush1.bf16.msra.mxu0 %v10036
      %10907 = vmatprep.subr.bf16.mxu0 0
      %10908 = vmatpush2.bf16.msra.mxu0 0
      %10909 = vmatprep.subr.bf16.mxu0 0
      %10910 = vmatpush2.bf16.msra.mxu0 0
      %10911 = vmatprep.subr.bf16.mxu0 0
      %10912 = vmatpush2.bf16.msra.mxu0 0
      %10913 = vmatprep.subr.bf16.mxu0 0
      %10914 = vmatpush2.bf16.msra.mxu0 0
      %10915 = vmatprep.subr.bf16.mxu0 0
      %10916 = vmatpush2.bf16.msra.mxu0 0
      %10917 = vmatprep.subr.bf16.mxu0 0
      %10918 = vmatpush2.bf16.msra.mxu0 0
      %10919 = vmatprep.subr.bf16.mxu0 0
      %10920 = vmatpush2.bf16.msra.mxu0 0
      %10921 = vmatprep.subr.bf16.mxu0 0
      %10922 = vmatpush2.bf16.msra.mxu0 0
      %10923 = vmatprep.mubr.bf16.mxu0 0
      %10924 = vmatmul.mubr.bf16.gmra.mxu0 %v10848
      %v10925 = vpop.f32.mrf.mxu0
      %v10926 = vadd.f32 0.0, %v10925
      %v10927 = vpop.f32.mrf.mxu0
      %v10928 = vadd.f32 0.0, %v10927
      %v10929 = vpop.f32.mrf.mxu0
      %v10930 = vpop.f32.mrf.mxu0
      %10931 = vdwg.mxu0
      %s10932 = scalar_lea.vmem %s13, 24
      %v10933 = vld [vmem:[%s10932] sm:$0xf]
      %v10934 = vunpack.c.l.bf16 %v10933
      %v10936 = vlaneseq
      %v10937 = vshrl.u32 %v10936, 7
      %v10938 = vsub.s32 0, %v10937
      %v10939 = vrot.slane %v10934, %v10938
      %v10940 = vlaneseq
      %v10941 = vshrl.u32 %v10940, 7
      %v10942 = vsub.s32 2, %v10941
      %v10943 = vrot.slane %v10934, %v10942
      %v10944 = vlaneseq
      %v10945 = vshrl.u32 %v10944, 7
      %v10946 = vsub.s32 4, %v10945
      %v10947 = vrot.slane %v10934, %v10946
      %v10948 = vlaneseq
      %v10949 = vshrl.u32 %v10948, 7
      %v10950 = vsub.s32 6, %v10949
      %v10951 = vrot.slane %v10934, %v10950
      %v10956 = vlaneseq
      %v10957 = vshrl.u32 %v10956, 7
      %v10958 = vsub.s32 0, %v10957
      %v10959 = vrot.slane %v10939, %v10958
      %v10960 = vlaneseq
      %v10961 = vshrl.u32 %v10960, 7
      %v10962 = vsub.s32 0, %v10961
      %v10963 = vrot.slane %v10943, %v10962
      %v10964 = vlaneseq
      %v10965 = vshrl.u32 %v10964, 7
      %v10966 = vsub.s32 0, %v10965
      %v10967 = vrot.slane %v10947, %v10966
      %v10968 = vlaneseq
      %v10969 = vshrl.u32 %v10968, 7
      %v10970 = vsub.s32 0, %v10969
      %v10971 = vrot.slane %v10951, %v10970
      %v10972 = vmul.f32 %v10885, %v10959
      %v10973 = vmul.f32 %v10887, %v10963
      %v10974 = vmul.f32 %v10926, %v10967
      %v10975 = vmul.f32 %v10928, %v10971
      %v10976 = vadd.f32 %v10841, %v10972
      %v10977 = vadd.f32 %v10842, %v10973
      %v10978 = vadd.f32 %v10843, %v10974
      %v10979 = vadd.f32 %v10844, %v10975
      %s10980 = scalar_lea.vmem %s12, 14
      %v10981 = vld [vmem:[%s10980] sm:$0x3]
      %v10983 = vsel %vm10024, %v10981, 0
      %10985 = vmatprep.subr.bf16.mxu0 0
      %10986 = vmatpush1.bf16.msra.mxu0 0
      %10987 = vmatprep.subr.bf16.mxu0 0
      %10988 = vmatpush1.bf16.msra.mxu0 0
      %10989 = vmatprep.subr.bf16.mxu0 0
      %10990 = vmatpush1.bf16.msra.mxu0 0
      %10991 = vmatprep.subr.bf16.mxu0 0
      %10992 = vmatpush1.bf16.msra.mxu0 0
      %10993 = vmatprep.subr.bf16.mxu0 0
      %10994 = vmatpush1.bf16.msra.mxu0 0
      %10995 = vmatprep.subr.bf16.mxu0 0
      %10996 = vmatpush1.bf16.msra.mxu0 0
      %10997 = vmatprep.subr.bf16.mxu0 0
      %10998 = vmatpush1.bf16.msra.mxu0 0
      %10999 = vmatprep.subr.bf16.mxu0 %v10033
      %11000 = vmatpush1.bf16.msra.mxu0 %v10030
      %11001 = vmatprep.subr.bf16.mxu0 0
      %11002 = vmatpush2.bf16.msra.mxu0 0
      %11003 = vmatprep.subr.bf16.mxu0 0
      %11004 = vmatpush2.bf16.msra.mxu0 0
      %11005 = vmatprep.subr.bf16.mxu0 0
      %11006 = vmatpush2.bf16.msra.mxu0 0
      %11007 = vmatprep.subr.bf16.mxu0 0
      %11008 = vmatpush2.bf16.msra.mxu0 0
      %11009 = vmatprep.subr.bf16.mxu0 0
      %11010 = vmatpush2.bf16.msra.mxu0 0
      %11011 = vmatprep.subr.bf16.mxu0 0
      %11012 = vmatpush2.bf16.msra.mxu0 0
      %11013 = vmatprep.subr.bf16.mxu0 0
      %11014 = vmatpush2.bf16.msra.mxu0 0
      %11015 = vmatprep.subr.bf16.mxu0 0
      %11016 = vmatpush2.bf16.msra.mxu0 0
      %11017 = vmatprep.mubr.bf16.mxu0 0
      %11018 = vmatmul.mubr.bf16.gmra.mxu0 %v10983
      %v11019 = vpop.f32.mrf.mxu0
      %v11020 = vadd.f32 0.0, %v11019
      %v11021 = vpop.f32.mrf.mxu0
      %v11022 = vadd.f32 0.0, %v11021
      %v11023 = vpop.f32.mrf.mxu0
      %v11024 = vpop.f32.mrf.mxu0
      %11025 = vdwg.mxu0
      %11026 = vmatprep.subr.bf16.mxu0 0
      %11027 = vmatpush1.bf16.msra.mxu0 0
      %11028 = vmatprep.subr.bf16.mxu0 0
      %11029 = vmatpush1.bf16.msra.mxu0 0
      %11030 = vmatprep.subr.bf16.mxu0 0
      %11031 = vmatpush1.bf16.msra.mxu0 0
      %11032 = vmatprep.subr.bf16.mxu0 0
      %11033 = vmatpush1.bf16.msra.mxu0 0
      %11034 = vmatprep.subr.bf16.mxu0 0
      %11035 = vmatpush1.bf16.msra.mxu0 0
      %11036 = vmatprep.subr.bf16.mxu0 0
      %11037 = vmatpush1.bf16.msra.mxu0 0
      %11038 = vmatprep.subr.bf16.mxu0 0
      %11039 = vmatpush1.bf16.msra.mxu0 0
      %11040 = vmatprep.subr.bf16.mxu0 %v10039
      %11041 = vmatpush1.bf16.msra.mxu0 %v10036
      %11042 = vmatprep.subr.bf16.mxu0 0
      %11043 = vmatpush2.bf16.msra.mxu0 0
      %11044 = vmatprep.subr.bf16.mxu0 0
      %11045 = vmatpush2.bf16.msra.mxu0 0
      %11046 = vmatprep.subr.bf16.mxu0 0
      %11047 = vmatpush2.bf16.msra.mxu0 0
      %11048 = vmatprep.subr.bf16.mxu0 0
      %11049 = vmatpush2.bf16.msra.mxu0 0
      %11050 = vmatprep.subr.bf16.mxu0 0
      %11051 = vmatpush2.bf16.msra.mxu0 0
      %11052 = vmatprep.subr.bf16.mxu0 0
      %11053 = vmatpush2.bf16.msra.mxu0 0
      %11054 = vmatprep.subr.bf16.mxu0 0
      %11055 = vmatpush2.bf16.msra.mxu0 0
      %11056 = vmatprep.subr.bf16.mxu0 0
      %11057 = vmatpush2.bf16.msra.mxu0 0
      %11058 = vmatprep.mubr.bf16.mxu0 0
      %11059 = vmatmul.mubr.bf16.gmra.mxu0 %v10983
      %v11060 = vpop.f32.mrf.mxu0
      %v11061 = vadd.f32 0.0, %v11060
      %v11062 = vpop.f32.mrf.mxu0
      %v11063 = vadd.f32 0.0, %v11062
      %v11064 = vpop.f32.mrf.mxu0
      %v11065 = vpop.f32.mrf.mxu0
      %11066 = vdwg.mxu0
      %s11067 = scalar_lea.vmem %s13, 28
      %v11068 = vld [vmem:[%s11067] sm:$0xf]
      %v11069 = vunpack.c.l.bf16 %v11068
      %v11071 = vlaneseq
      %v11072 = vshrl.u32 %v11071, 7
      %v11073 = vsub.s32 0, %v11072
      %v11074 = vrot.slane %v11069, %v11073
      %v11075 = vlaneseq
      %v11076 = vshrl.u32 %v11075, 7
      %v11077 = vsub.s32 2, %v11076
      %v11078 = vrot.slane %v11069, %v11077
      %v11079 = vlaneseq
      %v11080 = vshrl.u32 %v11079, 7
      %v11081 = vsub.s32 4, %v11080
      %v11082 = vrot.slane %v11069, %v11081
      %v11083 = vlaneseq
      %v11084 = vshrl.u32 %v11083, 7
      %v11085 = vsub.s32 6, %v11084
      %v11086 = vrot.slane %v11069, %v11085
      %v11091 = vlaneseq
      %v11092 = vshrl.u32 %v11091, 7
      %v11093 = vsub.s32 0, %v11092
      %v11094 = vrot.slane %v11074, %v11093
      %v11095 = vlaneseq
      %v11096 = vshrl.u32 %v11095, 7
      %v11097 = vsub.s32 0, %v11096
      %v11098 = vrot.slane %v11078, %v11097
      %v11099 = vlaneseq
      %v11100 = vshrl.u32 %v11099, 7
      %v11101 = vsub.s32 0, %v11100
      %v11102 = vrot.slane %v11082, %v11101
      %v11103 = vlaneseq
      %v11104 = vshrl.u32 %v11103, 7
      %v11105 = vsub.s32 0, %v11104
      %v11106 = vrot.slane %v11086, %v11105
      %v11107 = vmul.f32 %v11020, %v11094
      %v11108 = vmul.f32 %v11022, %v11098
      %v11109 = vmul.f32 %v11061, %v11102
      %v11110 = vmul.f32 %v11063, %v11106
      %v11111 = vadd.f32 %v10976, %v11107
      %v11112 = vadd.f32 %v10977, %v11108
      %v11113 = vadd.f32 %v10978, %v11109
      %v11114 = vadd.f32 %v10979, %v11110
      %s11115 = scalar_lea.vmem %s12, 16
      %v11116 = vld [vmem:[%s11115] sm:$0x3]
      %v11118 = vsel %vm10024, %v11116, 0
      %11120 = vmatprep.subr.bf16.mxu0 0
      %11121 = vmatpush1.bf16.msra.mxu0 0
      %11122 = vmatprep.subr.bf16.mxu0 0
      %11123 = vmatpush1.bf16.msra.mxu0 0
      %11124 = vmatprep.subr.bf16.mxu0 0
      %11125 = vmatpush1.bf16.msra.mxu0 0
      %11126 = vmatprep.subr.bf16.mxu0 0
      %11127 = vmatpush1.bf16.msra.mxu0 0
      %11128 = vmatprep.subr.bf16.mxu0 0
      %11129 = vmatpush1.bf16.msra.mxu0 0
      %11130 = vmatprep.subr.bf16.mxu0 0
      %11131 = vmatpush1.bf16.msra.mxu0 0
      %11132 = vmatprep.subr.bf16.mxu0 0
      %11133 = vmatpush1.bf16.msra.mxu0 0
      %11134 = vmatprep.subr.bf16.mxu0 %v10033
      %11135 = vmatpush1.bf16.msra.mxu0 %v10030
      %11136 = vmatprep.subr.bf16.mxu0 0
      %11137 = vmatpush2.bf16.msra.mxu0 0
      %11138 = vmatprep.subr.bf16.mxu0 0
      %11139 = vmatpush2.bf16.msra.mxu0 0
      %11140 = vmatprep.subr.bf16.mxu0 0
      %11141 = vmatpush2.bf16.msra.mxu0 0
      %11142 = vmatprep.subr.bf16.mxu0 0
      %11143 = vmatpush2.bf16.msra.mxu0 0
      %11144 = vmatprep.subr.bf16.mxu0 0
      %11145 = vmatpush2.bf16.msra.mxu0 0
      %11146 = vmatprep.subr.bf16.mxu0 0
      %11147 = vmatpush2.bf16.msra.mxu0 0
      %11148 = vmatprep.subr.bf16.mxu0 0
      %11149 = vmatpush2.bf16.msra.mxu0 0
      %11150 = vmatprep.subr.bf16.mxu0 0
      %11151 = vmatpush2.bf16.msra.mxu0 0
      %11152 = vmatprep.mubr.bf16.mxu0 0
      %11153 = vmatmul.mubr.bf16.gmra.mxu0 %v11118
      %v11154 = vpop.f32.mrf.mxu0
      %v11155 = vadd.f32 0.0, %v11154
      %v11156 = vpop.f32.mrf.mxu0
      %v11157 = vadd.f32 0.0, %v11156
      %v11158 = vpop.f32.mrf.mxu0
      %v11159 = vpop.f32.mrf.mxu0
      %11160 = vdwg.mxu0
      %11161 = vmatprep.subr.bf16.mxu0 0
      %11162 = vmatpush1.bf16.msra.mxu0 0
      %11163 = vmatprep.subr.bf16.mxu0 0
      %11164 = vmatpush1.bf16.msra.mxu0 0
      %11165 = vmatprep.subr.bf16.mxu0 0
      %11166 = vmatpush1.bf16.msra.mxu0 0
      %11167 = vmatprep.subr.bf16.mxu0 0
      %11168 = vmatpush1.bf16.msra.mxu0 0
      %11169 = vmatprep.subr.bf16.mxu0 0
      %11170 = vmatpush1.bf16.msra.mxu0 0
      %11171 = vmatprep.subr.bf16.mxu0 0
      %11172 = vmatpush1.bf16.msra.mxu0 0
      %11173 = vmatprep.subr.bf16.mxu0 0
      %11174 = vmatpush1.bf16.msra.mxu0 0
      %11175 = vmatprep.subr.bf16.mxu0 %v10039
      %11176 = vmatpush1.bf16.msra.mxu0 %v10036
      %11177 = vmatprep.subr.bf16.mxu0 0
      %11178 = vmatpush2.bf16.msra.mxu0 0
      %11179 = vmatprep.subr.bf16.mxu0 0
      %11180 = vmatpush2.bf16.msra.mxu0 0
      %11181 = vmatprep.subr.bf16.mxu0 0
      %11182 = vmatpush2.bf16.msra.mxu0 0
      %11183 = vmatprep.subr.bf16.mxu0 0
      %11184 = vmatpush2.bf16.msra.mxu0 0
      %11185 = vmatprep.subr.bf16.mxu0 0
      %11186 = vmatpush2.bf16.msra.mxu0 0
      %11187 = vmatprep.subr.bf16.mxu0 0
      %11188 = vmatpush2.bf16.msra.mxu0 0
      %11189 = vmatprep.subr.bf16.mxu0 0
      %11190 = vmatpush2.bf16.msra.mxu0 0
      %11191 = vmatprep.subr.bf16.mxu0 0
      %11192 = vmatpush2.bf16.msra.mxu0 0
      %11193 = vmatprep.mubr.bf16.mxu0 0
      %11194 = vmatmul.mubr.bf16.gmra.mxu0 %v11118
      %v11195 = vpop.f32.mrf.mxu0
      %v11196 = vadd.f32 0.0, %v11195
      %v11197 = vpop.f32.mrf.mxu0
      %v11198 = vadd.f32 0.0, %v11197
      %v11199 = vpop.f32.mrf.mxu0
      %v11200 = vpop.f32.mrf.mxu0
      %11201 = vdwg.mxu0
      %s11202 = scalar_lea.vmem %s13, 32
      %v11203 = vld [vmem:[%s11202] sm:$0xf]
      %v11204 = vunpack.c.l.bf16 %v11203
      %v11206 = vlaneseq
      %v11207 = vshrl.u32 %v11206, 7
      %v11208 = vsub.s32 0, %v11207
      %v11209 = vrot.slane %v11204, %v11208
      %v11210 = vlaneseq
      %v11211 = vshrl.u32 %v11210, 7
      %v11212 = vsub.s32 2, %v11211
      %v11213 = vrot.slane %v11204, %v11212
      %v11214 = vlaneseq
      %v11215 = vshrl.u32 %v11214, 7
      %v11216 = vsub.s32 4, %v11215
      %v11217 = vrot.slane %v11204, %v11216
      %v11218 = vlaneseq
      %v11219 = vshrl.u32 %v11218, 7
      %v11220 = vsub.s32 6, %v11219
      %v11221 = vrot.slane %v11204, %v11220
      %v11226 = vlaneseq
      %v11227 = vshrl.u32 %v11226, 7
      %v11228 = vsub.s32 0, %v11227
      %v11229 = vrot.slane %v11209, %v11228
      %v11230 = vlaneseq
      %v11231 = vshrl.u32 %v11230, 7
      %v11232 = vsub.s32 0, %v11231
      %v11233 = vrot.slane %v11213, %v11232
      %v11234 = vlaneseq
      %v11235 = vshrl.u32 %v11234, 7
      %v11236 = vsub.s32 0, %v11235
      %v11237 = vrot.slane %v11217, %v11236
      %v11238 = vlaneseq
      %v11239 = vshrl.u32 %v11238, 7
      %v11240 = vsub.s32 0, %v11239
      %v11241 = vrot.slane %v11221, %v11240
      %v11242 = vmul.f32 %v11155, %v11229
      %v11243 = vmul.f32 %v11157, %v11233
      %v11244 = vmul.f32 %v11196, %v11237
      %v11245 = vmul.f32 %v11198, %v11241
      %v11246 = vadd.f32 %v11111, %v11242
      %v11247 = vadd.f32 %v11112, %v11243
      %v11248 = vadd.f32 %v11113, %v11244
      %v11249 = vadd.f32 %v11114, %v11245
      %v11250 = vsel %vm668, %v11246, 0.0
      %v11251 = vsel %vm668, %v11247, 0.0
      %v11252 = vadd.f32 %v11250, %v11251
      %v11253 = vsel %vm668, %v11248, 0.0
      %v11254 = vadd.f32 %v11252, %v11253
      %v11255 = vsel %vm668, %v11249, 0.0
      %v11256 = vadd.f32 %v11254, %v11255
      %11257 = vadd.xlane.f32.xlu0 %v11256
      %v11258 = vpop.xlane.xlu0 %11257
      %s11259 = sld [smem:[#allocation2]]
      %v11260 = vstv %s11259
      %v11261 = vadd.f32 %v11258, %v11260
      %vm11262 = vcmask 3072
      %v11263 = vsel %vm11262, %v11261, 0.0
      %11264 = vadd.xlane.f32.xlu0 %v11263
      %v11265 = vpop.xlane.xlu0 %11264
      %v11266 = vrot.slane %v11265, 4
      %v11267 = vadd.f32 %v11265, %v11266
      %v11268 = vrot.slane %v11267, 2
      %v11269 = vadd.f32 %v11267, %v11268
      %v11270 = vrot.slane %v11269, 1
      %v11271 = vadd.f32 %v11269, %v11270
      %s11272 = vtos %v11271
      %s11273 = smul.f32 %s11272, 0.25
      %v11274 = vstv %s11273
      %11275 = vst [vmem:[%s491] sm:$0x1] %v11274
      %p11276 = scmp.lt.s32.totalorder %s27, 1
      %s11277 = scalar_select %p11276, %s27, 1
      %s11278 = scalar_lea.vmem %s15, %s11277
      // Predicated region
      $region81: #{discriminator_forward.1} parent=79 // pred_check
        %p11279 = pneg %p365
      $region82: #{discriminator_forward.1} parent=79 // pred_check_branch
        %11281 = sbr.rel (%p11279) target = $region84
      $region83: #{discriminator_forward.1} parent=79 // pred_region
        _
      $region84: #{discriminator_forward.1} parent=79 // pred_fallthru
        _
    $region80: #{discriminator_forward.1} parent=5 // pred_fallthru
      _
    %p11282 = scmp.le.s32.totalorder 2, %s22
    // Predicated region
    $region85: #{discriminator_forward.1} parent=5 // pred_check
      %p11283 = pneg %p11282
    $region86: #{discriminator_forward.1} parent=5 // pred_check_branch
      %11285 = sbr.rel (%p11283) target = $region88
    $region87: #{discriminator_forward.1} parent=5 // pred_region
      %s11286 = ssub.s32 %s22, 2
      // Predicated region
      $region89: #{discriminator_forward.1} parent=87 // pred_check
        %p11287 = pneg %p371
      $region90: #{discriminator_forward.1} parent=87 // pred_check_branch
        %11289 = sbr.rel (%p11287) target = $region92
      $region91: #{discriminator_forward.1} parent=87 // pred_region
        %p11290 = scmp.lt.s32.totalorder %s28, 1
        %s11291 = scalar_select %p11290, %s28, 1
        %s11292 = scalar_lea.vmem %s15, %s11291
      $region92: #{discriminator_forward.1} parent=87 // pred_fallthru
        _
    $region88: #{discriminator_forward.1} parent=5 // pred_fallthru
      _
  $region6: #{discriminator_forward.1} parent=0 // loop_footer
    %s26 = sadd.s32 1, %s22
  $region7: #{discriminator_forward.1} parent=0 // loop_footer_branch
    %21 = sbr.rel target = $region3
  $region8: #{discriminator_forward.1} parent=0 // loop_exit
    _

</llo_original>
